<compile_context>
chip_gen: v7x
topology: tpu7x:2x2x1
jax: 0.10.0
libtpu: 0.0.40
codegen_flags: <defaults>
</compile_context>

<pallas_src>
import functools

import jax
import jax.numpy as jnp
from jax.experimental import pallas as pl
from jax.experimental.pallas import tpu as pltpu


# ------------------------------ helpers ------------------------------------

_SINGLE_BUFFER_CONSTS = True  # single-buffer revisited constant blocks


def _row_tile(n, cap=512):
    """Largest row tile (power-of-two multiple of 8, <= cap) dividing n."""
    t = cap
    while t >= 8:
        if n % t == 0:
            return t
        t //= 2
    return n


def _col_tile(n, cap=512):
    """Largest multiple-of-128 tile (<= cap) dividing n; else n (full dim)."""
    t = cap
    while t >= 128:
        if n % t == 0:
            return t
        t //= 2
    return n


def _nbytes(shape, dtype):
    n = 1
    for s in shape:
        n *= int(s)
    return n * jnp.dtype(dtype).itemsize


def _compiler_params(dims, block_bytes):
    """dimension_semantics + explicit VMEM limit from actual block sizes."""
    # 2x covers double-buffering of pipelined blocks; floor at the default
    # scoped limit, cap to leave headroom under v7x's 64 MiB physical VMEM.
    limit = int(min(max(2 * block_bytes + (4 << 20), 32 << 20), 56 << 20))
    return pltpu.CompilerParams(dimension_semantics=dims,
                                vmem_limit_bytes=limit)


def _const_spec(block_shape):
    """BlockSpec for a block whose index is identical at every grid step."""
    index_map = lambda *_: (0,) * len(block_shape)
    if _SINGLE_BUFFER_CONSTS:
        try:
            return pl.BlockSpec(block_shape, index_map,
                                pipeline_mode=pl.Buffered(1))
        except TypeError:  # jax without pipeline_mode on BlockSpec
            pass
    return pl.BlockSpec(block_shape, index_map)


def _prep_bias(bias, tq, tk):
    """Collapse a broadcastable attention bias to a single (tq, tk) f32 mask."""
    if bias is None:
        return None
    b = jnp.asarray(bias, jnp.float32)
    # TODO(synk): only biases broadcastable over batch & heads are supported
    # (shapes like (1,1,Tq,Tk) or (1,1,1,Tk)), which is what T2T uses.
    b = b.reshape(b.shape[-2], b.shape[-1])
    return jnp.broadcast_to(b, (tq, tk))


# ----------------------- fused LayerNorm + projections ----------------------

def _proj_kernel(*refs, n_proj, apply_ln):
    if apply_ln:
        x_ref, g_ref, b_ref = refs[0], refs[1], refs[2]
        base = 3
    else:
        x_ref = refs[0]
        base = 1
    out_refs = refs[base + 2 * n_proj:]

    x = x_ref[...].astype(jnp.float32)
    if apply_ln:
        mean = jnp.mean(x, axis=-1, keepdims=True)
        var = jnp.mean(jnp.square(x - mean), axis=-1, keepdims=True)
        x = (x - mean) * jax.lax.rsqrt(var + 1e-5)
        x = x * g_ref[...].astype(jnp.float32) + b_ref[...].astype(jnp.float32)

    xb = x.astype(jnp.bfloat16)                      # bf16 operands for the MXU
    for p_idx in range(n_proj):
        w_ref = refs[base + 2 * p_idx]               # stored bf16
        bias_ref = refs[base + 2 * p_idx + 1]
        acc = jnp.dot(xb, w_ref[...], preferred_element_type=jnp.float32)
        out_refs[p_idx][...] = (acc + bias_ref[...].astype(jnp.float32)
                                ).astype(out_refs[p_idx].dtype)


def fused_projections(x2d, weights_and_biases, ln=None, out_dtype=None):
    """Optionally LayerNorm x2d, then apply one or more (W, b) projections.

    x2d: (N, Din); weights_and_biases: list of (W: (Din, Dout), b: (1, Dout)).
    Returns a list of (N, Dout_i) arrays of dtype `out_dtype` (default x2d.dtype).
    """
    n, din = x2d.shape
    tile_n = _row_tile(n)
    n_proj = len(weights_and_biases)
    apply_ln = ln is not None
    out_dtype = out_dtype or x2d.dtype

    inputs = [x2d]
    in_specs = [pl.BlockSpec((tile_n, din), lambda i: (i, 0))]
    vmem = _nbytes((tile_n, din), x2d.dtype)
    if apply_ln:
        inputs += [ln[0], ln[1]]
        in_specs += [_const_spec((1, din)), _const_spec((1, din))]
        vmem += 2 * _nbytes((1, din), jnp.float32)

    out_shapes, out_specs = [], []
    for w, b in weights_and_biases:
        dout = w.shape[1]
        inputs += [w, b]
        in_specs += [_const_spec(w.shape), _const_spec((1, dout))]
        out_shapes.append(jax.ShapeDtypeStruct((n, dout), out_dtype))
        out_specs.append(pl.BlockSpec((tile_n, dout), lambda i: (i, 0)))
        vmem += (_nbytes(w.shape, w.dtype) + _nbytes((1, dout), b.dtype)
                 + _nbytes((tile_n, dout), out_dtype))

    kernel = functools.partial(_proj_kernel, n_proj=n_proj, apply_ln=apply_ln)
    outs = pl.pallas_call(
        kernel,
        out_shape=tuple(out_shapes),
        grid=(n // tile_n,),
        in_specs=in_specs,
        out_specs=tuple(out_specs),
        compiler_params=_compiler_params(("parallel",), vmem),
    )(*inputs)
    if not isinstance(outs, (tuple, list)):
        outs = (outs,)
    return list(outs)


# -------------- fused attention + output projection + residual --------------

def _attn_kernel(*refs, n_heads, scale, has_bias):
    if has_bias:
        (q_ref, k_ref, v_ref, bias_ref, wo_ref, bo_ref, res_ref,
         out_ref, w_ref) = refs
    else:
        (q_ref, k_ref, v_ref, wo_ref, bo_ref, res_ref, out_ref, w_ref) = refs
        bias_ref = None

    # q: (nH, tq, dh)   k, v: (nH, Tk, dh)   -- head-major, dh on lanes.
    q = (q_ref[0].astype(jnp.float32) * scale).astype(jnp.bfloat16)
    k = k_ref[0].astype(jnp.bfloat16)
    v = v_ref[0].astype(jnp.bfloat16)

    # QK^T for all heads in one batched dot_general -> (nH, tq, Tk), f32 accum.
    logits = jax.lax.dot_general(q, k, (((2,), (2,)), ((0,), (0,))),
                                 preferred_element_type=jnp.float32)
    if has_bias:
        logits = logits + bias_ref[...][None, :, :]
    logits = logits - jnp.max(logits, axis=-1, keepdims=True)
    p = jnp.exp(logits)
    p = p * pl.reciprocal(jnp.sum(p, axis=-1, keepdims=True), approx=True)
    w_ref[0] = p.astype(w_ref.dtype)

    # PV for all heads -> (nH, tq, dh), f32 accum.
    ctx = jax.lax.dot_general(p.astype(jnp.bfloat16), v,
                              (((2,), (1,)), ((0,), (0,))),
                              preferred_element_type=jnp.float32)

    # Output projection + bias + residual. Heads are indexed on the *leading*
    # dim of ctx / Wo (no lane slicing, no in-kernel relayouts); f32 accum.
    acc = res_ref[0].astype(jnp.float32) + bo_ref[...].astype(jnp.float32)
    for h in range(n_heads):
        acc = acc + jnp.dot(ctx[h].astype(jnp.bfloat16), wo_ref[h],
                            preferred_element_type=jnp.float32)
    out_ref[0] = acc.astype(out_ref.dtype)


def attention_block(q2d, k2d, v2d, bias2d, wo, bo, residual, n_heads,
                    weights_dtype=jnp.float32):
    """Multi-head attention + output projection + residual add.

    q2d: (B*Tq, H); k2d/v2d: (B*Tk, H); bias2d: (Tq, Tk) f32 or None;
    residual: (B, Tq, H).  Returns (out (B, Tq, H), weights (B, nH, Tq, Tk)).
    """
    B, Tq, H = residual.shape
    Tk = k2d.shape[0] // B
    dh = H // n_heads
    scale = 1.0 / float(dh) ** 0.5
    has_bias = bias2d is not None

    # Head-major layout (dh on lanes) done once by XLA, outside the kernels.
    qh = q2d.reshape(B, Tq, n_heads, dh).transpose(0, 2, 1, 3)
    kh = k2d.reshape(B, Tk, n_heads, dh).transpose(0, 2, 1, 3)
    vh = v2d.reshape(B, Tk, n_heads, dh).transpose(0, 2, 1, 3)
    wo3 = wo.reshape(n_heads, dh, H)

    tq = _row_tile(Tq, cap=256)

    inputs = [qh, kh, vh]
    in_specs = [pl.BlockSpec((1, n_heads, tq, dh), lambda b, i: (b, 0, i, 0)),
                pl.BlockSpec((1, n_heads, Tk, dh), lambda b, i: (b, 0, 0, 0)),
                pl.BlockSpec((1, n_heads, Tk, dh), lambda b, i: (b, 0, 0, 0))]
    vmem = (_nbytes((n_heads, tq, dh), qh.dtype)
            + 2 * _nbytes((n_heads, Tk, dh), kh.dtype))
    if has_bias:
        inputs.append(bias2d)
        in_specs.append(pl.BlockSpec((tq, Tk), lambda b, i: (i, 0)))
        vmem += _nbytes((tq, Tk), jnp.float32)
    inputs += [wo3, bo, residual]
    in_specs += [_const_spec((n_heads, dh, H)),
                 _const_spec((1, H)),
                 pl.BlockSpec((1, tq, H), lambda b, i: (b, i, 0))]
    vmem += (_nbytes((n_heads, dh, H), wo3.dtype)
             + _nbytes((1, H), bo.dtype)
             + 2 * _nbytes((tq, H), residual.dtype)               # res + out
             + _nbytes((n_heads, tq, Tk), weights_dtype)
             + 3 * _nbytes((n_heads, tq, Tk), jnp.float32))       # logits / p

    kernel = functools.partial(_attn_kernel, n_heads=n_heads, scale=scale,
                               has_bias=has_bias)
    out, weights = pl.pallas_call(
        kernel,
        out_shape=(jax.ShapeDtypeStruct((B, Tq, H), residual.dtype),
                   jax.ShapeDtypeStruct((B, n_heads, Tq, Tk), weights_dtype)),
        grid=(B, Tq // tq),
        in_specs=in_specs,
        out_specs=(pl.BlockSpec((1, tq, H), lambda b, i: (b, i, 0)),
                   pl.BlockSpec((1, n_heads, tq, Tk),
                                lambda b, i: (b, 0, i, 0))),
        compiler_params=_compiler_params(("parallel", "parallel"), vmem),
    )(*inputs)
    return out, weights


# -------------- fused LayerNorm + FFN + residual (filter-tiled) -------------

def _ln_ffn_res_kernel(x_ref, g_ref, b_ref, w1_ref, b1_ref, w2_ref, b2_ref,
                       o_ref, y_sc, acc_sc):
    j = pl.program_id(1)

    @pl.when(j == 0)
    def _():
        x = x_ref[...].astype(jnp.float32)
        mean = jnp.mean(x, axis=-1, keepdims=True)
        var = jnp.mean(jnp.square(x - mean), axis=-1, keepdims=True)
        y = (x - mean) * jax.lax.rsqrt(var + 1e-5)
        y = y * g_ref[...].astype(jnp.float32) + b_ref[...].astype(jnp.float32)
        y_sc[...] = y.astype(y_sc.dtype)             # bf16 staging for the MXU
        acc_sc[...] = jnp.zeros_like(acc_sc)

    h = jnp.dot(y_sc[...], w1_ref[...], preferred_element_type=jnp.float32)
    h = jnp.maximum(h + b1_ref[...].astype(jnp.float32), 0.0)   # ReLU
    acc_sc[...] += jnp.dot(h.astype(jnp.bfloat16), w2_ref[...],
                           preferred_element_type=jnp.float32)

    @pl.when(j == pl.num_programs(1) - 1)
    def _():
        out = (acc_sc[...] + b2_ref[...].astype(jnp.float32)
               + x_ref[...].astype(jnp.float32))      # residual uses pre-LN x
        o_ref[...] = out.astype(o_ref.dtype)


def ln_ffn_residual(x2d, g, b, w1, b1, w2, b2):
    n, h = x2d.shape
    f = w1.shape[1]
    tile_n = _row_tile(n)
    tile_f = _col_tile(f)

    vmem = (2 * _nbytes((tile_n, h), x2d.dtype)
            + 3 * _nbytes((1, h), jnp.float32)
            + _nbytes((h, tile_f), w1.dtype) + _nbytes((1, tile_f), jnp.float32)
            + _nbytes((tile_f, h), w2.dtype)
            + _nbytes((tile_n, h), jnp.bfloat16)       # y_sc scratch
            + _nbytes((tile_n, h), jnp.float32)        # acc_sc scratch
            + _nbytes((tile_n, tile_f), jnp.float32))  # relu intermediate

    return pl.pallas_call(
        _ln_ffn_res_kernel,
        out_shape=jax.ShapeDtypeStruct((n, h), x2d.dtype),
        grid=(n // tile_n, f // tile_f),
        in_specs=[pl.BlockSpec((tile_n, h), lambda i, j: (i, 0)),
                  _const_spec((1, h)),
                  _const_spec((1, h)),
                  pl.BlockSpec((h, tile_f), lambda i, j: (0, j)),
                  pl.BlockSpec((1, tile_f), lambda i, j: (0, j)),
                  pl.BlockSpec((tile_f, h), lambda i, j: (j, 0)),
                  _const_spec((1, h))],
        out_specs=pl.BlockSpec((tile_n, h), lambda i, j: (i, 0)),
        scratch_shapes=[pltpu.VMEM((tile_n, h), jnp.bfloat16),
                        pltpu.VMEM((tile_n, h), jnp.float32)],
        compiler_params=_compiler_params(("parallel", "arbitrary"), vmem),
    )(x2d, g, b, w1, b1, w2, b2)


# ------------------------------ final LayerNorm -----------------------------

def _layernorm_kernel(x_ref, g_ref, b_ref, o_ref):
    x = x_ref[...].astype(jnp.float32)
    mean = jnp.mean(x, axis=-1, keepdims=True)
    var = jnp.mean(jnp.square(x - mean), axis=-1, keepdims=True)
    y = (x - mean) * jax.lax.rsqrt(var + 1e-5)
    o_ref[...] = (y * g_ref[...].astype(jnp.float32)
                  + b_ref[...].astype(jnp.float32)).astype(o_ref.dtype)


def layernorm(x2d, gamma, beta):
    n, h = x2d.shape
    tile_n = _row_tile(n)
    vmem = 2 * _nbytes((tile_n, h), x2d.dtype) + 2 * _nbytes((1, h), jnp.float32)
    return pl.pallas_call(
        _layernorm_kernel,
        out_shape=jax.ShapeDtypeStruct((n, h), x2d.dtype),
        grid=(n // tile_n,),
        in_specs=[pl.BlockSpec((tile_n, h), lambda i: (i, 0)),
                  _const_spec((1, h)),
                  _const_spec((1, h))],
        out_specs=pl.BlockSpec((tile_n, h), lambda i: (i, 0)),
        compiler_params=_compiler_params(("parallel",), vmem),
    )(x2d, gamma, beta)


# --------------------------- model glue (plain JAX) -------------------------

def decoder_layer_forward(lp, x, memory, self_bias, memory_bias, n_heads,
                          weights_dtype=jnp.float32):
    B, T, H = x.shape
    Tm = memory.shape[1]

    # --- self-attention block: LN+QKV fused; attention+Wo+residual fused ---
    sa = lp["self_att"]
    q, k, v = fused_projections(
        x.reshape(-1, H),
        [(sa["wq"], sa["bq"]), (sa["wk"], sa["bk"]), (sa["wv"], sa["bv"])],
        ln=(lp["ln_self_g"], lp["ln_self_b"]), out_dtype=jnp.bfloat16)
    x, w_self = attention_block(q, k, v, _prep_bias(self_bias, T, T),
                                sa["wo"], sa["bo"], x, n_heads,
                                weights_dtype=weights_dtype)

    # --- cross-attention block ---
    ca = lp["cross_att"]
    (q,) = fused_projections(x.reshape(-1, H), [(ca["wq"], ca["bq"])],
                             ln=(lp["ln_cross_g"], lp["ln_cross_b"]),
                             out_dtype=jnp.bfloat16)
    k, v = fused_projections(memory.reshape(-1, H),
                             [(ca["wk"], ca["bk"]), (ca["wv"], ca["bv"])],
                             ln=None, out_dtype=jnp.bfloat16)
    x, w_cross = attention_block(q, k, v, _prep_bias(memory_bias, T, Tm),
                                 ca["wo"], ca["bo"], x, n_heads,
                                 weights_dtype=weights_dtype)

    # --- feed-forward block: LN + FFN + residual fused, filter-tiled ---
    x = ln_ffn_residual(x.reshape(-1, H), lp["ln_ffn_g"], lp["ln_ffn_b"],
                        lp["ffn_w1"], lp["ffn_b1"],
                        lp["ffn_w2"], lp["ffn_b2"]).reshape(B, T, H)
    return x, (w_self, w_cross)


def decoder_forward(params, x, memory, self_bias, memory_bias, n_heads,
                    weights_dtype=jnp.float32):
    self_list, cross_list = [], []
    for lp in params["layers"]:
        x, (w_self, w_cross) = decoder_layer_forward(
            lp, x, memory, self_bias, memory_bias, n_heads,
            weights_dtype=weights_dtype)
        self_list.append(w_self)
        cross_list.append(w_cross)
    B, T, H = x.shape
    x = layernorm(x.reshape(-1, H), params["ln_out_g"],
                  params["ln_out_b"]).reshape(B, T, H)
    return x, (self_list, cross_list)


# ------------------------------ parameter init ------------------------------

def init_params(key, n_layers, hidden_dim, n_heads, filter_size):
    def dense(k, din, dout):
        k1, k2 = jax.random.split(k)
        # Matmul weights stored bf16 (native MXU operand dtype, halves weight
        # HBM/DMA bytes); biases and LN parameters stay f32.
        w = (jax.random.normal(k1, (din, dout), jnp.float32) * 0.02
             ).astype(jnp.bfloat16)
        b = jax.random.normal(k2, (1, dout), jnp.float32) * 0.02
        return w, b

    layers = []
    for _ in range(n_layers):
        key, *ks = jax.random.split(key, 7)
        wq, bq = dense(ks[0], hidden_dim, hidden_dim)
        wk, bk = dense(ks[1], hidden_dim, hidden_dim)
        wv, bv = dense(ks[2], hidden_dim, hidden_dim)
        wo, bo = dense(ks[3], hidden_dim, hidden_dim)
        self_att = dict(wq=wq, bq=bq, wk=wk, bk=bk, wv=wv, bv=bv, wo=wo, bo=bo)
        key, *ks = jax.random.split(key, 7)
        wq, bq = dense(ks[0], hidden_dim, hidden_dim)
        wk, bk = dense(ks[1], hidden_dim, hidden_dim)
        wv, bv = dense(ks[2], hidden_dim, hidden_dim)
        wo, bo = dense(ks[3], hidden_dim, hidden_dim)
        cross_att = dict(wq=wq, bq=bq, wk=wk, bk=bk, wv=wv, bv=bv, wo=wo, bo=bo)
        key, k1, k2 = jax.random.split(key, 3)
        ffn_w1, ffn_b1 = dense(k1, hidden_dim, filter_size)
        ffn_w2, ffn_b2 = dense(k2, filter_size, hidden_dim)
        layers.append(dict(
            ln_self_g=jnp.ones((1, hidden_dim), jnp.float32),
            ln_self_b=jnp.zeros((1, hidden_dim), jnp.float32),
            ln_cross_g=jnp.ones((1, hidden_dim), jnp.float32),
            ln_cross_b=jnp.zeros((1, hidden_dim), jnp.float32),
            ln_ffn_g=jnp.ones((1, hidden_dim), jnp.float32),
            ln_ffn_b=jnp.zeros((1, hidden_dim), jnp.float32),
            self_att=self_att, cross_att=cross_att,
            ffn_w1=ffn_w1, ffn_b1=ffn_b1, ffn_w2=ffn_w2, ffn_b2=ffn_b2,
        ))
    return dict(
        layers=layers,
        ln_out_g=jnp.ones((1, hidden_dim), jnp.float32),
        ln_out_b=jnp.zeros((1, hidden_dim), jnp.float32),
    )


# ----------------------------------- main -----------------------------------

if __name__ == "__main__":
    n_layers, hidden_dim, n_heads, filter_size = 2, 32, 4, 64
    B, T_dec, T_mem = 2, 8, 8

    key = jax.random.PRNGKey(0)
    kx, kmem, kp = jax.random.split(key, 3)
    x = jax.random.normal(kx, (B, T_dec, hidden_dim), jnp.float32)
    memory = jax.random.normal(kmem, (B, T_mem, hidden_dim), jnp.float32)

    # causal self-attention bias (1, 1, Tq, Tq): 0 on/below diag, -1e9 above
    causal = jnp.tril(jnp.ones((T_dec, T_dec), jnp.float32))
    self_bias = ((1.0 - causal) * -1e9).reshape(1, 1, T_dec, T_dec)
    # memory (padding) bias: all positions visible
    memory_bias = jnp.zeros((1, 1, 1, T_mem), jnp.float32)

    params = init_params(kp, n_layers, hidden_dim, n_heads, filter_size)

    fwd = jax.jit(functools.partial(decoder_forward, n_heads=n_heads))
    try:
        out, (self_w, cross_w) = fwd(params, x, memory, self_bias, memory_bias)
    except Exception:
        # Fallback: this jax build rejects pl.Buffered(1) on pallas_call specs.
        _SINGLE_BUFFER_CONSTS = False
        fwd = jax.jit(functools.partial(decoder_forward, n_heads=n_heads))
        out, (self_w, cross_w) = fwd(params, x, memory, self_bias, memory_bias)

    jax.block_until_ready(out)
    jax.block_until_ready(self_w[-1])
    jax.block_until_ready(cross_w[-1])

    assert out.shape == (B, T_dec, hidden_dim)
    assert self_w[0].shape == (B, n_heads, T_dec, T_dec)
    assert cross_w[0].shape == (B, n_heads, T_dec, T_mem)
    print("KERNEL_OK")
</pallas_src>

<mosaic_0001>
module attributes {stable_mosaic.version = 11 : i64} {
  func.func @_proj_kernel(%arg0: i32, %arg1: memref<16x32xf32, #tpu.memory_space<vmem>>, %arg2: memref<32x32xbf16, #tpu.memory_space<vmem>>, %arg3: memref<1x32xf32, #tpu.memory_space<vmem>>, %arg4: memref<32x32xbf16, #tpu.memory_space<vmem>>, %arg5: memref<1x32xf32, #tpu.memory_space<vmem>>, %arg6: memref<16x32xbf16, #tpu.memory_space<vmem>>, %arg7: memref<16x32xbf16, #tpu.memory_space<vmem>>) attributes {dimension_semantics = [#tpu.dimension_semantics<parallel>], iteration_bounds = array<i64: 1>, scalar_prefetch = 0 : i64, scratch_operands = 0 : i64, tpu.core_type = #tpu.core_type<tc>, window_params = [{transform_indices = @transform_0, window_bounds = array<i64: 16, 32>}, {pipeline_mode = #tpu.pipeline_mode<synchronous>, transform_indices = @transform_1, window_bounds = array<i64: 32, 32>}, {pipeline_mode = #tpu.pipeline_mode<synchronous>, transform_indices = @transform_2, window_bounds = array<i64: 1, 32>}, {pipeline_mode = #tpu.pipeline_mode<synchronous>, transform_indices = @transform_3, window_bounds = array<i64: 32, 32>}, {pipeline_mode = #tpu.pipeline_mode<synchronous>, transform_indices = @transform_4, window_bounds = array<i64: 1, 32>}, {transform_indices = @transform_5, window_bounds = array<i64: 16, 32>}, {transform_indices = @transform_6, window_bounds = array<i64: 16, 32>}]} {
    %c0 = arith.constant 0 : index
    %c0_0 = arith.constant 0 : index
    %0 = vector.load %arg1[%c0, %c0_0] : memref<16x32xf32, #tpu.memory_space<vmem>>, vector<16x32xf32>
    %1 = arith.truncf %0 : vector<16x32xf32> to vector<16x32xbf16>
    %c0_1 = arith.constant 0 : index
    %c0_2 = arith.constant 0 : index
    %2 = vector.load %arg2[%c0_1, %c0_2] : memref<32x32xbf16, #tpu.memory_space<vmem>>, vector<32x32xbf16>
    %cst = arith.constant dense<0.000000e+00> : vector<16x32xf32>
    %3 = tpu.matmul %1, %2, %cst {dimension_numbers = #tpu.dot_dimension_numbers<[1], [0], [0], [1], [0, 0, 1, 1], [], []>} : vector<16x32xbf16>, vector<32x32xbf16>, vector<16x32xf32> -> vector<16x32xf32>
    %c0_3 = arith.constant 0 : index
    %c0_4 = arith.constant 0 : index
    %4 = vector.load %arg3[%c0_3, %c0_4] : memref<1x32xf32, #tpu.memory_space<vmem>>, vector<1x32xf32>
    %5 = vector.broadcast %4 : vector<1x32xf32> to vector<16x32xf32>
    %6 = arith.addf %3, %5 : vector<16x32xf32>
    %7 = arith.truncf %6 : vector<16x32xf32> to vector<16x32xbf16>
    %c0_5 = arith.constant 0 : index
    %c0_6 = arith.constant 0 : index
    %8 = vector.load %arg6[%c0_5, %c0_6] : memref<16x32xbf16, #tpu.memory_space<vmem>>, vector<16x32xbf16>
    tpu.vector_store %arg6[%c0_5, %c0_6], %7 {strides = array<i32>} : memref<16x32xbf16, #tpu.memory_space<vmem>>, vector<16x32xbf16>,
    %c0_7 = arith.constant 0 : index
    %c0_8 = arith.constant 0 : index
    %9 = vector.load %arg4[%c0_7, %c0_8] : memref<32x32xbf16, #tpu.memory_space<vmem>>, vector<32x32xbf16>
    %cst_9 = arith.constant dense<0.000000e+00> : vector<16x32xf32>
    %10 = tpu.matmul %1, %9, %cst_9 {dimension_numbers = #tpu.dot_dimension_numbers<[1], [0], [0], [1], [0, 0, 1, 1], [], []>} : vector<16x32xbf16>, vector<32x32xbf16>, vector<16x32xf32> -> vector<16x32xf32>
    %c0_10 = arith.constant 0 : index
    %c0_11 = arith.constant 0 : index
    %11 = vector.load %arg5[%c0_10, %c0_11] : memref<1x32xf32, #tpu.memory_space<vmem>>, vector<1x32xf32>
    %12 = vector.broadcast %11 : vector<1x32xf32> to vector<16x32xf32>
    %13 = arith.addf %10, %12 : vector<16x32xf32>
    %14 = arith.truncf %13 : vector<16x32xf32> to vector<16x32xbf16>
    %c0_12 = arith.constant 0 : index
    %c0_13 = arith.constant 0 : index
    %15 = vector.load %arg7[%c0_12, %c0_13] : memref<16x32xbf16, #tpu.memory_space<vmem>>, vector<16x32xbf16>
    tpu.vector_store %arg7[%c0_12, %c0_13], %14 {strides = array<i32>} : memref<16x32xbf16, #tpu.memory_space<vmem>>, vector<16x32xbf16>,
    return
  }
  func.func @transform_0(%arg0: i32) -> (i32, i32) {
    %c0_i32 = arith.constant 0 : i32
    %c0_i32_0 = arith.constant 0 : i32
    return %arg0, %c0_i32 : i32, i32
  }
  func.func @transform_1(%arg0: i32) -> (i32, i32) {
    %c0_i32 = arith.constant 0 : i32
    %c0_i32_0 = arith.constant 0 : i32
    %c0_i32_1 = arith.constant 0 : i32
    return %c0_i32, %c0_i32_0 : i32, i32
  }
  func.func @transform_2(%arg0: i32) -> (i32, i32) {
    %c0_i32 = arith.constant 0 : i32
    %c0_i32_0 = arith.constant 0 : i32
    %c0_i32_1 = arith.constant 0 : i32
    return %c0_i32, %c0_i32_0 : i32, i32
  }
  func.func @transform_3(%arg0: i32) -> (i32, i32) {
    %c0_i32 = arith.constant 0 : i32
    %c0_i32_0 = arith.constant 0 : i32
    %c0_i32_1 = arith.constant 0 : i32
    return %c0_i32, %c0_i32_0 : i32, i32
  }
  func.func @transform_4(%arg0: i32) -> (i32, i32) {
    %c0_i32 = arith.constant 0 : i32
    %c0_i32_0 = arith.constant 0 : i32
    %c0_i32_1 = arith.constant 0 : i32
    return %c0_i32, %c0_i32_0 : i32, i32
  }
  func.func @transform_5(%arg0: i32) -> (i32, i32) {
    %c0_i32 = arith.constant 0 : i32
    %c0_i32_0 = arith.constant 0 : i32
    return %arg0, %c0_i32 : i32, i32
  }
  func.func @transform_6(%arg0: i32) -> (i32, i32) {
    %c0_i32 = arith.constant 0 : i32
    %c0_i32_0 = arith.constant 0 : i32
    return %arg0, %c0_i32 : i32, i32
  }
}

module attributes {stable_mosaic.version = 11 : i64} {
  func.func @_proj_kernel(%arg0: i32, %arg1: memref<16x32xf32, #tpu.memory_space<vmem>>, %arg2: memref<32x32xbf16, #tpu.memory_space<vmem>>, %arg3: memref<1x32xf32, #tpu.memory_space<vmem>>, %arg4: memref<32x32xbf16, #tpu.memory_space<vmem>>, %arg5: memref<1x32xf32, #tpu.memory_space<vmem>>, %arg6: memref<16x32xbf16, #tpu.memory_space<vmem>>, %arg7: memref<16x32xbf16, #tpu.memory_space<vmem>>) attributes {dimension_semantics = [#tpu.dimension_semantics<parallel>], iteration_bounds = array<i64: 1>, scalar_prefetch = 0 : i64, scratch_operands = 0 : i64, tpu.core_type = #tpu.core_type<tc>, window_params = [{transform_indices = @transform_0, window_bounds = array<i64: 16, 32>}, {pipeline_mode = #tpu.pipeline_mode<synchronous>, transform_indices = @transform_1, window_bounds = array<i64: 32, 32>}, {pipeline_mode = #tpu.pipeline_mode<synchronous>, transform_indices = @transform_2, window_bounds = array<i64: 1, 32>}, {pipeline_mode = #tpu.pipeline_mode<synchronous>, transform_indices = @transform_3, window_bounds = array<i64: 32, 32>}, {pipeline_mode = #tpu.pipeline_mode<synchronous>, transform_indices = @transform_4, window_bounds = array<i64: 1, 32>}, {transform_indices = @transform_5, window_bounds = array<i64: 16, 32>}, {transform_indices = @transform_6, window_bounds = array<i64: 16, 32>}]} {
    %c0 = arith.constant 0 : index
    %c0_0 = arith.constant 0 : index
    %0 = vector.load %arg1[%c0, %c0_0] : memref<16x32xf32, #tpu.memory_space<vmem>>, vector<16x32xf32>
    %1 = arith.truncf %0 : vector<16x32xf32> to vector<16x32xbf16>
    %c0_1 = arith.constant 0 : index
    %c0_2 = arith.constant 0 : index
    %2 = vector.load %arg2[%c0_1, %c0_2] : memref<32x32xbf16, #tpu.memory_space<vmem>>, vector<32x32xbf16>
    %cst = arith.constant dense<0.000000e+00> : vector<16x32xf32>
    %3 = tpu.matmul %1, %2, %cst {dimension_numbers = #tpu.dot_dimension_numbers<[1], [0], [0], [1], [0, 0, 1, 1], [], []>} : vector<16x32xbf16>, vector<32x32xbf16>, vector<16x32xf32> -> vector<16x32xf32>
    %c0_3 = arith.constant 0 : index
    %c0_4 = arith.constant 0 : index
    %4 = vector.load %arg3[%c0_3, %c0_4] : memref<1x32xf32, #tpu.memory_space<vmem>>, vector<1x32xf32>
    %5 = vector.broadcast %4 : vector<1x32xf32> to vector<16x32xf32>
    %6 = arith.addf %3, %5 : vector<16x32xf32>
    %7 = arith.truncf %6 : vector<16x32xf32> to vector<16x32xbf16>
    %c0_5 = arith.constant 0 : index
    %c0_6 = arith.constant 0 : index
    %8 = vector.load %arg6[%c0_5, %c0_6] : memref<16x32xbf16, #tpu.memory_space<vmem>>, vector<16x32xbf16>
    tpu.vector_store %arg6[%c0_5, %c0_6], %7 {strides = array<i32>} : memref<16x32xbf16, #tpu.memory_space<vmem>>, vector<16x32xbf16>,
    %c0_7 = arith.constant 0 : index
    %c0_8 = arith.constant 0 : index
    %9 = vector.load %arg4[%c0_7, %c0_8] : memref<32x32xbf16, #tpu.memory_space<vmem>>, vector<32x32xbf16>
    %cst_9 = arith.constant dense<0.000000e+00> : vector<16x32xf32>
    %10 = tpu.matmul %1, %9, %cst_9 {dimension_numbers = #tpu.dot_dimension_numbers<[1], [0], [0], [1], [0, 0, 1, 1], [], []>} : vector<16x32xbf16>, vector<32x32xbf16>, vector<16x32xf32> -> vector<16x32xf32>
    %c0_10 = arith.constant 0 : index
    %c0_11 = arith.constant 0 : index
    %11 = vector.load %arg5[%c0_10, %c0_11] : memref<1x32xf32, #tpu.memory_space<vmem>>, vector<1x32xf32>
    %12 = vector.broadcast %11 : vector<1x32xf32> to vector<16x32xf32>
    %13 = arith.addf %10, %12 : vector<16x32xf32>
    %14 = arith.truncf %13 : vector<16x32xf32> to vector<16x32xbf16>
    %c0_12 = arith.constant 0 : index
    %c0_13 = arith.constant 0 : index
    %15 = vector.load %arg7[%c0_12, %c0_13] : memref<16x32xbf16, #tpu.memory_space<vmem>>, vector<16x32xbf16>
    tpu.vector_store %arg7[%c0_12, %c0_13], %14 {strides = array<i32>} : memref<16x32xbf16, #tpu.memory_space<vmem>>, vector<16x32xbf16>,
    return
  }
  func.func @transform_0(%arg0: i32) -> (i32, i32) {
    %c0_i32 = arith.constant 0 : i32
    %c0_i32_0 = arith.constant 0 : i32
    return %arg0, %c0_i32 : i32, i32
  }
  func.func @transform_1(%arg0: i32) -> (i32, i32) {
    %c0_i32 = arith.constant 0 : i32
    %c0_i32_0 = arith.constant 0 : i32
    %c0_i32_1 = arith.constant 0 : i32
    return %c0_i32, %c0_i32_0 : i32, i32
  }
  func.func @transform_2(%arg0: i32) -> (i32, i32) {
    %c0_i32 = arith.constant 0 : i32
    %c0_i32_0 = arith.constant 0 : i32
    %c0_i32_1 = arith.constant 0 : i32
    return %c0_i32, %c0_i32_0 : i32, i32
  }
  func.func @transform_3(%arg0: i32) -> (i32, i32) {
    %c0_i32 = arith.constant 0 : i32
    %c0_i32_0 = arith.constant 0 : i32
    %c0_i32_1 = arith.constant 0 : i32
    return %c0_i32, %c0_i32_0 : i32, i32
  }
  func.func @transform_4(%arg0: i32) -> (i32, i32) {
    %c0_i32 = arith.constant 0 : i32
    %c0_i32_0 = arith.constant 0 : i32
    %c0_i32_1 = arith.constant 0 : i32
    return %c0_i32, %c0_i32_0 : i32, i32
  }
  func.func @transform_5(%arg0: i32) -> (i32, i32) {
    %c0_i32 = arith.constant 0 : i32
    %c0_i32_0 = arith.constant 0 : i32
    return %arg0, %c0_i32 : i32, i32
  }
  func.func @transform_6(%arg0: i32) -> (i32, i32) {
    %c0_i32 = arith.constant 0 : i32
    %c0_i32_0 = arith.constant 0 : i32
    return %arg0, %c0_i32 : i32, i32
  }
}

module attributes {stable_mosaic.version = 11 : i64} {
  func.func @_proj_kernel(%arg0: i32, %arg1: memref<16x32xf32, #tpu.memory_space<vmem>>, %arg2: memref<1x32xf32, #tpu.memory_space<vmem>>, %arg3: memref<1x32xf32, #tpu.memory_space<vmem>>, %arg4: memref<32x32xbf16, #tpu.memory_space<vmem>>, %arg5: memref<1x32xf32, #tpu.memory_space<vmem>>, %arg6: memref<16x32xbf16, #tpu.memory_space<vmem>>) attributes {dimension_semantics = [#tpu.dimension_semantics<parallel>], iteration_bounds = array<i64: 1>, scalar_prefetch = 0 : i64, scratch_operands = 0 : i64, tpu.core_type = #tpu.core_type<tc>, window_params = [{transform_indices = @transform_0, window_bounds = array<i64: 16, 32>}, {pipeline_mode = #tpu.pipeline_mode<synchronous>, transform_indices = @transform_1, window_bounds = array<i64: 1, 32>}, {pipeline_mode = #tpu.pipeline_mode<synchronous>, transform_indices = @transform_2, window_bounds = array<i64: 1, 32>}, {pipeline_mode = #tpu.pipeline_mode<synchronous>, transform_indices = @transform_3, window_bounds = array<i64: 32, 32>}, {pipeline_mode = #tpu.pipeline_mode<synchronous>, transform_indices = @transform_4, window_bounds = array<i64: 1, 32>}, {transform_indices = @transform_5, window_bounds = array<i64: 16, 32>}]} {
    %c0 = arith.constant 0 : index
    %c0_0 = arith.constant 0 : index
    %0 = vector.load %arg1[%c0, %c0_0] : memref<16x32xf32, #tpu.memory_space<vmem>>, vector<16x32xf32>
    %cst = arith.constant dense<0.000000e+00> : vector<16xf32>
    %1 = vector.multi_reduction <add>, %0, %cst [1] : vector<16x32xf32> to vector<16xf32>
    %2 = vector.shape_cast %1 : vector<16xf32> to vector<16x1xf32>
    %cst_1 = arith.constant 3.200000e+01 : f32
    %3 = vector.broadcast %cst_1 : f32 to vector<16x1xf32>
    %4 = arith.divf %2, %3 : vector<16x1xf32>
    %5 = vector.broadcast %4 : vector<16x1xf32> to vector<16x32xf32>
    %6 = arith.subf %0, %5 : vector<16x32xf32>
    %7 = arith.mulf %6, %6 : vector<16x32xf32>
    %cst_2 = arith.constant dense<0.000000e+00> : vector<16xf32>
    %8 = vector.multi_reduction <add>, %7, %cst_2 [1] : vector<16x32xf32> to vector<16xf32>
    %9 = vector.shape_cast %8 : vector<16xf32> to vector<16x1xf32>
    %cst_3 = arith.constant 3.200000e+01 : f32
    %10 = vector.broadcast %cst_3 : f32 to vector<16x1xf32>
    %11 = arith.divf %9, %10 : vector<16x1xf32>
    %12 = vector.broadcast %4 : vector<16x1xf32> to vector<16x32xf32>
    %13 = arith.subf %0, %12 : vector<16x32xf32>
    %cst_4 = arith.constant 9.99999974E-6 : f32
    %14 = vector.broadcast %cst_4 : f32 to vector<16x1xf32>
    %15 = arith.addf %11, %14 : vector<16x1xf32>
    %16 = math.rsqrt %15 : vector<16x1xf32>
    %17 = vector.broadcast %16 : vector<16x1xf32> to vector<16x32xf32>
    %18 = arith.mulf %13, %17 : vector<16x32xf32>
    %c0_5 = arith.constant 0 : index
    %c0_6 = arith.constant 0 : index
    %19 = vector.load %arg2[%c0_5, %c0_6] : memref<1x32xf32, #tpu.memory_space<vmem>>, vector<1x32xf32>
    %20 = vector.broadcast %19 : vector<1x32xf32> to vector<16x32xf32>
    %21 = arith.mulf %18, %20 : vector<16x32xf32>
    %c0_7 = arith.constant 0 : index
    %c0_8 = arith.constant 0 : index
    %22 = vector.load %arg3[%c0_7, %c0_8] : memref<1x32xf32, #tpu.memory_space<vmem>>, vector<1x32xf32>
    %23 = vector.broadcast %22 : vector<1x32xf32> to vector<16x32xf32>
    %24 = arith.addf %21, %23 : vector<16x32xf32>
    %25 = arith.truncf %24 : vector<16x32xf32> to vector<16x32xbf16>
    %c0_9 = arith.constant 0 : index
    %c0_10 = arith.constant 0 : index
    %26 = vector.load %arg4[%c0_9, %c0_10] : memref<32x32xbf16, #tpu.memory_space<vmem>>, vector<32x32xbf16>
    %cst_11 = arith.constant dense<0.000000e+00> : vector<16x32xf32>
    %27 = tpu.matmul %25, %26, %cst_11 {dimension_numbers = #tpu.dot_dimension_numbers<[1], [0], [0], [1], [0, 0, 1, 1], [], []>} : vector<16x32xbf16>, vector<32x32xbf16>, vector<16x32xf32> -> vector<16x32xf32>
    %c0_12 = arith.constant 0 : index
    %c0_13 = arith.constant 0 : index
    %28 = vector.load %arg5[%c0_12, %c0_13] : memref<1x32xf32, #tpu.memory_space<vmem>>, vector<1x32xf32>
    %29 = vector.broadcast %28 : vector<1x32xf32> to vector<16x32xf32>
    %30 = arith.addf %27, %29 : vector<16x32xf32>
    %31 = arith.truncf %30 : vector<16x32xf32> to vector<16x32xbf16>
    %c0_14 = arith.constant 0 : index
    %c0_15 = arith.constant 0 : index
    %32 = vector.load %arg6[%c0_14, %c0_15] : memref<16x32xbf16, #tpu.memory_space<vmem>>, vector<16x32xbf16>
    tpu.vector_store %arg6[%c0_14, %c0_15], %31 {strides = array<i32>} : memref<16x32xbf16, #tpu.memory_space<vmem>>, vector<16x32xbf16>,
    return
  }
  func.func @transform_0(%arg0: i32) -> (i32, i32) {
    %c0_i32 = arith.constant 0 : i32
    %c0_i32_0 = arith.constant 0 : i32
    return %arg0, %c0_i32 : i32, i32
  }
  func.func @transform_1(%arg0: i32) -> (i32, i32) {
    %c0_i32 = arith.constant 0 : i32
    %c0_i32_0 = arith.constant 0 : i32
    %c0_i32_1 = arith.constant 0 : i32
    return %c0_i32, %c0_i32_0 : i32, i32
  }
  func.func @transform_2(%arg0: i32) -> (i32, i32) {
    %c0_i32 = arith.constant 0 : i32
    %c0_i32_0 = arith.constant 0 : i32
    %c0_i32_1 = arith.constant 0 : i32
    return %c0_i32, %c0_i32_0 : i32, i32
  }
  func.func @transform_3(%arg0: i32) -> (i32, i32) {
    %c0_i32 = arith.constant 0 : i32
    %c0_i32_0 = arith.constant 0 : i32
    %c0_i32_1 = arith.constant 0 : i32
    return %c0_i32, %c0_i32_0 : i32, i32
  }
  func.func @transform_4(%arg0: i32) -> (i32, i32) {
    %c0_i32 = arith.constant 0 : i32
    %c0_i32_0 = arith.constant 0 : i32
    %c0_i32_1 = arith.constant 0 : i32
    return %c0_i32, %c0_i32_0 : i32, i32
  }
  func.func @transform_5(%arg0: i32) -> (i32, i32) {
    %c0_i32 = arith.constant 0 : i32
    %c0_i32_0 = arith.constant 0 : i32
    return %arg0, %c0_i32 : i32, i32
  }
}

module attributes {stable_mosaic.version = 11 : i64} {
  func.func @_proj_kernel(%arg0: i32, %arg1: memref<16x32xf32, #tpu.memory_space<vmem>>, %arg2: memref<1x32xf32, #tpu.memory_space<vmem>>, %arg3: memref<1x32xf32, #tpu.memory_space<vmem>>, %arg4: memref<32x32xbf16, #tpu.memory_space<vmem>>, %arg5: memref<1x32xf32, #tpu.memory_space<vmem>>, %arg6: memref<32x32xbf16, #tpu.memory_space<vmem>>, %arg7: memref<1x32xf32, #tpu.memory_space<vmem>>, %arg8: memref<32x32xbf16, #tpu.memory_space<vmem>>, %arg9: memref<1x32xf32, #tpu.memory_space<vmem>>, %arg10: memref<16x32xbf16, #tpu.memory_space<vmem>>, %arg11: memref<16x32xbf16, #tpu.memory_space<vmem>>, %arg12: memref<16x32xbf16, #tpu.memory_space<vmem>>) attributes {dimension_semantics = [#tpu.dimension_semantics<parallel>], iteration_bounds = array<i64: 1>, scalar_prefetch = 0 : i64, scratch_operands = 0 : i64, tpu.core_type = #tpu.core_type<tc>, window_params = [{transform_indices = @transform_0, window_bounds = array<i64: 16, 32>}, {pipeline_mode = #tpu.pipeline_mode<synchronous>, transform_indices = @transform_1, window_bounds = array<i64: 1, 32>}, {pipeline_mode = #tpu.pipeline_mode<synchronous>, transform_indices = @transform_2, window_bounds = array<i64: 1, 32>}, {pipeline_mode = #tpu.pipeline_mode<synchronous>, transform_indices = @transform_3, window_bounds = array<i64: 32, 32>}, {pipeline_mode = #tpu.pipeline_mode<synchronous>, transform_indices = @transform_4, window_bounds = array<i64: 1, 32>}, {pipeline_mode = #tpu.pipeline_mode<synchronous>, transform_indices = @transform_5, window_bounds = array<i64: 32, 32>}, {pipeline_mode = #tpu.pipeline_mode<synchronous>, transform_indices = @transform_6, window_bounds = array<i64: 1, 32>}, {pipeline_mode = #tpu.pipeline_mode<synchronous>, transform_indices = @transform_7, window_bounds = array<i64: 32, 32>}, {pipeline_mode = #tpu.pipeline_mode<synchronous>, transform_indices = @transform_8, window_bounds = array<i64: 1, 32>}, {transform_indices = @transform_9, window_bounds = array<i64: 16, 32>}, {transform_indices = @transform_10, window_bounds = array<i64: 16, 32>}, {transform_indices = @transform_11, window_bounds = array<i64: 16, 32>}]} {
    %c0 = arith.constant 0 : index
    %c0_0 = arith.constant 0 : index
    %0 = vector.load %arg1[%c0, %c0_0] : memref<16x32xf32, #tpu.memory_space<vmem>>, vector<16x32xf32>
    %cst = arith.constant dense<0.000000e+00> : vector<16xf32>
    %1 = vector.multi_reduction <add>, %0, %cst [1] : vector<16x32xf32> to vector<16xf32>
    %2 = vector.shape_cast %1 : vector<16xf32> to vector<16x1xf32>
    %cst_1 = arith.constant 3.200000e+01 : f32
    %3 = vector.broadcast %cst_1 : f32 to vector<16x1xf32>
    %4 = arith.divf %2, %3 : vector<16x1xf32>
    %5 = vector.broadcast %4 : vector<16x1xf32> to vector<16x32xf32>
    %6 = arith.subf %0, %5 : vector<16x32xf32>
    %7 = arith.mulf %6, %6 : vector<16x32xf32>
    %cst_2 = arith.constant dense<0.000000e+00> : vector<16xf32>
    %8 = vector.multi_reduction <add>, %7, %cst_2 [1] : vector<16x32xf32> to vector<16xf32>
    %9 = vector.shape_cast %8 : vector<16xf32> to vector<16x1xf32>
    %cst_3 = arith.constant 3.200000e+01 : f32
    %10 = vector.broadcast %cst_3 : f32 to vector<16x1xf32>
    %11 = arith.divf %9, %10 : vector<16x1xf32>
    %12 = vector.broadcast %4 : vector<16x1xf32> to vector<16x32xf32>
    %13 = arith.subf %0, %12 : vector<16x32xf32>
    %cst_4 = arith.constant 9.99999974E-6 : f32
    %14 = vector.broadcast %cst_4 : f32 to vector<16x1xf32>
    %15 = arith.addf %11, %14 : vector<16x1xf32>
    %16 = math.rsqrt %15 : vector<16x1xf32>
    %17 = vector.broadcast %16 : vector<16x1xf32> to vector<16x32xf32>
    %18 = arith.mulf %13, %17 : vector<16x32xf32>
    %c0_5 = arith.constant 0 : index
    %c0_6 = arith.constant 0 : index
    %19 = vector.load %arg2[%c0_5, %c0_6] : memref<1x32xf32, #tpu.memory_space<vmem>>, vector<1x32xf32>
    %20 = vector.broadcast %19 : vector<1x32xf32> to vector<16x32xf32>
    %21 = arith.mulf %18, %20 : vector<16x32xf32>
    %c0_7 = arith.constant 0 : index
    %c0_8 = arith.constant 0 : index
    %22 = vector.load %arg3[%c0_7, %c0_8] : memref<1x32xf32, #tpu.memory_space<vmem>>, vector<1x32xf32>
    %23 = vector.broadcast %22 : vector<1x32xf32> to vector<16x32xf32>
    %24 = arith.addf %21, %23 : vector<16x32xf32>
    %25 = arith.truncf %24 : vector<16x32xf32> to vector<16x32xbf16>
    %c0_9 = arith.constant 0 : index
    %c0_10 = arith.constant 0 : index
    %26 = vector.load %arg4[%c0_9, %c0_10] : memref<32x32xbf16, #tpu.memory_space<vmem>>, vector<32x32xbf16>
    %cst_11 = arith.constant dense<0.000000e+00> : vector<16x32xf32>
    %27 = tpu.matmul %25, %26, %cst_11 {dimension_numbers = #tpu.dot_dimension_numbers<[1], [0], [0], [1], [0, 0, 1, 1], [], []>} : vector<16x32xbf16>, vector<32x32xbf16>, vector<16x32xf32> -> vector<16x32xf32>
    %c0_12 = arith.constant 0 : index
    %c0_13 = arith.constant 0 : index
    %28 = vector.load %arg5[%c0_12, %c0_13] : memref<1x32xf32, #tpu.memory_space<vmem>>, vector<1x32xf32>
    %29 = vector.broadcast %28 : vector<1x32xf32> to vector<16x32xf32>
    %30 = arith.addf %27, %29 : vector<16x32xf32>
    %31 = arith.truncf %30 : vector<16x32xf32> to vector<16x32xbf16>
    %c0_14 = arith.constant 0 : index
    %c0_15 = arith.constant 0 : index
    %32 = vector.load %arg10[%c0_14, %c0_15] : memref<16x32xbf16, #tpu.memory_space<vmem>>, vector<16x32xbf16>
    tpu.vector_store %arg10[%c0_14, %c0_15], %31 {strides = array<i32>} : memref<16x32xbf16, #tpu.memory_space<vmem>>, vector<16x32xbf16>,
    %c0_16 = arith.constant 0 : index
    %c0_17 = arith.constant 0 : index
    %33 = vector.load %arg6[%c0_16, %c0_17] : memref<32x32xbf16, #tpu.memory_space<vmem>>, vector<32x32xbf16>
    %cst_18 = arith.constant dense<0.000000e+00> : vector<16x32xf32>
    %34 = tpu.matmul %25, %33, %cst_18 {dimension_numbers = #tpu.dot_dimension_numbers<[1], [0], [0], [1], [0, 0, 1, 1], [], []>} : vector<16x32xbf16>, vector<32x32xbf16>, vector<16x32xf32> -> vector<16x32xf32>
    %c0_19 = arith.constant 0 : index
    %c0_20 = arith.constant 0 : index
    %35 = vector.load %arg7[%c0_19, %c0_20] : memref<1x32xf32, #tpu.memory_space<vmem>>, vector<1x32xf32>
    %36 = vector.broadcast %35 : vector<1x32xf32> to vector<16x32xf32>
    %37 = arith.addf %34, %36 : vector<16x32xf32>
    %38 = arith.truncf %37 : vector<16x32xf32> to vector<16x32xbf16>
    %c0_21 = arith.constant 0 : index
    %c0_22 = arith.constant 0 : index
    %39 = vector.load %arg11[%c0_21, %c0_22] : memref<16x32xbf16, #tpu.memory_space<vmem>>, vector<16x32xbf16>
    tpu.vector_store %arg11[%c0_21, %c0_22], %38 {strides = array<i32>} : memref<16x32xbf16, #tpu.memory_space<vmem>>, vector<16x32xbf16>,
    %c0_23 = arith.constant 0 : index
    %c0_24 = arith.constant 0 : index
    %40 = vector.load %arg8[%c0_23, %c0_24] : memref<32x32xbf16, #tpu.memory_space<vmem>>, vector<32x32xbf16>
    %cst_25 = arith.constant dense<0.000000e+00> : vector<16x32xf32>
    %41 = tpu.matmul %25, %40, %cst_25 {dimension_numbers = #tpu.dot_dimension_numbers<[1], [0], [0], [1], [0, 0, 1, 1], [], []>} : vector<16x32xbf16>, vector<32x32xbf16>, vector<16x32xf32> -> vector<16x32xf32>
    %c0_26 = arith.constant 0 : index
    %c0_27 = arith.constant 0 : index
    %42 = vector.load %arg9[%c0_26, %c0_27] : memref<1x32xf32, #tpu.memory_space<vmem>>, vector<1x32xf32>
    %43 = vector.broadcast %42 : vector<1x32xf32> to vector<16x32xf32>
    %44 = arith.addf %41, %43 : vector<16x32xf32>
    %45 = arith.truncf %44 : vector<16x32xf32> to vector<16x32xbf16>
    %c0_28 = arith.constant 0 : index
    %c0_29 = arith.constant 0 : index
    %46 = vector.load %arg12[%c0_28, %c0_29] : memref<16x32xbf16, #tpu.memory_space<vmem>>, vector<16x32xbf16>
    tpu.vector_store %arg12[%c0_28, %c0_29], %45 {strides = array<i32>} : memref<16x32xbf16, #tpu.memory_space<vmem>>, vector<16x32xbf16>,
    return
  }
  func.func @transform_0(%arg0: i32) -> (i32, i32) {
    %c0_i32 = arith.constant 0 : i32
    %c0_i32_0 = arith.constant 0 : i32
    return %arg0, %c0_i32 : i32, i32
  }
  func.func @transform_1(%arg0: i32) -> (i32, i32) {
    %c0_i32 = arith.constant 0 : i32
    %c0_i32_0 = arith.constant 0 : i32
    %c0_i32_1 = arith.constant 0 : i32
    return %c0_i32, %c0_i32_0 : i32, i32
  }
  func.func @transform_2(%arg0: i32) -> (i32, i32) {
    %c0_i32 = arith.constant 0 : i32
    %c0_i32_0 = arith.constant 0 : i32
    %c0_i32_1 = arith.constant 0 : i32
    return %c0_i32, %c0_i32_0 : i32, i32
  }
  func.func @transform_3(%arg0: i32) -> (i32, i32) {
    %c0_i32 = arith.constant 0 : i32
    %c0_i32_0 = arith.constant 0 : i32
    %c0_i32_1 = arith.constant 0 : i32
    return %c0_i32, %c0_i32_0 : i32, i32
  }
  func.func @transform_4(%arg0: i32) -> (i32, i32) {
    %c0_i32 = arith.constant 0 : i32
    %c0_i32_0 = arith.constant 0 : i32
    %c0_i32_1 = arith.constant 0 : i32
    return %c0_i32, %c0_i32_0 : i32, i32
  }
  func.func @transform_5(%arg0: i32) -> (i32, i32) {
    %c0_i32 = arith.constant 0 : i32
    %c0_i32_0 = arith.constant 0 : i32
    %c0_i32_1 = arith.constant 0 : i32
    return %c0_i32, %c0_i32_0 : i32, i32
  }
  func.func @transform_6(%arg0: i32) -> (i32, i32) {
    %c0_i32 = arith.constant 0 : i32
    %c0_i32_0 = arith.constant 0 : i32
    %c0_i32_1 = arith.constant 0 : i32
    return %c0_i32, %c0_i32_0 : i32, i32
  }
  func.func @transform_7(%arg0: i32) -> (i32, i32) {
    %c0_i32 = arith.constant 0 : i32
    %c0_i32_0 = arith.constant 0 : i32
    %c0_i32_1 = arith.constant 0 : i32
    return %c0_i32, %c0_i32_0 : i32, i32
  }
  func.func @transform_8(%arg0: i32) -> (i32, i32) {
    %c0_i32 = arith.constant 0 : i32
    %c0_i32_0 = arith.constant 0 : i32
    %c0_i32_1 = arith.constant 0 : i32
    return %c0_i32, %c0_i32_0 : i32, i32
  }
  func.func @transform_9(%arg0: i32) -> (i32, i32) {
    %c0_i32 = arith.constant 0 : i32
    %c0_i32_0 = arith.constant 0 : i32
    return %arg0, %c0_i32 : i32, i32
  }
  func.func @transform_10(%arg0: i32) -> (i32, i32) {
    %c0_i32 = arith.constant 0 : i32
    %c0_i32_0 = arith.constant 0 : i32
    return %arg0, %c0_i32 : i32, i32
  }
  func.func @transform_11(%arg0: i32) -> (i32, i32) {
    %c0_i32 = arith.constant 0 : i32
    %c0_i32_0 = arith.constant 0 : i32
    return %arg0, %c0_i32 : i32, i32
  }
}

module attributes {stable_mosaic.version = 11 : i64} {
  func.func @_attn_kernel(%arg0: i32, %arg1: i32, %arg2: memref<1x4x8x8xbf16, #tpu.memory_space<vmem>>, %arg3: memref<1x4x8x8xbf16, #tpu.memory_space<vmem>>, %arg4: memref<1x4x8x8xbf16, #tpu.memory_space<vmem>>, %arg5: memref<8x8xf32, #tpu.memory_space<vmem>>, %arg6: memref<4x8x32xbf16, #tpu.memory_space<vmem>>, %arg7: memref<1x32xf32, #tpu.memory_space<vmem>>, %arg8: memref<1x8x32xf32, #tpu.memory_space<vmem>>, %arg9: memref<1x8x32xf32, #tpu.memory_space<vmem>>, %arg10: memref<1x4x8x8xf32, #tpu.memory_space<vmem>>) attributes {dimension_semantics = [#tpu.dimension_semantics<parallel>, #tpu.dimension_semantics<parallel>], iteration_bounds = array<i64: 2, 1>, scalar_prefetch = 0 : i64, scratch_operands = 0 : i64, tpu.core_type = #tpu.core_type<tc>, window_params = [{transform_indices = @transform_0, window_bounds = array<i64: 1, 4, 8, 8>}, {transform_indices = @transform_1, window_bounds = array<i64: 1, 4, 8, 8>}, {transform_indices = @transform_2, window_bounds = array<i64: 1, 4, 8, 8>}, {transform_indices = @transform_3, window_bounds = array<i64: 8, 8>}, {pipeline_mode = #tpu.pipeline_mode<synchronous>, transform_indices = @transform_4, window_bounds = array<i64: 4, 8, 32>}, {pipeline_mode = #tpu.pipeline_mode<synchronous>, transform_indices = @transform_5, window_bounds = array<i64: 1, 32>}, {transform_indices = @transform_6, window_bounds = array<i64: 1, 8, 32>}, {transform_indices = @transform_7, window_bounds = array<i64: 1, 8, 32>}, {transform_indices = @transform_8, window_bounds = array<i64: 1, 4, 8, 8>}]} {
    %c0 = arith.constant 0 : index
    %c0_0 = arith.constant 0 : index
    %c0_1 = arith.constant 0 : index
    %c0_2 = arith.constant 0 : index
    %0 = vector.load %arg2[%c0, %c0_0, %c0_1, %c0_2] : memref<1x4x8x8xbf16, #tpu.memory_space<vmem>>, vector<1x4x8x8xbf16>
    %1 = vector.shape_cast %0 : vector<1x4x8x8xbf16> to vector<4x8x8xbf16>
    %2 = arith.extf %1 : vector<4x8x8xbf16> to vector<4x8x8xf32>
    %cst = arith.constant 0.353553385 : f32
    %3 = vector.broadcast %cst : f32 to vector<4x8x8xf32>
    %4 = arith.mulf %2, %3 : vector<4x8x8xf32>
    %5 = arith.truncf %4 : vector<4x8x8xf32> to vector<4x8x8xbf16>
    %c0_3 = arith.constant 0 : index
    %c0_4 = arith.constant 0 : index
    %c0_5 = arith.constant 0 : index
    %c0_6 = arith.constant 0 : index
    %6 = vector.load %arg3[%c0_3, %c0_4, %c0_5, %c0_6] : memref<1x4x8x8xbf16, #tpu.memory_space<vmem>>, vector<1x4x8x8xbf16>
    %7 = vector.shape_cast %6 : vector<1x4x8x8xbf16> to vector<4x8x8xbf16>
    %c0_7 = arith.constant 0 : index
    %c0_8 = arith.constant 0 : index
    %c0_9 = arith.constant 0 : index
    %c0_10 = arith.constant 0 : index
    %8 = vector.load %arg4[%c0_7, %c0_8, %c0_9, %c0_10] : memref<1x4x8x8xbf16, #tpu.memory_space<vmem>>, vector<1x4x8x8xbf16>
    %9 = vector.shape_cast %8 : vector<1x4x8x8xbf16> to vector<4x8x8xbf16>
    %cst_11 = arith.constant dense<0.000000e+00> : vector<4x8x8xf32>
    %10 = tpu.matmul %5, %7, %cst_11 {dimension_numbers = #tpu.dot_dimension_numbers<[2], [2], [1], [1], [0, 0, 0, 1, 1, 1], [0], [0]>} : vector<4x8x8xbf16>, vector<4x8x8xbf16>, vector<4x8x8xf32> -> vector<4x8x8xf32>
    %c0_12 = arith.constant 0 : index
    %c0_13 = arith.constant 0 : index
    %11 = vector.load %arg5[%c0_12, %c0_13] : memref<8x8xf32, #tpu.memory_space<vmem>>, vector<8x8xf32>
    %12 = vector.shape_cast %11 : vector<8x8xf32> to vector<1x8x8xf32>
    %13 = vector.broadcast %12 : vector<1x8x8xf32> to vector<4x8x8xf32>
    %14 = arith.addf %10, %13 : vector<4x8x8xf32>
    %cst_14 = arith.constant dense<0xFF800000> : vector<4x8xf32>
    %15 = vector.multi_reduction <maximumf>, %14, %cst_14 [2] : vector<4x8x8xf32> to vector<4x8xf32>
    %16 = vector.shape_cast %15 : vector<4x8xf32> to vector<4x8x1xf32>
    %17 = vector.broadcast %16 : vector<4x8x1xf32> to vector<4x8x8xf32>
    %18 = arith.subf %14, %17 : vector<4x8x8xf32>
    %19 = math.exp %18 : vector<4x8x8xf32>
    %cst_15 = arith.constant dense<0.000000e+00> : vector<4x8xf32>
    %20 = vector.multi_reduction <add>, %19, %cst_15 [2] : vector<4x8x8xf32> to vector<4x8xf32>
    %21 = vector.shape_cast %20 : vector<4x8xf32> to vector<4x8x1xf32>
    %22 = tpu.reciprocal %21 {approx = true} : vector<4x8x1xf32> -> vector<4x8x1xf32>
    %23 = vector.broadcast %22 : vector<4x8x1xf32> to vector<4x8x8xf32>
    %24 = arith.mulf %19, %23 : vector<4x8x8xf32>
    %c0_16 = arith.constant 0 : index
    %c0_17 = arith.constant 0 : index
    %c0_18 = arith.constant 0 : index
    %c0_19 = arith.constant 0 : index
    %25 = vector.load %arg10[%c0_16, %c0_17, %c0_18, %c0_19] : memref<1x4x8x8xf32, #tpu.memory_space<vmem>>, vector<1x4x8x8xf32>
    %26 = vector.shape_cast %25 : vector<1x4x8x8xf32> to vector<4x8x8xf32>
    %27 = vector.shape_cast %24 : vector<4x8x8xf32> to vector<1x4x8x8xf32>
    tpu.vector_store %arg10[%c0_16, %c0_17, %c0_18, %c0_19], %27 {strides = array<i32>} : memref<1x4x8x8xf32, #tpu.memory_space<vmem>>, vector<1x4x8x8xf32>,
    %28 = arith.truncf %24 : vector<4x8x8xf32> to vector<4x8x8xbf16>
    %cst_20 = arith.constant dense<0.000000e+00> : vector<4x8x8xf32>
    %29 = tpu.matmul %28, %9, %cst_20 {dimension_numbers = #tpu.dot_dimension_numbers<[2], [1], [1], [2], [0, 0, 0, 1, 1, 2], [0], [0]>} : vector<4x8x8xbf16>, vector<4x8x8xbf16>, vector<4x8x8xf32> -> vector<4x8x8xf32>
    %c0_21 = arith.constant 0 : index
    %c0_22 = arith.constant 0 : index
    %c0_23 = arith.constant 0 : index
    %30 = vector.load %arg8[%c0_21, %c0_22, %c0_23] : memref<1x8x32xf32, #tpu.memory_space<vmem>>, vector<1x8x32xf32>
    %31 = vector.shape_cast %30 : vector<1x8x32xf32> to vector<8x32xf32>
    %c0_24 = arith.constant 0 : index
    %c0_25 = arith.constant 0 : index
    %32 = vector.load %arg7[%c0_24, %c0_25] : memref<1x32xf32, #tpu.memory_space<vmem>>, vector<1x32xf32>
    %33 = vector.broadcast %32 : vector<1x32xf32> to vector<8x32xf32>
    %34 = arith.addf %31, %33 : vector<8x32xf32>
    %35 = vector.extract_strided_slice %29 {offsets = [0, 0, 0], sizes = [1, 8, 8], strides = [1, 1, 1]} : vector<4x8x8xf32> to vector<1x8x8xf32>
    %36 = vector.shape_cast %35 : vector<1x8x8xf32> to vector<8x8xf32>
    %37 = arith.truncf %36 : vector<8x8xf32> to vector<8x8xbf16>
    %c0_26 = arith.constant 0 : index
    %c0_27 = arith.constant 0 : index
    %c0_28 = arith.constant 0 : index
    %38 = vector.load %arg6[%c0_26, %c0_27, %c0_28] : memref<4x8x32xbf16, #tpu.memory_space<vmem>>, vector<1x8x32xbf16>
    %39 = vector.shape_cast %38 : vector<1x8x32xbf16> to vector<8x32xbf16>
    %cst_29 = arith.constant dense<0.000000e+00> : vector<8x32xf32>
    %40 = tpu.matmul %37, %39, %cst_29 {dimension_numbers = #tpu.dot_dimension_numbers<[1], [0], [0], [1], [0, 0, 1, 1], [], []>} : vector<8x8xbf16>, vector<8x32xbf16>, vector<8x32xf32> -> vector<8x32xf32>
    %41 = arith.addf %34, %40 : vector<8x32xf32>
    %42 = vector.extract_strided_slice %29 {offsets = [1, 0, 0], sizes = [1, 8, 8], strides = [1, 1, 1]} : vector<4x8x8xf32> to vector<1x8x8xf32>
    %43 = vector.shape_cast %42 : vector<1x8x8xf32> to vector<8x8xf32>
    %44 = arith.truncf %43 : vector<8x8xf32> to vector<8x8xbf16>
    %c1 = arith.constant 1 : index
    %c0_30 = arith.constant 0 : index
    %c0_31 = arith.constant 0 : index
    %45 = vector.load %arg6[%c1, %c0_30, %c0_31] : memref<4x8x32xbf16, #tpu.memory_space<vmem>>, vector<1x8x32xbf16>
    %46 = vector.shape_cast %45 : vector<1x8x32xbf16> to vector<8x32xbf16>
    %cst_32 = arith.constant dense<0.000000e+00> : vector<8x32xf32>
    %47 = tpu.matmul %44, %46, %cst_32 {dimension_numbers = #tpu.dot_dimension_numbers<[1], [0], [0], [1], [0, 0, 1, 1], [], []>} : vector<8x8xbf16>, vector<8x32xbf16>, vector<8x32xf32> -> vector<8x32xf32>
    %48 = arith.addf %41, %47 : vector<8x32xf32>
    %49 = vector.extract_strided_slice %29 {offsets = [2, 0, 0], sizes = [1, 8, 8], strides = [1, 1, 1]} : vector<4x8x8xf32> to vector<1x8x8xf32>
    %50 = vector.shape_cast %49 : vector<1x8x8xf32> to vector<8x8xf32>
    %51 = arith.truncf %50 : vector<8x8xf32> to vector<8x8xbf16>
    %c2 = arith.constant 2 : index
    %c0_33 = arith.constant 0 : index
    %c0_34 = arith.constant 0 : index
    %52 = vector.load %arg6[%c2, %c0_33, %c0_34] : memref<4x8x32xbf16, #tpu.memory_space<vmem>>, vector<1x8x32xbf16>
    %53 = vector.shape_cast %52 : vector<1x8x32xbf16> to vector<8x32xbf16>
    %cst_35 = arith.constant dense<0.000000e+00> : vector<8x32xf32>
    %54 = tpu.matmul %51, %53, %cst_35 {dimension_numbers = #tpu.dot_dimension_numbers<[1], [0], [0], [1], [0, 0, 1, 1], [], []>} : vector<8x8xbf16>, vector<8x32xbf16>, vector<8x32xf32> -> vector<8x32xf32>
    %55 = arith.addf %48, %54 : vector<8x32xf32>
    %56 = vector.extract_strided_slice %29 {offsets = [3, 0, 0], sizes = [1, 8, 8], strides = [1, 1, 1]} : vector<4x8x8xf32> to vector<1x8x8xf32>
    %57 = vector.shape_cast %56 : vector<1x8x8xf32> to vector<8x8xf32>
    %58 = arith.truncf %57 : vector<8x8xf32> to vector<8x8xbf16>
    %c3 = arith.constant 3 : index
    %c0_36 = arith.constant 0 : index
    %c0_37 = arith.constant 0 : index
    %59 = vector.load %arg6[%c3, %c0_36, %c0_37] : memref<4x8x32xbf16, #tpu.memory_space<vmem>>, vector<1x8x32xbf16>
    %60 = vector.shape_cast %59 : vector<1x8x32xbf16> to vector<8x32xbf16>
    %cst_38 = arith.constant dense<0.000000e+00> : vector<8x32xf32>
    %61 = tpu.matmul %58, %60, %cst_38 {dimension_numbers = #tpu.dot_dimension_numbers<[1], [0], [0], [1], [0, 0, 1, 1], [], []>} : vector<8x8xbf16>, vector<8x32xbf16>, vector<8x32xf32> -> vector<8x32xf32>
    %62 = arith.addf %55, %61 : vector<8x32xf32>
    %c0_39 = arith.constant 0 : index
    %c0_40 = arith.constant 0 : index
    %c0_41 = arith.constant 0 : index
    %63 = vector.load %arg9[%c0_39, %c0_40, %c0_41] : memref<1x8x32xf32, #tpu.memory_space<vmem>>, vector<1x8x32xf32>
    %64 = vector.shape_cast %63 : vector<1x8x32xf32> to vector<8x32xf32>
    %65 = vector.shape_cast %62 : vector<8x32xf32> to vector<1x8x32xf32>
    tpu.vector_store %arg9[%c0_39, %c0_40, %c0_41], %65 {strides = array<i32>} : memref<1x8x32xf32, #tpu.memory_space<vmem>>, vector<1x8x32xf32>,
    return
  }
  func.func @transform_0(%arg0: i32, %arg1: i32) -> (i32, i32, i32, i32) {
    %c0_i32 = arith.constant 0 : i32
    %c0_i32_0 = arith.constant 0 : i32
    %c0_i32_1 = arith.constant 0 : i32
    return %arg0, %c0_i32, %arg1, %c0_i32_0 : i32, i32, i32, i32
  }
  func.func @transform_1(%arg0: i32, %arg1: i32) -> (i32, i32, i32, i32) {
    %c0_i32 = arith.constant 0 : i32
    %c0_i32_0 = arith.constant 0 : i32
    %c0_i32_1 = arith.constant 0 : i32
    %c0_i32_2 = arith.constant 0 : i32
    return %arg0, %c0_i32, %c0_i32_0, %c0_i32_1 : i32, i32, i32, i32
  }
  func.func @transform_2(%arg0: i32, %arg1: i32) -> (i32, i32, i32, i32) {
    %c0_i32 = arith.constant 0 : i32
    %c0_i32_0 = arith.constant 0 : i32
    %c0_i32_1 = arith.constant 0 : i32
    %c0_i32_2 = arith.constant 0 : i32
    return %arg0, %c0_i32, %c0_i32_0, %c0_i32_1 : i32, i32, i32, i32
  }
  func.func @transform_3(%arg0: i32, %arg1: i32) -> (i32, i32) {
    %c0_i32 = arith.constant 0 : i32
    %c0_i32_0 = arith.constant 0 : i32
    return %arg1, %c0_i32 : i32, i32
  }
  func.func @transform_4(%arg0: i32, %arg1: i32) -> (i32, i32, i32) {
    %c0_i32 = arith.constant 0 : i32
    %c0_i32_0 = arith.constant 0 : i32
    %c0_i32_1 = arith.constant 0 : i32
    %c0_i32_2 = arith.constant 0 : i32
    return %c0_i32, %c0_i32_0, %c0_i32_1 : i32, i32, i32
  }
  func.func @transform_5(%arg0: i32, %arg1: i32) -> (i32, i32) {
    %c0_i32 = arith.constant 0 : i32
    %c0_i32_0 = arith.constant 0 : i32
    %c0_i32_1 = arith.constant 0 : i32
    return %c0_i32, %c0_i32_0 : i32, i32
  }
  func.func @transform_6(%arg0: i32, %arg1: i32) -> (i32, i32, i32) {
    %c0_i32 = arith.constant 0 : i32
    %c0_i32_0 = arith.constant 0 : i32
    return %arg0, %arg1, %c0_i32 : i32, i32, i32
  }
  func.func @transform_7(%arg0: i32, %arg1: i32) -> (i32, i32, i32) {
    %c0_i32 = arith.constant 0 : i32
    %c0_i32_0 = arith.constant 0 : i32
    return %arg0, %arg1, %c0_i32 : i32, i32, i32
  }
  func.func @transform_8(%arg0: i32, %arg1: i32) -> (i32, i32, i32, i32) {
    %c0_i32 = arith.constant 0 : i32
    %c0_i32_0 = arith.constant 0 : i32
    %c0_i32_1 = arith.constant 0 : i32
    return %arg0, %c0_i32, %arg1, %c0_i32_0 : i32, i32, i32, i32
  }
}

module attributes {stable_mosaic.version = 11 : i64} {
  func.func @_ln_ffn_res_kernel(%arg0: i32, %arg1: i32, %arg2: memref<16x32xf32, #tpu.memory_space<vmem>>, %arg3: memref<1x32xf32, #tpu.memory_space<vmem>>, %arg4: memref<1x32xf32, #tpu.memory_space<vmem>>, %arg5: memref<32x64xbf16, #tpu.memory_space<vmem>>, %arg6: memref<1x64xf32, #tpu.memory_space<vmem>>, %arg7: memref<64x32xbf16, #tpu.memory_space<vmem>>, %arg8: memref<1x32xf32, #tpu.memory_space<vmem>>, %arg9: memref<16x32xf32, #tpu.memory_space<vmem>>, %arg10: memref<16x32xbf16, #tpu.memory_space<vmem>>, %arg11: memref<16x32xf32, #tpu.memory_space<vmem>>) attributes {dimension_semantics = [#tpu.dimension_semantics<parallel>, #tpu.dimension_semantics<arbitrary>], iteration_bounds = array<i64: 1, 1>, scalar_prefetch = 0 : i64, scratch_operands = 2 : i64, tpu.core_type = #tpu.core_type<tc>, window_params = [{transform_indices = @transform_0, window_bounds = array<i64: 16, 32>}, {pipeline_mode = #tpu.pipeline_mode<synchronous>, transform_indices = @transform_1, window_bounds = array<i64: 1, 32>}, {pipeline_mode = #tpu.pipeline_mode<synchronous>, transform_indices = @transform_2, window_bounds = array<i64: 1, 32>}, {transform_indices = @transform_3, window_bounds = array<i64: 32, 64>}, {transform_indices = @transform_4, window_bounds = array<i64: 1, 64>}, {transform_indices = @transform_5, window_bounds = array<i64: 64, 32>}, {pipeline_mode = #tpu.pipeline_mode<synchronous>, transform_indices = @transform_6, window_bounds = array<i64: 1, 32>}, {transform_indices = @transform_7, window_bounds = array<i64: 16, 32>}]} {
    %c0_i32 = arith.constant 0 : i32
    %0 = arith.cmpi eq, %arg1, %c0_i32 : i32
    %1 = arith.extui %0 : i1 to i32
    %c0_i32_0 = arith.constant 0 : i32
    %2 = arith.cmpi ne, %1, %c0_i32_0 : i32
    scf.if %2 {
      %c0_16 = arith.constant 0 : index
      %c0_17 = arith.constant 0 : index
      %20 = vector.load %arg2[%c0_16, %c0_17] : memref<16x32xf32, #tpu.memory_space<vmem>>, vector<16x32xf32>
      %cst_18 = arith.constant dense<0.000000e+00> : vector<16xf32>
      %21 = vector.multi_reduction <add>, %20, %cst_18 [1] : vector<16x32xf32> to vector<16xf32>
      %22 = vector.shape_cast %21 : vector<16xf32> to vector<16x1xf32>
      %cst_19 = arith.constant 3.200000e+01 : f32
      %23 = vector.broadcast %cst_19 : f32 to vector<16x1xf32>
      %24 = arith.divf %22, %23 : vector<16x1xf32>
      %25 = vector.broadcast %24 : vector<16x1xf32> to vector<16x32xf32>
      %26 = arith.subf %20, %25 : vector<16x32xf32>
      %27 = arith.mulf %26, %26 : vector<16x32xf32>
      %cst_20 = arith.constant dense<0.000000e+00> : vector<16xf32>
      %28 = vector.multi_reduction <add>, %27, %cst_20 [1] : vector<16x32xf32> to vector<16xf32>
      %29 = vector.shape_cast %28 : vector<16xf32> to vector<16x1xf32>
      %cst_21 = arith.constant 3.200000e+01 : f32
      %30 = vector.broadcast %cst_21 : f32 to vector<16x1xf32>
      %31 = arith.divf %29, %30 : vector<16x1xf32>
      %32 = vector.broadcast %24 : vector<16x1xf32> to vector<16x32xf32>
      %33 = arith.subf %20, %32 : vector<16x32xf32>
      %cst_22 = arith.constant 9.99999974E-6 : f32
      %34 = vector.broadcast %cst_22 : f32 to vector<16x1xf32>
      %35 = arith.addf %31, %34 : vector<16x1xf32>
      %36 = math.rsqrt %35 : vector<16x1xf32>
      %37 = vector.broadcast %36 : vector<16x1xf32> to vector<16x32xf32>
      %38 = arith.mulf %33, %37 : vector<16x32xf32>
      %c0_23 = arith.constant 0 : index
      %c0_24 = arith.constant 0 : index
      %39 = vector.load %arg3[%c0_23, %c0_24] : memref<1x32xf32, #tpu.memory_space<vmem>>, vector<1x32xf32>
      %40 = vector.broadcast %39 : vector<1x32xf32> to vector<16x32xf32>
      %41 = arith.mulf %38, %40 : vector<16x32xf32>
      %c0_25 = arith.constant 0 : index
      %c0_26 = arith.constant 0 : index
      %42 = vector.load %arg4[%c0_25, %c0_26] : memref<1x32xf32, #tpu.memory_space<vmem>>, vector<1x32xf32>
      %43 = vector.broadcast %42 : vector<1x32xf32> to vector<16x32xf32>
      %44 = arith.addf %41, %43 : vector<16x32xf32>
      %45 = arith.truncf %44 : vector<16x32xf32> to vector<16x32xbf16>
      %c0_27 = arith.constant 0 : index
      %c0_28 = arith.constant 0 : index
      %46 = vector.load %arg10[%c0_27, %c0_28] : memref<16x32xbf16, #tpu.memory_space<vmem>>, vector<16x32xbf16>
      tpu.vector_store %arg10[%c0_27, %c0_28], %45 {strides = array<i32>} : memref<16x32xbf16, #tpu.memory_space<vmem>>, vector<16x32xbf16>,
      %cst_29 = arith.constant 0.000000e+00 : f32
      %47 = vector.broadcast %cst_29 : f32 to vector<16x32xf32>
      %c0_30 = arith.constant 0 : index
      %c0_31 = arith.constant 0 : index
      %48 = vector.load %arg11[%c0_30, %c0_31] : memref<16x32xf32, #tpu.memory_space<vmem>>, vector<16x32xf32>
      tpu.vector_store %arg11[%c0_30, %c0_31], %47 {strides = array<i32>} : memref<16x32xf32, #tpu.memory_space<vmem>>, vector<16x32xf32>,
    } else {
    }
    %c0 = arith.constant 0 : index
    %c0_1 = arith.constant 0 : index
    %3 = vector.load %arg10[%c0, %c0_1] : memref<16x32xbf16, #tpu.memory_space<vmem>>, vector<16x32xbf16>
    %c0_2 = arith.constant 0 : index
    %c0_3 = arith.constant 0 : index
    %4 = vector.load %arg5[%c0_2, %c0_3] : memref<32x64xbf16, #tpu.memory_space<vmem>>, vector<32x64xbf16>
    %cst = arith.constant dense<0.000000e+00> : vector<16x64xf32>
    %5 = tpu.matmul %3, %4, %cst {dimension_numbers = #tpu.dot_dimension_numbers<[1], [0], [0], [1], [0, 0, 1, 1], [], []>} : vector<16x32xbf16>, vector<32x64xbf16>, vector<16x64xf32> -> vector<16x64xf32>
    %c0_4 = arith.constant 0 : index
    %c0_5 = arith.constant 0 : index
    %6 = vector.load %arg6[%c0_4, %c0_5] : memref<1x64xf32, #tpu.memory_space<vmem>>, vector<1x64xf32>
    %7 = vector.broadcast %6 : vector<1x64xf32> to vector<16x64xf32>
    %8 = arith.addf %5, %7 : vector<16x64xf32>
    %cst_6 = arith.constant 0.000000e+00 : f32
    %9 = vector.broadcast %cst_6 : f32 to vector<16x64xf32>
    %10 = arith.maximumf %8, %9 : vector<16x64xf32>
    %c0_7 = arith.constant 0 : index
    %c0_8 = arith.constant 0 : index
    %11 = vector.load %arg11[%c0_7, %c0_8] : memref<16x32xf32, #tpu.memory_space<vmem>>, vector<16x32xf32>
    %12 = arith.truncf %10 : vector<16x64xf32> to vector<16x64xbf16>
    %c0_9 = arith.constant 0 : index
    %c0_10 = arith.constant 0 : index
    %13 = vector.load %arg7[%c0_9, %c0_10] : memref<64x32xbf16, #tpu.memory_space<vmem>>, vector<64x32xbf16>
    %cst_11 = arith.constant dense<0.000000e+00> : vector<16x32xf32>
    %14 = tpu.matmul %12, %13, %cst_11 {dimension_numbers = #tpu.dot_dimension_numbers<[1], [0], [0], [1], [0, 0, 1, 1], [], []>} : vector<16x64xbf16>, vector<64x32xbf16>, vector<16x32xf32> -> vector<16x32xf32>
    %15 = arith.addf %11, %14 : vector<16x32xf32>
    %c0_12 = arith.constant 0 : index
    %c0_13 = arith.constant 0 : index
    %16 = vector.load %arg11[%c0_12, %c0_13] : memref<16x32xf32, #tpu.memory_space<vmem>>, vector<16x32xf32>
    tpu.vector_store %arg11[%c0_12, %c0_13], %15 {strides = array<i32>} : memref<16x32xf32, #tpu.memory_space<vmem>>, vector<16x32xf32>,
    %c0_i32_14 = arith.constant 0 : i32
    %17 = arith.cmpi eq, %arg1, %c0_i32_14 : i32
    %18 = arith.extui %17 : i1 to i32
    %c0_i32_15 = arith.constant 0 : i32
    %19 = arith.cmpi ne, %18, %c0_i32_15 : i32
    scf.if %19 {
      %c0_16 = arith.constant 0 : index
      %c0_17 = arith.constant 0 : index
      %20 = vector.load %arg11[%c0_16, %c0_17] : memref<16x32xf32, #tpu.memory_space<vmem>>, vector<16x32xf32>
      %c0_18 = arith.constant 0 : index
      %c0_19 = arith.constant 0 : index
      %21 = vector.load %arg8[%c0_18, %c0_19] : memref<1x32xf32, #tpu.memory_space<vmem>>, vector<1x32xf32>
      %22 = vector.broadcast %21 : vector<1x32xf32> to vector<16x32xf32>
      %23 = arith.addf %20, %22 : vector<16x32xf32>
      %c0_20 = arith.constant 0 : index
      %c0_21 = arith.constant 0 : index
      %24 = vector.load %arg2[%c0_20, %c0_21] : memref<16x32xf32, #tpu.memory_space<vmem>>, vector<16x32xf32>
      %25 = arith.addf %23, %24 : vector<16x32xf32>
      %c0_22 = arith.constant 0 : index
      %c0_23 = arith.constant 0 : index
      %26 = vector.load %arg9[%c0_22, %c0_23] : memref<16x32xf32, #tpu.memory_space<vmem>>, vector<16x32xf32>
      tpu.vector_store %arg9[%c0_22, %c0_23], %25 {strides = array<i32>} : memref<16x32xf32, #tpu.memory_space<vmem>>, vector<16x32xf32>,
    } else {
    }
    return
  }
  func.func @transform_0(%arg0: i32, %arg1: i32) -> (i32, i32) {
    %c0_i32 = arith.constant 0 : i32
    %c0_i32_0 = arith.constant 0 : i32
    return %arg0, %c0_i32 : i32, i32
  }
  func.func @transform_1(%arg0: i32, %arg1: i32) -> (i32, i32) {
    %c0_i32 = arith.constant 0 : i32
    %c0_i32_0 = arith.constant 0 : i32
    %c0_i32_1 = arith.constant 0 : i32
    return %c0_i32, %c0_i32_0 : i32, i32
  }
  func.func @transform_2(%arg0: i32, %arg1: i32) -> (i32, i32) {
    %c0_i32 = arith.constant 0 : i32
    %c0_i32_0 = arith.constant 0 : i32
    %c0_i32_1 = arith.constant 0 : i32
    return %c0_i32, %c0_i32_0 : i32, i32
  }
  func.func @transform_3(%arg0: i32, %arg1: i32) -> (i32, i32) {
    %c0_i32 = arith.constant 0 : i32
    %c0_i32_0 = arith.constant 0 : i32
    return %c0_i32, %arg1 : i32, i32
  }
  func.func @transform_4(%arg0: i32, %arg1: i32) -> (i32, i32) {
    %c0_i32 = arith.constant 0 : i32
    %c0_i32_0 = arith.constant 0 : i32
    return %c0_i32, %arg1 : i32, i32
  }
  func.func @transform_5(%arg0: i32, %arg1: i32) -> (i32, i32) {
    %c0_i32 = arith.constant 0 : i32
    %c0_i32_0 = arith.constant 0 : i32
    return %arg1, %c0_i32 : i32, i32
  }
  func.func @transform_6(%arg0: i32, %arg1: i32) -> (i32, i32) {
    %c0_i32 = arith.constant 0 : i32
    %c0_i32_0 = arith.constant 0 : i32
    %c0_i32_1 = arith.constant 0 : i32
    return %c0_i32, %c0_i32_0 : i32, i32
  }
  func.func @transform_7(%arg0: i32, %arg1: i32) -> (i32, i32) {
    %c0_i32 = arith.constant 0 : i32
    %c0_i32_0 = arith.constant 0 : i32
    return %arg0, %c0_i32 : i32, i32
  }
}

module attributes {stable_mosaic.version = 11 : i64} {
  func.func @_layernorm_kernel(%arg0: i32, %arg1: memref<16x32xf32, #tpu.memory_space<vmem>>, %arg2: memref<1x32xf32, #tpu.memory_space<vmem>>, %arg3: memref<1x32xf32, #tpu.memory_space<vmem>>, %arg4: memref<16x32xf32, #tpu.memory_space<vmem>>) attributes {dimension_semantics = [#tpu.dimension_semantics<parallel>], iteration_bounds = array<i64: 1>, scalar_prefetch = 0 : i64, scratch_operands = 0 : i64, tpu.core_type = #tpu.core_type<tc>, window_params = [{transform_indices = @transform_0, window_bounds = array<i64: 16, 32>}, {pipeline_mode = #tpu.pipeline_mode<synchronous>, transform_indices = @transform_1, window_bounds = array<i64: 1, 32>}, {pipeline_mode = #tpu.pipeline_mode<synchronous>, transform_indices = @transform_2, window_bounds = array<i64: 1, 32>}, {transform_indices = @transform_3, window_bounds = array<i64: 16, 32>}]} {
    %c0 = arith.constant 0 : index
    %c0_0 = arith.constant 0 : index
    %0 = vector.load %arg1[%c0, %c0_0] : memref<16x32xf32, #tpu.memory_space<vmem>>, vector<16x32xf32>
    %cst = arith.constant dense<0.000000e+00> : vector<16xf32>
    %1 = vector.multi_reduction <add>, %0, %cst [1] : vector<16x32xf32> to vector<16xf32>
    %2 = vector.shape_cast %1 : vector<16xf32> to vector<16x1xf32>
    %cst_1 = arith.constant 3.200000e+01 : f32
    %3 = vector.broadcast %cst_1 : f32 to vector<16x1xf32>
    %4 = arith.divf %2, %3 : vector<16x1xf32>
    %5 = vector.broadcast %4 : vector<16x1xf32> to vector<16x32xf32>
    %6 = arith.subf %0, %5 : vector<16x32xf32>
    %7 = arith.mulf %6, %6 : vector<16x32xf32>
    %cst_2 = arith.constant dense<0.000000e+00> : vector<16xf32>
    %8 = vector.multi_reduction <add>, %7, %cst_2 [1] : vector<16x32xf32> to vector<16xf32>
    %9 = vector.shape_cast %8 : vector<16xf32> to vector<16x1xf32>
    %cst_3 = arith.constant 3.200000e+01 : f32
    %10 = vector.broadcast %cst_3 : f32 to vector<16x1xf32>
    %11 = arith.divf %9, %10 : vector<16x1xf32>
    %12 = vector.broadcast %4 : vector<16x1xf32> to vector<16x32xf32>
    %13 = arith.subf %0, %12 : vector<16x32xf32>
    %cst_4 = arith.constant 9.99999974E-6 : f32
    %14 = vector.broadcast %cst_4 : f32 to vector<16x1xf32>
    %15 = arith.addf %11, %14 : vector<16x1xf32>
    %16 = math.rsqrt %15 : vector<16x1xf32>
    %17 = vector.broadcast %16 : vector<16x1xf32> to vector<16x32xf32>
    %18 = arith.mulf %13, %17 : vector<16x32xf32>
    %c0_5 = arith.constant 0 : index
    %c0_6 = arith.constant 0 : index
    %19 = vector.load %arg2[%c0_5, %c0_6] : memref<1x32xf32, #tpu.memory_space<vmem>>, vector<1x32xf32>
    %20 = vector.broadcast %19 : vector<1x32xf32> to vector<16x32xf32>
    %21 = arith.mulf %18, %20 : vector<16x32xf32>
    %c0_7 = arith.constant 0 : index
    %c0_8 = arith.constant 0 : index
    %22 = vector.load %arg3[%c0_7, %c0_8] : memref<1x32xf32, #tpu.memory_space<vmem>>, vector<1x32xf32>
    %23 = vector.broadcast %22 : vector<1x32xf32> to vector<16x32xf32>
    %24 = arith.addf %21, %23 : vector<16x32xf32>
    %c0_9 = arith.constant 0 : index
    %c0_10 = arith.constant 0 : index
    %25 = vector.load %arg4[%c0_9, %c0_10] : memref<16x32xf32, #tpu.memory_space<vmem>>, vector<16x32xf32>
    tpu.vector_store %arg4[%c0_9, %c0_10], %24 {strides = array<i32>} : memref<16x32xf32, #tpu.memory_space<vmem>>, vector<16x32xf32>,
    return
  }
  func.func @transform_0(%arg0: i32) -> (i32, i32) {
    %c0_i32 = arith.constant 0 : i32
    %c0_i32_0 = arith.constant 0 : i32
    return %arg0, %c0_i32 : i32, i32
  }
  func.func @transform_1(%arg0: i32) -> (i32, i32) {
    %c0_i32 = arith.constant 0 : i32
    %c0_i32_0 = arith.constant 0 : i32
    %c0_i32_1 = arith.constant 0 : i32
    return %c0_i32, %c0_i32_0 : i32, i32
  }
  func.func @transform_2(%arg0: i32) -> (i32, i32) {
    %c0_i32 = arith.constant 0 : i32
    %c0_i32_0 = arith.constant 0 : i32
    %c0_i32_1 = arith.constant 0 : i32
    return %c0_i32, %c0_i32_0 : i32, i32
  }
  func.func @transform_3(%arg0: i32) -> (i32, i32) {
    %c0_i32 = arith.constant 0 : i32
    %c0_i32_0 = arith.constant 0 : i32
    return %arg0, %c0_i32 : i32, i32
  }
}

module attributes {stable_mosaic.version = 11 : i64} {
  func.func @_proj_kernel(%arg0: i32, %arg1: memref<16x32xf32, #tpu.memory_space<vmem>>, %arg2: memref<32x32xbf16, #tpu.memory_space<vmem>>, %arg3: memref<1x32xf32, #tpu.memory_space<vmem>>, %arg4: memref<32x32xbf16, #tpu.memory_space<vmem>>, %arg5: memref<1x32xf32, #tpu.memory_space<vmem>>, %arg6: memref<16x32xbf16, #tpu.memory_space<vmem>>, %arg7: memref<16x32xbf16, #tpu.memory_space<vmem>>) attributes {dimension_semantics = [#tpu.dimension_semantics<parallel>], iteration_bounds = array<i64: 1>, scalar_prefetch = 0 : i64, scratch_operands = 0 : i64, tpu.core_type = #tpu.core_type<tc>, window_params = [{transform_indices = @transform_0, window_bounds = array<i64: 16, 32>}, {pipeline_mode = #tpu.pipeline_mode<synchronous>, transform_indices = @transform_1, window_bounds = array<i64: 32, 32>}, {pipeline_mode = #tpu.pipeline_mode<synchronous>, transform_indices = @transform_2, window_bounds = array<i64: 1, 32>}, {pipeline_mode = #tpu.pipeline_mode<synchronous>, transform_indices = @transform_3, window_bounds = array<i64: 32, 32>}, {pipeline_mode = #tpu.pipeline_mode<synchronous>, transform_indices = @transform_4, window_bounds = array<i64: 1, 32>}, {transform_indices = @transform_5, window_bounds = array<i64: 16, 32>}, {transform_indices = @transform_6, window_bounds = array<i64: 16, 32>}]} {
    %c0 = arith.constant 0 : index
    %c0_0 = arith.constant 0 : index
    %0 = vector.load %arg1[%c0, %c0_0] : memref<16x32xf32, #tpu.memory_space<vmem>>, vector<16x32xf32>
    %1 = arith.truncf %0 : vector<16x32xf32> to vector<16x32xbf16>
    %c0_1 = arith.constant 0 : index
    %c0_2 = arith.constant 0 : index
    %2 = vector.load %arg2[%c0_1, %c0_2] : memref<32x32xbf16, #tpu.memory_space<vmem>>, vector<32x32xbf16>
    %cst = arith.constant dense<0.000000e+00> : vector<16x32xf32>
    %3 = tpu.matmul %1, %2, %cst {dimension_numbers = #tpu.dot_dimension_numbers<[1], [0], [0], [1], [0, 0, 1, 1], [], []>} : vector<16x32xbf16>, vector<32x32xbf16>, vector<16x32xf32> -> vector<16x32xf32>
    %c0_3 = arith.constant 0 : index
    %c0_4 = arith.constant 0 : index
    %4 = vector.load %arg3[%c0_3, %c0_4] : memref<1x32xf32, #tpu.memory_space<vmem>>, vector<1x32xf32>
    %5 = vector.broadcast %4 : vector<1x32xf32> to vector<16x32xf32>
    %6 = arith.addf %3, %5 : vector<16x32xf32>
    %7 = arith.truncf %6 : vector<16x32xf32> to vector<16x32xbf16>
    %c0_5 = arith.constant 0 : index
    %c0_6 = arith.constant 0 : index
    %8 = vector.load %arg6[%c0_5, %c0_6] : memref<16x32xbf16, #tpu.memory_space<vmem>>, vector<16x32xbf16>
    tpu.vector_store %arg6[%c0_5, %c0_6], %7 {strides = array<i32>} : memref<16x32xbf16, #tpu.memory_space<vmem>>, vector<16x32xbf16>,
    %c0_7 = arith.constant 0 : index
    %c0_8 = arith.constant 0 : index
    %9 = vector.load %arg4[%c0_7, %c0_8] : memref<32x32xbf16, #tpu.memory_space<vmem>>, vector<32x32xbf16>
    %cst_9 = arith.constant dense<0.000000e+00> : vector<16x32xf32>
    %10 = tpu.matmul %1, %9, %cst_9 {dimension_numbers = #tpu.dot_dimension_numbers<[1], [0], [0], [1], [0, 0, 1, 1], [], []>} : vector<16x32xbf16>, vector<32x32xbf16>, vector<16x32xf32> -> vector<16x32xf32>
    %c0_10 = arith.constant 0 : index
    %c0_11 = arith.constant 0 : index
    %11 = vector.load %arg5[%c0_10, %c0_11] : memref<1x32xf32, #tpu.memory_space<vmem>>, vector<1x32xf32>
    %12 = vector.broadcast %11 : vector<1x32xf32> to vector<16x32xf32>
    %13 = arith.addf %10, %12 : vector<16x32xf32>
    %14 = arith.truncf %13 : vector<16x32xf32> to vector<16x32xbf16>
    %c0_12 = arith.constant 0 : index
    %c0_13 = arith.constant 0 : index
    %15 = vector.load %arg7[%c0_12, %c0_13] : memref<16x32xbf16, #tpu.memory_space<vmem>>, vector<16x32xbf16>
    tpu.vector_store %arg7[%c0_12, %c0_13], %14 {strides = array<i32>} : memref<16x32xbf16, #tpu.memory_space<vmem>>, vector<16x32xbf16>,
    return
  }
  func.func @transform_0(%arg0: i32) -> (i32, i32) {
    %c0_i32 = arith.constant 0 : i32
    %c0_i32_0 = arith.constant 0 : i32
    return %arg0, %c0_i32 : i32, i32
  }
  func.func @transform_1(%arg0: i32) -> (i32, i32) {
    %c0_i32 = arith.constant 0 : i32
    %c0_i32_0 = arith.constant 0 : i32
    %c0_i32_1 = arith.constant 0 : i32
    return %c0_i32, %c0_i32_0 : i32, i32
  }
  func.func @transform_2(%arg0: i32) -> (i32, i32) {
    %c0_i32 = arith.constant 0 : i32
    %c0_i32_0 = arith.constant 0 : i32
    %c0_i32_1 = arith.constant 0 : i32
    return %c0_i32, %c0_i32_0 : i32, i32
  }
  func.func @transform_3(%arg0: i32) -> (i32, i32) {
    %c0_i32 = arith.constant 0 : i32
    %c0_i32_0 = arith.constant 0 : i32
    %c0_i32_1 = arith.constant 0 : i32
    return %c0_i32, %c0_i32_0 : i32, i32
  }
  func.func @transform_4(%arg0: i32) -> (i32, i32) {
    %c0_i32 = arith.constant 0 : i32
    %c0_i32_0 = arith.constant 0 : i32
    %c0_i32_1 = arith.constant 0 : i32
    return %c0_i32, %c0_i32_0 : i32, i32
  }
  func.func @transform_5(%arg0: i32) -> (i32, i32) {
    %c0_i32 = arith.constant 0 : i32
    %c0_i32_0 = arith.constant 0 : i32
    return %arg0, %c0_i32 : i32, i32
  }
  func.func @transform_6(%arg0: i32) -> (i32, i32) {
    %c0_i32 = arith.constant 0 : i32
    %c0_i32_0 = arith.constant 0 : i32
    return %arg0, %c0_i32 : i32, i32
  }
}

module attributes {stable_mosaic.version = 11 : i64} {
  func.func @_proj_kernel(%arg0: i32, %arg1: memref<16x32xf32, #tpu.memory_space<vmem>>, %arg2: memref<1x32xf32, #tpu.memory_space<vmem>>, %arg3: memref<1x32xf32, #tpu.memory_space<vmem>>, %arg4: memref<32x32xbf16, #tpu.memory_space<vmem>>, %arg5: memref<1x32xf32, #tpu.memory_space<vmem>>, %arg6: memref<32x32xbf16, #tpu.memory_space<vmem>>, %arg7: memref<1x32xf32, #tpu.memory_space<vmem>>, %arg8: memref<32x32xbf16, #tpu.memory_space<vmem>>, %arg9: memref<1x32xf32, #tpu.memory_space<vmem>>, %arg10: memref<16x32xbf16, #tpu.memory_space<vmem>>, %arg11: memref<16x32xbf16, #tpu.memory_space<vmem>>, %arg12: memref<16x32xbf16, #tpu.memory_space<vmem>>) attributes {dimension_semantics = [#tpu.dimension_semantics<parallel>], iteration_bounds = array<i64: 1>, scalar_prefetch = 0 : i64, scratch_operands = 0 : i64, tpu.core_type = #tpu.core_type<tc>, window_params = [{transform_indices = @transform_0, window_bounds = array<i64: 16, 32>}, {pipeline_mode = #tpu.pipeline_mode<synchronous>, transform_indices = @transform_1, window_bounds = array<i64: 1, 32>}, {pipeline_mode = #tpu.pipeline_mode<synchronous>, transform_indices = @transform_2, window_bounds = array<i64: 1, 32>}, {pipeline_mode = #tpu.pipeline_mode<synchronous>, transform_indices = @transform_3, window_bounds = array<i64: 32, 32>}, {pipeline_mode = #tpu.pipeline_mode<synchronous>, transform_indices = @transform_4, window_bounds = array<i64: 1, 32>}, {pipeline_mode = #tpu.pipeline_mode<synchronous>, transform_indices = @transform_5, window_bounds = array<i64: 32, 32>}, {pipeline_mode = #tpu.pipeline_mode<synchronous>, transform_indices = @transform_6, window_bounds = array<i64: 1, 32>}, {pipeline_mode = #tpu.pipeline_mode<synchronous>, transform_indices = @transform_7, window_bounds = array<i64: 32, 32>}, {pipeline_mode = #tpu.pipeline_mode<synchronous>, transform_indices = @transform_8, window_bounds = array<i64: 1, 32>}, {transform_indices = @transform_9, window_bounds = array<i64: 16, 32>}, {transform_indices = @transform_10, window_bounds = array<i64: 16, 32>}, {transform_indices = @transform_11, window_bounds = array<i64: 16, 32>}]} {
    %c0 = arith.constant 0 : index
    %c0_0 = arith.constant 0 : index
    %0 = vector.load %arg1[%c0, %c0_0] : memref<16x32xf32, #tpu.memory_space<vmem>>, vector<16x32xf32>
    %cst = arith.constant dense<0.000000e+00> : vector<16xf32>
    %1 = vector.multi_reduction <add>, %0, %cst [1] : vector<16x32xf32> to vector<16xf32>
    %2 = vector.shape_cast %1 : vector<16xf32> to vector<16x1xf32>
    %cst_1 = arith.constant 3.200000e+01 : f32
    %3 = vector.broadcast %cst_1 : f32 to vector<16x1xf32>
    %4 = arith.divf %2, %3 : vector<16x1xf32>
    %5 = vector.broadcast %4 : vector<16x1xf32> to vector<16x32xf32>
    %6 = arith.subf %0, %5 : vector<16x32xf32>
    %7 = arith.mulf %6, %6 : vector<16x32xf32>
    %cst_2 = arith.constant dense<0.000000e+00> : vector<16xf32>
    %8 = vector.multi_reduction <add>, %7, %cst_2 [1] : vector<16x32xf32> to vector<16xf32>
    %9 = vector.shape_cast %8 : vector<16xf32> to vector<16x1xf32>
    %cst_3 = arith.constant 3.200000e+01 : f32
    %10 = vector.broadcast %cst_3 : f32 to vector<16x1xf32>
    %11 = arith.divf %9, %10 : vector<16x1xf32>
    %12 = vector.broadcast %4 : vector<16x1xf32> to vector<16x32xf32>
    %13 = arith.subf %0, %12 : vector<16x32xf32>
    %cst_4 = arith.constant 9.99999974E-6 : f32
    %14 = vector.broadcast %cst_4 : f32 to vector<16x1xf32>
    %15 = arith.addf %11, %14 : vector<16x1xf32>
    %16 = math.rsqrt %15 : vector<16x1xf32>
    %17 = vector.broadcast %16 : vector<16x1xf32> to vector<16x32xf32>
    %18 = arith.mulf %13, %17 : vector<16x32xf32>
    %c0_5 = arith.constant 0 : index
    %c0_6 = arith.constant 0 : index
    %19 = vector.load %arg2[%c0_5, %c0_6] : memref<1x32xf32, #tpu.memory_space<vmem>>, vector<1x32xf32>
    %20 = vector.broadcast %19 : vector<1x32xf32> to vector<16x32xf32>
    %21 = arith.mulf %18, %20 : vector<16x32xf32>
    %c0_7 = arith.constant 0 : index
    %c0_8 = arith.constant 0 : index
    %22 = vector.load %arg3[%c0_7, %c0_8] : memref<1x32xf32, #tpu.memory_space<vmem>>, vector<1x32xf32>
    %23 = vector.broadcast %22 : vector<1x32xf32> to vector<16x32xf32>
    %24 = arith.addf %21, %23 : vector<16x32xf32>
    %25 = arith.truncf %24 : vector<16x32xf32> to vector<16x32xbf16>
    %c0_9 = arith.constant 0 : index
    %c0_10 = arith.constant 0 : index
    %26 = vector.load %arg4[%c0_9, %c0_10] : memref<32x32xbf16, #tpu.memory_space<vmem>>, vector<32x32xbf16>
    %cst_11 = arith.constant dense<0.000000e+00> : vector<16x32xf32>
    %27 = tpu.matmul %25, %26, %cst_11 {dimension_numbers = #tpu.dot_dimension_numbers<[1], [0], [0], [1], [0, 0, 1, 1], [], []>} : vector<16x32xbf16>, vector<32x32xbf16>, vector<16x32xf32> -> vector<16x32xf32>
    %c0_12 = arith.constant 0 : index
    %c0_13 = arith.constant 0 : index
    %28 = vector.load %arg5[%c0_12, %c0_13] : memref<1x32xf32, #tpu.memory_space<vmem>>, vector<1x32xf32>
    %29 = vector.broadcast %28 : vector<1x32xf32> to vector<16x32xf32>
    %30 = arith.addf %27, %29 : vector<16x32xf32>
    %31 = arith.truncf %30 : vector<16x32xf32> to vector<16x32xbf16>
    %c0_14 = arith.constant 0 : index
    %c0_15 = arith.constant 0 : index
    %32 = vector.load %arg10[%c0_14, %c0_15] : memref<16x32xbf16, #tpu.memory_space<vmem>>, vector<16x32xbf16>
    tpu.vector_store %arg10[%c0_14, %c0_15], %31 {strides = array<i32>} : memref<16x32xbf16, #tpu.memory_space<vmem>>, vector<16x32xbf16>,
    %c0_16 = arith.constant 0 : index
    %c0_17 = arith.constant 0 : index
    %33 = vector.load %arg6[%c0_16, %c0_17] : memref<32x32xbf16, #tpu.memory_space<vmem>>, vector<32x32xbf16>
    %cst_18 = arith.constant dense<0.000000e+00> : vector<16x32xf32>
    %34 = tpu.matmul %25, %33, %cst_18 {dimension_numbers = #tpu.dot_dimension_numbers<[1], [0], [0], [1], [0, 0, 1, 1], [], []>} : vector<16x32xbf16>, vector<32x32xbf16>, vector<16x32xf32> -> vector<16x32xf32>
    %c0_19 = arith.constant 0 : index
    %c0_20 = arith.constant 0 : index
    %35 = vector.load %arg7[%c0_19, %c0_20] : memref<1x32xf32, #tpu.memory_space<vmem>>, vector<1x32xf32>
    %36 = vector.broadcast %35 : vector<1x32xf32> to vector<16x32xf32>
    %37 = arith.addf %34, %36 : vector<16x32xf32>
    %38 = arith.truncf %37 : vector<16x32xf32> to vector<16x32xbf16>
    %c0_21 = arith.constant 0 : index
    %c0_22 = arith.constant 0 : index
    %39 = vector.load %arg11[%c0_21, %c0_22] : memref<16x32xbf16, #tpu.memory_space<vmem>>, vector<16x32xbf16>
    tpu.vector_store %arg11[%c0_21, %c0_22], %38 {strides = array<i32>} : memref<16x32xbf16, #tpu.memory_space<vmem>>, vector<16x32xbf16>,
    %c0_23 = arith.constant 0 : index
    %c0_24 = arith.constant 0 : index
    %40 = vector.load %arg8[%c0_23, %c0_24] : memref<32x32xbf16, #tpu.memory_space<vmem>>, vector<32x32xbf16>
    %cst_25 = arith.constant dense<0.000000e+00> : vector<16x32xf32>
    %41 = tpu.matmul %25, %40, %cst_25 {dimension_numbers = #tpu.dot_dimension_numbers<[1], [0], [0], [1], [0, 0, 1, 1], [], []>} : vector<16x32xbf16>, vector<32x32xbf16>, vector<16x32xf32> -> vector<16x32xf32>
    %c0_26 = arith.constant 0 : index
    %c0_27 = arith.constant 0 : index
    %42 = vector.load %arg9[%c0_26, %c0_27] : memref<1x32xf32, #tpu.memory_space<vmem>>, vector<1x32xf32>
    %43 = vector.broadcast %42 : vector<1x32xf32> to vector<16x32xf32>
    %44 = arith.addf %41, %43 : vector<16x32xf32>
    %45 = arith.truncf %44 : vector<16x32xf32> to vector<16x32xbf16>
    %c0_28 = arith.constant 0 : index
    %c0_29 = arith.constant 0 : index
    %46 = vector.load %arg12[%c0_28, %c0_29] : memref<16x32xbf16, #tpu.memory_space<vmem>>, vector<16x32xbf16>
    tpu.vector_store %arg12[%c0_28, %c0_29], %45 {strides = array<i32>} : memref<16x32xbf16, #tpu.memory_space<vmem>>, vector<16x32xbf16>,
    return
  }
  func.func @transform_0(%arg0: i32) -> (i32, i32) {
    %c0_i32 = arith.constant 0 : i32
    %c0_i32_0 = arith.constant 0 : i32
    return %arg0, %c0_i32 : i32, i32
  }
  func.func @transform_1(%arg0: i32) -> (i32, i32) {
    %c0_i32 = arith.constant 0 : i32
    %c0_i32_0 = arith.constant 0 : i32
    %c0_i32_1 = arith.constant 0 : i32
    return %c0_i32, %c0_i32_0 : i32, i32
  }
  func.func @transform_2(%arg0: i32) -> (i32, i32) {
    %c0_i32 = arith.constant 0 : i32
    %c0_i32_0 = arith.constant 0 : i32
    %c0_i32_1 = arith.constant 0 : i32
    return %c0_i32, %c0_i32_0 : i32, i32
  }
  func.func @transform_3(%arg0: i32) -> (i32, i32) {
    %c0_i32 = arith.constant 0 : i32
    %c0_i32_0 = arith.constant 0 : i32
    %c0_i32_1 = arith.constant 0 : i32
    return %c0_i32, %c0_i32_0 : i32, i32
  }
  func.func @transform_4(%arg0: i32) -> (i32, i32) {
    %c0_i32 = arith.constant 0 : i32
    %c0_i32_0 = arith.constant 0 : i32
    %c0_i32_1 = arith.constant 0 : i32
    return %c0_i32, %c0_i32_0 : i32, i32
  }
  func.func @transform_5(%arg0: i32) -> (i32, i32) {
    %c0_i32 = arith.constant 0 : i32
    %c0_i32_0 = arith.constant 0 : i32
    %c0_i32_1 = arith.constant 0 : i32
    return %c0_i32, %c0_i32_0 : i32, i32
  }
  func.func @transform_6(%arg0: i32) -> (i32, i32) {
    %c0_i32 = arith.constant 0 : i32
    %c0_i32_0 = arith.constant 0 : i32
    %c0_i32_1 = arith.constant 0 : i32
    return %c0_i32, %c0_i32_0 : i32, i32
  }
  func.func @transform_7(%arg0: i32) -> (i32, i32) {
    %c0_i32 = arith.constant 0 : i32
    %c0_i32_0 = arith.constant 0 : i32
    %c0_i32_1 = arith.constant 0 : i32
    return %c0_i32, %c0_i32_0 : i32, i32
  }
  func.func @transform_8(%arg0: i32) -> (i32, i32) {
    %c0_i32 = arith.constant 0 : i32
    %c0_i32_0 = arith.constant 0 : i32
    %c0_i32_1 = arith.constant 0 : i32
    return %c0_i32, %c0_i32_0 : i32, i32
  }
  func.func @transform_9(%arg0: i32) -> (i32, i32) {
    %c0_i32 = arith.constant 0 : i32
    %c0_i32_0 = arith.constant 0 : i32
    return %arg0, %c0_i32 : i32, i32
  }
  func.func @transform_10(%arg0: i32) -> (i32, i32) {
    %c0_i32 = arith.constant 0 : i32
    %c0_i32_0 = arith.constant 0 : i32
    return %arg0, %c0_i32 : i32, i32
  }
  func.func @transform_11(%arg0: i32) -> (i32, i32) {
    %c0_i32 = arith.constant 0 : i32
    %c0_i32_0 = arith.constant 0 : i32
    return %arg0, %c0_i32 : i32, i32
  }
}

module attributes {stable_mosaic.version = 11 : i64} {
  func.func @_proj_kernel(%arg0: i32, %arg1: memref<16x32xf32, #tpu.memory_space<vmem>>, %arg2: memref<32x32xbf16, #tpu.memory_space<vmem>>, %arg3: memref<1x32xf32, #tpu.memory_space<vmem>>, %arg4: memref<32x32xbf16, #tpu.memory_space<vmem>>, %arg5: memref<1x32xf32, #tpu.memory_space<vmem>>, %arg6: memref<16x32xbf16, #tpu.memory_space<vmem>>, %arg7: memref<16x32xbf16, #tpu.memory_space<vmem>>) attributes {dimension_semantics = [#tpu.dimension_semantics<parallel>], iteration_bounds = array<i64: 1>, scalar_prefetch = 0 : i64, scratch_operands = 0 : i64, tpu.core_type = #tpu.core_type<tc>, window_params = [{transform_indices = @transform_0, window_bounds = array<i64: 16, 32>}, {pipeline_mode = #tpu.pipeline_mode<synchronous>, transform_indices = @transform_1, window_bounds = array<i64: 32, 32>}, {pipeline_mode = #tpu.pipeline_mode<synchronous>, transform_indices = @transform_2, window_bounds = array<i64: 1, 32>}, {pipeline_mode = #tpu.pipeline_mode<synchronous>, transform_indices = @transform_3, window_bounds = array<i64: 32, 32>}, {pipeline_mode = #tpu.pipeline_mode<synchronous>, transform_indices = @transform_4, window_bounds = array<i64: 1, 32>}, {transform_indices = @transform_5, window_bounds = array<i64: 16, 32>}, {transform_indices = @transform_6, window_bounds = array<i64: 16, 32>}]} {
    %c0 = arith.constant 0 : index
    %c0_0 = arith.constant 0 : index
    %0 = vector.load %arg1[%c0, %c0_0] : memref<16x32xf32, #tpu.memory_space<vmem>>, vector<16x32xf32>
    %1 = arith.truncf %0 : vector<16x32xf32> to vector<16x32xbf16>
    %c0_1 = arith.constant 0 : index
    %c0_2 = arith.constant 0 : index
    %2 = vector.load %arg2[%c0_1, %c0_2] : memref<32x32xbf16, #tpu.memory_space<vmem>>, vector<32x32xbf16>
    %cst = arith.constant dense<0.000000e+00> : vector<16x32xf32>
    %3 = tpu.matmul %1, %2, %cst {dimension_numbers = #tpu.dot_dimension_numbers<[1], [0], [0], [1], [0, 0, 1, 1], [], []>} : vector<16x32xbf16>, vector<32x32xbf16>, vector<16x32xf32> -> vector<16x32xf32>
    %c0_3 = arith.constant 0 : index
    %c0_4 = arith.constant 0 : index
    %4 = vector.load %arg3[%c0_3, %c0_4] : memref<1x32xf32, #tpu.memory_space<vmem>>, vector<1x32xf32>
    %5 = vector.broadcast %4 : vector<1x32xf32> to vector<16x32xf32>
    %6 = arith.addf %3, %5 : vector<16x32xf32>
    %7 = arith.truncf %6 : vector<16x32xf32> to vector<16x32xbf16>
    %c0_5 = arith.constant 0 : index
    %c0_6 = arith.constant 0 : index
    %8 = vector.load %arg6[%c0_5, %c0_6] : memref<16x32xbf16, #tpu.memory_space<vmem>>, vector<16x32xbf16>
    tpu.vector_store %arg6[%c0_5, %c0_6], %7 {strides = array<i32>} : memref<16x32xbf16, #tpu.memory_space<vmem>>, vector<16x32xbf16>,
    %c0_7 = arith.constant 0 : index
    %c0_8 = arith.constant 0 : index
    %9 = vector.load %arg4[%c0_7, %c0_8] : memref<32x32xbf16, #tpu.memory_space<vmem>>, vector<32x32xbf16>
    %cst_9 = arith.constant dense<0.000000e+00> : vector<16x32xf32>
    %10 = tpu.matmul %1, %9, %cst_9 {dimension_numbers = #tpu.dot_dimension_numbers<[1], [0], [0], [1], [0, 0, 1, 1], [], []>} : vector<16x32xbf16>, vector<32x32xbf16>, vector<16x32xf32> -> vector<16x32xf32>
    %c0_10 = arith.constant 0 : index
    %c0_11 = arith.constant 0 : index
    %11 = vector.load %arg5[%c0_10, %c0_11] : memref<1x32xf32, #tpu.memory_space<vmem>>, vector<1x32xf32>
    %12 = vector.broadcast %11 : vector<1x32xf32> to vector<16x32xf32>
    %13 = arith.addf %10, %12 : vector<16x32xf32>
    %14 = arith.truncf %13 : vector<16x32xf32> to vector<16x32xbf16>
    %c0_12 = arith.constant 0 : index
    %c0_13 = arith.constant 0 : index
    %15 = vector.load %arg7[%c0_12, %c0_13] : memref<16x32xbf16, #tpu.memory_space<vmem>>, vector<16x32xbf16>
    tpu.vector_store %arg7[%c0_12, %c0_13], %14 {strides = array<i32>} : memref<16x32xbf16, #tpu.memory_space<vmem>>, vector<16x32xbf16>,
    return
  }
  func.func @transform_0(%arg0: i32) -> (i32, i32) {
    %c0_i32 = arith.constant 0 : i32
    %c0_i32_0 = arith.constant 0 : i32
    return %arg0, %c0_i32 : i32, i32
  }
  func.func @transform_1(%arg0: i32) -> (i32, i32) {
    %c0_i32 = arith.constant 0 : i32
    %c0_i32_0 = arith.constant 0 : i32
    %c0_i32_1 = arith.constant 0 : i32
    return %c0_i32, %c0_i32_0 : i32, i32
  }
  func.func @transform_2(%arg0: i32) -> (i32, i32) {
    %c0_i32 = arith.constant 0 : i32
    %c0_i32_0 = arith.constant 0 : i32
    %c0_i32_1 = arith.constant 0 : i32
    return %c0_i32, %c0_i32_0 : i32, i32
  }
  func.func @transform_3(%arg0: i32) -> (i32, i32) {
    %c0_i32 = arith.constant 0 : i32
    %c0_i32_0 = arith.constant 0 : i32
    %c0_i32_1 = arith.constant 0 : i32
    return %c0_i32, %c0_i32_0 : i32, i32
  }
  func.func @transform_4(%arg0: i32) -> (i32, i32) {
    %c0_i32 = arith.constant 0 : i32
    %c0_i32_0 = arith.constant 0 : i32
    %c0_i32_1 = arith.constant 0 : i32
    return %c0_i32, %c0_i32_0 : i32, i32
  }
  func.func @transform_5(%arg0: i32) -> (i32, i32) {
    %c0_i32 = arith.constant 0 : i32
    %c0_i32_0 = arith.constant 0 : i32
    return %arg0, %c0_i32 : i32, i32
  }
  func.func @transform_6(%arg0: i32) -> (i32, i32) {
    %c0_i32 = arith.constant 0 : i32
    %c0_i32_0 = arith.constant 0 : i32
    return %arg0, %c0_i32 : i32, i32
  }
}

module attributes {stable_mosaic.version = 11 : i64} {
  func.func @_attn_kernel(%arg0: i32, %arg1: i32, %arg2: memref<1x4x8x8xbf16, #tpu.memory_space<vmem>>, %arg3: memref<1x4x8x8xbf16, #tpu.memory_space<vmem>>, %arg4: memref<1x4x8x8xbf16, #tpu.memory_space<vmem>>, %arg5: memref<8x8xf32, #tpu.memory_space<vmem>>, %arg6: memref<4x8x32xbf16, #tpu.memory_space<vmem>>, %arg7: memref<1x32xf32, #tpu.memory_space<vmem>>, %arg8: memref<1x8x32xf32, #tpu.memory_space<vmem>>, %arg9: memref<1x8x32xf32, #tpu.memory_space<vmem>>, %arg10: memref<1x4x8x8xf32, #tpu.memory_space<vmem>>) attributes {dimension_semantics = [#tpu.dimension_semantics<parallel>, #tpu.dimension_semantics<parallel>], iteration_bounds = array<i64: 2, 1>, scalar_prefetch = 0 : i64, scratch_operands = 0 : i64, tpu.core_type = #tpu.core_type<tc>, window_params = [{transform_indices = @transform_0, window_bounds = array<i64: 1, 4, 8, 8>}, {transform_indices = @transform_1, window_bounds = array<i64: 1, 4, 8, 8>}, {transform_indices = @transform_2, window_bounds = array<i64: 1, 4, 8, 8>}, {transform_indices = @transform_3, window_bounds = array<i64: 8, 8>}, {pipeline_mode = #tpu.pipeline_mode<synchronous>, transform_indices = @transform_4, window_bounds = array<i64: 4, 8, 32>}, {pipeline_mode = #tpu.pipeline_mode<synchronous>, transform_indices = @transform_5, window_bounds = array<i64: 1, 32>}, {transform_indices = @transform_6, window_bounds = array<i64: 1, 8, 32>}, {transform_indices = @transform_7, window_bounds = array<i64: 1, 8, 32>}, {transform_indices = @transform_8, window_bounds = array<i64: 1, 4, 8, 8>}]} {
    %c0 = arith.constant 0 : index
    %c0_0 = arith.constant 0 : index
    %c0_1 = arith.constant 0 : index
    %c0_2 = arith.constant 0 : index
    %0 = vector.load %arg2[%c0, %c0_0, %c0_1, %c0_2] : memref<1x4x8x8xbf16, #tpu.memory_space<vmem>>, vector<1x4x8x8xbf16>
    %1 = vector.shape_cast %0 : vector<1x4x8x8xbf16> to vector<4x8x8xbf16>
    %2 = arith.extf %1 : vector<4x8x8xbf16> to vector<4x8x8xf32>
    %cst = arith.constant 0.353553385 : f32
    %3 = vector.broadcast %cst : f32 to vector<4x8x8xf32>
    %4 = arith.mulf %2, %3 : vector<4x8x8xf32>
    %5 = arith.truncf %4 : vector<4x8x8xf32> to vector<4x8x8xbf16>
    %c0_3 = arith.constant 0 : index
    %c0_4 = arith.constant 0 : index
    %c0_5 = arith.constant 0 : index
    %c0_6 = arith.constant 0 : index
    %6 = vector.load %arg3[%c0_3, %c0_4, %c0_5, %c0_6] : memref<1x4x8x8xbf16, #tpu.memory_space<vmem>>, vector<1x4x8x8xbf16>
    %7 = vector.shape_cast %6 : vector<1x4x8x8xbf16> to vector<4x8x8xbf16>
    %c0_7 = arith.constant 0 : index
    %c0_8 = arith.constant 0 : index
    %c0_9 = arith.constant 0 : index
    %c0_10 = arith.constant 0 : index
    %8 = vector.load %arg4[%c0_7, %c0_8, %c0_9, %c0_10] : memref<1x4x8x8xbf16, #tpu.memory_space<vmem>>, vector<1x4x8x8xbf16>
    %9 = vector.shape_cast %8 : vector<1x4x8x8xbf16> to vector<4x8x8xbf16>
    %cst_11 = arith.constant dense<0.000000e+00> : vector<4x8x8xf32>
    %10 = tpu.matmul %5, %7, %cst_11 {dimension_numbers = #tpu.dot_dimension_numbers<[2], [2], [1], [1], [0, 0, 0, 1, 1, 1], [0], [0]>} : vector<4x8x8xbf16>, vector<4x8x8xbf16>, vector<4x8x8xf32> -> vector<4x8x8xf32>
    %c0_12 = arith.constant 0 : index
    %c0_13 = arith.constant 0 : index
    %11 = vector.load %arg5[%c0_12, %c0_13] : memref<8x8xf32, #tpu.memory_space<vmem>>, vector<8x8xf32>
    %12 = vector.shape_cast %11 : vector<8x8xf32> to vector<1x8x8xf32>
    %13 = vector.broadcast %12 : vector<1x8x8xf32> to vector<4x8x8xf32>
    %14 = arith.addf %10, %13 : vector<4x8x8xf32>
    %cst_14 = arith.constant dense<0xFF800000> : vector<4x8xf32>
    %15 = vector.multi_reduction <maximumf>, %14, %cst_14 [2] : vector<4x8x8xf32> to vector<4x8xf32>
    %16 = vector.shape_cast %15 : vector<4x8xf32> to vector<4x8x1xf32>
    %17 = vector.broadcast %16 : vector<4x8x1xf32> to vector<4x8x8xf32>
    %18 = arith.subf %14, %17 : vector<4x8x8xf32>
    %19 = math.exp %18 : vector<4x8x8xf32>
    %cst_15 = arith.constant dense<0.000000e+00> : vector<4x8xf32>
    %20 = vector.multi_reduction <add>, %19, %cst_15 [2] : vector<4x8x8xf32> to vector<4x8xf32>
    %21 = vector.shape_cast %20 : vector<4x8xf32> to vector<4x8x1xf32>
    %22 = tpu.reciprocal %21 {approx = true} : vector<4x8x1xf32> -> vector<4x8x1xf32>
    %23 = vector.broadcast %22 : vector<4x8x1xf32> to vector<4x8x8xf32>
    %24 = arith.mulf %19, %23 : vector<4x8x8xf32>
    %c0_16 = arith.constant 0 : index
    %c0_17 = arith.constant 0 : index
    %c0_18 = arith.constant 0 : index
    %c0_19 = arith.constant 0 : index
    %25 = vector.load %arg10[%c0_16, %c0_17, %c0_18, %c0_19] : memref<1x4x8x8xf32, #tpu.memory_space<vmem>>, vector<1x4x8x8xf32>
    %26 = vector.shape_cast %25 : vector<1x4x8x8xf32> to vector<4x8x8xf32>
    %27 = vector.shape_cast %24 : vector<4x8x8xf32> to vector<1x4x8x8xf32>
    tpu.vector_store %arg10[%c0_16, %c0_17, %c0_18, %c0_19], %27 {strides = array<i32>} : memref<1x4x8x8xf32, #tpu.memory_space<vmem>>, vector<1x4x8x8xf32>,
    %28 = arith.truncf %24 : vector<4x8x8xf32> to vector<4x8x8xbf16>
    %cst_20 = arith.constant dense<0.000000e+00> : vector<4x8x8xf32>
    %29 = tpu.matmul %28, %9, %cst_20 {dimension_numbers = #tpu.dot_dimension_numbers<[2], [1], [1], [2], [0, 0, 0, 1, 1, 2], [0], [0]>} : vector<4x8x8xbf16>, vector<4x8x8xbf16>, vector<4x8x8xf32> -> vector<4x8x8xf32>
    %c0_21 = arith.constant 0 : index
    %c0_22 = arith.constant 0 : index
    %c0_23 = arith.constant 0 : index
    %30 = vector.load %arg8[%c0_21, %c0_22, %c0_23] : memref<1x8x32xf32, #tpu.memory_space<vmem>>, vector<1x8x32xf32>
    %31 = vector.shape_cast %30 : vector<1x8x32xf32> to vector<8x32xf32>
    %c0_24 = arith.constant 0 : index
    %c0_25 = arith.constant 0 : index
    %32 = vector.load %arg7[%c0_24, %c0_25] : memref<1x32xf32, #tpu.memory_space<vmem>>, vector<1x32xf32>
    %33 = vector.broadcast %32 : vector<1x32xf32> to vector<8x32xf32>
    %34 = arith.addf %31, %33 : vector<8x32xf32>
    %35 = vector.extract_strided_slice %29 {offsets = [0, 0, 0], sizes = [1, 8, 8], strides = [1, 1, 1]} : vector<4x8x8xf32> to vector<1x8x8xf32>
    %36 = vector.shape_cast %35 : vector<1x8x8xf32> to vector<8x8xf32>
    %37 = arith.truncf %36 : vector<8x8xf32> to vector<8x8xbf16>
    %c0_26 = arith.constant 0 : index
    %c0_27 = arith.constant 0 : index
    %c0_28 = arith.constant 0 : index
    %38 = vector.load %arg6[%c0_26, %c0_27, %c0_28] : memref<4x8x32xbf16, #tpu.memory_space<vmem>>, vector<1x8x32xbf16>
    %39 = vector.shape_cast %38 : vector<1x8x32xbf16> to vector<8x32xbf16>
    %cst_29 = arith.constant dense<0.000000e+00> : vector<8x32xf32>
    %40 = tpu.matmul %37, %39, %cst_29 {dimension_numbers = #tpu.dot_dimension_numbers<[1], [0], [0], [1], [0, 0, 1, 1], [], []>} : vector<8x8xbf16>, vector<8x32xbf16>, vector<8x32xf32> -> vector<8x32xf32>
    %41 = arith.addf %34, %40 : vector<8x32xf32>
    %42 = vector.extract_strided_slice %29 {offsets = [1, 0, 0], sizes = [1, 8, 8], strides = [1, 1, 1]} : vector<4x8x8xf32> to vector<1x8x8xf32>
    %43 = vector.shape_cast %42 : vector<1x8x8xf32> to vector<8x8xf32>
    %44 = arith.truncf %43 : vector<8x8xf32> to vector<8x8xbf16>
    %c1 = arith.constant 1 : index
    %c0_30 = arith.constant 0 : index
    %c0_31 = arith.constant 0 : index
    %45 = vector.load %arg6[%c1, %c0_30, %c0_31] : memref<4x8x32xbf16, #tpu.memory_space<vmem>>, vector<1x8x32xbf16>
    %46 = vector.shape_cast %45 : vector<1x8x32xbf16> to vector<8x32xbf16>
    %cst_32 = arith.constant dense<0.000000e+00> : vector<8x32xf32>
    %47 = tpu.matmul %44, %46, %cst_32 {dimension_numbers = #tpu.dot_dimension_numbers<[1], [0], [0], [1], [0, 0, 1, 1], [], []>} : vector<8x8xbf16>, vector<8x32xbf16>, vector<8x32xf32> -> vector<8x32xf32>
    %48 = arith.addf %41, %47 : vector<8x32xf32>
    %49 = vector.extract_strided_slice %29 {offsets = [2, 0, 0], sizes = [1, 8, 8], strides = [1, 1, 1]} : vector<4x8x8xf32> to vector<1x8x8xf32>
    %50 = vector.shape_cast %49 : vector<1x8x8xf32> to vector<8x8xf32>
    %51 = arith.truncf %50 : vector<8x8xf32> to vector<8x8xbf16>
    %c2 = arith.constant 2 : index
    %c0_33 = arith.constant 0 : index
    %c0_34 = arith.constant 0 : index
    %52 = vector.load %arg6[%c2, %c0_33, %c0_34] : memref<4x8x32xbf16, #tpu.memory_space<vmem>>, vector<1x8x32xbf16>
    %53 = vector.shape_cast %52 : vector<1x8x32xbf16> to vector<8x32xbf16>
    %cst_35 = arith.constant dense<0.000000e+00> : vector<8x32xf32>
    %54 = tpu.matmul %51, %53, %cst_35 {dimension_numbers = #tpu.dot_dimension_numbers<[1], [0], [0], [1], [0, 0, 1, 1], [], []>} : vector<8x8xbf16>, vector<8x32xbf16>, vector<8x32xf32> -> vector<8x32xf32>
    %55 = arith.addf %48, %54 : vector<8x32xf32>
    %56 = vector.extract_strided_slice %29 {offsets = [3, 0, 0], sizes = [1, 8, 8], strides = [1, 1, 1]} : vector<4x8x8xf32> to vector<1x8x8xf32>
    %57 = vector.shape_cast %56 : vector<1x8x8xf32> to vector<8x8xf32>
    %58 = arith.truncf %57 : vector<8x8xf32> to vector<8x8xbf16>
    %c3 = arith.constant 3 : index
    %c0_36 = arith.constant 0 : index
    %c0_37 = arith.constant 0 : index
    %59 = vector.load %arg6[%c3, %c0_36, %c0_37] : memref<4x8x32xbf16, #tpu.memory_space<vmem>>, vector<1x8x32xbf16>
    %60 = vector.shape_cast %59 : vector<1x8x32xbf16> to vector<8x32xbf16>
    %cst_38 = arith.constant dense<0.000000e+00> : vector<8x32xf32>
    %61 = tpu.matmul %58, %60, %cst_38 {dimension_numbers = #tpu.dot_dimension_numbers<[1], [0], [0], [1], [0, 0, 1, 1], [], []>} : vector<8x8xbf16>, vector<8x32xbf16>, vector<8x32xf32> -> vector<8x32xf32>
    %62 = arith.addf %55, %61 : vector<8x32xf32>
    %c0_39 = arith.constant 0 : index
    %c0_40 = arith.constant 0 : index
    %c0_41 = arith.constant 0 : index
    %63 = vector.load %arg9[%c0_39, %c0_40, %c0_41] : memref<1x8x32xf32, #tpu.memory_space<vmem>>, vector<1x8x32xf32>
    %64 = vector.shape_cast %63 : vector<1x8x32xf32> to vector<8x32xf32>
    %65 = vector.shape_cast %62 : vector<8x32xf32> to vector<1x8x32xf32>
    tpu.vector_store %arg9[%c0_39, %c0_40, %c0_41], %65 {strides = array<i32>} : memref<1x8x32xf32, #tpu.memory_space<vmem>>, vector<1x8x32xf32>,
    return
  }
  func.func @transform_0(%arg0: i32, %arg1: i32) -> (i32, i32, i32, i32) {
    %c0_i32 = arith.constant 0 : i32
    %c0_i32_0 = arith.constant 0 : i32
    %c0_i32_1 = arith.constant 0 : i32
    return %arg0, %c0_i32, %arg1, %c0_i32_0 : i32, i32, i32, i32
  }
  func.func @transform_1(%arg0: i32, %arg1: i32) -> (i32, i32, i32, i32) {
    %c0_i32 = arith.constant 0 : i32
    %c0_i32_0 = arith.constant 0 : i32
    %c0_i32_1 = arith.constant 0 : i32
    %c0_i32_2 = arith.constant 0 : i32
    return %arg0, %c0_i32, %c0_i32_0, %c0_i32_1 : i32, i32, i32, i32
  }
  func.func @transform_2(%arg0: i32, %arg1: i32) -> (i32, i32, i32, i32) {
    %c0_i32 = arith.constant 0 : i32
    %c0_i32_0 = arith.constant 0 : i32
    %c0_i32_1 = arith.constant 0 : i32
    %c0_i32_2 = arith.constant 0 : i32
    return %arg0, %c0_i32, %c0_i32_0, %c0_i32_1 : i32, i32, i32, i32
  }
  func.func @transform_3(%arg0: i32, %arg1: i32) -> (i32, i32) {
    %c0_i32 = arith.constant 0 : i32
    %c0_i32_0 = arith.constant 0 : i32
    return %arg1, %c0_i32 : i32, i32
  }
  func.func @transform_4(%arg0: i32, %arg1: i32) -> (i32, i32, i32) {
    %c0_i32 = arith.constant 0 : i32
    %c0_i32_0 = arith.constant 0 : i32
    %c0_i32_1 = arith.constant 0 : i32
    %c0_i32_2 = arith.constant 0 : i32
    return %c0_i32, %c0_i32_0, %c0_i32_1 : i32, i32, i32
  }
  func.func @transform_5(%arg0: i32, %arg1: i32) -> (i32, i32) {
    %c0_i32 = arith.constant 0 : i32
    %c0_i32_0 = arith.constant 0 : i32
    %c0_i32_1 = arith.constant 0 : i32
    return %c0_i32, %c0_i32_0 : i32, i32
  }
  func.func @transform_6(%arg0: i32, %arg1: i32) -> (i32, i32, i32) {
    %c0_i32 = arith.constant 0 : i32
    %c0_i32_0 = arith.constant 0 : i32
    return %arg0, %arg1, %c0_i32 : i32, i32, i32
  }
  func.func @transform_7(%arg0: i32, %arg1: i32) -> (i32, i32, i32) {
    %c0_i32 = arith.constant 0 : i32
    %c0_i32_0 = arith.constant 0 : i32
    return %arg0, %arg1, %c0_i32 : i32, i32, i32
  }
  func.func @transform_8(%arg0: i32, %arg1: i32) -> (i32, i32, i32, i32) {
    %c0_i32 = arith.constant 0 : i32
    %c0_i32_0 = arith.constant 0 : i32
    %c0_i32_1 = arith.constant 0 : i32
    return %arg0, %c0_i32, %arg1, %c0_i32_0 : i32, i32, i32, i32
  }
}

module attributes {stable_mosaic.version = 11 : i64} {
  func.func @_layernorm_kernel(%arg0: i32, %arg1: memref<16x32xf32, #tpu.memory_space<vmem>>, %arg2: memref<1x32xf32, #tpu.memory_space<vmem>>, %arg3: memref<1x32xf32, #tpu.memory_space<vmem>>, %arg4: memref<16x32xf32, #tpu.memory_space<vmem>>) attributes {dimension_semantics = [#tpu.dimension_semantics<parallel>], iteration_bounds = array<i64: 1>, scalar_prefetch = 0 : i64, scratch_operands = 0 : i64, tpu.core_type = #tpu.core_type<tc>, window_params = [{transform_indices = @transform_0, window_bounds = array<i64: 16, 32>}, {pipeline_mode = #tpu.pipeline_mode<synchronous>, transform_indices = @transform_1, window_bounds = array<i64: 1, 32>}, {pipeline_mode = #tpu.pipeline_mode<synchronous>, transform_indices = @transform_2, window_bounds = array<i64: 1, 32>}, {transform_indices = @transform_3, window_bounds = array<i64: 16, 32>}]} {
    %c0 = arith.constant 0 : index
    %c0_0 = arith.constant 0 : index
    %0 = vector.load %arg1[%c0, %c0_0] : memref<16x32xf32, #tpu.memory_space<vmem>>, vector<16x32xf32>
    %cst = arith.constant dense<0.000000e+00> : vector<16xf32>
    %1 = vector.multi_reduction <add>, %0, %cst [1] : vector<16x32xf32> to vector<16xf32>
    %2 = vector.shape_cast %1 : vector<16xf32> to vector<16x1xf32>
    %cst_1 = arith.constant 3.200000e+01 : f32
    %3 = vector.broadcast %cst_1 : f32 to vector<16x1xf32>
    %4 = arith.divf %2, %3 : vector<16x1xf32>
    %5 = vector.broadcast %4 : vector<16x1xf32> to vector<16x32xf32>
    %6 = arith.subf %0, %5 : vector<16x32xf32>
    %7 = arith.mulf %6, %6 : vector<16x32xf32>
    %cst_2 = arith.constant dense<0.000000e+00> : vector<16xf32>
    %8 = vector.multi_reduction <add>, %7, %cst_2 [1] : vector<16x32xf32> to vector<16xf32>
    %9 = vector.shape_cast %8 : vector<16xf32> to vector<16x1xf32>
    %cst_3 = arith.constant 3.200000e+01 : f32
    %10 = vector.broadcast %cst_3 : f32 to vector<16x1xf32>
    %11 = arith.divf %9, %10 : vector<16x1xf32>
    %12 = vector.broadcast %4 : vector<16x1xf32> to vector<16x32xf32>
    %13 = arith.subf %0, %12 : vector<16x32xf32>
    %cst_4 = arith.constant 9.99999974E-6 : f32
    %14 = vector.broadcast %cst_4 : f32 to vector<16x1xf32>
    %15 = arith.addf %11, %14 : vector<16x1xf32>
    %16 = math.rsqrt %15 : vector<16x1xf32>
    %17 = vector.broadcast %16 : vector<16x1xf32> to vector<16x32xf32>
    %18 = arith.mulf %13, %17 : vector<16x32xf32>
    %c0_5 = arith.constant 0 : index
    %c0_6 = arith.constant 0 : index
    %19 = vector.load %arg2[%c0_5, %c0_6] : memref<1x32xf32, #tpu.memory_space<vmem>>, vector<1x32xf32>
    %20 = vector.broadcast %19 : vector<1x32xf32> to vector<16x32xf32>
    %21 = arith.mulf %18, %20 : vector<16x32xf32>
    %c0_7 = arith.constant 0 : index
    %c0_8 = arith.constant 0 : index
    %22 = vector.load %arg3[%c0_7, %c0_8] : memref<1x32xf32, #tpu.memory_space<vmem>>, vector<1x32xf32>
    %23 = vector.broadcast %22 : vector<1x32xf32> to vector<16x32xf32>
    %24 = arith.addf %21, %23 : vector<16x32xf32>
    %c0_9 = arith.constant 0 : index
    %c0_10 = arith.constant 0 : index
    %25 = vector.load %arg4[%c0_9, %c0_10] : memref<16x32xf32, #tpu.memory_space<vmem>>, vector<16x32xf32>
    tpu.vector_store %arg4[%c0_9, %c0_10], %24 {strides = array<i32>} : memref<16x32xf32, #tpu.memory_space<vmem>>, vector<16x32xf32>,
    return
  }
  func.func @transform_0(%arg0: i32) -> (i32, i32) {
    %c0_i32 = arith.constant 0 : i32
    %c0_i32_0 = arith.constant 0 : i32
    return %arg0, %c0_i32 : i32, i32
  }
  func.func @transform_1(%arg0: i32) -> (i32, i32) {
    %c0_i32 = arith.constant 0 : i32
    %c0_i32_0 = arith.constant 0 : i32
    %c0_i32_1 = arith.constant 0 : i32
    return %c0_i32, %c0_i32_0 : i32, i32
  }
  func.func @transform_2(%arg0: i32) -> (i32, i32) {
    %c0_i32 = arith.constant 0 : i32
    %c0_i32_0 = arith.constant 0 : i32
    %c0_i32_1 = arith.constant 0 : i32
    return %c0_i32, %c0_i32_0 : i32, i32
  }
  func.func @transform_3(%arg0: i32) -> (i32, i32) {
    %c0_i32 = arith.constant 0 : i32
    %c0_i32_0 = arith.constant 0 : i32
    return %arg0, %c0_i32 : i32, i32
  }
}

module attributes {stable_mosaic.version = 11 : i64} {
  func.func @_ln_ffn_res_kernel(%arg0: i32, %arg1: i32, %arg2: memref<16x32xf32, #tpu.memory_space<vmem>>, %arg3: memref<1x32xf32, #tpu.memory_space<vmem>>, %arg4: memref<1x32xf32, #tpu.memory_space<vmem>>, %arg5: memref<32x64xbf16, #tpu.memory_space<vmem>>, %arg6: memref<1x64xf32, #tpu.memory_space<vmem>>, %arg7: memref<64x32xbf16, #tpu.memory_space<vmem>>, %arg8: memref<1x32xf32, #tpu.memory_space<vmem>>, %arg9: memref<16x32xf32, #tpu.memory_space<vmem>>, %arg10: memref<16x32xbf16, #tpu.memory_space<vmem>>, %arg11: memref<16x32xf32, #tpu.memory_space<vmem>>) attributes {dimension_semantics = [#tpu.dimension_semantics<parallel>, #tpu.dimension_semantics<arbitrary>], iteration_bounds = array<i64: 1, 1>, scalar_prefetch = 0 : i64, scratch_operands = 2 : i64, tpu.core_type = #tpu.core_type<tc>, window_params = [{transform_indices = @transform_0, window_bounds = array<i64: 16, 32>}, {pipeline_mode = #tpu.pipeline_mode<synchronous>, transform_indices = @transform_1, window_bounds = array<i64: 1, 32>}, {pipeline_mode = #tpu.pipeline_mode<synchronous>, transform_indices = @transform_2, window_bounds = array<i64: 1, 32>}, {transform_indices = @transform_3, window_bounds = array<i64: 32, 64>}, {transform_indices = @transform_4, window_bounds = array<i64: 1, 64>}, {transform_indices = @transform_5, window_bounds = array<i64: 64, 32>}, {pipeline_mode = #tpu.pipeline_mode<synchronous>, transform_indices = @transform_6, window_bounds = array<i64: 1, 32>}, {transform_indices = @transform_7, window_bounds = array<i64: 16, 32>}]} {
    %c0_i32 = arith.constant 0 : i32
    %0 = arith.cmpi eq, %arg1, %c0_i32 : i32
    %1 = arith.extui %0 : i1 to i32
    %c0_i32_0 = arith.constant 0 : i32
    %2 = arith.cmpi ne, %1, %c0_i32_0 : i32
    scf.if %2 {
      %c0_16 = arith.constant 0 : index
      %c0_17 = arith.constant 0 : index
      %20 = vector.load %arg2[%c0_16, %c0_17] : memref<16x32xf32, #tpu.memory_space<vmem>>, vector<16x32xf32>
      %cst_18 = arith.constant dense<0.000000e+00> : vector<16xf32>
      %21 = vector.multi_reduction <add>, %20, %cst_18 [1] : vector<16x32xf32> to vector<16xf32>
      %22 = vector.shape_cast %21 : vector<16xf32> to vector<16x1xf32>
      %cst_19 = arith.constant 3.200000e+01 : f32
      %23 = vector.broadcast %cst_19 : f32 to vector<16x1xf32>
      %24 = arith.divf %22, %23 : vector<16x1xf32>
      %25 = vector.broadcast %24 : vector<16x1xf32> to vector<16x32xf32>
      %26 = arith.subf %20, %25 : vector<16x32xf32>
      %27 = arith.mulf %26, %26 : vector<16x32xf32>
      %cst_20 = arith.constant dense<0.000000e+00> : vector<16xf32>
      %28 = vector.multi_reduction <add>, %27, %cst_20 [1] : vector<16x32xf32> to vector<16xf32>
      %29 = vector.shape_cast %28 : vector<16xf32> to vector<16x1xf32>
      %cst_21 = arith.constant 3.200000e+01 : f32
      %30 = vector.broadcast %cst_21 : f32 to vector<16x1xf32>
      %31 = arith.divf %29, %30 : vector<16x1xf32>
      %32 = vector.broadcast %24 : vector<16x1xf32> to vector<16x32xf32>
      %33 = arith.subf %20, %32 : vector<16x32xf32>
      %cst_22 = arith.constant 9.99999974E-6 : f32
      %34 = vector.broadcast %cst_22 : f32 to vector<16x1xf32>
      %35 = arith.addf %31, %34 : vector<16x1xf32>
      %36 = math.rsqrt %35 : vector<16x1xf32>
      %37 = vector.broadcast %36 : vector<16x1xf32> to vector<16x32xf32>
      %38 = arith.mulf %33, %37 : vector<16x32xf32>
      %c0_23 = arith.constant 0 : index
      %c0_24 = arith.constant 0 : index
      %39 = vector.load %arg3[%c0_23, %c0_24] : memref<1x32xf32, #tpu.memory_space<vmem>>, vector<1x32xf32>
      %40 = vector.broadcast %39 : vector<1x32xf32> to vector<16x32xf32>
      %41 = arith.mulf %38, %40 : vector<16x32xf32>
      %c0_25 = arith.constant 0 : index
      %c0_26 = arith.constant 0 : index
      %42 = vector.load %arg4[%c0_25, %c0_26] : memref<1x32xf32, #tpu.memory_space<vmem>>, vector<1x32xf32>
      %43 = vector.broadcast %42 : vector<1x32xf32> to vector<16x32xf32>
      %44 = arith.addf %41, %43 : vector<16x32xf32>
      %45 = arith.truncf %44 : vector<16x32xf32> to vector<16x32xbf16>
      %c0_27 = arith.constant 0 : index
      %c0_28 = arith.constant 0 : index
      %46 = vector.load %arg10[%c0_27, %c0_28] : memref<16x32xbf16, #tpu.memory_space<vmem>>, vector<16x32xbf16>
      tpu.vector_store %arg10[%c0_27, %c0_28], %45 {strides = array<i32>} : memref<16x32xbf16, #tpu.memory_space<vmem>>, vector<16x32xbf16>,
      %cst_29 = arith.constant 0.000000e+00 : f32
      %47 = vector.broadcast %cst_29 : f32 to vector<16x32xf32>
      %c0_30 = arith.constant 0 : index
      %c0_31 = arith.constant 0 : index
      %48 = vector.load %arg11[%c0_30, %c0_31] : memref<16x32xf32, #tpu.memory_space<vmem>>, vector<16x32xf32>
      tpu.vector_store %arg11[%c0_30, %c0_31], %47 {strides = array<i32>} : memref<16x32xf32, #tpu.memory_space<vmem>>, vector<16x32xf32>,
    } else {
    }
    %c0 = arith.constant 0 : index
    %c0_1 = arith.constant 0 : index
    %3 = vector.load %arg10[%c0, %c0_1] : memref<16x32xbf16, #tpu.memory_space<vmem>>, vector<16x32xbf16>
    %c0_2 = arith.constant 0 : index
    %c0_3 = arith.constant 0 : index
    %4 = vector.load %arg5[%c0_2, %c0_3] : memref<32x64xbf16, #tpu.memory_space<vmem>>, vector<32x64xbf16>
    %cst = arith.constant dense<0.000000e+00> : vector<16x64xf32>
    %5 = tpu.matmul %3, %4, %cst {dimension_numbers = #tpu.dot_dimension_numbers<[1], [0], [0], [1], [0, 0, 1, 1], [], []>} : vector<16x32xbf16>, vector<32x64xbf16>, vector<16x64xf32> -> vector<16x64xf32>
    %c0_4 = arith.constant 0 : index
    %c0_5 = arith.constant 0 : index
    %6 = vector.load %arg6[%c0_4, %c0_5] : memref<1x64xf32, #tpu.memory_space<vmem>>, vector<1x64xf32>
    %7 = vector.broadcast %6 : vector<1x64xf32> to vector<16x64xf32>
    %8 = arith.addf %5, %7 : vector<16x64xf32>
    %cst_6 = arith.constant 0.000000e+00 : f32
    %9 = vector.broadcast %cst_6 : f32 to vector<16x64xf32>
    %10 = arith.maximumf %8, %9 : vector<16x64xf32>
    %c0_7 = arith.constant 0 : index
    %c0_8 = arith.constant 0 : index
    %11 = vector.load %arg11[%c0_7, %c0_8] : memref<16x32xf32, #tpu.memory_space<vmem>>, vector<16x32xf32>
    %12 = arith.truncf %10 : vector<16x64xf32> to vector<16x64xbf16>
    %c0_9 = arith.constant 0 : index
    %c0_10 = arith.constant 0 : index
    %13 = vector.load %arg7[%c0_9, %c0_10] : memref<64x32xbf16, #tpu.memory_space<vmem>>, vector<64x32xbf16>
    %cst_11 = arith.constant dense<0.000000e+00> : vector<16x32xf32>
    %14 = tpu.matmul %12, %13, %cst_11 {dimension_numbers = #tpu.dot_dimension_numbers<[1], [0], [0], [1], [0, 0, 1, 1], [], []>} : vector<16x64xbf16>, vector<64x32xbf16>, vector<16x32xf32> -> vector<16x32xf32>
    %15 = arith.addf %11, %14 : vector<16x32xf32>
    %c0_12 = arith.constant 0 : index
    %c0_13 = arith.constant 0 : index
    %16 = vector.load %arg11[%c0_12, %c0_13] : memref<16x32xf32, #tpu.memory_space<vmem>>, vector<16x32xf32>
    tpu.vector_store %arg11[%c0_12, %c0_13], %15 {strides = array<i32>} : memref<16x32xf32, #tpu.memory_space<vmem>>, vector<16x32xf32>,
    %c0_i32_14 = arith.constant 0 : i32
    %17 = arith.cmpi eq, %arg1, %c0_i32_14 : i32
    %18 = arith.extui %17 : i1 to i32
    %c0_i32_15 = arith.constant 0 : i32
    %19 = arith.cmpi ne, %18, %c0_i32_15 : i32
    scf.if %19 {
      %c0_16 = arith.constant 0 : index
      %c0_17 = arith.constant 0 : index
      %20 = vector.load %arg11[%c0_16, %c0_17] : memref<16x32xf32, #tpu.memory_space<vmem>>, vector<16x32xf32>
      %c0_18 = arith.constant 0 : index
      %c0_19 = arith.constant 0 : index
      %21 = vector.load %arg8[%c0_18, %c0_19] : memref<1x32xf32, #tpu.memory_space<vmem>>, vector<1x32xf32>
      %22 = vector.broadcast %21 : vector<1x32xf32> to vector<16x32xf32>
      %23 = arith.addf %20, %22 : vector<16x32xf32>
      %c0_20 = arith.constant 0 : index
      %c0_21 = arith.constant 0 : index
      %24 = vector.load %arg2[%c0_20, %c0_21] : memref<16x32xf32, #tpu.memory_space<vmem>>, vector<16x32xf32>
      %25 = arith.addf %23, %24 : vector<16x32xf32>
      %c0_22 = arith.constant 0 : index
      %c0_23 = arith.constant 0 : index
      %26 = vector.load %arg9[%c0_22, %c0_23] : memref<16x32xf32, #tpu.memory_space<vmem>>, vector<16x32xf32>
      tpu.vector_store %arg9[%c0_22, %c0_23], %25 {strides = array<i32>} : memref<16x32xf32, #tpu.memory_space<vmem>>, vector<16x32xf32>,
    } else {
    }
    return
  }
  func.func @transform_0(%arg0: i32, %arg1: i32) -> (i32, i32) {
    %c0_i32 = arith.constant 0 : i32
    %c0_i32_0 = arith.constant 0 : i32
    return %arg0, %c0_i32 : i32, i32
  }
  func.func @transform_1(%arg0: i32, %arg1: i32) -> (i32, i32) {
    %c0_i32 = arith.constant 0 : i32
    %c0_i32_0 = arith.constant 0 : i32
    %c0_i32_1 = arith.constant 0 : i32
    return %c0_i32, %c0_i32_0 : i32, i32
  }
  func.func @transform_2(%arg0: i32, %arg1: i32) -> (i32, i32) {
    %c0_i32 = arith.constant 0 : i32
    %c0_i32_0 = arith.constant 0 : i32
    %c0_i32_1 = arith.constant 0 : i32
    return %c0_i32, %c0_i32_0 : i32, i32
  }
  func.func @transform_3(%arg0: i32, %arg1: i32) -> (i32, i32) {
    %c0_i32 = arith.constant 0 : i32
    %c0_i32_0 = arith.constant 0 : i32
    return %c0_i32, %arg1 : i32, i32
  }
  func.func @transform_4(%arg0: i32, %arg1: i32) -> (i32, i32) {
    %c0_i32 = arith.constant 0 : i32
    %c0_i32_0 = arith.constant 0 : i32
    return %c0_i32, %arg1 : i32, i32
  }
  func.func @transform_5(%arg0: i32, %arg1: i32) -> (i32, i32) {
    %c0_i32 = arith.constant 0 : i32
    %c0_i32_0 = arith.constant 0 : i32
    return %arg1, %c0_i32 : i32, i32
  }
  func.func @transform_6(%arg0: i32, %arg1: i32) -> (i32, i32) {
    %c0_i32 = arith.constant 0 : i32
    %c0_i32_0 = arith.constant 0 : i32
    %c0_i32_1 = arith.constant 0 : i32
    return %c0_i32, %c0_i32_0 : i32, i32
  }
  func.func @transform_7(%arg0: i32, %arg1: i32) -> (i32, i32) {
    %c0_i32 = arith.constant 0 : i32
    %c0_i32_0 = arith.constant 0 : i32
    return %arg0, %c0_i32 : i32, i32
  }
}

module attributes {stable_mosaic.version = 11 : i64} {
  func.func @_proj_kernel(%arg0: i32, %arg1: memref<16x32xf32, #tpu.memory_space<vmem>>, %arg2: memref<1x32xf32, #tpu.memory_space<vmem>>, %arg3: memref<1x32xf32, #tpu.memory_space<vmem>>, %arg4: memref<32x32xbf16, #tpu.memory_space<vmem>>, %arg5: memref<1x32xf32, #tpu.memory_space<vmem>>, %arg6: memref<16x32xbf16, #tpu.memory_space<vmem>>) attributes {dimension_semantics = [#tpu.dimension_semantics<parallel>], iteration_bounds = array<i64: 1>, scalar_prefetch = 0 : i64, scratch_operands = 0 : i64, tpu.core_type = #tpu.core_type<tc>, window_params = [{transform_indices = @transform_0, window_bounds = array<i64: 16, 32>}, {pipeline_mode = #tpu.pipeline_mode<synchronous>, transform_indices = @transform_1, window_bounds = array<i64: 1, 32>}, {pipeline_mode = #tpu.pipeline_mode<synchronous>, transform_indices = @transform_2, window_bounds = array<i64: 1, 32>}, {pipeline_mode = #tpu.pipeline_mode<synchronous>, transform_indices = @transform_3, window_bounds = array<i64: 32, 32>}, {pipeline_mode = #tpu.pipeline_mode<synchronous>, transform_indices = @transform_4, window_bounds = array<i64: 1, 32>}, {transform_indices = @transform_5, window_bounds = array<i64: 16, 32>}]} {
    %c0 = arith.constant 0 : index
    %c0_0 = arith.constant 0 : index
    %0 = vector.load %arg1[%c0, %c0_0] : memref<16x32xf32, #tpu.memory_space<vmem>>, vector<16x32xf32>
    %cst = arith.constant dense<0.000000e+00> : vector<16xf32>
    %1 = vector.multi_reduction <add>, %0, %cst [1] : vector<16x32xf32> to vector<16xf32>
    %2 = vector.shape_cast %1 : vector<16xf32> to vector<16x1xf32>
    %cst_1 = arith.constant 3.200000e+01 : f32
    %3 = vector.broadcast %cst_1 : f32 to vector<16x1xf32>
    %4 = arith.divf %2, %3 : vector<16x1xf32>
    %5 = vector.broadcast %4 : vector<16x1xf32> to vector<16x32xf32>
    %6 = arith.subf %0, %5 : vector<16x32xf32>
    %7 = arith.mulf %6, %6 : vector<16x32xf32>
    %cst_2 = arith.constant dense<0.000000e+00> : vector<16xf32>
    %8 = vector.multi_reduction <add>, %7, %cst_2 [1] : vector<16x32xf32> to vector<16xf32>
    %9 = vector.shape_cast %8 : vector<16xf32> to vector<16x1xf32>
    %cst_3 = arith.constant 3.200000e+01 : f32
    %10 = vector.broadcast %cst_3 : f32 to vector<16x1xf32>
    %11 = arith.divf %9, %10 : vector<16x1xf32>
    %12 = vector.broadcast %4 : vector<16x1xf32> to vector<16x32xf32>
    %13 = arith.subf %0, %12 : vector<16x32xf32>
    %cst_4 = arith.constant 9.99999974E-6 : f32
    %14 = vector.broadcast %cst_4 : f32 to vector<16x1xf32>
    %15 = arith.addf %11, %14 : vector<16x1xf32>
    %16 = math.rsqrt %15 : vector<16x1xf32>
    %17 = vector.broadcast %16 : vector<16x1xf32> to vector<16x32xf32>
    %18 = arith.mulf %13, %17 : vector<16x32xf32>
    %c0_5 = arith.constant 0 : index
    %c0_6 = arith.constant 0 : index
    %19 = vector.load %arg2[%c0_5, %c0_6] : memref<1x32xf32, #tpu.memory_space<vmem>>, vector<1x32xf32>
    %20 = vector.broadcast %19 : vector<1x32xf32> to vector<16x32xf32>
    %21 = arith.mulf %18, %20 : vector<16x32xf32>
    %c0_7 = arith.constant 0 : index
    %c0_8 = arith.constant 0 : index
    %22 = vector.load %arg3[%c0_7, %c0_8] : memref<1x32xf32, #tpu.memory_space<vmem>>, vector<1x32xf32>
    %23 = vector.broadcast %22 : vector<1x32xf32> to vector<16x32xf32>
    %24 = arith.addf %21, %23 : vector<16x32xf32>
    %25 = arith.truncf %24 : vector<16x32xf32> to vector<16x32xbf16>
    %c0_9 = arith.constant 0 : index
    %c0_10 = arith.constant 0 : index
    %26 = vector.load %arg4[%c0_9, %c0_10] : memref<32x32xbf16, #tpu.memory_space<vmem>>, vector<32x32xbf16>
    %cst_11 = arith.constant dense<0.000000e+00> : vector<16x32xf32>
    %27 = tpu.matmul %25, %26, %cst_11 {dimension_numbers = #tpu.dot_dimension_numbers<[1], [0], [0], [1], [0, 0, 1, 1], [], []>} : vector<16x32xbf16>, vector<32x32xbf16>, vector<16x32xf32> -> vector<16x32xf32>
    %c0_12 = arith.constant 0 : index
    %c0_13 = arith.constant 0 : index
    %28 = vector.load %arg5[%c0_12, %c0_13] : memref<1x32xf32, #tpu.memory_space<vmem>>, vector<1x32xf32>
    %29 = vector.broadcast %28 : vector<1x32xf32> to vector<16x32xf32>
    %30 = arith.addf %27, %29 : vector<16x32xf32>
    %31 = arith.truncf %30 : vector<16x32xf32> to vector<16x32xbf16>
    %c0_14 = arith.constant 0 : index
    %c0_15 = arith.constant 0 : index
    %32 = vector.load %arg6[%c0_14, %c0_15] : memref<16x32xbf16, #tpu.memory_space<vmem>>, vector<16x32xbf16>
    tpu.vector_store %arg6[%c0_14, %c0_15], %31 {strides = array<i32>} : memref<16x32xbf16, #tpu.memory_space<vmem>>, vector<16x32xbf16>,
    return
  }
  func.func @transform_0(%arg0: i32) -> (i32, i32) {
    %c0_i32 = arith.constant 0 : i32
    %c0_i32_0 = arith.constant 0 : i32
    return %arg0, %c0_i32 : i32, i32
  }
  func.func @transform_1(%arg0: i32) -> (i32, i32) {
    %c0_i32 = arith.constant 0 : i32
    %c0_i32_0 = arith.constant 0 : i32
    %c0_i32_1 = arith.constant 0 : i32
    return %c0_i32, %c0_i32_0 : i32, i32
  }
  func.func @transform_2(%arg0: i32) -> (i32, i32) {
    %c0_i32 = arith.constant 0 : i32
    %c0_i32_0 = arith.constant 0 : i32
    %c0_i32_1 = arith.constant 0 : i32
    return %c0_i32, %c0_i32_0 : i32, i32
  }
  func.func @transform_3(%arg0: i32) -> (i32, i32) {
    %c0_i32 = arith.constant 0 : i32
    %c0_i32_0 = arith.constant 0 : i32
    %c0_i32_1 = arith.constant 0 : i32
    return %c0_i32, %c0_i32_0 : i32, i32
  }
  func.func @transform_4(%arg0: i32) -> (i32, i32) {
    %c0_i32 = arith.constant 0 : i32
    %c0_i32_0 = arith.constant 0 : i32
    %c0_i32_1 = arith.constant 0 : i32
    return %c0_i32, %c0_i32_0 : i32, i32
  }
  func.func @transform_5(%arg0: i32) -> (i32, i32) {
    %c0_i32 = arith.constant 0 : i32
    %c0_i32_0 = arith.constant 0 : i32
    return %arg0, %c0_i32 : i32, i32
  }
}

</mosaic_0001>

<llo_original>
// kernel: decoder_forward.16
$region0: #{decoder_forward.16}
  #allocation0 [shape = 'u32[]', space=smem, size = 0x4, offset = 0x4, fixed_abs, tag = 'smem constant byte address 0x4 - core index']
  #allocation1 [shape = 'u32[144,128]{1,0:T(1,128)}', space=vmem, size = 0x12000, scoped, tag = 'internal scratch']
  %s0 = inlined_call_operand.vmem [shape: f32[16,32], index: 0, kind: input, shape index: {}]
  %s1 = inlined_call_operand.vmem [shape: bf16[32,32], index: 1, kind: input, shape index: {}]
  %s2 = inlined_call_operand.vmem [shape: f32[1,32], index: 2, kind: input, shape index: {}]
  %s3 = inlined_call_operand.vmem [shape: bf16[32,32], index: 3, kind: input, shape index: {}]
  %s4 = inlined_call_operand.hbm [shape: f32[1,32], index: 4, kind: input, shape index: {}]
  %s5 = inlined_call_operand.vmem [shape: bf16[16,32], index: 5, kind: output, shape index: {0}]
  %s6 = inlined_call_operand.vmem [shape: bf16[16,32], index: 6, kind: output, shape index: {1}]
  %7 = xla_tuple %s5, %s6
  %s8 = sld [smem:[#allocation0]]
  $region42: #{decoder_forward.16} parent=0
    _
  %s10 = ssub.s32 1, %s8
  %s11 = scalar_select 0, %s10, %s8
  $region1: #{decoder_forward.16} parent=0
    #allocation2 [shape = 'u8[512]{0}', space=vmem, size = 0x400, scoped, tag = 'input window, operand 4, single buffered']
    #allocation3 [shape = 's32[1]{0}', space=sflag, size = 0x4, scoped, tag = 'scoped memory for decoder_forward.16']
    %12 = vsyncpa [#allocation3], 0
    // Predicated region
    $region2: #{decoder_forward.16} parent=1 // pred_check
      _
    $region3: #{decoder_forward.16} parent=1 // pred_check_branch
      %14 = sbr.rel (0) target = $region5
    $region4: #{decoder_forward.16} parent=1 // pred_region
      _
    $region5: #{decoder_forward.16} parent=1 // pred_fallthru
      _
    // Predicated region
    $region6: #{decoder_forward.16} parent=1 // pred_check
      _
    $region7: #{decoder_forward.16} parent=1 // pred_check_branch
      %16 = sbr.rel (0) target = $region9
    $region8: #{decoder_forward.16} parent=1 // pred_region
      _
    $region9: #{decoder_forward.16} parent=1 // pred_fallthru
      _
    // Predicated region
    $region10: #{decoder_forward.16} parent=1 // pred_check
      _
    $region11: #{decoder_forward.16} parent=1 // pred_check_branch
      %18 = sbr.rel (0) target = $region13
    $region12: #{decoder_forward.16} parent=1 // pred_region
      _
    $region13: #{decoder_forward.16} parent=1 // pred_fallthru
      _
    // Predicated region
    $region14: #{decoder_forward.16} parent=1 // pred_check
      _
    $region15: #{decoder_forward.16} parent=1 // pred_check_branch
      %20 = sbr.rel (0) target = $region17
    $region16: #{decoder_forward.16} parent=1 // pred_region
      _
    $region17: #{decoder_forward.16} parent=1 // pred_fallthru
      _
    // Predicated region
    $region18: #{decoder_forward.16} parent=1 // pred_check
      _
    $region19: #{decoder_forward.16} parent=1 // pred_check_branch
      %22 = sbr.rel (0) target = $region21
    $region20: #{decoder_forward.16} parent=1 // pred_region
      %s24 = ssub.s32 16, 16
      %25 = vsyncadd [#allocation3], %s24
      %s27 = sshll.u32 [#allocation2], 4
      %s28 = int_to_ptr.vmem [resolvable:$true] %s27
      %30 = dma.hbm_to_vmem [thread:$0]  %s4, 16, %s28, [#allocation3]
    $region21: #{decoder_forward.16} parent=1 // pred_fallthru
      _
    // Predicated region
    $region22: #{decoder_forward.16} parent=1 // pred_check
      _
    $region23: #{decoder_forward.16} parent=1 // pred_check_branch
      %32 = sbr.rel (0) target = $region25
    $region24: #{decoder_forward.16} parent=1 // pred_region
      %33 = dma.done [#allocation3], 16
    $region25: #{decoder_forward.16} parent=1 // pred_fallthru
      _
    %v35 = vld [vmem:[%s0] sm:$0xff]
    %v36 = vld [vmem:[%s0 + $0x8] sm:$0xff]
    %v37 = vpack.c.bf16 %v36, %v35
    %v38 = vld [vmem:[%s1] sm:$0xf]
    %v39 = vld [vmem:[%s1 + $0x4] sm:$0xf]
    %v40 = vld [vmem:[%s1 + $0x8] sm:$0xf]
    %v41 = vld [vmem:[%s1 + $0xc] sm:$0xf]
    %v42 = vld [vmem:[%s2] sm:$0x1]
    %v44 = vlaneseq
    %v45 = vshrl.u32 %v44, 7
    %v46 = vsub.s32 0, %v45
    %v47 = vrot.slane %v42, %v46
    %v53 = vunpack.c.l.b16 %v38
    %v54 = vunpack.c.l.b16 %v39
    %v55 = vunpack.c.l.b16 %v40
    %v56 = vunpack.c.l.b16 %v41
    %v57 = vpack.c.b16 %v54, %v53
    %v58 = vpack.c.b16 %v56, %v55
    %vm61 = vcmask 261120
    %v63 = vsel %vm61, %v37, 0
    %65 = vmatprep.subr.bf16.mxu0 0
    %66 = vmatpush1.bf16.msra.mxu0 %v57
    %67 = vmatprep.subr.bf16.mxu0 0
    %68 = vmatpush1.bf16.msra.mxu0 %v58
    %69 = vmatprep.subr.bf16.mxu0 0
    %70 = vmatpush1.bf16.msra.mxu0 0
    %71 = vmatprep.subr.bf16.mxu0 0
    %72 = vmatpush1.bf16.msra.mxu0 0
    %73 = vmatprep.subr.bf16.mxu0 0
    %74 = vmatpush1.bf16.msra.mxu0 0
    %75 = vmatprep.subr.bf16.mxu0 0
    %76 = vmatpush1.bf16.msra.mxu0 0
    %77 = vmatprep.subr.bf16.mxu0 0
    %78 = vmatpush1.bf16.msra.mxu0 0
    %79 = vmatprep.subr.bf16.mxu0 0
    %80 = vmatpush1.bf16.msra.mxu0 0
    %81 = vmatprep.subr.bf16.mxu0 0
    %82 = vmatpush1.bf16.msra.mxu0 0
    %83 = vmatprep.subr.bf16.mxu0 0
    %84 = vmatpush1.bf16.msra.mxu0 0
    %85 = vmatprep.subr.bf16.mxu0 0
    %86 = vmatpush1.bf16.msra.mxu0 0
    %87 = vmatprep.subr.bf16.mxu0 0
    %88 = vmatpush1.bf16.msra.mxu0 0
    %89 = vmatprep.subr.bf16.mxu0 0
    %90 = vmatpush1.bf16.msra.mxu0 0
    %91 = vmatprep.subr.bf16.mxu0 0
    %92 = vmatpush1.bf16.msra.mxu0 0
    %93 = vmatprep.subr.bf16.mxu0 0
    %94 = vmatpush1.bf16.msra.mxu0 0
    %95 = vmatprep.subr.bf16.mxu0 0
    %96 = vmatpush1.bf16.msra.mxu0 0
    %97 = vmatprep.mubr.bf16.mxu0 0
    %98 = vmatmul.mubr.bf16.gmra.mrb[0].mxu0 %v63
    %v99 = vpop.f32.mrb[0].mxu0
    %v100 = vadd.f32 %v47, %v99
    %v101 = vpop.f32.mrb[0].mxu0
    %v102 = vpop.f32.mrb[0].mxu0
    %v103 = vadd.f32 %v47, %v102
    %v104 = vpop.f32.mrb[0].mxu0
    %105 = vdwg.mxu0
    %v106 = vpack.c.bf16 %v103, %v100
    %v108 = vunpack.c.l.b16 %v106
    %v109 = vunpack.c.h.b16 %v106
    %v110 = vpack.c.b16 %v108, %v108
    %v111 = vpack.c.b16 %v109, %v109
    %vm114 = vcmask 257024
    %115 = vst.msk [vmem:[%s5] sm:$0xf] %vm114, %v110
    %116 = vst.msk [vmem:[%s5 + $0x4] sm:$0xf] %vm114, %v111
    %v117 = vld [vmem:[%s3] sm:$0xf]
    %v118 = vld [vmem:[%s3 + $0x4] sm:$0xf]
    %v119 = vld [vmem:[%s3 + $0x8] sm:$0xf]
    %v120 = vld [vmem:[%s3 + $0xc] sm:$0xf]
    %v121 = vld [vmem:[#allocation2] sm:$0x1]
    %v123 = vlaneseq
    %v124 = vshrl.u32 %v123, 7
    %v125 = vsub.s32 0, %v124
    %v126 = vrot.slane %v121, %v125
    %v132 = vunpack.c.l.b16 %v117
    %v133 = vunpack.c.l.b16 %v118
    %v134 = vunpack.c.l.b16 %v119
    %v135 = vunpack.c.l.b16 %v120
    %v136 = vpack.c.b16 %v133, %v132
    %v137 = vpack.c.b16 %v135, %v134
    %140 = vmatprep.subr.bf16.mxu0 0
    %141 = vmatpush1.bf16.msra.mxu0 %v136
    %142 = vmatprep.subr.bf16.mxu0 0
    %143 = vmatpush1.bf16.msra.mxu0 %v137
    %144 = vmatprep.subr.bf16.mxu0 0
    %145 = vmatpush1.bf16.msra.mxu0 0
    %146 = vmatprep.subr.bf16.mxu0 0
    %147 = vmatpush1.bf16.msra.mxu0 0
    %148 = vmatprep.subr.bf16.mxu0 0
    %149 = vmatpush1.bf16.msra.mxu0 0
    %150 = vmatprep.subr.bf16.mxu0 0
    %151 = vmatpush1.bf16.msra.mxu0 0
    %152 = vmatprep.subr.bf16.mxu0 0
    %153 = vmatpush1.bf16.msra.mxu0 0
    %154 = vmatprep.subr.bf16.mxu0 0
    %155 = vmatpush1.bf16.msra.mxu0 0
    %156 = vmatprep.subr.bf16.mxu0 0
    %157 = vmatpush1.bf16.msra.mxu0 0
    %158 = vmatprep.subr.bf16.mxu0 0
    %159 = vmatpush1.bf16.msra.mxu0 0
    %160 = vmatprep.subr.bf16.mxu0 0
    %161 = vmatpush1.bf16.msra.mxu0 0
    %162 = vmatprep.subr.bf16.mxu0 0
    %163 = vmatpush1.bf16.msra.mxu0 0
    %164 = vmatprep.subr.bf16.mxu0 0
    %165 = vmatpush1.bf16.msra.mxu0 0
    %166 = vmatprep.subr.bf16.mxu0 0
    %167 = vmatpush1.bf16.msra.mxu0 0
    %168 = vmatprep.subr.bf16.mxu0 0
    %169 = vmatpush1.bf16.msra.mxu0 0
    %170 = vmatprep.subr.bf16.mxu0 0
    %171 = vmatpush1.bf16.msra.mxu0 0
    %172 = vmatprep.mubr.bf16.mxu0 0
    %173 = vmatmul.mubr.bf16.gmra.mrb[0].mxu0 %v63
    %v174 = vpop.f32.mrb[0].mxu0
    %v175 = vadd.f32 %v126, %v174
    %v176 = vpop.f32.mrb[0].mxu0
    %v177 = vpop.f32.mrb[0].mxu0
    %v178 = vadd.f32 %v126, %v177
    %v179 = vpop.f32.mrb[0].mxu0
    %180 = vdwg.mxu0
    %v181 = vpack.c.bf16 %v178, %v175
    %v183 = vunpack.c.l.b16 %v181
    %v184 = vunpack.c.h.b16 %v181
    %v185 = vpack.c.b16 %v183, %v183
    %v186 = vpack.c.b16 %v184, %v184
    %189 = vst.msk [vmem:[%s6] sm:$0xf] %vm114, %v185
    %190 = vst.msk [vmem:[%s6 + $0x4] sm:$0xf] %vm114, %v186
    // Predicated region
    $region26: #{decoder_forward.16} parent=1 // pred_check
      _
    $region27: #{decoder_forward.16} parent=1 // pred_check_branch
      %192 = sbr.rel (0) target = $region29
    $region28: #{decoder_forward.16} parent=1 // pred_region
      _
    $region29: #{decoder_forward.16} parent=1 // pred_fallthru
      _
    // Predicated region
    $region30: #{decoder_forward.16} parent=1 // pred_check
      _
    $region31: #{decoder_forward.16} parent=1 // pred_check_branch
      %194 = sbr.rel (0) target = $region33
    $region32: #{decoder_forward.16} parent=1 // pred_region
      _
    $region33: #{decoder_forward.16} parent=1 // pred_fallthru
      _
    // Predicated region
    $region34: #{decoder_forward.16} parent=1 // pred_check
      _
    $region35: #{decoder_forward.16} parent=1 // pred_check_branch
      %196 = sbr.rel (0) target = $region37
    $region36: #{decoder_forward.16} parent=1 // pred_region
      _
    $region37: #{decoder_forward.16} parent=1 // pred_fallthru
      _
    // Predicated region
    $region38: #{decoder_forward.16} parent=1 // pred_check
      _
    $region39: #{decoder_forward.16} parent=1 // pred_check_branch
      %198 = sbr.rel (0) target = $region41
    $region40: #{decoder_forward.16} parent=1 // pred_region
      _
    $region41: #{decoder_forward.16} parent=1 // pred_fallthru
      _
    %199 = vsyncpa [#allocation3], 1

// kernel: decoder_forward.22
$region0: #{decoder_forward.22}
  #allocation0 [shape = 'u32[]', space=smem, size = 0x4, offset = 0x4, fixed_abs, tag = 'smem constant byte address 0x4 - core index']
  #allocation1 [shape = 'u32[144,128]{1,0:T(1,128)}', space=vmem, size = 0x12000, scoped, tag = 'internal scratch']
  %s0 = inlined_call_operand.vmem [shape: f32[16,32], index: 0, kind: input, shape index: {}]
  %s1 = inlined_call_operand.vmem [shape: bf16[32,32], index: 1, kind: input, shape index: {}]
  %s2 = inlined_call_operand.vmem [shape: f32[1,32], index: 2, kind: input, shape index: {}]
  %s3 = inlined_call_operand.vmem [shape: bf16[32,32], index: 3, kind: input, shape index: {}]
  %s4 = inlined_call_operand.vmem [shape: f32[1,32], index: 4, kind: input, shape index: {}]
  %s5 = inlined_call_operand.vmem [shape: bf16[16,32], index: 5, kind: output, shape index: {0}]
  %s6 = inlined_call_operand.vmem [shape: bf16[16,32], index: 6, kind: output, shape index: {1}]
  %7 = xla_tuple %s5, %s6
  %s8 = sld [smem:[#allocation0]]
  $region38: #{decoder_forward.22} parent=0
    _
  %s10 = ssub.s32 1, %s8
  %s11 = scalar_select 0, %s10, %s8
  // Predicated region
  $region2: #{decoder_forward.22} parent=0 // pred_check
    _
  $region3: #{decoder_forward.22} parent=0 // pred_check_branch
    %13 = sbr.rel (0) target = $region5
  $region4: #{decoder_forward.22} parent=0 // pred_region
    _
  $region5: #{decoder_forward.22} parent=0 // pred_fallthru
    _
  // Predicated region
  $region6: #{decoder_forward.22} parent=0 // pred_check
    _
  $region7: #{decoder_forward.22} parent=0 // pred_check_branch
    %15 = sbr.rel (0) target = $region9
  $region8: #{decoder_forward.22} parent=0 // pred_region
    _
  $region9: #{decoder_forward.22} parent=0 // pred_fallthru
    _
  // Predicated region
  $region10: #{decoder_forward.22} parent=0 // pred_check
    _
  $region11: #{decoder_forward.22} parent=0 // pred_check_branch
    %17 = sbr.rel (0) target = $region13
  $region12: #{decoder_forward.22} parent=0 // pred_region
    _
  $region13: #{decoder_forward.22} parent=0 // pred_fallthru
    _
  // Predicated region
  $region14: #{decoder_forward.22} parent=0 // pred_check
    _
  $region15: #{decoder_forward.22} parent=0 // pred_check_branch
    %19 = sbr.rel (0) target = $region17
  $region16: #{decoder_forward.22} parent=0 // pred_region
    _
  $region17: #{decoder_forward.22} parent=0 // pred_fallthru
    _
  // Predicated region
  $region18: #{decoder_forward.22} parent=0 // pred_check
    _
  $region19: #{decoder_forward.22} parent=0 // pred_check_branch
    %21 = sbr.rel (0) target = $region21
  $region20: #{decoder_forward.22} parent=0 // pred_region
    _
  $region21: #{decoder_forward.22} parent=0 // pred_fallthru
    _
  %v23 = vld [vmem:[%s0] sm:$0xff]
  %v24 = vld [vmem:[%s0 + $0x8] sm:$0xff]
  %v25 = vpack.c.bf16 %v24, %v23
  %v26 = vld [vmem:[%s1] sm:$0xf]
  %v27 = vld [vmem:[%s1 + $0x4] sm:$0xf]
  %v28 = vld [vmem:[%s1 + $0x8] sm:$0xf]
  %v29 = vld [vmem:[%s1 + $0xc] sm:$0xf]
  %v30 = vld [vmem:[%s2] sm:$0x1]
  %v32 = vlaneseq
  %v33 = vshrl.u32 %v32, 7
  %v34 = vsub.s32 0, %v33
  %v35 = vrot.slane %v30, %v34
  %v41 = vunpack.c.l.b16 %v26
  %v42 = vunpack.c.l.b16 %v27
  %v43 = vunpack.c.l.b16 %v28
  %v44 = vunpack.c.l.b16 %v29
  %v45 = vpack.c.b16 %v42, %v41
  %v46 = vpack.c.b16 %v44, %v43
  %vm49 = vcmask 261120
  %v51 = vsel %vm49, %v25, 0
  %53 = vmatprep.subr.bf16.mxu0 0
  %54 = vmatpush1.bf16.msra.mxu0 %v45
  %55 = vmatprep.subr.bf16.mxu0 0
  %56 = vmatpush1.bf16.msra.mxu0 %v46
  %57 = vmatprep.subr.bf16.mxu0 0
  %58 = vmatpush1.bf16.msra.mxu0 0
  %59 = vmatprep.subr.bf16.mxu0 0
  %60 = vmatpush1.bf16.msra.mxu0 0
  %61 = vmatprep.subr.bf16.mxu0 0
  %62 = vmatpush1.bf16.msra.mxu0 0
  %63 = vmatprep.subr.bf16.mxu0 0
  %64 = vmatpush1.bf16.msra.mxu0 0
  %65 = vmatprep.subr.bf16.mxu0 0
  %66 = vmatpush1.bf16.msra.mxu0 0
  %67 = vmatprep.subr.bf16.mxu0 0
  %68 = vmatpush1.bf16.msra.mxu0 0
  %69 = vmatprep.subr.bf16.mxu0 0
  %70 = vmatpush1.bf16.msra.mxu0 0
  %71 = vmatprep.subr.bf16.mxu0 0
  %72 = vmatpush1.bf16.msra.mxu0 0
  %73 = vmatprep.subr.bf16.mxu0 0
  %74 = vmatpush1.bf16.msra.mxu0 0
  %75 = vmatprep.subr.bf16.mxu0 0
  %76 = vmatpush1.bf16.msra.mxu0 0
  %77 = vmatprep.subr.bf16.mxu0 0
  %78 = vmatpush1.bf16.msra.mxu0 0
  %79 = vmatprep.subr.bf16.mxu0 0
  %80 = vmatpush1.bf16.msra.mxu0 0
  %81 = vmatprep.subr.bf16.mxu0 0
  %82 = vmatpush1.bf16.msra.mxu0 0
  %83 = vmatprep.subr.bf16.mxu0 0
  %84 = vmatpush1.bf16.msra.mxu0 0
  %85 = vmatprep.mubr.bf16.mxu0 0
  %86 = vmatmul.mubr.bf16.gmra.mrb[0].mxu0 %v51
  %v87 = vpop.f32.mrb[0].mxu0
  %v88 = vadd.f32 %v35, %v87
  %v89 = vpop.f32.mrb[0].mxu0
  %v90 = vpop.f32.mrb[0].mxu0
  %v91 = vadd.f32 %v35, %v90
  %v92 = vpop.f32.mrb[0].mxu0
  %93 = vdwg.mxu0
  %v94 = vpack.c.bf16 %v91, %v88
  %v96 = vunpack.c.l.b16 %v94
  %v97 = vunpack.c.h.b16 %v94
  %v98 = vpack.c.b16 %v96, %v96
  %v99 = vpack.c.b16 %v97, %v97
  %vm102 = vcmask 257024
  %103 = vst.msk [vmem:[%s5] sm:$0xf] %vm102, %v98
  %104 = vst.msk [vmem:[%s5 + $0x4] sm:$0xf] %vm102, %v99
  %v105 = vld [vmem:[%s3] sm:$0xf]
  %v106 = vld [vmem:[%s3 + $0x4] sm:$0xf]
  %v107 = vld [vmem:[%s3 + $0x8] sm:$0xf]
  %v108 = vld [vmem:[%s3 + $0xc] sm:$0xf]
  %v109 = vld [vmem:[%s4] sm:$0x1]
  %v111 = vlaneseq
  %v112 = vshrl.u32 %v111, 7
  %v113 = vsub.s32 0, %v112
  %v114 = vrot.slane %v109, %v113
  %v120 = vunpack.c.l.b16 %v105
  %v121 = vunpack.c.l.b16 %v106
  %v122 = vunpack.c.l.b16 %v107
  %v123 = vunpack.c.l.b16 %v108
  %v124 = vpack.c.b16 %v121, %v120
  %v125 = vpack.c.b16 %v123, %v122
  %128 = vmatprep.subr.bf16.mxu0 0
  %129 = vmatpush1.bf16.msra.mxu0 %v124
  %130 = vmatprep.subr.bf16.mxu0 0
  %131 = vmatpush1.bf16.msra.mxu0 %v125
  %132 = vmatprep.subr.bf16.mxu0 0
  %133 = vmatpush1.bf16.msra.mxu0 0
  %134 = vmatprep.subr.bf16.mxu0 0
  %135 = vmatpush1.bf16.msra.mxu0 0
  %136 = vmatprep.subr.bf16.mxu0 0
  %137 = vmatpush1.bf16.msra.mxu0 0
  %138 = vmatprep.subr.bf16.mxu0 0
  %139 = vmatpush1.bf16.msra.mxu0 0
  %140 = vmatprep.subr.bf16.mxu0 0
  %141 = vmatpush1.bf16.msra.mxu0 0
  %142 = vmatprep.subr.bf16.mxu0 0
  %143 = vmatpush1.bf16.msra.mxu0 0
  %144 = vmatprep.subr.bf16.mxu0 0
  %145 = vmatpush1.bf16.msra.mxu0 0
  %146 = vmatprep.subr.bf16.mxu0 0
  %147 = vmatpush1.bf16.msra.mxu0 0
  %148 = vmatprep.subr.bf16.mxu0 0
  %149 = vmatpush1.bf16.msra.mxu0 0
  %150 = vmatprep.subr.bf16.mxu0 0
  %151 = vmatpush1.bf16.msra.mxu0 0
  %152 = vmatprep.subr.bf16.mxu0 0
  %153 = vmatpush1.bf16.msra.mxu0 0
  %154 = vmatprep.subr.bf16.mxu0 0
  %155 = vmatpush1.bf16.msra.mxu0 0
  %156 = vmatprep.subr.bf16.mxu0 0
  %157 = vmatpush1.bf16.msra.mxu0 0
  %158 = vmatprep.subr.bf16.mxu0 0
  %159 = vmatpush1.bf16.msra.mxu0 0
  %160 = vmatprep.mubr.bf16.mxu0 0
  %161 = vmatmul.mubr.bf16.gmra.mrb[0].mxu0 %v51
  %v162 = vpop.f32.mrb[0].mxu0
  %v163 = vadd.f32 %v114, %v162
  %v164 = vpop.f32.mrb[0].mxu0
  %v165 = vpop.f32.mrb[0].mxu0
  %v166 = vadd.f32 %v114, %v165
  %v167 = vpop.f32.mrb[0].mxu0
  %168 = vdwg.mxu0
  %v169 = vpack.c.bf16 %v166, %v163
  %v171 = vunpack.c.l.b16 %v169
  %v172 = vunpack.c.h.b16 %v169
  %v173 = vpack.c.b16 %v171, %v171
  %v174 = vpack.c.b16 %v172, %v172
  %177 = vst.msk [vmem:[%s6] sm:$0xf] %vm102, %v173
  %178 = vst.msk [vmem:[%s6 + $0x4] sm:$0xf] %vm102, %v174
  // Predicated region
  $region22: #{decoder_forward.22} parent=0 // pred_check
    _
  $region23: #{decoder_forward.22} parent=0 // pred_check_branch
    %180 = sbr.rel (0) target = $region25
  $region24: #{decoder_forward.22} parent=0 // pred_region
    _
  $region25: #{decoder_forward.22} parent=0 // pred_fallthru
    _
  // Predicated region
  $region26: #{decoder_forward.22} parent=0 // pred_check
    _
  $region27: #{decoder_forward.22} parent=0 // pred_check_branch
    %182 = sbr.rel (0) target = $region29
  $region28: #{decoder_forward.22} parent=0 // pred_region
    _
  $region29: #{decoder_forward.22} parent=0 // pred_fallthru
    _
  // Predicated region
  $region30: #{decoder_forward.22} parent=0 // pred_check
    _
  $region31: #{decoder_forward.22} parent=0 // pred_check_branch
    %184 = sbr.rel (0) target = $region33
  $region32: #{decoder_forward.22} parent=0 // pred_region
    _
  $region33: #{decoder_forward.22} parent=0 // pred_fallthru
    _
  // Predicated region
  $region34: #{decoder_forward.22} parent=0 // pred_check
    _
  $region35: #{decoder_forward.22} parent=0 // pred_check_branch
    %186 = sbr.rel (0) target = $region37
  $region36: #{decoder_forward.22} parent=0 // pred_region
    _
  $region37: #{decoder_forward.22} parent=0 // pred_fallthru
    _

// kernel: decoder_forward.15
$region0: #{decoder_forward.15}
  #allocation0 [shape = 'u32[]', space=smem, size = 0x4, offset = 0x4, fixed_abs, tag = 'smem constant byte address 0x4 - core index']
  #allocation1 [shape = 'u32[144,128]{1,0:T(1,128)}', space=vmem, size = 0x12000, scoped, tag = 'internal scratch']
  %s0 = inlined_call_operand.vmem [shape: f32[16,32], index: 0, kind: input, shape index: {}]
  %s1 = inlined_call_operand.vmem [shape: f32[1,32], index: 1, kind: input, shape index: {}]
  %s2 = inlined_call_operand.vmem [shape: f32[1,32], index: 2, kind: input, shape index: {}]
  %s3 = inlined_call_operand.vmem [shape: bf16[32,32], index: 3, kind: input, shape index: {}]
  %s4 = inlined_call_operand.vmem [shape: f32[1,32], index: 4, kind: input, shape index: {}]
  %s5 = inlined_call_operand.vmem [shape: bf16[16,32], index: 5, kind: output, shape index: {}]
  %s6 = sld [smem:[#allocation0]]
  $region30: #{decoder_forward.15} parent=0
    _
  %s8 = ssub.s32 1, %s6
  %s9 = scalar_select 0, %s8, %s6
  // Predicated region
  $region2: #{decoder_forward.15} parent=0 // pred_check
    _
  $region3: #{decoder_forward.15} parent=0 // pred_check_branch
    %11 = sbr.rel (0) target = $region5
  $region4: #{decoder_forward.15} parent=0 // pred_region
    _
  $region5: #{decoder_forward.15} parent=0 // pred_fallthru
    _
  // Predicated region
  $region6: #{decoder_forward.15} parent=0 // pred_check
    _
  $region7: #{decoder_forward.15} parent=0 // pred_check_branch
    %13 = sbr.rel (0) target = $region9
  $region8: #{decoder_forward.15} parent=0 // pred_region
    _
  $region9: #{decoder_forward.15} parent=0 // pred_fallthru
    _
  // Predicated region
  $region10: #{decoder_forward.15} parent=0 // pred_check
    _
  $region11: #{decoder_forward.15} parent=0 // pred_check_branch
    %15 = sbr.rel (0) target = $region13
  $region12: #{decoder_forward.15} parent=0 // pred_region
    _
  $region13: #{decoder_forward.15} parent=0 // pred_fallthru
    _
  // Predicated region
  $region14: #{decoder_forward.15} parent=0 // pred_check
    _
  $region15: #{decoder_forward.15} parent=0 // pred_check_branch
    %17 = sbr.rel (0) target = $region17
  $region16: #{decoder_forward.15} parent=0 // pred_region
    _
  $region17: #{decoder_forward.15} parent=0 // pred_fallthru
    _
  // Predicated region
  $region18: #{decoder_forward.15} parent=0 // pred_check
    _
  $region19: #{decoder_forward.15} parent=0 // pred_check_branch
    %19 = sbr.rel (0) target = $region21
  $region20: #{decoder_forward.15} parent=0 // pred_region
    _
  $region21: #{decoder_forward.15} parent=0 // pred_fallthru
    _
  %v21 = vld [vmem:[%s0] sm:$0xff]
  %v22 = vld [vmem:[%s0 + $0x8] sm:$0xff]
  %vm23 = vcmask 261120
  %v24 = vsel %vm23, %v21, 0.0
  %25 = vadd.xlane.f32.xlu0 %v24
  %v26 = vpop.xlane.xlu0 %25
  %v27 = vsel %vm23, %v22, 0.0
  %28 = vadd.xlane.f32.xlu0 %v27
  %v29 = vpop.xlane.xlu0 %28
  %v30 = vrcp.pop 32.0
  %v31 = vmul.f32 %v26, %v30
  %v32 = vmul.f32 %v29, %v30
  %v33 = vsub.f32 %v21, %v31
  %v34 = vsub.f32 %v22, %v32
  %v35 = vmul.f32 %v33, %v33
  %v36 = vmul.f32 %v34, %v34
  %v37 = vsel %vm23, %v35, 0.0
  %38 = vadd.xlane.f32.xlu0 %v37
  %v39 = vpop.xlane.xlu0 %38
  %v40 = vsel %vm23, %v36, 0.0
  %41 = vadd.xlane.f32.xlu0 %v40
  %v42 = vpop.xlane.xlu0 %41
  %v43 = vmul.f32 %v39, %v30
  %v44 = vmul.f32 %v42, %v30
  %v45 = vadd.f32 %v43, 1e-05
  %v46 = vadd.f32 %v44, 1e-05
  %v47 = vrsqrt.pop %v45
  %v48 = vrsqrt.pop %v46
  %v49 = vmul.f32 %v33, %v47
  %v50 = vmul.f32 %v34, %v48
  %v51 = vld [vmem:[%s1] sm:$0x1]
  %v53 = vlaneseq
  %v54 = vshrl.u32 %v53, 7
  %v55 = vsub.s32 0, %v54
  %v56 = vrot.slane %v51, %v55
  %v58 = vmul.f32 %v49, %v56
  %v59 = vmul.f32 %v50, %v56
  %v60 = vld [vmem:[%s2] sm:$0x1]
  %v62 = vlaneseq
  %v63 = vshrl.u32 %v62, 7
  %v64 = vsub.s32 0, %v63
  %v65 = vrot.slane %v60, %v64
  %v67 = vadd.f32 %v58, %v65
  %v68 = vadd.f32 %v59, %v65
  %v69 = vpack.c.bf16 %v68, %v67
  %v70 = vld [vmem:[%s3] sm:$0xf]
  %v71 = vld [vmem:[%s3 + $0x4] sm:$0xf]
  %v72 = vld [vmem:[%s3 + $0x8] sm:$0xf]
  %v73 = vld [vmem:[%s3 + $0xc] sm:$0xf]
  %v74 = vld [vmem:[%s4] sm:$0x1]
  %v76 = vlaneseq
  %v77 = vshrl.u32 %v76, 7
  %v78 = vsub.s32 0, %v77
  %v79 = vrot.slane %v74, %v78
  %v85 = vunpack.c.l.b16 %v70
  %v86 = vunpack.c.l.b16 %v71
  %v87 = vunpack.c.l.b16 %v72
  %v88 = vunpack.c.l.b16 %v73
  %v89 = vpack.c.b16 %v86, %v85
  %v90 = vpack.c.b16 %v88, %v87
  %v94 = vsel %vm23, %v69, 0
  %96 = vmatprep.subr.bf16.mxu0 0
  %97 = vmatpush1.bf16.msra.mxu0 %v89
  %98 = vmatprep.subr.bf16.mxu0 0
  %99 = vmatpush1.bf16.msra.mxu0 %v90
  %100 = vmatprep.subr.bf16.mxu0 0
  %101 = vmatpush1.bf16.msra.mxu0 0
  %102 = vmatprep.subr.bf16.mxu0 0
  %103 = vmatpush1.bf16.msra.mxu0 0
  %104 = vmatprep.subr.bf16.mxu0 0
  %105 = vmatpush1.bf16.msra.mxu0 0
  %106 = vmatprep.subr.bf16.mxu0 0
  %107 = vmatpush1.bf16.msra.mxu0 0
  %108 = vmatprep.subr.bf16.mxu0 0
  %109 = vmatpush1.bf16.msra.mxu0 0
  %110 = vmatprep.subr.bf16.mxu0 0
  %111 = vmatpush1.bf16.msra.mxu0 0
  %112 = vmatprep.subr.bf16.mxu0 0
  %113 = vmatpush1.bf16.msra.mxu0 0
  %114 = vmatprep.subr.bf16.mxu0 0
  %115 = vmatpush1.bf16.msra.mxu0 0
  %116 = vmatprep.subr.bf16.mxu0 0
  %117 = vmatpush1.bf16.msra.mxu0 0
  %118 = vmatprep.subr.bf16.mxu0 0
  %119 = vmatpush1.bf16.msra.mxu0 0
  %120 = vmatprep.subr.bf16.mxu0 0
  %121 = vmatpush1.bf16.msra.mxu0 0
  %122 = vmatprep.subr.bf16.mxu0 0
  %123 = vmatpush1.bf16.msra.mxu0 0
  %124 = vmatprep.subr.bf16.mxu0 0
  %125 = vmatpush1.bf16.msra.mxu0 0
  %126 = vmatprep.subr.bf16.mxu0 0
  %127 = vmatpush1.bf16.msra.mxu0 0
  %128 = vmatprep.mubr.bf16.mxu0 0
  %129 = vmatmul.mubr.bf16.gmra.mrb[0].mxu0 %v94
  %v130 = vpop.f32.mrb[0].mxu0
  %v131 = vadd.f32 %v79, %v130
  %v132 = vpop.f32.mrb[0].mxu0
  %v133 = vpop.f32.mrb[0].mxu0
  %v134 = vadd.f32 %v79, %v133
  %v135 = vpop.f32.mrb[0].mxu0
  %136 = vdwg.mxu0
  %v137 = vpack.c.bf16 %v134, %v131
  %v139 = vunpack.c.l.b16 %v137
  %v140 = vunpack.c.h.b16 %v137
  %v141 = vpack.c.b16 %v139, %v139
  %v142 = vpack.c.b16 %v140, %v140
  %vm145 = vcmask 257024
  %146 = vst.msk [vmem:[%s5] sm:$0xf] %vm145, %v141
  %147 = vst.msk [vmem:[%s5 + $0x4] sm:$0xf] %vm145, %v142
  // Predicated region
  $region22: #{decoder_forward.15} parent=0 // pred_check
    _
  $region23: #{decoder_forward.15} parent=0 // pred_check_branch
    %149 = sbr.rel (0) target = $region25
  $region24: #{decoder_forward.15} parent=0 // pred_region
    _
  $region25: #{decoder_forward.15} parent=0 // pred_fallthru
    _
  // Predicated region
  $region26: #{decoder_forward.15} parent=0 // pred_check
    _
  $region27: #{decoder_forward.15} parent=0 // pred_check_branch
    %151 = sbr.rel (0) target = $region29
  $region28: #{decoder_forward.15} parent=0 // pred_region
    _
  $region29: #{decoder_forward.15} parent=0 // pred_fallthru
    _

// kernel: decoder_forward.13
$region0: #{decoder_forward.13}
  #allocation0 [shape = 'u32[]', space=smem, size = 0x4, offset = 0x4, fixed_abs, tag = 'smem constant byte address 0x4 - core index']
  #allocation1 [shape = 'u32[144,128]{1,0:T(1,128)}', space=vmem, size = 0x12000, scoped, tag = 'internal scratch']
  %s0 = inlined_call_operand.vmem [shape: f32[16,32], index: 0, kind: input, shape index: {}]
  %s1 = inlined_call_operand.vmem [shape: f32[1,32], index: 1, kind: input, shape index: {}]
  %s2 = inlined_call_operand.vmem [shape: f32[1,32], index: 2, kind: input, shape index: {}]
  %s3 = inlined_call_operand.vmem [shape: bf16[32,32], index: 3, kind: input, shape index: {}]
  %s4 = inlined_call_operand.vmem [shape: f32[1,32], index: 4, kind: input, shape index: {}]
  %s5 = inlined_call_operand.vmem [shape: bf16[32,32], index: 5, kind: input, shape index: {}]
  %s6 = inlined_call_operand.vmem [shape: f32[1,32], index: 6, kind: input, shape index: {}]
  %s7 = inlined_call_operand.vmem [shape: bf16[32,32], index: 7, kind: input, shape index: {}]
  %s8 = inlined_call_operand.vmem [shape: f32[1,32], index: 8, kind: input, shape index: {}]
  %s9 = inlined_call_operand.vmem [shape: bf16[16,32], index: 9, kind: output, shape index: {0}]
  %s10 = inlined_call_operand.vmem [shape: bf16[16,32], index: 10, kind: output, shape index: {1}]
  %s11 = inlined_call_operand.vmem [shape: bf16[16,32], index: 11, kind: output, shape index: {2}]
  %12 = xla_tuple %s9, %s10, %s11
  %s13 = sld [smem:[#allocation0]]
  $region62: #{decoder_forward.13} parent=0
    _
  %s15 = ssub.s32 1, %s13
  %s16 = scalar_select 0, %s15, %s13
  // Predicated region
  $region2: #{decoder_forward.13} parent=0 // pred_check
    _
  $region3: #{decoder_forward.13} parent=0 // pred_check_branch
    %18 = sbr.rel (0) target = $region5
  $region4: #{decoder_forward.13} parent=0 // pred_region
    _
  $region5: #{decoder_forward.13} parent=0 // pred_fallthru
    _
  // Predicated region
  $region6: #{decoder_forward.13} parent=0 // pred_check
    _
  $region7: #{decoder_forward.13} parent=0 // pred_check_branch
    %20 = sbr.rel (0) target = $region9
  $region8: #{decoder_forward.13} parent=0 // pred_region
    _
  $region9: #{decoder_forward.13} parent=0 // pred_fallthru
    _
  // Predicated region
  $region10: #{decoder_forward.13} parent=0 // pred_check
    _
  $region11: #{decoder_forward.13} parent=0 // pred_check_branch
    %22 = sbr.rel (0) target = $region13
  $region12: #{decoder_forward.13} parent=0 // pred_region
    _
  $region13: #{decoder_forward.13} parent=0 // pred_fallthru
    _
  // Predicated region
  $region14: #{decoder_forward.13} parent=0 // pred_check
    _
  $region15: #{decoder_forward.13} parent=0 // pred_check_branch
    %24 = sbr.rel (0) target = $region17
  $region16: #{decoder_forward.13} parent=0 // pred_region
    _
  $region17: #{decoder_forward.13} parent=0 // pred_fallthru
    _
  // Predicated region
  $region18: #{decoder_forward.13} parent=0 // pred_check
    _
  $region19: #{decoder_forward.13} parent=0 // pred_check_branch
    %26 = sbr.rel (0) target = $region21
  $region20: #{decoder_forward.13} parent=0 // pred_region
    _
  $region21: #{decoder_forward.13} parent=0 // pred_fallthru
    _
  // Predicated region
  $region22: #{decoder_forward.13} parent=0 // pred_check
    _
  $region23: #{decoder_forward.13} parent=0 // pred_check_branch
    %28 = sbr.rel (0) target = $region25
  $region24: #{decoder_forward.13} parent=0 // pred_region
    _
  $region25: #{decoder_forward.13} parent=0 // pred_fallthru
    _
  // Predicated region
  $region26: #{decoder_forward.13} parent=0 // pred_check
    _
  $region27: #{decoder_forward.13} parent=0 // pred_check_branch
    %30 = sbr.rel (0) target = $region29
  $region28: #{decoder_forward.13} parent=0 // pred_region
    _
  $region29: #{decoder_forward.13} parent=0 // pred_fallthru
    _
  // Predicated region
  $region30: #{decoder_forward.13} parent=0 // pred_check
    _
  $region31: #{decoder_forward.13} parent=0 // pred_check_branch
    %32 = sbr.rel (0) target = $region33
  $region32: #{decoder_forward.13} parent=0 // pred_region
    _
  $region33: #{decoder_forward.13} parent=0 // pred_fallthru
    _
  // Predicated region
  $region34: #{decoder_forward.13} parent=0 // pred_check
    _
  $region35: #{decoder_forward.13} parent=0 // pred_check_branch
    %34 = sbr.rel (0) target = $region37
  $region36: #{decoder_forward.13} parent=0 // pred_region
    _
  $region37: #{decoder_forward.13} parent=0 // pred_fallthru
    _
  %v36 = vld [vmem:[%s0] sm:$0xff]
  %v37 = vld [vmem:[%s0 + $0x8] sm:$0xff]
  %vm38 = vcmask 261120
  %v39 = vsel %vm38, %v36, 0.0
  %40 = vadd.xlane.f32.xlu0 %v39
  %v41 = vpop.xlane.xlu0 %40
  %v42 = vsel %vm38, %v37, 0.0
  %43 = vadd.xlane.f32.xlu0 %v42
  %v44 = vpop.xlane.xlu0 %43
  %v45 = vrcp.pop 32.0
  %v46 = vmul.f32 %v41, %v45
  %v47 = vmul.f32 %v44, %v45
  %v48 = vsub.f32 %v36, %v46
  %v49 = vsub.f32 %v37, %v47
  %v50 = vmul.f32 %v48, %v48
  %v51 = vmul.f32 %v49, %v49
  %v52 = vsel %vm38, %v50, 0.0
  %53 = vadd.xlane.f32.xlu0 %v52
  %v54 = vpop.xlane.xlu0 %53
  %v55 = vsel %vm38, %v51, 0.0
  %56 = vadd.xlane.f32.xlu0 %v55
  %v57 = vpop.xlane.xlu0 %56
  %v58 = vmul.f32 %v54, %v45
  %v59 = vmul.f32 %v57, %v45
  %v60 = vadd.f32 %v58, 1e-05
  %v61 = vadd.f32 %v59, 1e-05
  %v62 = vrsqrt.pop %v60
  %v63 = vrsqrt.pop %v61
  %v64 = vmul.f32 %v48, %v62
  %v65 = vmul.f32 %v49, %v63
  %v66 = vld [vmem:[%s1] sm:$0x1]
  %v68 = vlaneseq
  %v69 = vshrl.u32 %v68, 7
  %v70 = vsub.s32 0, %v69
  %v71 = vrot.slane %v66, %v70
  %v73 = vmul.f32 %v64, %v71
  %v74 = vmul.f32 %v65, %v71
  %v75 = vld [vmem:[%s2] sm:$0x1]
  %v77 = vlaneseq
  %v78 = vshrl.u32 %v77, 7
  %v79 = vsub.s32 0, %v78
  %v80 = vrot.slane %v75, %v79
  %v82 = vadd.f32 %v73, %v80
  %v83 = vadd.f32 %v74, %v80
  %v84 = vpack.c.bf16 %v83, %v82
  %v85 = vld [vmem:[%s3] sm:$0xf]
  %v86 = vld [vmem:[%s3 + $0x4] sm:$0xf]
  %v87 = vld [vmem:[%s3 + $0x8] sm:$0xf]
  %v88 = vld [vmem:[%s3 + $0xc] sm:$0xf]
  %v89 = vld [vmem:[%s4] sm:$0x1]
  %v91 = vlaneseq
  %v92 = vshrl.u32 %v91, 7
  %v93 = vsub.s32 0, %v92
  %v94 = vrot.slane %v89, %v93
  %v100 = vunpack.c.l.b16 %v85
  %v101 = vunpack.c.l.b16 %v86
  %v102 = vunpack.c.l.b16 %v87
  %v103 = vunpack.c.l.b16 %v88
  %v104 = vpack.c.b16 %v101, %v100
  %v105 = vpack.c.b16 %v103, %v102
  %v109 = vsel %vm38, %v84, 0
  %111 = vmatprep.subr.bf16.mxu0 0
  %112 = vmatpush1.bf16.msra.mxu0 %v104
  %113 = vmatprep.subr.bf16.mxu0 0
  %114 = vmatpush1.bf16.msra.mxu0 %v105
  %115 = vmatprep.subr.bf16.mxu0 0
  %116 = vmatpush1.bf16.msra.mxu0 0
  %117 = vmatprep.subr.bf16.mxu0 0
  %118 = vmatpush1.bf16.msra.mxu0 0
  %119 = vmatprep.subr.bf16.mxu0 0
  %120 = vmatpush1.bf16.msra.mxu0 0
  %121 = vmatprep.subr.bf16.mxu0 0
  %122 = vmatpush1.bf16.msra.mxu0 0
  %123 = vmatprep.subr.bf16.mxu0 0
  %124 = vmatpush1.bf16.msra.mxu0 0
  %125 = vmatprep.subr.bf16.mxu0 0
  %126 = vmatpush1.bf16.msra.mxu0 0
  %127 = vmatprep.subr.bf16.mxu0 0
  %128 = vmatpush1.bf16.msra.mxu0 0
  %129 = vmatprep.subr.bf16.mxu0 0
  %130 = vmatpush1.bf16.msra.mxu0 0
  %131 = vmatprep.subr.bf16.mxu0 0
  %132 = vmatpush1.bf16.msra.mxu0 0
  %133 = vmatprep.subr.bf16.mxu0 0
  %134 = vmatpush1.bf16.msra.mxu0 0
  %135 = vmatprep.subr.bf16.mxu0 0
  %136 = vmatpush1.bf16.msra.mxu0 0
  %137 = vmatprep.subr.bf16.mxu0 0
  %138 = vmatpush1.bf16.msra.mxu0 0
  %139 = vmatprep.subr.bf16.mxu0 0
  %140 = vmatpush1.bf16.msra.mxu0 0
  %141 = vmatprep.subr.bf16.mxu0 0
  %142 = vmatpush1.bf16.msra.mxu0 0
  %143 = vmatprep.mubr.bf16.mxu0 0
  %144 = vmatmul.mubr.bf16.gmra.mrb[0].mxu0 %v109
  %v145 = vpop.f32.mrb[0].mxu0
  %v146 = vadd.f32 %v94, %v145
  %v147 = vpop.f32.mrb[0].mxu0
  %v148 = vpop.f32.mrb[0].mxu0
  %v149 = vadd.f32 %v94, %v148
  %v150 = vpop.f32.mrb[0].mxu0
  %151 = vdwg.mxu0
  %v152 = vpack.c.bf16 %v149, %v146
  %v154 = vunpack.c.l.b16 %v152
  %v155 = vunpack.c.h.b16 %v152
  %v156 = vpack.c.b16 %v154, %v154
  %v157 = vpack.c.b16 %v155, %v155
  %vm160 = vcmask 257024
  %161 = vst.msk [vmem:[%s9] sm:$0xf] %vm160, %v156
  %162 = vst.msk [vmem:[%s9 + $0x4] sm:$0xf] %vm160, %v157
  %v163 = vld [vmem:[%s5] sm:$0xf]
  %v164 = vld [vmem:[%s5 + $0x4] sm:$0xf]
  %v165 = vld [vmem:[%s5 + $0x8] sm:$0xf]
  %v166 = vld [vmem:[%s5 + $0xc] sm:$0xf]
  %v167 = vld [vmem:[%s6] sm:$0x1]
  %v169 = vlaneseq
  %v170 = vshrl.u32 %v169, 7
  %v171 = vsub.s32 0, %v170
  %v172 = vrot.slane %v167, %v171
  %v178 = vunpack.c.l.b16 %v163
  %v179 = vunpack.c.l.b16 %v164
  %v180 = vunpack.c.l.b16 %v165
  %v181 = vunpack.c.l.b16 %v166
  %v182 = vpack.c.b16 %v179, %v178
  %v183 = vpack.c.b16 %v181, %v180
  %186 = vmatprep.subr.bf16.mxu0 0
  %187 = vmatpush1.bf16.msra.mxu0 %v182
  %188 = vmatprep.subr.bf16.mxu0 0
  %189 = vmatpush1.bf16.msra.mxu0 %v183
  %190 = vmatprep.subr.bf16.mxu0 0
  %191 = vmatpush1.bf16.msra.mxu0 0
  %192 = vmatprep.subr.bf16.mxu0 0
  %193 = vmatpush1.bf16.msra.mxu0 0
  %194 = vmatprep.subr.bf16.mxu0 0
  %195 = vmatpush1.bf16.msra.mxu0 0
  %196 = vmatprep.subr.bf16.mxu0 0
  %197 = vmatpush1.bf16.msra.mxu0 0
  %198 = vmatprep.subr.bf16.mxu0 0
  %199 = vmatpush1.bf16.msra.mxu0 0
  %200 = vmatprep.subr.bf16.mxu0 0
  %201 = vmatpush1.bf16.msra.mxu0 0
  %202 = vmatprep.subr.bf16.mxu0 0
  %203 = vmatpush1.bf16.msra.mxu0 0
  %204 = vmatprep.subr.bf16.mxu0 0
  %205 = vmatpush1.bf16.msra.mxu0 0
  %206 = vmatprep.subr.bf16.mxu0 0
  %207 = vmatpush1.bf16.msra.mxu0 0
  %208 = vmatprep.subr.bf16.mxu0 0
  %209 = vmatpush1.bf16.msra.mxu0 0
  %210 = vmatprep.subr.bf16.mxu0 0
  %211 = vmatpush1.bf16.msra.mxu0 0
  %212 = vmatprep.subr.bf16.mxu0 0
  %213 = vmatpush1.bf16.msra.mxu0 0
  %214 = vmatprep.subr.bf16.mxu0 0
  %215 = vmatpush1.bf16.msra.mxu0 0
  %216 = vmatprep.subr.bf16.mxu0 0
  %217 = vmatpush1.bf16.msra.mxu0 0
  %218 = vmatprep.mubr.bf16.mxu0 0
  %219 = vmatmul.mubr.bf16.gmra.mrb[0].mxu0 %v109
  %v220 = vpop.f32.mrb[0].mxu0
  %v221 = vadd.f32 %v172, %v220
  %v222 = vpop.f32.mrb[0].mxu0
  %v223 = vpop.f32.mrb[0].mxu0
  %v224 = vadd.f32 %v172, %v223
  %v225 = vpop.f32.mrb[0].mxu0
  %226 = vdwg.mxu0
  %v227 = vpack.c.bf16 %v224, %v221
  %v229 = vunpack.c.l.b16 %v227
  %v230 = vunpack.c.h.b16 %v227
  %v231 = vpack.c.b16 %v229, %v229
  %v232 = vpack.c.b16 %v230, %v230
  %235 = vst.msk [vmem:[%s10] sm:$0xf] %vm160, %v231
  %236 = vst.msk [vmem:[%s10 + $0x4] sm:$0xf] %vm160, %v232
  %v237 = vld [vmem:[%s7] sm:$0xf]
  %v238 = vld [vmem:[%s7 + $0x4] sm:$0xf]
  %v239 = vld [vmem:[%s7 + $0x8] sm:$0xf]
  %v240 = vld [vmem:[%s7 + $0xc] sm:$0xf]
  %v241 = vld [vmem:[%s8] sm:$0x1]
  %v243 = vlaneseq
  %v244 = vshrl.u32 %v243, 7
  %v245 = vsub.s32 0, %v244
  %v246 = vrot.slane %v241, %v245
  %v252 = vunpack.c.l.b16 %v237
  %v253 = vunpack.c.l.b16 %v238
  %v254 = vunpack.c.l.b16 %v239
  %v255 = vunpack.c.l.b16 %v240
  %v256 = vpack.c.b16 %v253, %v252
  %v257 = vpack.c.b16 %v255, %v254
  %260 = vmatprep.subr.bf16.mxu0 0
  %261 = vmatpush1.bf16.msra.mxu0 %v256
  %262 = vmatprep.subr.bf16.mxu0 0
  %263 = vmatpush1.bf16.msra.mxu0 %v257
  %264 = vmatprep.subr.bf16.mxu0 0
  %265 = vmatpush1.bf16.msra.mxu0 0
  %266 = vmatprep.subr.bf16.mxu0 0
  %267 = vmatpush1.bf16.msra.mxu0 0
  %268 = vmatprep.subr.bf16.mxu0 0
  %269 = vmatpush1.bf16.msra.mxu0 0
  %270 = vmatprep.subr.bf16.mxu0 0
  %271 = vmatpush1.bf16.msra.mxu0 0
  %272 = vmatprep.subr.bf16.mxu0 0
  %273 = vmatpush1.bf16.msra.mxu0 0
  %274 = vmatprep.subr.bf16.mxu0 0
  %275 = vmatpush1.bf16.msra.mxu0 0
  %276 = vmatprep.subr.bf16.mxu0 0
  %277 = vmatpush1.bf16.msra.mxu0 0
  %278 = vmatprep.subr.bf16.mxu0 0
  %279 = vmatpush1.bf16.msra.mxu0 0
  %280 = vmatprep.subr.bf16.mxu0 0
  %281 = vmatpush1.bf16.msra.mxu0 0
  %282 = vmatprep.subr.bf16.mxu0 0
  %283 = vmatpush1.bf16.msra.mxu0 0
  %284 = vmatprep.subr.bf16.mxu0 0
  %285 = vmatpush1.bf16.msra.mxu0 0
  %286 = vmatprep.subr.bf16.mxu0 0
  %287 = vmatpush1.bf16.msra.mxu0 0
  %288 = vmatprep.subr.bf16.mxu0 0
  %289 = vmatpush1.bf16.msra.mxu0 0
  %290 = vmatprep.subr.bf16.mxu0 0
  %291 = vmatpush1.bf16.msra.mxu0 0
  %292 = vmatprep.mubr.bf16.mxu0 0
  %293 = vmatmul.mubr.bf16.gmra.mrb[0].mxu0 %v109
  %v294 = vpop.f32.mrb[0].mxu0
  %v295 = vadd.f32 %v246, %v294
  %v296 = vpop.f32.mrb[0].mxu0
  %v297 = vpop.f32.mrb[0].mxu0
  %v298 = vadd.f32 %v246, %v297
  %v299 = vpop.f32.mrb[0].mxu0
  %300 = vdwg.mxu0
  %v301 = vpack.c.bf16 %v298, %v295
  %v303 = vunpack.c.l.b16 %v301
  %v304 = vunpack.c.h.b16 %v301
  %v305 = vpack.c.b16 %v303, %v303
  %v306 = vpack.c.b16 %v304, %v304
  %309 = vst.msk [vmem:[%s11] sm:$0xf] %vm160, %v305
  %310 = vst.msk [vmem:[%s11 + $0x4] sm:$0xf] %vm160, %v306
  // Predicated region
  $region38: #{decoder_forward.13} parent=0 // pred_check
    _
  $region39: #{decoder_forward.13} parent=0 // pred_check_branch
    %312 = sbr.rel (0) target = $region41
  $region40: #{decoder_forward.13} parent=0 // pred_region
    _
  $region41: #{decoder_forward.13} parent=0 // pred_fallthru
    _
  // Predicated region
  $region42: #{decoder_forward.13} parent=0 // pred_check
    _
  $region43: #{decoder_forward.13} parent=0 // pred_check_branch
    %314 = sbr.rel (0) target = $region45
  $region44: #{decoder_forward.13} parent=0 // pred_region
    _
  $region45: #{decoder_forward.13} parent=0 // pred_fallthru
    _
  // Predicated region
  $region46: #{decoder_forward.13} parent=0 // pred_check
    _
  $region47: #{decoder_forward.13} parent=0 // pred_check_branch
    %316 = sbr.rel (0) target = $region49
  $region48: #{decoder_forward.13} parent=0 // pred_region
    _
  $region49: #{decoder_forward.13} parent=0 // pred_fallthru
    _
  // Predicated region
  $region50: #{decoder_forward.13} parent=0 // pred_check
    _
  $region51: #{decoder_forward.13} parent=0 // pred_check_branch
    %318 = sbr.rel (0) target = $region53
  $region52: #{decoder_forward.13} parent=0 // pred_region
    _
  $region53: #{decoder_forward.13} parent=0 // pred_fallthru
    _
  // Predicated region
  $region54: #{decoder_forward.13} parent=0 // pred_check
    _
  $region55: #{decoder_forward.13} parent=0 // pred_check_branch
    %320 = sbr.rel (0) target = $region57
  $region56: #{decoder_forward.13} parent=0 // pred_region
    _
  $region57: #{decoder_forward.13} parent=0 // pred_fallthru
    _
  // Predicated region
  $region58: #{decoder_forward.13} parent=0 // pred_check
    _
  $region59: #{decoder_forward.13} parent=0 // pred_check_branch
    %322 = sbr.rel (0) target = $region61
  $region60: #{decoder_forward.13} parent=0 // pred_region
    _
  $region61: #{decoder_forward.13} parent=0 // pred_fallthru
    _

// kernel: decoder_forward.18
$region0: #{decoder_forward.18}
  #allocation0 [shape = 'u32[]', space=smem, size = 0x4, offset = 0x4, fixed_abs, tag = 'smem constant byte address 0x4 - core index']
  #allocation1 [shape = 'u32[144,128]{1,0:T(1,128)}', space=vmem, size = 0x12000, scoped, tag = 'internal scratch']
  #allocation2 [shape = 'bf16[16,32]{1,0:T(16,128)(2,1)}', space=vmem, size = 0x1000, scoped, tag = 'scratch operand']
  #allocation3 [shape = 'f32[16,32]{1,0:T(8,128)}', space=vmem, size = 0x2000, scoped, tag = 'scratch operand']
  %s0 = inlined_call_operand.vmem [shape: f32[16,32], index: 0, kind: input, shape index: {}]
  %s1 = inlined_call_operand.vmem [shape: f32[1,32], index: 1, kind: input, shape index: {}]
  %s2 = inlined_call_operand.vmem [shape: f32[1,32], index: 2, kind: input, shape index: {}]
  %s3 = inlined_call_operand.vmem [shape: bf16[32,64], index: 3, kind: input, shape index: {}]
  %s4 = inlined_call_operand.vmem [shape: f32[1,64], index: 4, kind: input, shape index: {}]
  %s5 = inlined_call_operand.vmem [shape: bf16[64,32], index: 5, kind: input, shape index: {}]
  %s6 = inlined_call_operand.vmem [shape: f32[1,32], index: 6, kind: input, shape index: {}]
  %s7 = inlined_call_operand.vmem [shape: f32[16,32], index: 7, kind: output, shape index: {}]
  %s8 = sld [smem:[#allocation0]]
  $region46: #{decoder_forward.18} parent=0
    _
  %s10 = ssub.s32 1, %s8
  %s11 = scalar_select 0, %s10, %s8
  // Predicated region
  $region2: #{decoder_forward.18} parent=0 // pred_check
    _
  $region3: #{decoder_forward.18} parent=0 // pred_check_branch
    %13 = sbr.rel (0) target = $region5
  $region4: #{decoder_forward.18} parent=0 // pred_region
    _
  $region5: #{decoder_forward.18} parent=0 // pred_fallthru
    _
  // Predicated region
  $region6: #{decoder_forward.18} parent=0 // pred_check
    _
  $region7: #{decoder_forward.18} parent=0 // pred_check_branch
    %15 = sbr.rel (0) target = $region9
  $region8: #{decoder_forward.18} parent=0 // pred_region
    _
  $region9: #{decoder_forward.18} parent=0 // pred_fallthru
    _
  // Predicated region
  $region10: #{decoder_forward.18} parent=0 // pred_check
    _
  $region11: #{decoder_forward.18} parent=0 // pred_check_branch
    %17 = sbr.rel (0) target = $region13
  $region12: #{decoder_forward.18} parent=0 // pred_region
    _
  $region13: #{decoder_forward.18} parent=0 // pred_fallthru
    _
  // Predicated region
  $region14: #{decoder_forward.18} parent=0 // pred_check
    _
  $region15: #{decoder_forward.18} parent=0 // pred_check_branch
    %19 = sbr.rel (0) target = $region17
  $region16: #{decoder_forward.18} parent=0 // pred_region
    _
  $region17: #{decoder_forward.18} parent=0 // pred_fallthru
    _
  // Predicated region
  $region18: #{decoder_forward.18} parent=0 // pred_check
    _
  $region19: #{decoder_forward.18} parent=0 // pred_check_branch
    %21 = sbr.rel (0) target = $region21
  $region20: #{decoder_forward.18} parent=0 // pred_region
    _
  $region21: #{decoder_forward.18} parent=0 // pred_fallthru
    _
  // Predicated region
  $region22: #{decoder_forward.18} parent=0 // pred_check
    _
  $region23: #{decoder_forward.18} parent=0 // pred_check_branch
    %23 = sbr.rel (0) target = $region25
  $region24: #{decoder_forward.18} parent=0 // pred_region
    _
  $region25: #{decoder_forward.18} parent=0 // pred_fallthru
    _
  // Predicated region
  $region26: #{decoder_forward.18} parent=0 // pred_check
    _
  $region27: #{decoder_forward.18} parent=0 // pred_check_branch
    %25 = sbr.rel (0) target = $region29
  $region28: #{decoder_forward.18} parent=0 // pred_region
    _
  $region29: #{decoder_forward.18} parent=0 // pred_fallthru
    _
  %p27 = scmp.eq.s32.totalorder 0, 0
  // Predicated region
  $region30: #{decoder_forward.18} parent=0 // pred_check
    %p28 = pneg %p27
  $region31: #{decoder_forward.18} parent=0 // pred_check_branch
    %30 = sbr.rel (%p28) target = $region33
  $region32: #{decoder_forward.18} parent=0 // pred_region
    %v31 = vld [vmem:[%s0] sm:$0xff]
    %v32 = vld [vmem:[%s0 + $0x8] sm:$0xff]
    %vm33 = vcmask 261120
    %v34 = vsel %vm33, %v31, 0.0
    %35 = vadd.xlane.f32.xlu0 %v34
    %v36 = vpop.xlane.xlu0 %35
    %v37 = vsel %vm33, %v32, 0.0
    %38 = vadd.xlane.f32.xlu0 %v37
    %v39 = vpop.xlane.xlu0 %38
    %v40 = vrcp.pop 32.0
    %v41 = vmul.f32 %v36, %v40
    %v42 = vmul.f32 %v39, %v40
    %v43 = vsub.f32 %v31, %v41
    %v44 = vsub.f32 %v32, %v42
    %v45 = vmul.f32 %v43, %v43
    %v46 = vmul.f32 %v44, %v44
    %v47 = vsel %vm33, %v45, 0.0
    %48 = vadd.xlane.f32.xlu0 %v47
    %v49 = vpop.xlane.xlu0 %48
    %v50 = vsel %vm33, %v46, 0.0
    %51 = vadd.xlane.f32.xlu0 %v50
    %v52 = vpop.xlane.xlu0 %51
    %v53 = vmul.f32 %v49, %v40
    %v54 = vmul.f32 %v52, %v40
    %v55 = vadd.f32 %v53, 1e-05
    %v56 = vadd.f32 %v54, 1e-05
    %v57 = vrsqrt.pop %v55
    %v58 = vrsqrt.pop %v56
    %v59 = vmul.f32 %v43, %v57
    %v60 = vmul.f32 %v44, %v58
    %v61 = vld [vmem:[%s1] sm:$0x1]
    %v63 = vlaneseq
    %v64 = vshrl.u32 %v63, 7
    %v65 = vsub.s32 0, %v64
    %v66 = vrot.slane %v61, %v65
    %v68 = vmul.f32 %v59, %v66
    %v69 = vmul.f32 %v60, %v66
    %v70 = vld [vmem:[%s2] sm:$0x1]
    %v72 = vlaneseq
    %v73 = vshrl.u32 %v72, 7
    %v74 = vsub.s32 0, %v73
    %v75 = vrot.slane %v70, %v74
    %v77 = vadd.f32 %v68, %v75
    %v78 = vadd.f32 %v69, %v75
    %v79 = vpack.c.bf16 %v78, %v77
    %80 = vst.msk [vmem:[#allocation2] sm:$0xff] %vm33, %v79
    %81 = vst.msk [vmem:[#allocation3] sm:$0xff] %vm33, 0.0
    %82 = vst.msk [vmem:[#allocation3 + $0x8] sm:$0xff] %vm33, 0.0
  $region33: #{decoder_forward.18} parent=0 // pred_fallthru
    _
  %v83 = vld [vmem:[#allocation2] sm:$0xff]
  %v84 = vld [vmem:[%s3] sm:$0xf]
  %v85 = vld [vmem:[%s3 + $0x4] sm:$0xf]
  %v86 = vld [vmem:[%s3 + $0x8] sm:$0xf]
  %v87 = vld [vmem:[%s3 + $0xc] sm:$0xf]
  %v88 = vld [vmem:[%s4] sm:$0x1]
  %v90 = vlaneseq
  %v91 = vshrl.u32 %v90, 7
  %v92 = vsub.s32 0, %v91
  %v93 = vrot.slane %v88, %v92
  %v99 = vunpack.c.l.b16 %v84
  %v100 = vunpack.c.l.b16 %v85
  %v101 = vunpack.c.l.b16 %v86
  %v102 = vunpack.c.l.b16 %v87
  %v103 = vpack.c.b16 %v100, %v99
  %v104 = vpack.c.b16 %v102, %v101
  %vm107 = vcmask 261120
  %v109 = vsel %vm107, %v83, 0
  %111 = vmatprep.subr.bf16.mxu0 0
  %112 = vmatpush1.bf16.msra.mxu0 %v103
  %113 = vmatprep.subr.bf16.mxu0 0
  %114 = vmatpush1.bf16.msra.mxu0 %v104
  %115 = vmatprep.subr.bf16.mxu0 0
  %116 = vmatpush1.bf16.msra.mxu0 0
  %117 = vmatprep.subr.bf16.mxu0 0
  %118 = vmatpush1.bf16.msra.mxu0 0
  %119 = vmatprep.subr.bf16.mxu0 0
  %120 = vmatpush1.bf16.msra.mxu0 0
  %121 = vmatprep.subr.bf16.mxu0 0
  %122 = vmatpush1.bf16.msra.mxu0 0
  %123 = vmatprep.subr.bf16.mxu0 0
  %124 = vmatpush1.bf16.msra.mxu0 0
  %125 = vmatprep.subr.bf16.mxu0 0
  %126 = vmatpush1.bf16.msra.mxu0 0
  %127 = vmatprep.subr.bf16.mxu0 0
  %128 = vmatpush1.bf16.msra.mxu0 0
  %129 = vmatprep.subr.bf16.mxu0 0
  %130 = vmatpush1.bf16.msra.mxu0 0
  %131 = vmatprep.subr.bf16.mxu0 0
  %132 = vmatpush1.bf16.msra.mxu0 0
  %133 = vmatprep.subr.bf16.mxu0 0
  %134 = vmatpush1.bf16.msra.mxu0 0
  %135 = vmatprep.subr.bf16.mxu0 0
  %136 = vmatpush1.bf16.msra.mxu0 0
  %137 = vmatprep.subr.bf16.mxu0 0
  %138 = vmatpush1.bf16.msra.mxu0 0
  %139 = vmatprep.subr.bf16.mxu0 0
  %140 = vmatpush1.bf16.msra.mxu0 0
  %141 = vmatprep.subr.bf16.mxu0 0
  %142 = vmatpush1.bf16.msra.mxu0 0
  %143 = vmatprep.mubr.bf16.mxu0 0
  %144 = vmatmul.mubr.bf16.gmra.mrb[0].mxu0 %v109
  %v145 = vpop.f32.mrb[0].mxu0
  %v146 = vadd.f32 %v93, %v145
  %v147 = vpop.f32.mrb[0].mxu0
  %v148 = vpop.f32.mrb[0].mxu0
  %v149 = vadd.f32 %v93, %v148
  %v150 = vpop.f32.mrb[0].mxu0
  %151 = vdwg.mxu0
  %v152 = vmax.f32 %v146, 0.0
  %v153 = vmax.f32 %v149, 0.0
  %v154 = vld [vmem:[#allocation3] sm:$0xff]
  %v155 = vld [vmem:[#allocation3 + $0x8] sm:$0xff]
  %v156 = vpack.c.bf16 %v153, %v152
  %v157 = vld [vmem:[%s5] sm:$0xf]
  %v158 = vld [vmem:[%s5 + $0x4] sm:$0xf]
  %v159 = vld [vmem:[%s5 + $0x8] sm:$0xf]
  %v160 = vld [vmem:[%s5 + $0xc] sm:$0xf]
  %v161 = vld [vmem:[%s5 + $0x10] sm:$0xf]
  %v162 = vld [vmem:[%s5 + $0x14] sm:$0xf]
  %v163 = vld [vmem:[%s5 + $0x18] sm:$0xf]
  %v164 = vld [vmem:[%s5 + $0x1c] sm:$0xf]
  %v173 = vunpack.c.l.b16 %v157
  %v174 = vunpack.c.l.b16 %v158
  %v175 = vunpack.c.l.b16 %v159
  %v176 = vunpack.c.l.b16 %v160
  %v177 = vunpack.c.l.b16 %v161
  %v178 = vunpack.c.l.b16 %v162
  %v179 = vunpack.c.l.b16 %v163
  %v180 = vunpack.c.l.b16 %v164
  %v181 = vpack.c.b16 %v174, %v173
  %v182 = vpack.c.b16 %v176, %v175
  %v183 = vpack.c.b16 %v178, %v177
  %v184 = vpack.c.b16 %v180, %v179
  %vm189 = vcmask 523264
  %v191 = vsel %vm189, %v156, 0
  %193 = vmatprep.subr.bf16.mxu0 0
  %194 = vmatpush1.bf16.msra.mxu0 %v181
  %195 = vmatprep.subr.bf16.mxu0 0
  %196 = vmatpush1.bf16.msra.mxu0 %v182
  %197 = vmatprep.subr.bf16.mxu0 0
  %198 = vmatpush1.bf16.msra.mxu0 %v183
  %199 = vmatprep.subr.bf16.mxu0 0
  %200 = vmatpush1.bf16.msra.mxu0 %v184
  %201 = vmatprep.subr.bf16.mxu0 0
  %202 = vmatpush1.bf16.msra.mxu0 0
  %203 = vmatprep.subr.bf16.mxu0 0
  %204 = vmatpush1.bf16.msra.mxu0 0
  %205 = vmatprep.subr.bf16.mxu0 0
  %206 = vmatpush1.bf16.msra.mxu0 0
  %207 = vmatprep.subr.bf16.mxu0 0
  %208 = vmatpush1.bf16.msra.mxu0 0
  %209 = vmatprep.subr.bf16.mxu0 0
  %210 = vmatpush1.bf16.msra.mxu0 0
  %211 = vmatprep.subr.bf16.mxu0 0
  %212 = vmatpush1.bf16.msra.mxu0 0
  %213 = vmatprep.subr.bf16.mxu0 0
  %214 = vmatpush1.bf16.msra.mxu0 0
  %215 = vmatprep.subr.bf16.mxu0 0
  %216 = vmatpush1.bf16.msra.mxu0 0
  %217 = vmatprep.subr.bf16.mxu0 0
  %218 = vmatpush1.bf16.msra.mxu0 0
  %219 = vmatprep.subr.bf16.mxu0 0
  %220 = vmatpush1.bf16.msra.mxu0 0
  %221 = vmatprep.subr.bf16.mxu0 0
  %222 = vmatpush1.bf16.msra.mxu0 0
  %223 = vmatprep.subr.bf16.mxu0 0
  %224 = vmatpush1.bf16.msra.mxu0 0
  %225 = vmatprep.mubr.bf16.mxu0 0
  %226 = vmatmul.mubr.bf16.gmra.mrb[0].mxu0 %v191
  %v227 = vpop.f32.mrb[0].mxu0
  %v228 = vadd.f32 0.0, %v227
  %v229 = vpop.f32.mrb[0].mxu0
  %v230 = vpop.f32.mrb[0].mxu0
  %v231 = vadd.f32 0.0, %v230
  %v232 = vpop.f32.mrb[0].mxu0
  %233 = vdwg.mxu0
  %v234 = vadd.f32 %v154, %v228
  %v235 = vadd.f32 %v155, %v231
  %236 = vst.msk [vmem:[#allocation3] sm:$0xff] %vm107, %v234
  %237 = vst.msk [vmem:[#allocation3 + $0x8] sm:$0xff] %vm107, %v235
  // Predicated region
  $region34: #{decoder_forward.18} parent=0 // pred_check
    %p238 = pneg %p27
  $region35: #{decoder_forward.18} parent=0 // pred_check_branch
    %240 = sbr.rel (%p238) target = $region37
  $region36: #{decoder_forward.18} parent=0 // pred_region
    %v241 = vld [vmem:[#allocation3] sm:$0xff]
    %v242 = vld [vmem:[#allocation3 + $0x8] sm:$0xff]
    %v243 = vld [vmem:[%s6] sm:$0x1]
    %v245 = vlaneseq
    %v246 = vshrl.u32 %v245, 7
    %v247 = vsub.s32 0, %v246
    %v248 = vrot.slane %v243, %v247
    %v250 = vadd.f32 %v241, %v248
    %v251 = vadd.f32 %v242, %v248
    %v252 = vld [vmem:[%s0] sm:$0xff]
    %v253 = vld [vmem:[%s0 + $0x8] sm:$0xff]
    %v254 = vadd.f32 %v250, %v252
    %v255 = vadd.f32 %v251, %v253
    %256 = vst.msk [vmem:[%s7] sm:$0xff] %vm107, %v254
    %257 = vst.msk [vmem:[%s7 + $0x8] sm:$0xff] %vm107, %v255
  $region37: #{decoder_forward.18} parent=0 // pred_fallthru
    _
  // Predicated region
  $region38: #{decoder_forward.18} parent=0 // pred_check
    _
  $region39: #{decoder_forward.18} parent=0 // pred_check_branch
    %259 = sbr.rel (0) target = $region41
  $region40: #{decoder_forward.18} parent=0 // pred_region
    _
  $region41: #{decoder_forward.18} parent=0 // pred_fallthru
    _
  // Predicated region
  $region42: #{decoder_forward.18} parent=0 // pred_check
    _
  $region43: #{decoder_forward.18} parent=0 // pred_check_branch
    %261 = sbr.rel (0) target = $region45
  $region44: #{decoder_forward.18} parent=0 // pred_region
    _
  $region45: #{decoder_forward.18} parent=0 // pred_fallthru
    _

// kernel: decoder_forward.14
$region0: #{decoder_forward.14}
  #allocation0 [shape = 'u32[]', space=smem, size = 0x4, offset = 0x4, fixed_abs, tag = 'smem constant byte address 0x4 - core index']
  #allocation1 [shape = 'u32[144,128]{1,0:T(1,128)}', space=vmem, size = 0x12000, scoped, tag = 'internal scratch']
  %s0 = inlined_call_operand.vmem [shape: bf16[2,4,8,8], index: 0, kind: input, shape index: {}]
  %s1 = inlined_call_operand.vmem [shape: bf16[2,4,8,8], index: 1, kind: input, shape index: {}]
  %s2 = inlined_call_operand.vmem [shape: bf16[2,4,8,8], index: 2, kind: input, shape index: {}]
  %s3 = inlined_call_operand.vmem [shape: f32[8,8], index: 3, kind: input, shape index: {}]
  %s4 = inlined_call_operand.vmem [shape: bf16[4,8,32], index: 4, kind: input, shape index: {}]
  %s5 = inlined_call_operand.vmem [shape: f32[1,32], index: 5, kind: input, shape index: {}]
  %s6 = inlined_call_operand.vmem [shape: f32[2,8,32], index: 6, kind: input, shape index: {}]
  %s7 = inlined_call_operand.vmem [shape: f32[2,8,32], index: 7, kind: output, shape index: {0}]
  %s8 = inlined_call_operand.hbm [shape: f32[2,4,8,8], index: 8, kind: output, shape index: {1}]
  %9 = xla_tuple %s7, %s8
  %s10 = sld [smem:[#allocation0]]
  $region69: #{decoder_forward.14} parent=0
    _
  %s12 = ssub.s32 1, %s10
  %s13 = scalar_select 0, %s12, %s10
  $region1: #{decoder_forward.14} parent=0
    #allocation2 [shape = 'u8[32768]{0}', space=vmem, size = 0x8000, scoped, tag = 'output window, operand 1']
    #allocation3 [shape = 's32[2]{0}', space=sflag, size = 0x8, scoped, tag = 'scoped memory for decoder_forward.14']
    %14 = vsyncpa [#allocation3], 0
    %s15 = scalar_lea.sflag [#allocation3], 1
    %16 = vsyncpa %s15, 0
    loop: start=0, step=1, limit=4
    $region2: #{decoder_forward.14} parent=1 // loop_pre_header
      _
    $region3: #{decoder_forward.14} parent=1 // loop_header
      %s18 = sphi 0, %s22
      %p19 = scmp.ge.s32.totalorder %s18, 4
      %s25 = sphi 0, %s37
      %s26 = sphi 0, %s33
      %s27 = sphi 0, %s25
      %s28 = sphi 0, %s26
      %s29 = sphi 0, %s27
      %s30 = sphi 0, %s28
      %s42 = sphi 0, %s44
      %s45 = sphi 0, %s42
      %s46 = sphi 0, %s45
      %s62 = sphi 0, %s46
      %s68 = sphi 0, %s70
      %s71 = sphi 0, %s68
      %s72 = sphi 0, %s71
      %s88 = sphi 0, %s72
      %s94 = sphi 0, %s96
      %s97 = sphi 0, %s94
      %s98 = sphi 0, %s97
      %s114 = sphi 0, %s98
      %s120 = sphi 0, %s122
      %s123 = sphi 0, %s120
      %s124 = sphi 0, %s123
      %s140 = sphi 0, %s124
      %s144 = sphi 0, %s144
      %s146 = sphi 0, %s144
      %s147 = sphi 0, %s146
      %s161 = sphi 0, %s147
      %s165 = sphi 0, %s165
      %s167 = sphi 0, %s165
      %s168 = sphi 0, %s167
      %s182 = sphi 0, %s168
      %s190 = sphi 0, %s192
      %s193 = sphi 0, %s190
      %s194 = sphi 0, %s193
      %s210 = sphi 0, %s194
      %s218 = sphi 0, %s220
      %s221 = sphi 0, %s218
      %s222 = sphi 0, %s221
      %s238 = sphi 0, %s222
      %s246 = sphi 0, %s248
      %s249 = sphi 0, %s246
      %s250 = sphi 0, %s249
      %s266 = sphi 0, %s250
    $region4: #{decoder_forward.14} parent=1 // loop_header_branch
      %21 = sbr.rel (%p19) target = $region8
    $region5: #{decoder_forward.14} parent=1 // loop_body
      %s23 = ssub.s32 %s18, 1
      %s24 = ssub.s32 %s18, 2
      %s31 = sadd.s32 1, %s26
      %p32 = scmp.ge.s32.totalorder %s31, 1
      %s33 = scalar_select %p32, 0, %s31
      %s34 = sadd.s32 1, %s25
      %s35 = scalar_select %p32, %s34, %s25
      %p36 = scmp.ge.s32.totalorder %s35, 2
      %s37 = scalar_select %p36, 0, %s35
      %s38 = ssub.s32 %s25, %s37
      %s39 = ssub.s32 %s26, %s33
      %s40 = sor.u32 %s38, %s39
      %p41 = scmp.eq.s32.totalorder %s40, 0
      %s43 = sadd.s32 %s42, 1
      %s44 = scalar_select %p41, %s42, %s43
      %p47 = pneg %p41
      %p48 = scmp.eq.s32.totalorder %s18, 1
      %p49 = por %p47, %p48
      %p50 = scmp.ne.s32.totalorder %s42, %s45
      %p51 = scmp.eq.s32.totalorder %s18, 0
      %p52 = por %p50, %p51
      %p53 = scmp.ne.s32.totalorder %s42, %s45
      %p54 = scmp.eq.s32.totalorder %s23, 1
      %p55 = por %p53, %p54
      %p56 = scmp.ne.s32.totalorder %s45, %s46
      %p57 = scmp.eq.s32.totalorder %s23, 0
      %p58 = por %p56, %p57
      %p59 = scmp.ne.s32.totalorder %s45, %s46
      %p60 = scmp.eq.s32.totalorder %s24, 1
      %p61 = por %p59, %p60
      %p63 = scmp.ne.s32.totalorder %s46, %s62
      %p64 = scmp.eq.s32.totalorder %s24, 0
      %p65 = por %p63, %p64
      %s66 = ssub.s32 %s25, %s37
      %p67 = scmp.eq.s32.totalorder %s66, 0
      %s69 = sadd.s32 %s68, 1
      %s70 = scalar_select %p67, %s68, %s69
      %p73 = pneg %p67
      %p74 = scmp.eq.s32.totalorder %s18, 1
      %p75 = por %p73, %p74
      %p76 = scmp.ne.s32.totalorder %s68, %s71
      %p77 = scmp.eq.s32.totalorder %s18, 0
      %p78 = por %p76, %p77
      %p79 = scmp.ne.s32.totalorder %s68, %s71
      %p80 = scmp.eq.s32.totalorder %s23, 1
      %p81 = por %p79, %p80
      %p82 = scmp.ne.s32.totalorder %s71, %s72
      %p83 = scmp.eq.s32.totalorder %s23, 0
      %p84 = por %p82, %p83
      %p85 = scmp.ne.s32.totalorder %s71, %s72
      %p86 = scmp.eq.s32.totalorder %s24, 1
      %p87 = por %p85, %p86
      %p89 = scmp.ne.s32.totalorder %s72, %s88
      %p90 = scmp.eq.s32.totalorder %s24, 0
      %p91 = por %p89, %p90
      %s92 = ssub.s32 %s25, %s37
      %p93 = scmp.eq.s32.totalorder %s92, 0
      %s95 = sadd.s32 %s94, 1
      %s96 = scalar_select %p93, %s94, %s95
      %p99 = pneg %p93
      %p100 = scmp.eq.s32.totalorder %s18, 1
      %p101 = por %p99, %p100
      %p102 = scmp.ne.s32.totalorder %s94, %s97
      %p103 = scmp.eq.s32.totalorder %s18, 0
      %p104 = por %p102, %p103
      %p105 = scmp.ne.s32.totalorder %s94, %s97
      %p106 = scmp.eq.s32.totalorder %s23, 1
      %p107 = por %p105, %p106
      %p108 = scmp.ne.s32.totalorder %s97, %s98
      %p109 = scmp.eq.s32.totalorder %s23, 0
      %p110 = por %p108, %p109
      %p111 = scmp.ne.s32.totalorder %s97, %s98
      %p112 = scmp.eq.s32.totalorder %s24, 1
      %p113 = por %p111, %p112
      %p115 = scmp.ne.s32.totalorder %s98, %s114
      %p116 = scmp.eq.s32.totalorder %s24, 0
      %p117 = por %p115, %p116
      %s118 = ssub.s32 %s26, %s33
      %p119 = scmp.eq.s32.totalorder %s118, 0
      %s121 = sadd.s32 %s120, 1
      %s122 = scalar_select %p119, %s120, %s121
      %p125 = pneg %p119
      %p126 = scmp.eq.s32.totalorder %s18, 1
      %p127 = por %p125, %p126
      %p128 = scmp.ne.s32.totalorder %s120, %s123
      %p129 = scmp.eq.s32.totalorder %s18, 0
      %p130 = por %p128, %p129
      %p131 = scmp.ne.s32.totalorder %s120, %s123
      %p132 = scmp.eq.s32.totalorder %s23, 1
      %p133 = por %p131, %p132
      %p134 = scmp.ne.s32.totalorder %s123, %s124
      %p135 = scmp.eq.s32.totalorder %s23, 0
      %p136 = por %p134, %p135
      %p137 = scmp.ne.s32.totalorder %s123, %s124
      %p138 = scmp.eq.s32.totalorder %s24, 1
      %p139 = por %p137, %p138
      %p141 = scmp.ne.s32.totalorder %s124, %s140
      %p142 = scmp.eq.s32.totalorder %s24, 0
      %p143 = por %p141, %p142
      %s145 = sadd.s32 %s144, 1
      %p148 = scmp.eq.s32.totalorder %s18, 1
      %p149 = scmp.ne.s32.totalorder %s144, %s146
      %p150 = scmp.eq.s32.totalorder %s18, 0
      %p151 = por %p149, %p150
      %p152 = scmp.ne.s32.totalorder %s144, %s146
      %p153 = scmp.eq.s32.totalorder %s23, 1
      %p154 = por %p152, %p153
      %p155 = scmp.ne.s32.totalorder %s146, %s147
      %p156 = scmp.eq.s32.totalorder %s23, 0
      %p157 = por %p155, %p156
      %p158 = scmp.ne.s32.totalorder %s146, %s147
      %p159 = scmp.eq.s32.totalorder %s24, 1
      %p160 = por %p158, %p159
      %p162 = scmp.ne.s32.totalorder %s147, %s161
      %p163 = scmp.eq.s32.totalorder %s24, 0
      %p164 = por %p162, %p163
      %s166 = sadd.s32 %s165, 1
      %p169 = scmp.eq.s32.totalorder %s18, 1
      %p170 = scmp.ne.s32.totalorder %s165, %s167
      %p171 = scmp.eq.s32.totalorder %s18, 0
      %p172 = por %p170, %p171
      %p173 = scmp.ne.s32.totalorder %s165, %s167
      %p174 = scmp.eq.s32.totalorder %s23, 1
      %p175 = por %p173, %p174
      %p176 = scmp.ne.s32.totalorder %s167, %s168
      %p177 = scmp.eq.s32.totalorder %s23, 0
      %p178 = por %p176, %p177
      %p179 = scmp.ne.s32.totalorder %s167, %s168
      %p180 = scmp.eq.s32.totalorder %s24, 1
      %p181 = por %p179, %p180
      %p183 = scmp.ne.s32.totalorder %s168, %s182
      %p184 = scmp.eq.s32.totalorder %s24, 0
      %p185 = por %p183, %p184
      %s186 = ssub.s32 %s25, %s37
      %s187 = ssub.s32 %s26, %s33
      %s188 = sor.u32 %s186, %s187
      %p189 = scmp.eq.s32.totalorder %s188, 0
      %s191 = sadd.s32 %s190, 1
      %s192 = scalar_select %p189, %s190, %s191
      %p195 = pneg %p189
      %p196 = scmp.eq.s32.totalorder %s18, 1
      %p197 = por %p195, %p196
      %p198 = scmp.ne.s32.totalorder %s190, %s193
      %p199 = scmp.eq.s32.totalorder %s18, 0
      %p200 = por %p198, %p199
      %p201 = scmp.ne.s32.totalorder %s190, %s193
      %p202 = scmp.eq.s32.totalorder %s23, 1
      %p203 = por %p201, %p202
      %p204 = scmp.ne.s32.totalorder %s193, %s194
      %p205 = scmp.eq.s32.totalorder %s23, 0
      %p206 = por %p204, %p205
      %p207 = scmp.ne.s32.totalorder %s193, %s194
      %p208 = scmp.eq.s32.totalorder %s24, 1
      %p209 = por %p207, %p208
      %p211 = scmp.ne.s32.totalorder %s194, %s210
      %p212 = scmp.eq.s32.totalorder %s24, 0
      %p213 = por %p211, %p212
      %s214 = ssub.s32 %s25, %s37
      %s215 = ssub.s32 %s26, %s33
      %s216 = sor.u32 %s214, %s215
      %p217 = scmp.eq.s32.totalorder %s216, 0
      %s219 = sadd.s32 %s218, 1
      %s220 = scalar_select %p217, %s218, %s219
      %p223 = pneg %p217
      %p224 = scmp.eq.s32.totalorder %s18, 1
      %p225 = por %p223, %p224
      %p226 = scmp.ne.s32.totalorder %s218, %s221
      %p227 = scmp.eq.s32.totalorder %s18, 0
      %p228 = por %p226, %p227
      %p229 = scmp.ne.s32.totalorder %s218, %s221
      %p230 = scmp.eq.s32.totalorder %s23, 1
      %p231 = por %p229, %p230
      %p232 = scmp.ne.s32.totalorder %s221, %s222
      %p233 = scmp.eq.s32.totalorder %s23, 0
      %p234 = por %p232, %p233
      %p235 = scmp.ne.s32.totalorder %s221, %s222
      %p236 = scmp.eq.s32.totalorder %s24, 1
      %p237 = por %p235, %p236
      %p239 = scmp.ne.s32.totalorder %s222, %s238
      %p240 = scmp.eq.s32.totalorder %s24, 0
      %p241 = por %p239, %p240
      %s242 = ssub.s32 %s25, %s37
      %s243 = ssub.s32 %s26, %s33
      %s244 = sor.u32 %s242, %s243
      %p245 = scmp.eq.s32.totalorder %s244, 0
      %s247 = sadd.s32 %s246, 1
      %s248 = scalar_select %p245, %s246, %s247
      %p251 = pneg %p245
      %p252 = scmp.eq.s32.totalorder %s18, 1
      %p253 = por %p251, %p252
      %p254 = scmp.ne.s32.totalorder %s246, %s249
      %p255 = scmp.eq.s32.totalorder %s18, 0
      %p256 = por %p254, %p255
      %p257 = scmp.ne.s32.totalorder %s246, %s249
      %p258 = scmp.eq.s32.totalorder %s23, 1
      %p259 = por %p257, %p258
      %p260 = scmp.ne.s32.totalorder %s249, %s250
      %p261 = scmp.eq.s32.totalorder %s23, 0
      %p262 = por %p260, %p261
      %p263 = scmp.ne.s32.totalorder %s249, %s250
      %p264 = scmp.eq.s32.totalorder %s24, 1
      %p265 = por %p263, %p264
      %p267 = scmp.ne.s32.totalorder %s250, %s266
      %p268 = scmp.eq.s32.totalorder %s24, 0
      %p269 = por %p267, %p268
      %p270 = scmp.le.s32.totalorder 1, %s18
      %p271 = scmp.lt.s32.totalorder %s18, 3
      %p272 = pnand %p270, %p271
      %p273 = pneg %p272
      // Predicated region
      $region9: #{decoder_forward.14} parent=5 // pred_check
        _
      $region10: #{decoder_forward.14} parent=5 // pred_check_branch
        %275 = sbr.rel (%p272) target = $region12
      $region11: #{decoder_forward.14} parent=5 // pred_region
        %s276 = ssub.s32 %s18, 1
        // Predicated region
        $region13: #{decoder_forward.14} parent=11 // pred_check
          %p277 = pneg %p136
        $region14: #{decoder_forward.14} parent=11 // pred_check_branch
          %279 = sbr.rel (%p277) target = $region16
        $region15: #{decoder_forward.14} parent=11 // pred_region
          %p280 = scmp.lt.s32.totalorder %s28, 0
          %s281 = scalar_select %p280, %s28, 0
          %s282 = smul.addr %s281, 8
          %s283 = scalar_lea.vmem %s3, %s282
        $region16: #{decoder_forward.14} parent=11 // pred_fallthru
          _
        // Predicated region
        $region17: #{decoder_forward.14} parent=11 // pred_check
          %p284 = pneg %p157
        $region18: #{decoder_forward.14} parent=11 // pred_check_branch
          %286 = sbr.rel (%p284) target = $region20
        $region19: #{decoder_forward.14} parent=11 // pred_region
          _
        $region20: #{decoder_forward.14} parent=11 // pred_fallthru
          _
        // Predicated region
        $region21: #{decoder_forward.14} parent=11 // pred_check
          %p287 = pneg %p178
        $region22: #{decoder_forward.14} parent=11 // pred_check_branch
          %289 = sbr.rel (%p287) target = $region24
        $region23: #{decoder_forward.14} parent=11 // pred_region
          _
        $region24: #{decoder_forward.14} parent=11 // pred_fallthru
          _
      $region12: #{decoder_forward.14} parent=5 // pred_fallthru
        _
      %p290 = scmp.lt.s32.totalorder %s18, 2
      // Predicated region
      $region25: #{decoder_forward.14} parent=5 // pred_check
        %p291 = pneg %p290
      $region26: #{decoder_forward.14} parent=5 // pred_check_branch
        %293 = sbr.rel (%p291) target = $region28
      $region27: #{decoder_forward.14} parent=5 // pred_region
        // Predicated region
        $region29: #{decoder_forward.14} parent=27 // pred_check
          %p294 = pneg %p52
        $region30: #{decoder_forward.14} parent=27 // pred_check_branch
          %296 = sbr.rel (%p294) target = $region32
        $region31: #{decoder_forward.14} parent=27 // pred_region
          %p297 = scmp.lt.s32.totalorder %s25, 1
          %s298 = scalar_select %p297, %s25, 1
          %p299 = scmp.lt.s32.totalorder %s26, 0
          %s300 = scalar_select %p299, %s26, 0
          %s301 = smul.addr %s298, 4
          %s302 = sadd.s32 %s300, %s301
          %s303 = smul.addr %s302, 4
          %s304 = scalar_lea.vmem %s0, %s303
        $region32: #{decoder_forward.14} parent=27 // pred_fallthru
          _
        // Predicated region
        $region33: #{decoder_forward.14} parent=27 // pred_check
          %p305 = pneg %p78
        $region34: #{decoder_forward.14} parent=27 // pred_check_branch
          %307 = sbr.rel (%p305) target = $region36
        $region35: #{decoder_forward.14} parent=27 // pred_region
          %p308 = scmp.lt.s32.totalorder %s25, 1
          %s309 = scalar_select %p308, %s25, 1
          %s310 = smul.addr %s309, 4
          %s311 = smul.addr %s310, 4
          %s312 = scalar_lea.vmem %s1, %s311
        $region36: #{decoder_forward.14} parent=27 // pred_fallthru
          _
        // Predicated region
        $region37: #{decoder_forward.14} parent=27 // pred_check
          %p313 = pneg %p104
        $region38: #{decoder_forward.14} parent=27 // pred_check_branch
          %315 = sbr.rel (%p313) target = $region40
        $region39: #{decoder_forward.14} parent=27 // pred_region
          %p316 = scmp.lt.s32.totalorder %s25, 1
          %s317 = scalar_select %p316, %s25, 1
          %s318 = smul.addr %s317, 4
          %s319 = smul.addr %s318, 4
          %s320 = scalar_lea.vmem %s2, %s319
        $region40: #{decoder_forward.14} parent=27 // pred_fallthru
          _
        // Predicated region
        $region41: #{decoder_forward.14} parent=27 // pred_check
          %p321 = pneg %p200
        $region42: #{decoder_forward.14} parent=27 // pred_check_branch
          %323 = sbr.rel (%p321) target = $region44
        $region43: #{decoder_forward.14} parent=27 // pred_region
          %p324 = scmp.lt.s32.totalorder %s25, 1
          %s325 = scalar_select %p324, %s25, 1
          %p326 = scmp.lt.s32.totalorder %s26, 0
          %s327 = scalar_select %p326, %s26, 0
          %s328 = sadd.s32 %s327, %s325
          %s329 = smul.addr %s328, 8
          %s330 = scalar_lea.vmem %s6, %s329
        $region44: #{decoder_forward.14} parent=27 // pred_fallthru
          _
      $region28: #{decoder_forward.14} parent=5 // pred_fallthru
        _
      %p331 = scmp.le.s32.totalorder 1, %s18
      %p332 = scmp.lt.s32.totalorder %s18, 3
      %p333 = pnand %p331, %p332
      %p334 = pneg %p333
      // Predicated region
      $region45: #{decoder_forward.14} parent=5 // pred_check
        _
      $region46: #{decoder_forward.14} parent=5 // pred_check_branch
        %336 = sbr.rel (%p333) target = $region48
      $region47: #{decoder_forward.14} parent=5 // pred_region
        %s337 = ssub.s32 %s18, 1
        %p338 = scmp.lt.s32.totalorder %s27, 1
        %s339 = scalar_select %p338, %s27, 1
        %p340 = scmp.lt.s32.totalorder %s28, 0
        %s341 = scalar_select %p340, %s28, 0
        %s342 = smul.addr %s339, 4
        %s343 = sadd.s32 %s341, %s342
        %s344 = smul.addr %s343, 4
        %s345 = scalar_lea.vmem %s0, %s344
        %p346 = pneg %p58
        %p347 = pneg %p55
        %p348 = scmp.lt.s32.totalorder %s27, 1
        %s349 = scalar_select %p348, %s27, 1
        %s350 = smul.addr %s349, 4
        %s351 = smul.addr %s350, 4
        %s352 = scalar_lea.vmem %s1, %s351
        %p353 = pneg %p84
        %p354 = pneg %p81
        %p355 = scmp.lt.s32.totalorder %s27, 1
        %s356 = scalar_select %p355, %s27, 1
        %s357 = smul.addr %s356, 4
        %s358 = smul.addr %s357, 4
        %s359 = scalar_lea.vmem %s2, %s358
        %p360 = pneg %p110
        %p361 = pneg %p107
        %p362 = scmp.lt.s32.totalorder %s28, 0
        %s363 = scalar_select %p362, %s28, 0
        %s364 = smul.addr %s363, 8
        %s365 = scalar_lea.vmem %s3, %s364
        %p366 = pneg %p136
        %p367 = pneg %p133
        %p368 = pneg %p157
        %p369 = pneg %p154
        %p370 = pneg %p178
        %p371 = pneg %p175
        %p372 = scmp.lt.s32.totalorder %s27, 1
        %s373 = scalar_select %p372, %s27, 1
        %p374 = scmp.lt.s32.totalorder %s28, 0
        %s375 = scalar_select %p374, %s28, 0
        %s376 = sadd.s32 %s375, %s373
        %s377 = smul.addr %s376, 8
        %s378 = scalar_lea.vmem %s6, %s377
        %p379 = pneg %p206
        %p380 = pneg %p203
        %p381 = pneg %p234
        %p382 = pneg %p231
        %p383 = scmp.lt.s32.totalorder %s27, 1
        %s384 = scalar_select %p383, %s27, 1
        %p385 = scmp.lt.s32.totalorder %s28, 0
        %s386 = scalar_select %p385, %s28, 0
        %s387 = sadd.s32 %s386, %s384
        %s388 = smul.addr %s387, 8
        %s389 = scalar_lea.vmem %s7, %s388
        %p390 = pneg %p262
        %p391 = pneg %p259
        %s392 = sand.u32 %s249, 1
        %s393 = scalar_lea.sflag [#allocation3], %s392
        %s394 = sand.u32 %s249, 1
        %s395 = smul.addr %s394, 32
        %s396 = scalar_lea.vmem [#allocation2], %s395
        %p397 = scmp.lt.s32.totalorder %s27, 1
        %s398 = scalar_select %p397, %s27, 1
        %p399 = scmp.lt.s32.totalorder %s28, 0
        %s400 = scalar_select %p399, %s28, 0
        %s401 = smul.addr %s398, 4
        %s402 = sadd.s32 %s400, %s401
        %s403 = smul.addr %s402, 4
        %s404 = scalar_lea.vmem %s0, %s403
        %p405 = scmp.lt.s32.totalorder %s27, 1
        %s406 = scalar_select %p405, %s27, 1
        %s407 = smul.addr %s406, 4
        %s408 = smul.addr %s407, 4
        %s409 = scalar_lea.vmem %s1, %s408
        %p410 = scmp.lt.s32.totalorder %s27, 1
        %s411 = scalar_select %p410, %s27, 1
        %s412 = smul.addr %s411, 4
        %s413 = smul.addr %s412, 4
        %s414 = scalar_lea.vmem %s2, %s413
        %p415 = scmp.lt.s32.totalorder %s28, 0
        %s416 = scalar_select %p415, %s28, 0
        %s417 = smul.addr %s416, 8
        %s418 = scalar_lea.vmem %s3, %s417
        %p419 = scmp.lt.s32.totalorder %s27, 1
        %s420 = scalar_select %p419, %s27, 1
        %p421 = scmp.lt.s32.totalorder %s28, 0
        %s422 = scalar_select %p421, %s28, 0
        %s423 = sadd.s32 %s422, %s420
        %s424 = smul.addr %s423, 8
        %s425 = scalar_lea.vmem %s6, %s424
        %p426 = scmp.lt.s32.totalorder %s27, 1
        %s427 = scalar_select %p426, %s27, 1
        %p428 = scmp.lt.s32.totalorder %s28, 0
        %s429 = scalar_select %p428, %s28, 0
        %s430 = sadd.s32 %s429, %s427
        %s431 = smul.addr %s430, 8
        %s432 = scalar_lea.vmem %s7, %s431
        %v434 = vld [vmem:[%s404] sm:$0xf]
        %v435 = vld [vmem:[%s404 + $0x4] sm:$0xf]
        %v436 = vld [vmem:[%s404 + $0x8] sm:$0xf]
        %v437 = vld [vmem:[%s404 + $0xc] sm:$0xf]
        %v438 = vunpack.c.l.bf16 %v434
        %v439 = vunpack.c.l.bf16 %v435
        %v440 = vunpack.c.l.bf16 %v436
        %v441 = vunpack.c.l.bf16 %v437
        %v442 = vmul.f32 %v438, 0.35355338
        %v443 = vmul.f32 %v439, 0.35355338
        %v444 = vmul.f32 %v440, 0.35355338
        %v445 = vmul.f32 %v441, 0.35355338
        %v446 = vpack.c.bf16 %v442, %v442
        %v447 = vpack.c.bf16 %v443, %v443
        %v448 = vpack.c.bf16 %v444, %v444
        %v449 = vpack.c.bf16 %v445, %v445
        %v450 = vld [vmem:[%s409] sm:$0xf]
        %v451 = vld [vmem:[%s409 + $0x4] sm:$0xf]
        %v452 = vld [vmem:[%s409 + $0x8] sm:$0xf]
        %v453 = vld [vmem:[%s409 + $0xc] sm:$0xf]
        %v454 = vld [vmem:[%s414] sm:$0xf]
        %v455 = vld [vmem:[%s414 + $0x4] sm:$0xf]
        %v456 = vld [vmem:[%s414 + $0x8] sm:$0xf]
        %v457 = vld [vmem:[%s414 + $0xc] sm:$0xf]
        %v458 = vld [vmem:[%s418] sm:$0xff]
        %vm459 = vcmask 64512
        %v461 = vsel %vm459, %v446, 0
        %v464 = vsel %vm459, %v450, 0
        %466 = vmatprep.subr.bf16.mxu0 0
        %467 = vmatpush1.bf16.xpose.msra.mxu0 %v464
        %468 = vmatprep.subr.bf16.mxu0 0
        %469 = vmatpush1.bf16.xpose.msra.mxu0 0
        %470 = vmatprep.subr.bf16.mxu0 0
        %471 = vmatpush1.bf16.xpose.msra.mxu0 0
        %472 = vmatprep.subr.bf16.mxu0 0
        %473 = vmatpush1.bf16.xpose.msra.mxu0 0
        %474 = vmatprep.subr.bf16.mxu0 0
        %475 = vmatpush1.bf16.xpose.msra.mxu0 0
        %476 = vmatprep.subr.bf16.mxu0 0
        %477 = vmatpush1.bf16.xpose.msra.mxu0 0
        %478 = vmatprep.subr.bf16.mxu0 0
        %479 = vmatpush1.bf16.xpose.msra.mxu0 0
        %480 = vmatprep.subr.bf16.mxu0 0
        %481 = vmatpush1.bf16.xpose.msra.mxu0 0
        %482 = vmatprep.subr.bf16.mxu0 0
        %483 = vmatpush1.bf16.xpose.msra.mxu0 0
        %484 = vmatprep.subr.bf16.mxu0 0
        %485 = vmatpush1.bf16.xpose.msra.mxu0 0
        %486 = vmatprep.subr.bf16.mxu0 0
        %487 = vmatpush1.bf16.xpose.msra.mxu0 0
        %488 = vmatprep.subr.bf16.mxu0 0
        %489 = vmatpush1.bf16.xpose.msra.mxu0 0
        %490 = vmatprep.subr.bf16.mxu0 0
        %491 = vmatpush1.bf16.xpose.msra.mxu0 0
        %492 = vmatprep.subr.bf16.mxu0 0
        %493 = vmatpush1.bf16.xpose.msra.mxu0 0
        %494 = vmatprep.subr.bf16.mxu0 0
        %495 = vmatpush1.bf16.xpose.msra.mxu0 0
        %496 = vmatprep.subr.bf16.mxu0 0
        %497 = vmatpush1.bf16.xpose.msra.mxu0 0
        %498 = vmatprep.mubr.bf16.mxu0 0
        %499 = vmatmul.mubr.bf16.gmra.mrb[0].mxu0 %v461
        %v500 = vpop.f32.mrb[0].mxu0
        %v501 = vadd.f32 %v458, %v500
        %v502 = vpop.f32.mrb[0].mxu0
        %v503 = vpop.f32.mrb[0].mxu0
        %v504 = vpop.f32.mrb[0].mxu0
        %505 = vdwg.mxu0
        %v507 = vsel %vm459, %v447, 0
        %v510 = vsel %vm459, %v451, 0
        %512 = vmatprep.subr.bf16.mxu0 0
        %513 = vmatpush1.bf16.xpose.msra.mxu0 %v510
        %514 = vmatprep.subr.bf16.mxu0 0
        %515 = vmatpush1.bf16.xpose.msra.mxu0 0
        %516 = vmatprep.subr.bf16.mxu0 0
        %517 = vmatpush1.bf16.xpose.msra.mxu0 0
        %518 = vmatprep.subr.bf16.mxu0 0
        %519 = vmatpush1.bf16.xpose.msra.mxu0 0
        %520 = vmatprep.subr.bf16.mxu0 0
        %521 = vmatpush1.bf16.xpose.msra.mxu0 0
        %522 = vmatprep.subr.bf16.mxu0 0
        %523 = vmatpush1.bf16.xpose.msra.mxu0 0
        %524 = vmatprep.subr.bf16.mxu0 0
        %525 = vmatpush1.bf16.xpose.msra.mxu0 0
        %526 = vmatprep.subr.bf16.mxu0 0
        %527 = vmatpush1.bf16.xpose.msra.mxu0 0
        %528 = vmatprep.subr.bf16.mxu0 0
        %529 = vmatpush1.bf16.xpose.msra.mxu0 0
        %530 = vmatprep.subr.bf16.mxu0 0
        %531 = vmatpush1.bf16.xpose.msra.mxu0 0
        %532 = vmatprep.subr.bf16.mxu0 0
        %533 = vmatpush1.bf16.xpose.msra.mxu0 0
        %534 = vmatprep.subr.bf16.mxu0 0
        %535 = vmatpush1.bf16.xpose.msra.mxu0 0
        %536 = vmatprep.subr.bf16.mxu0 0
        %537 = vmatpush1.bf16.xpose.msra.mxu0 0
        %538 = vmatprep.subr.bf16.mxu0 0
        %539 = vmatpush1.bf16.xpose.msra.mxu0 0
        %540 = vmatprep.subr.bf16.mxu0 0
        %541 = vmatpush1.bf16.xpose.msra.mxu0 0
        %542 = vmatprep.subr.bf16.mxu0 0
        %543 = vmatpush1.bf16.xpose.msra.mxu0 0
        %544 = vmatprep.mubr.bf16.mxu0 0
        %545 = vmatmul.mubr.bf16.gmra.mrb[0].mxu0 %v507
        %v546 = vpop.f32.mrb[0].mxu0
        %v547 = vadd.f32 %v458, %v546
        %v548 = vpop.f32.mrb[0].mxu0
        %v549 = vpop.f32.mrb[0].mxu0
        %v550 = vpop.f32.mrb[0].mxu0
        %551 = vdwg.mxu0
        %v553 = vsel %vm459, %v448, 0
        %v556 = vsel %vm459, %v452, 0
        %558 = vmatprep.subr.bf16.mxu0 0
        %559 = vmatpush1.bf16.xpose.msra.mxu0 %v556
        %560 = vmatprep.subr.bf16.mxu0 0
        %561 = vmatpush1.bf16.xpose.msra.mxu0 0
        %562 = vmatprep.subr.bf16.mxu0 0
        %563 = vmatpush1.bf16.xpose.msra.mxu0 0
        %564 = vmatprep.subr.bf16.mxu0 0
        %565 = vmatpush1.bf16.xpose.msra.mxu0 0
        %566 = vmatprep.subr.bf16.mxu0 0
        %567 = vmatpush1.bf16.xpose.msra.mxu0 0
        %568 = vmatprep.subr.bf16.mxu0 0
        %569 = vmatpush1.bf16.xpose.msra.mxu0 0
        %570 = vmatprep.subr.bf16.mxu0 0
        %571 = vmatpush1.bf16.xpose.msra.mxu0 0
        %572 = vmatprep.subr.bf16.mxu0 0
        %573 = vmatpush1.bf16.xpose.msra.mxu0 0
        %574 = vmatprep.subr.bf16.mxu0 0
        %575 = vmatpush1.bf16.xpose.msra.mxu0 0
        %576 = vmatprep.subr.bf16.mxu0 0
        %577 = vmatpush1.bf16.xpose.msra.mxu0 0
        %578 = vmatprep.subr.bf16.mxu0 0
        %579 = vmatpush1.bf16.xpose.msra.mxu0 0
        %580 = vmatprep.subr.bf16.mxu0 0
        %581 = vmatpush1.bf16.xpose.msra.mxu0 0
        %582 = vmatprep.subr.bf16.mxu0 0
        %583 = vmatpush1.bf16.xpose.msra.mxu0 0
        %584 = vmatprep.subr.bf16.mxu0 0
        %585 = vmatpush1.bf16.xpose.msra.mxu0 0
        %586 = vmatprep.subr.bf16.mxu0 0
        %587 = vmatpush1.bf16.xpose.msra.mxu0 0
        %588 = vmatprep.subr.bf16.mxu0 0
        %589 = vmatpush1.bf16.xpose.msra.mxu0 0
        %590 = vmatprep.mubr.bf16.mxu0 0
        %591 = vmatmul.mubr.bf16.gmra.mrb[0].mxu0 %v553
        %v592 = vpop.f32.mrb[0].mxu0
        %v593 = vadd.f32 %v458, %v592
        %v594 = vpop.f32.mrb[0].mxu0
        %v595 = vpop.f32.mrb[0].mxu0
        %v596 = vpop.f32.mrb[0].mxu0
        %597 = vdwg.mxu0
        %v599 = vsel %vm459, %v449, 0
        %v602 = vsel %vm459, %v453, 0
        %604 = vmatprep.subr.bf16.mxu0 0
        %605 = vmatpush1.bf16.xpose.msra.mxu0 %v602
        %606 = vmatprep.subr.bf16.mxu0 0
        %607 = vmatpush1.bf16.xpose.msra.mxu0 0
        %608 = vmatprep.subr.bf16.mxu0 0
        %609 = vmatpush1.bf16.xpose.msra.mxu0 0
        %610 = vmatprep.subr.bf16.mxu0 0
        %611 = vmatpush1.bf16.xpose.msra.mxu0 0
        %612 = vmatprep.subr.bf16.mxu0 0
        %613 = vmatpush1.bf16.xpose.msra.mxu0 0
        %614 = vmatprep.subr.bf16.mxu0 0
        %615 = vmatpush1.bf16.xpose.msra.mxu0 0
        %616 = vmatprep.subr.bf16.mxu0 0
        %617 = vmatpush1.bf16.xpose.msra.mxu0 0
        %618 = vmatprep.subr.bf16.mxu0 0
        %619 = vmatpush1.bf16.xpose.msra.mxu0 0
        %620 = vmatprep.subr.bf16.mxu0 0
        %621 = vmatpush1.bf16.xpose.msra.mxu0 0
        %622 = vmatprep.subr.bf16.mxu0 0
        %623 = vmatpush1.bf16.xpose.msra.mxu0 0
        %624 = vmatprep.subr.bf16.mxu0 0
        %625 = vmatpush1.bf16.xpose.msra.mxu0 0
        %626 = vmatprep.subr.bf16.mxu0 0
        %627 = vmatpush1.bf16.xpose.msra.mxu0 0
        %628 = vmatprep.subr.bf16.mxu0 0
        %629 = vmatpush1.bf16.xpose.msra.mxu0 0
        %630 = vmatprep.subr.bf16.mxu0 0
        %631 = vmatpush1.bf16.xpose.msra.mxu0 0
        %632 = vmatprep.subr.bf16.mxu0 0
        %633 = vmatpush1.bf16.xpose.msra.mxu0 0
        %634 = vmatprep.subr.bf16.mxu0 0
        %635 = vmatpush1.bf16.xpose.msra.mxu0 0
        %636 = vmatprep.mubr.bf16.mxu0 0
        %637 = vmatmul.mubr.bf16.gmra.mrb[0].mxu0 %v599
        %v638 = vpop.f32.mrb[0].mxu0
        %v639 = vadd.f32 %v458, %v638
        %v640 = vpop.f32.mrb[0].mxu0
        %v641 = vpop.f32.mrb[0].mxu0
        %v642 = vpop.f32.mrb[0].mxu0
        %643 = vdwg.mxu0
        %v644 = vsel %vm459, %v501, -inf
        %645 = vmax.xlane.f32.xlu0 %v644
        %v646 = vpop.xlane.xlu0 %645
        %v647 = vsel %vm459, %v547, -inf
        %648 = vmax.xlane.f32.xlu0 %v647
        %v649 = vpop.xlane.xlu0 %648
        %v650 = vsel %vm459, %v593, -inf
        %651 = vmax.xlane.f32.xlu0 %v650
        %v652 = vpop.xlane.xlu0 %651
        %v653 = vsel %vm459, %v639, -inf
        %654 = vmax.xlane.f32.xlu0 %v653
        %v655 = vpop.xlane.xlu0 %654
        %v656 = vsub.f32 %v501, %v646
        %v657 = vsub.f32 %v547, %v649
        %v658 = vsub.f32 %v593, %v652
        %v659 = vsub.f32 %v639, %v655
        %v660 = vmul.f32 %v656, 1.442695
        %v661 = vpow.pop %v660
        %v662 = vmul.f32 %v657, 1.442695
        %v663 = vpow.pop %v662
        %v664 = vmul.f32 %v658, 1.442695
        %v665 = vpow.pop %v664
        %v666 = vmul.f32 %v659, 1.442695
        %v667 = vpow.pop %v666
        %v668 = vsel %vm459, %v661, 0.0
        %669 = vadd.xlane.f32.xlu0 %v668
        %v670 = vpop.xlane.xlu0 %669
        %v671 = vsel %vm459, %v663, 0.0
        %672 = vadd.xlane.f32.xlu0 %v671
        %v673 = vpop.xlane.xlu0 %672
        %v674 = vsel %vm459, %v665, 0.0
        %675 = vadd.xlane.f32.xlu0 %v674
        %v676 = vpop.xlane.xlu0 %675
        %v677 = vsel %vm459, %v667, 0.0
        %678 = vadd.xlane.f32.xlu0 %v677
        %v679 = vpop.xlane.xlu0 %678
        %v680 = vrcp.pop %v670
        %v681 = vrcp.pop %v673
        %v682 = vrcp.pop %v676
        %v683 = vrcp.pop %v679
        %v684 = vmul.f32 %v661, %v680
        %v685 = vmul.f32 %v663, %v681
        %v686 = vmul.f32 %v665, %v682
        %v687 = vmul.f32 %v667, %v683
        %688 = vst.msk [vmem:[%s396] sm:$0xff] %vm459, %v684
        %689 = vst.msk [vmem:[%s396 + $0x8] sm:$0xff] %vm459, %v685
        %690 = vst.msk [vmem:[%s396 + $0x10] sm:$0xff] %vm459, %v686
        %691 = vst.msk [vmem:[%s396 + $0x18] sm:$0xff] %vm459, %v687
        %v692 = vpack.c.bf16 %v684, %v684
        %v693 = vpack.c.bf16 %v685, %v685
        %v694 = vpack.c.bf16 %v686, %v686
        %v695 = vpack.c.bf16 %v687, %v687
        %v697 = vsel %vm459, %v692, 0
        %vm699 = vcmask 1043456
        %v701 = vsel %vm699, %v454, 0
        %703 = vmatprep.subr.bf16.mxu0 0
        %704 = vmatpush1.bf16.msra.mxu0 %v701
        %705 = vmatprep.subr.bf16.mxu0 0
        %706 = vmatpush1.bf16.msra.mxu0 0
        %707 = vmatprep.subr.bf16.mxu0 0
        %708 = vmatpush1.bf16.msra.mxu0 0
        %709 = vmatprep.subr.bf16.mxu0 0
        %710 = vmatpush1.bf16.msra.mxu0 0
        %711 = vmatprep.subr.bf16.mxu0 0
        %712 = vmatpush1.bf16.msra.mxu0 0
        %713 = vmatprep.subr.bf16.mxu0 0
        %714 = vmatpush1.bf16.msra.mxu0 0
        %715 = vmatprep.subr.bf16.mxu0 0
        %716 = vmatpush1.bf16.msra.mxu0 0
        %717 = vmatprep.subr.bf16.mxu0 0
        %718 = vmatpush1.bf16.msra.mxu0 0
        %719 = vmatprep.subr.bf16.mxu0 0
        %720 = vmatpush1.bf16.msra.mxu0 0
        %721 = vmatprep.subr.bf16.mxu0 0
        %722 = vmatpush1.bf16.msra.mxu0 0
        %723 = vmatprep.subr.bf16.mxu0 0
        %724 = vmatpush1.bf16.msra.mxu0 0
        %725 = vmatprep.subr.bf16.mxu0 0
        %726 = vmatpush1.bf16.msra.mxu0 0
        %727 = vmatprep.subr.bf16.mxu0 0
        %728 = vmatpush1.bf16.msra.mxu0 0
        %729 = vmatprep.subr.bf16.mxu0 0
        %730 = vmatpush1.bf16.msra.mxu0 0
        %731 = vmatprep.subr.bf16.mxu0 0
        %732 = vmatpush1.bf16.msra.mxu0 0
        %733 = vmatprep.subr.bf16.mxu0 0
        %734 = vmatpush1.bf16.msra.mxu0 0
        %735 = vmatprep.mubr.bf16.mxu0 0
        %736 = vmatmul.mubr.bf16.gmra.mrb[0].mxu0 %v697
        %v737 = vpop.f32.mrb[0].mxu0
        %v738 = vadd.f32 0.0, %v737
        %v739 = vpop.f32.mrb[0].mxu0
        %v740 = vpop.f32.mrb[0].mxu0
        %v741 = vpop.f32.mrb[0].mxu0
        %742 = vdwg.mxu0
        %v744 = vsel %vm459, %v693, 0
        %v747 = vsel %vm699, %v455, 0
        %749 = vmatprep.subr.bf16.mxu0 0
        %750 = vmatpush1.bf16.msra.mxu0 %v747
        %751 = vmatprep.subr.bf16.mxu0 0
        %752 = vmatpush1.bf16.msra.mxu0 0
        %753 = vmatprep.subr.bf16.mxu0 0
        %754 = vmatpush1.bf16.msra.mxu0 0
        %755 = vmatprep.subr.bf16.mxu0 0
        %756 = vmatpush1.bf16.msra.mxu0 0
        %757 = vmatprep.subr.bf16.mxu0 0
        %758 = vmatpush1.bf16.msra.mxu0 0
        %759 = vmatprep.subr.bf16.mxu0 0
        %760 = vmatpush1.bf16.msra.mxu0 0
        %761 = vmatprep.subr.bf16.mxu0 0
        %762 = vmatpush1.bf16.msra.mxu0 0
        %763 = vmatprep.subr.bf16.mxu0 0
        %764 = vmatpush1.bf16.msra.mxu0 0
        %765 = vmatprep.subr.bf16.mxu0 0
        %766 = vmatpush1.bf16.msra.mxu0 0
        %767 = vmatprep.subr.bf16.mxu0 0
        %768 = vmatpush1.bf16.msra.mxu0 0
        %769 = vmatprep.subr.bf16.mxu0 0
        %770 = vmatpush1.bf16.msra.mxu0 0
        %771 = vmatprep.subr.bf16.mxu0 0
        %772 = vmatpush1.bf16.msra.mxu0 0
        %773 = vmatprep.subr.bf16.mxu0 0
        %774 = vmatpush1.bf16.msra.mxu0 0
        %775 = vmatprep.subr.bf16.mxu0 0
        %776 = vmatpush1.bf16.msra.mxu0 0
        %777 = vmatprep.subr.bf16.mxu0 0
        %778 = vmatpush1.bf16.msra.mxu0 0
        %779 = vmatprep.subr.bf16.mxu0 0
        %780 = vmatpush1.bf16.msra.mxu0 0
        %781 = vmatprep.mubr.bf16.mxu0 0
        %782 = vmatmul.mubr.bf16.gmra.mrb[0].mxu0 %v744
        %v783 = vpop.f32.mrb[0].mxu0
        %v784 = vadd.f32 0.0, %v783
        %v785 = vpop.f32.mrb[0].mxu0
        %v786 = vpop.f32.mrb[0].mxu0
        %v787 = vpop.f32.mrb[0].mxu0
        %788 = vdwg.mxu0
        %v790 = vsel %vm459, %v694, 0
        %v793 = vsel %vm699, %v456, 0
        %795 = vmatprep.subr.bf16.mxu0 0
        %796 = vmatpush1.bf16.msra.mxu0 %v793
        %797 = vmatprep.subr.bf16.mxu0 0
        %798 = vmatpush1.bf16.msra.mxu0 0
        %799 = vmatprep.subr.bf16.mxu0 0
        %800 = vmatpush1.bf16.msra.mxu0 0
        %801 = vmatprep.subr.bf16.mxu0 0
        %802 = vmatpush1.bf16.msra.mxu0 0
        %803 = vmatprep.subr.bf16.mxu0 0
        %804 = vmatpush1.bf16.msra.mxu0 0
        %805 = vmatprep.subr.bf16.mxu0 0
        %806 = vmatpush1.bf16.msra.mxu0 0
        %807 = vmatprep.subr.bf16.mxu0 0
        %808 = vmatpush1.bf16.msra.mxu0 0
        %809 = vmatprep.subr.bf16.mxu0 0
        %810 = vmatpush1.bf16.msra.mxu0 0
        %811 = vmatprep.subr.bf16.mxu0 0
        %812 = vmatpush1.bf16.msra.mxu0 0
        %813 = vmatprep.subr.bf16.mxu0 0
        %814 = vmatpush1.bf16.msra.mxu0 0
        %815 = vmatprep.subr.bf16.mxu0 0
        %816 = vmatpush1.bf16.msra.mxu0 0
        %817 = vmatprep.subr.bf16.mxu0 0
        %818 = vmatpush1.bf16.msra.mxu0 0
        %819 = vmatprep.subr.bf16.mxu0 0
        %820 = vmatpush1.bf16.msra.mxu0 0
        %821 = vmatprep.subr.bf16.mxu0 0
        %822 = vmatpush1.bf16.msra.mxu0 0
        %823 = vmatprep.subr.bf16.mxu0 0
        %824 = vmatpush1.bf16.msra.mxu0 0
        %825 = vmatprep.subr.bf16.mxu0 0
        %826 = vmatpush1.bf16.msra.mxu0 0
        %827 = vmatprep.mubr.bf16.mxu0 0
        %828 = vmatmul.mubr.bf16.gmra.mrb[0].mxu0 %v790
        %v829 = vpop.f32.mrb[0].mxu0
        %v830 = vadd.f32 0.0, %v829
        %v831 = vpop.f32.mrb[0].mxu0
        %v832 = vpop.f32.mrb[0].mxu0
        %v833 = vpop.f32.mrb[0].mxu0
        %834 = vdwg.mxu0
        %v836 = vsel %vm459, %v695, 0
        %v839 = vsel %vm699, %v457, 0
        %841 = vmatprep.subr.bf16.mxu0 0
        %842 = vmatpush1.bf16.msra.mxu0 %v839
        %843 = vmatprep.subr.bf16.mxu0 0
        %844 = vmatpush1.bf16.msra.mxu0 0
        %845 = vmatprep.subr.bf16.mxu0 0
        %846 = vmatpush1.bf16.msra.mxu0 0
        %847 = vmatprep.subr.bf16.mxu0 0
        %848 = vmatpush1.bf16.msra.mxu0 0
        %849 = vmatprep.subr.bf16.mxu0 0
        %850 = vmatpush1.bf16.msra.mxu0 0
        %851 = vmatprep.subr.bf16.mxu0 0
        %852 = vmatpush1.bf16.msra.mxu0 0
        %853 = vmatprep.subr.bf16.mxu0 0
        %854 = vmatpush1.bf16.msra.mxu0 0
        %855 = vmatprep.subr.bf16.mxu0 0
        %856 = vmatpush1.bf16.msra.mxu0 0
        %857 = vmatprep.subr.bf16.mxu0 0
        %858 = vmatpush1.bf16.msra.mxu0 0
        %859 = vmatprep.subr.bf16.mxu0 0
        %860 = vmatpush1.bf16.msra.mxu0 0
        %861 = vmatprep.subr.bf16.mxu0 0
        %862 = vmatpush1.bf16.msra.mxu0 0
        %863 = vmatprep.subr.bf16.mxu0 0
        %864 = vmatpush1.bf16.msra.mxu0 0
        %865 = vmatprep.subr.bf16.mxu0 0
        %866 = vmatpush1.bf16.msra.mxu0 0
        %867 = vmatprep.subr.bf16.mxu0 0
        %868 = vmatpush1.bf16.msra.mxu0 0
        %869 = vmatprep.subr.bf16.mxu0 0
        %870 = vmatpush1.bf16.msra.mxu0 0
        %871 = vmatprep.subr.bf16.mxu0 0
        %872 = vmatpush1.bf16.msra.mxu0 0
        %873 = vmatprep.mubr.bf16.mxu0 0
        %874 = vmatmul.mubr.bf16.gmra.mrb[0].mxu0 %v836
        %v875 = vpop.f32.mrb[0].mxu0
        %v876 = vadd.f32 0.0, %v875
        %v877 = vpop.f32.mrb[0].mxu0
        %v878 = vpop.f32.mrb[0].mxu0
        %v879 = vpop.f32.mrb[0].mxu0
        %880 = vdwg.mxu0
        %v881 = vld [vmem:[%s425] sm:$0xff]
        %v882 = vld [vmem:[%s5] sm:$0x1]
        %v884 = vlaneseq
        %v885 = vshrl.u32 %v884, 7
        %v886 = vsub.s32 0, %v885
        %v887 = vrot.slane %v882, %v886
        %v889 = vadd.f32 %v881, %v887
        %v890 = vpack.c.bf16 %v738, %v738
        %v891 = vld [vmem:[%s4] sm:$0xf]
        %v893 = vsel %vm459, %v890, 0
        %v896 = vsel %vm699, %v891, 0
        %898 = vmatprep.subr.bf16.mxu0 0
        %899 = vmatpush1.bf16.msra.mxu0 %v896
        %900 = vmatprep.subr.bf16.mxu0 0
        %901 = vmatpush1.bf16.msra.mxu0 0
        %902 = vmatprep.subr.bf16.mxu0 0
        %903 = vmatpush1.bf16.msra.mxu0 0
        %904 = vmatprep.subr.bf16.mxu0 0
        %905 = vmatpush1.bf16.msra.mxu0 0
        %906 = vmatprep.subr.bf16.mxu0 0
        %907 = vmatpush1.bf16.msra.mxu0 0
        %908 = vmatprep.subr.bf16.mxu0 0
        %909 = vmatpush1.bf16.msra.mxu0 0
        %910 = vmatprep.subr.bf16.mxu0 0
        %911 = vmatpush1.bf16.msra.mxu0 0
        %912 = vmatprep.subr.bf16.mxu0 0
        %913 = vmatpush1.bf16.msra.mxu0 0
        %914 = vmatprep.subr.bf16.mxu0 0
        %915 = vmatpush1.bf16.msra.mxu0 0
        %916 = vmatprep.subr.bf16.mxu0 0
        %917 = vmatpush1.bf16.msra.mxu0 0
        %918 = vmatprep.subr.bf16.mxu0 0
        %919 = vmatpush1.bf16.msra.mxu0 0
        %920 = vmatprep.subr.bf16.mxu0 0
        %921 = vmatpush1.bf16.msra.mxu0 0
        %922 = vmatprep.subr.bf16.mxu0 0
        %923 = vmatpush1.bf16.msra.mxu0 0
        %924 = vmatprep.subr.bf16.mxu0 0
        %925 = vmatpush1.bf16.msra.mxu0 0
        %926 = vmatprep.subr.bf16.mxu0 0
        %927 = vmatpush1.bf16.msra.mxu0 0
        %928 = vmatprep.subr.bf16.mxu0 0
        %929 = vmatpush1.bf16.msra.mxu0 0
        %930 = vmatprep.mubr.bf16.mxu0 0
        %931 = vmatmul.mubr.bf16.gmra.mrb[0].mxu0 %v893
        %v932 = vpop.f32.mrb[0].mxu0
        %v933 = vadd.f32 0.0, %v932
        %v934 = vpop.f32.mrb[0].mxu0
        %v935 = vpop.f32.mrb[0].mxu0
        %v936 = vpop.f32.mrb[0].mxu0
        %937 = vdwg.mxu0
        %v938 = vadd.f32 %v889, %v933
        %v939 = vpack.c.bf16 %v784, %v784
        %s940 = scalar_lea.vmem %s4, 4
        %v941 = vld [vmem:[%s940] sm:$0xf]
        %v943 = vsel %vm459, %v939, 0
        %v946 = vsel %vm699, %v941, 0
        %948 = vmatprep.subr.bf16.mxu0 0
        %949 = vmatpush1.bf16.msra.mxu0 %v946
        %950 = vmatprep.subr.bf16.mxu0 0
        %951 = vmatpush1.bf16.msra.mxu0 0
        %952 = vmatprep.subr.bf16.mxu0 0
        %953 = vmatpush1.bf16.msra.mxu0 0
        %954 = vmatprep.subr.bf16.mxu0 0
        %955 = vmatpush1.bf16.msra.mxu0 0
        %956 = vmatprep.subr.bf16.mxu0 0
        %957 = vmatpush1.bf16.msra.mxu0 0
        %958 = vmatprep.subr.bf16.mxu0 0
        %959 = vmatpush1.bf16.msra.mxu0 0
        %960 = vmatprep.subr.bf16.mxu0 0
        %961 = vmatpush1.bf16.msra.mxu0 0
        %962 = vmatprep.subr.bf16.mxu0 0
        %963 = vmatpush1.bf16.msra.mxu0 0
        %964 = vmatprep.subr.bf16.mxu0 0
        %965 = vmatpush1.bf16.msra.mxu0 0
        %966 = vmatprep.subr.bf16.mxu0 0
        %967 = vmatpush1.bf16.msra.mxu0 0
        %968 = vmatprep.subr.bf16.mxu0 0
        %969 = vmatpush1.bf16.msra.mxu0 0
        %970 = vmatprep.subr.bf16.mxu0 0
        %971 = vmatpush1.bf16.msra.mxu0 0
        %972 = vmatprep.subr.bf16.mxu0 0
        %973 = vmatpush1.bf16.msra.mxu0 0
        %974 = vmatprep.subr.bf16.mxu0 0
        %975 = vmatpush1.bf16.msra.mxu0 0
        %976 = vmatprep.subr.bf16.mxu0 0
        %977 = vmatpush1.bf16.msra.mxu0 0
        %978 = vmatprep.subr.bf16.mxu0 0
        %979 = vmatpush1.bf16.msra.mxu0 0
        %980 = vmatprep.mubr.bf16.mxu0 0
        %981 = vmatmul.mubr.bf16.gmra.mrb[0].mxu0 %v943
        %v982 = vpop.f32.mrb[0].mxu0
        %v983 = vadd.f32 0.0, %v982
        %v984 = vpop.f32.mrb[0].mxu0
        %v985 = vpop.f32.mrb[0].mxu0
        %v986 = vpop.f32.mrb[0].mxu0
        %987 = vdwg.mxu0
        %v988 = vadd.f32 %v938, %v983
        %v989 = vpack.c.bf16 %v830, %v830
        %s990 = scalar_lea.vmem %s4, 8
        %v991 = vld [vmem:[%s990] sm:$0xf]
        %v993 = vsel %vm459, %v989, 0
        %v996 = vsel %vm699, %v991, 0
        %998 = vmatprep.subr.bf16.mxu0 0
        %999 = vmatpush1.bf16.msra.mxu0 %v996
        %1000 = vmatprep.subr.bf16.mxu0 0
        %1001 = vmatpush1.bf16.msra.mxu0 0
        %1002 = vmatprep.subr.bf16.mxu0 0
        %1003 = vmatpush1.bf16.msra.mxu0 0
        %1004 = vmatprep.subr.bf16.mxu0 0
        %1005 = vmatpush1.bf16.msra.mxu0 0
        %1006 = vmatprep.subr.bf16.mxu0 0
        %1007 = vmatpush1.bf16.msra.mxu0 0
        %1008 = vmatprep.subr.bf16.mxu0 0
        %1009 = vmatpush1.bf16.msra.mxu0 0
        %1010 = vmatprep.subr.bf16.mxu0 0
        %1011 = vmatpush1.bf16.msra.mxu0 0
        %1012 = vmatprep.subr.bf16.mxu0 0
        %1013 = vmatpush1.bf16.msra.mxu0 0
        %1014 = vmatprep.subr.bf16.mxu0 0
        %1015 = vmatpush1.bf16.msra.mxu0 0
        %1016 = vmatprep.subr.bf16.mxu0 0
        %1017 = vmatpush1.bf16.msra.mxu0 0
        %1018 = vmatprep.subr.bf16.mxu0 0
        %1019 = vmatpush1.bf16.msra.mxu0 0
        %1020 = vmatprep.subr.bf16.mxu0 0
        %1021 = vmatpush1.bf16.msra.mxu0 0
        %1022 = vmatprep.subr.bf16.mxu0 0
        %1023 = vmatpush1.bf16.msra.mxu0 0
        %1024 = vmatprep.subr.bf16.mxu0 0
        %1025 = vmatpush1.bf16.msra.mxu0 0
        %1026 = vmatprep.subr.bf16.mxu0 0
        %1027 = vmatpush1.bf16.msra.mxu0 0
        %1028 = vmatprep.subr.bf16.mxu0 0
        %1029 = vmatpush1.bf16.msra.mxu0 0
        %1030 = vmatprep.mubr.bf16.mxu0 0
        %1031 = vmatmul.mubr.bf16.gmra.mrb[0].mxu0 %v993
        %v1032 = vpop.f32.mrb[0].mxu0
        %v1033 = vadd.f32 0.0, %v1032
        %v1034 = vpop.f32.mrb[0].mxu0
        %v1035 = vpop.f32.mrb[0].mxu0
        %v1036 = vpop.f32.mrb[0].mxu0
        %1037 = vdwg.mxu0
        %v1038 = vadd.f32 %v988, %v1033
        %v1039 = vpack.c.bf16 %v876, %v876
        %s1040 = scalar_lea.vmem %s4, 12
        %v1041 = vld [vmem:[%s1040] sm:$0xf]
        %v1043 = vsel %vm459, %v1039, 0
        %v1046 = vsel %vm699, %v1041, 0
        %1048 = vmatprep.subr.bf16.mxu0 0
        %1049 = vmatpush1.bf16.msra.mxu0 %v1046
        %1050 = vmatprep.subr.bf16.mxu0 0
        %1051 = vmatpush1.bf16.msra.mxu0 0
        %1052 = vmatprep.subr.bf16.mxu0 0
        %1053 = vmatpush1.bf16.msra.mxu0 0
        %1054 = vmatprep.subr.bf16.mxu0 0
        %1055 = vmatpush1.bf16.msra.mxu0 0
        %1056 = vmatprep.subr.bf16.mxu0 0
        %1057 = vmatpush1.bf16.msra.mxu0 0
        %1058 = vmatprep.subr.bf16.mxu0 0
        %1059 = vmatpush1.bf16.msra.mxu0 0
        %1060 = vmatprep.subr.bf16.mxu0 0
        %1061 = vmatpush1.bf16.msra.mxu0 0
        %1062 = vmatprep.subr.bf16.mxu0 0
        %1063 = vmatpush1.bf16.msra.mxu0 0
        %1064 = vmatprep.subr.bf16.mxu0 0
        %1065 = vmatpush1.bf16.msra.mxu0 0
        %1066 = vmatprep.subr.bf16.mxu0 0
        %1067 = vmatpush1.bf16.msra.mxu0 0
        %1068 = vmatprep.subr.bf16.mxu0 0
        %1069 = vmatpush1.bf16.msra.mxu0 0
        %1070 = vmatprep.subr.bf16.mxu0 0
        %1071 = vmatpush1.bf16.msra.mxu0 0
        %1072 = vmatprep.subr.bf16.mxu0 0
        %1073 = vmatpush1.bf16.msra.mxu0 0
        %1074 = vmatprep.subr.bf16.mxu0 0
        %1075 = vmatpush1.bf16.msra.mxu0 0
        %1076 = vmatprep.subr.bf16.mxu0 0
        %1077 = vmatpush1.bf16.msra.mxu0 0
        %1078 = vmatprep.subr.bf16.mxu0 0
        %1079 = vmatpush1.bf16.msra.mxu0 0
        %1080 = vmatprep.mubr.bf16.mxu0 0
        %1081 = vmatmul.mubr.bf16.gmra.mrb[0].mxu0 %v1043
        %v1082 = vpop.f32.mrb[0].mxu0
        %v1083 = vadd.f32 0.0, %v1082
        %v1084 = vpop.f32.mrb[0].mxu0
        %v1085 = vpop.f32.mrb[0].mxu0
        %v1086 = vpop.f32.mrb[0].mxu0
        %1087 = vdwg.mxu0
        %v1088 = vadd.f32 %v1038, %v1083
        %vm1089 = vcmask 261120
        %1090 = vst.msk [vmem:[%s432] sm:$0xff] %vm1089, %v1088
        %p1091 = scmp.lt.s32.totalorder %s27, 1
        %s1092 = scalar_select %p1091, %s27, 1
        %p1093 = scmp.lt.s32.totalorder %s28, 0
        %s1094 = scalar_select %p1093, %s28, 0
        %s1095 = sadd.s32 %s1094, %s1092
        %s1096 = smul.addr %s1095, 8
        %s1097 = scalar_lea.vmem %s7, %s1096
        %s1098 = sand.u32 %s249, 1
        %s1099 = scalar_lea.sflag [#allocation3], %s1098
        %s1100 = sand.u32 %s249, 1
        %s1101 = smul.addr %s1100, 32
        %s1102 = scalar_lea.vmem [#allocation2], %s1101
        // Predicated region
        $region49: #{decoder_forward.14} parent=47 // pred_check
          %p1103 = pneg %p231
        $region50: #{decoder_forward.14} parent=47 // pred_check_branch
          %1105 = sbr.rel (%p1103) target = $region52
        $region51: #{decoder_forward.14} parent=47 // pred_region
          _
        $region52: #{decoder_forward.14} parent=47 // pred_fallthru
          _
        // Predicated region
        $region53: #{decoder_forward.14} parent=47 // pred_check
          %p1106 = pneg %p259
        $region54: #{decoder_forward.14} parent=47 // pred_check_branch
          %1108 = sbr.rel (%p1106) target = $region56
        $region55: #{decoder_forward.14} parent=47 // pred_region
          %s1110 = ssub.s32 512, 512
          %1111 = vsyncadd %s1099, %s1110
          %s1112 = smul.addr %s27, 4
          %s1113 = sadd.s32 %s28, %s1112
          %s1114 = smul.addr %s1113, 128
          %s1115 = scalar_lea.hbm %s8, %s1114
          %s1116 = sshll.u32 %s1102, 4
          %s1117 = int_to_ptr.vmem [resolvable:$true] %s1116
          %1122 = dma.vmem_to_hbm [thread:$0]  %s1117, 512, %s1115, %s1099, 128, 128, 8
        $region56: #{decoder_forward.14} parent=47 // pred_fallthru
          _
      $region48: #{decoder_forward.14} parent=5 // pred_fallthru
        _
      %p1123 = scmp.le.s32.totalorder 2, %s18
      // Predicated region
      $region57: #{decoder_forward.14} parent=5 // pred_check
        %p1124 = pneg %p1123
      $region58: #{decoder_forward.14} parent=5 // pred_check_branch
        %1126 = sbr.rel (%p1124) target = $region60
      $region59: #{decoder_forward.14} parent=5 // pred_region
        %s1127 = ssub.s32 %s18, 2
        // Predicated region
        $region61: #{decoder_forward.14} parent=59 // pred_check
          %p1128 = pneg %p237
        $region62: #{decoder_forward.14} parent=59 // pred_check_branch
          %1130 = sbr.rel (%p1128) target = $region64
        $region63: #{decoder_forward.14} parent=59 // pred_region
          %p1131 = scmp.lt.s32.totalorder %s29, 1
          %s1132 = scalar_select %p1131, %s29, 1
          %p1133 = scmp.lt.s32.totalorder %s30, 0
          %s1134 = scalar_select %p1133, %s30, 0
          %s1135 = sadd.s32 %s1134, %s1132
          %s1136 = smul.addr %s1135, 8
          %s1137 = scalar_lea.vmem %s7, %s1136
        $region64: #{decoder_forward.14} parent=59 // pred_fallthru
          _
        // Predicated region
        $region65: #{decoder_forward.14} parent=59 // pred_check
          %p1138 = pneg %p265
        $region66: #{decoder_forward.14} parent=59 // pred_check_branch
          %1140 = sbr.rel (%p1138) target = $region68
        $region67: #{decoder_forward.14} parent=59 // pred_region
          %s1141 = sand.u32 %s250, 1
          %s1142 = scalar_lea.sflag [#allocation3], %s1141
          %s1143 = sand.u32 %s250, 1
          %s1144 = smul.addr %s1143, 32
          %s1145 = scalar_lea.vmem [#allocation2], %s1144
          %1146 = dma.done %s1142, 512
        $region68: #{decoder_forward.14} parent=59 // pred_fallthru
          _
      $region60: #{decoder_forward.14} parent=5 // pred_fallthru
        _
    $region6: #{decoder_forward.14} parent=1 // loop_footer
      %s22 = sadd.s32 1, %s18
    $region7: #{decoder_forward.14} parent=1 // loop_footer_branch
      %17 = sbr.rel target = $region3
    $region8: #{decoder_forward.14} parent=1 // loop_exit
      _
    %1147 = vsyncpa [#allocation3], 1
    %s1148 = scalar_lea.sflag [#allocation3], 1
    %1149 = vsyncpa %s1148, 1

// kernel: decoder_forward.25
$region0: #{decoder_forward.25}
  #allocation0 [shape = 'u32[]', space=smem, size = 0x4, offset = 0x4, fixed_abs, tag = 'smem constant byte address 0x4 - core index']
  #allocation1 [shape = 'u32[144,128]{1,0:T(1,128)}', space=vmem, size = 0x12000, scoped, tag = 'internal scratch']
  %s0 = inlined_call_operand.vmem [shape: f32[16,32], index: 0, kind: input, shape index: {}]
  %s1 = inlined_call_operand.vmem [shape: f32[1,32], index: 1, kind: input, shape index: {}]
  %s2 = inlined_call_operand.vmem [shape: f32[1,32], index: 2, kind: input, shape index: {}]
  %s3 = inlined_call_operand.hbm [shape: f32[16,32], index: 3, kind: output, shape index: {}]
  %s4 = sld [smem:[#allocation0]]
  $region22: #{decoder_forward.25} parent=0
    _
  %s6 = ssub.s32 1, %s4
  %s7 = scalar_select 0, %s6, %s4
  $region1: #{decoder_forward.25} parent=0
    #allocation2 [shape = 'u8[8192]{0}', space=vmem, size = 0x2000, scoped, tag = 'output window, operand 0, single buffered']
    #allocation3 [shape = 's32[1]{0}', space=sflag, size = 0x4, scoped, tag = 'scoped memory for decoder_forward.25']
    %8 = vsyncpa [#allocation3], 0
    // Predicated region
    $region2: #{decoder_forward.25} parent=1 // pred_check
      _
    $region3: #{decoder_forward.25} parent=1 // pred_check_branch
      %10 = sbr.rel (0) target = $region5
    $region4: #{decoder_forward.25} parent=1 // pred_region
      _
    $region5: #{decoder_forward.25} parent=1 // pred_fallthru
      _
    // Predicated region
    $region6: #{decoder_forward.25} parent=1 // pred_check
      _
    $region7: #{decoder_forward.25} parent=1 // pred_check_branch
      %12 = sbr.rel (0) target = $region9
    $region8: #{decoder_forward.25} parent=1 // pred_region
      _
    $region9: #{decoder_forward.25} parent=1 // pred_fallthru
      _
    // Predicated region
    $region10: #{decoder_forward.25} parent=1 // pred_check
      _
    $region11: #{decoder_forward.25} parent=1 // pred_check_branch
      %14 = sbr.rel (0) target = $region13
    $region12: #{decoder_forward.25} parent=1 // pred_region
      _
    $region13: #{decoder_forward.25} parent=1 // pred_fallthru
      _
    %v15 = vld [vmem:[%s0] sm:$0xff]
    %v16 = vld [vmem:[%s0 + $0x8] sm:$0xff]
    %vm17 = vcmask 261120
    %v18 = vsel %vm17, %v15, 0.0
    %19 = vadd.xlane.f32.xlu0 %v18
    %v20 = vpop.xlane.xlu0 %19
    %v21 = vsel %vm17, %v16, 0.0
    %22 = vadd.xlane.f32.xlu0 %v21
    %v23 = vpop.xlane.xlu0 %22
    %v24 = vrcp.pop 32.0
    %v25 = vmul.f32 %v20, %v24
    %v26 = vmul.f32 %v23, %v24
    %v27 = vsub.f32 %v15, %v25
    %v28 = vsub.f32 %v16, %v26
    %v29 = vmul.f32 %v27, %v27
    %v30 = vmul.f32 %v28, %v28
    %v31 = vsel %vm17, %v29, 0.0
    %32 = vadd.xlane.f32.xlu0 %v31
    %v33 = vpop.xlane.xlu0 %32
    %v34 = vsel %vm17, %v30, 0.0
    %35 = vadd.xlane.f32.xlu0 %v34
    %v36 = vpop.xlane.xlu0 %35
    %v37 = vmul.f32 %v33, %v24
    %v38 = vmul.f32 %v36, %v24
    %v39 = vadd.f32 %v37, 1e-05
    %v40 = vadd.f32 %v38, 1e-05
    %v41 = vrsqrt.pop %v39
    %v42 = vrsqrt.pop %v40
    %v43 = vmul.f32 %v27, %v41
    %v44 = vmul.f32 %v28, %v42
    %v45 = vld [vmem:[%s1] sm:$0x1]
    %v47 = vlaneseq
    %v48 = vshrl.u32 %v47, 7
    %v49 = vsub.s32 0, %v48
    %v50 = vrot.slane %v45, %v49
    %v52 = vmul.f32 %v43, %v50
    %v53 = vmul.f32 %v44, %v50
    %v54 = vld [vmem:[%s2] sm:$0x1]
    %v56 = vlaneseq
    %v57 = vshrl.u32 %v56, 7
    %v58 = vsub.s32 0, %v57
    %v59 = vrot.slane %v54, %v58
    %v61 = vadd.f32 %v52, %v59
    %v62 = vadd.f32 %v53, %v59
    %63 = vst.msk [vmem:[#allocation2] sm:$0xff] %vm17, %v61
    %64 = vst.msk [vmem:[#allocation2 + $0x8] sm:$0xff] %vm17, %v62
    // Predicated region
    $region14: #{decoder_forward.25} parent=1 // pred_check
      _
    $region15: #{decoder_forward.25} parent=1 // pred_check_branch
      %66 = sbr.rel (0) target = $region17
    $region16: #{decoder_forward.25} parent=1 // pred_region
      %s68 = ssub.s32 256, 256
      %69 = vsyncadd [#allocation3], %s68
      %s70 = sshll.u32 [#allocation2], 4
      %s71 = int_to_ptr.vmem [resolvable:$true] %s70
      %76 = dma.vmem_to_hbm [thread:$0]  %s71, 256, %s3, [#allocation3], 128, 128, 8
    $region17: #{decoder_forward.25} parent=1 // pred_fallthru
      _
    // Predicated region
    $region18: #{decoder_forward.25} parent=1 // pred_check
      _
    $region19: #{decoder_forward.25} parent=1 // pred_check_branch
      %78 = sbr.rel (0) target = $region21
    $region20: #{decoder_forward.25} parent=1 // pred_region
      %79 = dma.done [#allocation3], 256
    $region21: #{decoder_forward.25} parent=1 // pred_fallthru
      _
    %80 = vsyncpa [#allocation3], 1

// kernel: decoder_forward.13
$region0: #{decoder_forward.13}
  #allocation0 [shape = 'u32[]', space=smem, size = 0x4, offset = 0x4, fixed_abs, tag = 'smem constant byte address 0x4 - core index']
  #allocation1 [shape = 'u32[144,128]{1,0:T(1,128)}', space=vmem, size = 0x12000, scoped, tag = 'internal scratch']
  %s0 = inlined_call_operand.vmem [shape: f32[16,32], index: 0, kind: input, shape index: {}]
  %s1 = inlined_call_operand.vmem [shape: f32[1,32], index: 1, kind: input, shape index: {}]
  %s2 = inlined_call_operand.vmem [shape: f32[1,32], index: 2, kind: input, shape index: {}]
  %s3 = inlined_call_operand.vmem [shape: bf16[32,32], index: 3, kind: input, shape index: {}]
  %s4 = inlined_call_operand.vmem [shape: f32[1,32], index: 4, kind: input, shape index: {}]
  %s5 = inlined_call_operand.vmem [shape: bf16[32,32], index: 5, kind: input, shape index: {}]
  %s6 = inlined_call_operand.vmem [shape: f32[1,32], index: 6, kind: input, shape index: {}]
  %s7 = inlined_call_operand.vmem [shape: bf16[32,32], index: 7, kind: input, shape index: {}]
  %s8 = inlined_call_operand.vmem [shape: f32[1,32], index: 8, kind: input, shape index: {}]
  %s9 = inlined_call_operand.vmem [shape: bf16[16,32], index: 9, kind: output, shape index: {0}]
  %s10 = inlined_call_operand.vmem [shape: bf16[16,32], index: 10, kind: output, shape index: {1}]
  %s11 = inlined_call_operand.vmem [shape: bf16[16,32], index: 11, kind: output, shape index: {2}]
  %12 = xla_tuple %s9, %s10, %s11
  %s13 = sld [smem:[#allocation0]]
  $region62: #{decoder_forward.13} parent=0
    _
  %s15 = ssub.s32 1, %s13
  %s16 = scalar_select 0, %s15, %s13
  // Predicated region
  $region2: #{decoder_forward.13} parent=0 // pred_check
    _
  $region3: #{decoder_forward.13} parent=0 // pred_check_branch
    %18 = sbr.rel (0) target = $region5
  $region4: #{decoder_forward.13} parent=0 // pred_region
    _
  $region5: #{decoder_forward.13} parent=0 // pred_fallthru
    _
  // Predicated region
  $region6: #{decoder_forward.13} parent=0 // pred_check
    _
  $region7: #{decoder_forward.13} parent=0 // pred_check_branch
    %20 = sbr.rel (0) target = $region9
  $region8: #{decoder_forward.13} parent=0 // pred_region
    _
  $region9: #{decoder_forward.13} parent=0 // pred_fallthru
    _
  // Predicated region
  $region10: #{decoder_forward.13} parent=0 // pred_check
    _
  $region11: #{decoder_forward.13} parent=0 // pred_check_branch
    %22 = sbr.rel (0) target = $region13
  $region12: #{decoder_forward.13} parent=0 // pred_region
    _
  $region13: #{decoder_forward.13} parent=0 // pred_fallthru
    _
  // Predicated region
  $region14: #{decoder_forward.13} parent=0 // pred_check
    _
  $region15: #{decoder_forward.13} parent=0 // pred_check_branch
    %24 = sbr.rel (0) target = $region17
  $region16: #{decoder_forward.13} parent=0 // pred_region
    _
  $region17: #{decoder_forward.13} parent=0 // pred_fallthru
    _
  // Predicated region
  $region18: #{decoder_forward.13} parent=0 // pred_check
    _
  $region19: #{decoder_forward.13} parent=0 // pred_check_branch
    %26 = sbr.rel (0) target = $region21
  $region20: #{decoder_forward.13} parent=0 // pred_region
    _
  $region21: #{decoder_forward.13} parent=0 // pred_fallthru
    _
  // Predicated region
  $region22: #{decoder_forward.13} parent=0 // pred_check
    _
  $region23: #{decoder_forward.13} parent=0 // pred_check_branch
    %28 = sbr.rel (0) target = $region25
  $region24: #{decoder_forward.13} parent=0 // pred_region
    _
  $region25: #{decoder_forward.13} parent=0 // pred_fallthru
    _
  // Predicated region
  $region26: #{decoder_forward.13} parent=0 // pred_check
    _
  $region27: #{decoder_forward.13} parent=0 // pred_check_branch
    %30 = sbr.rel (0) target = $region29
  $region28: #{decoder_forward.13} parent=0 // pred_region
    _
  $region29: #{decoder_forward.13} parent=0 // pred_fallthru
    _
  // Predicated region
  $region30: #{decoder_forward.13} parent=0 // pred_check
    _
  $region31: #{decoder_forward.13} parent=0 // pred_check_branch
    %32 = sbr.rel (0) target = $region33
  $region32: #{decoder_forward.13} parent=0 // pred_region
    _
  $region33: #{decoder_forward.13} parent=0 // pred_fallthru
    _
  // Predicated region
  $region34: #{decoder_forward.13} parent=0 // pred_check
    _
  $region35: #{decoder_forward.13} parent=0 // pred_check_branch
    %34 = sbr.rel (0) target = $region37
  $region36: #{decoder_forward.13} parent=0 // pred_region
    _
  $region37: #{decoder_forward.13} parent=0 // pred_fallthru
    _
  %v36 = vld [vmem:[%s0] sm:$0xff]
  %v37 = vld [vmem:[%s0 + $0x8] sm:$0xff]
  %vm38 = vcmask 261120
  %v39 = vsel %vm38, %v36, 0.0
  %40 = vadd.xlane.f32.xlu0 %v39
  %v41 = vpop.xlane.xlu0 %40
  %v42 = vsel %vm38, %v37, 0.0
  %43 = vadd.xlane.f32.xlu0 %v42
  %v44 = vpop.xlane.xlu0 %43
  %v45 = vrcp.pop 32.0
  %v46 = vmul.f32 %v41, %v45
  %v47 = vmul.f32 %v44, %v45
  %v48 = vsub.f32 %v36, %v46
  %v49 = vsub.f32 %v37, %v47
  %v50 = vmul.f32 %v48, %v48
  %v51 = vmul.f32 %v49, %v49
  %v52 = vsel %vm38, %v50, 0.0
  %53 = vadd.xlane.f32.xlu0 %v52
  %v54 = vpop.xlane.xlu0 %53
  %v55 = vsel %vm38, %v51, 0.0
  %56 = vadd.xlane.f32.xlu0 %v55
  %v57 = vpop.xlane.xlu0 %56
  %v58 = vmul.f32 %v54, %v45
  %v59 = vmul.f32 %v57, %v45
  %v60 = vadd.f32 %v58, 1e-05
  %v61 = vadd.f32 %v59, 1e-05
  %v62 = vrsqrt.pop %v60
  %v63 = vrsqrt.pop %v61
  %v64 = vmul.f32 %v48, %v62
  %v65 = vmul.f32 %v49, %v63
  %v66 = vld [vmem:[%s1] sm:$0x1]
  %v68 = vlaneseq
  %v69 = vshrl.u32 %v68, 7
  %v70 = vsub.s32 0, %v69
  %v71 = vrot.slane %v66, %v70
  %v73 = vmul.f32 %v64, %v71
  %v74 = vmul.f32 %v65, %v71
  %v75 = vld [vmem:[%s2] sm:$0x1]
  %v77 = vlaneseq
  %v78 = vshrl.u32 %v77, 7
  %v79 = vsub.s32 0, %v78
  %v80 = vrot.slane %v75, %v79
  %v82 = vadd.f32 %v73, %v80
  %v83 = vadd.f32 %v74, %v80
  %v84 = vpack.c.bf16 %v83, %v82
  %v85 = vld [vmem:[%s3] sm:$0xf]
  %v86 = vld [vmem:[%s3 + $0x4] sm:$0xf]
  %v87 = vld [vmem:[%s3 + $0x8] sm:$0xf]
  %v88 = vld [vmem:[%s3 + $0xc] sm:$0xf]
  %v89 = vld [vmem:[%s4] sm:$0x1]
  %v91 = vlaneseq
  %v92 = vshrl.u32 %v91, 7
  %v93 = vsub.s32 0, %v92
  %v94 = vrot.slane %v89, %v93
  %v100 = vunpack.c.l.b16 %v85
  %v101 = vunpack.c.l.b16 %v86
  %v102 = vunpack.c.l.b16 %v87
  %v103 = vunpack.c.l.b16 %v88
  %v104 = vpack.c.b16 %v101, %v100
  %v105 = vpack.c.b16 %v103, %v102
  %v109 = vsel %vm38, %v84, 0
  %111 = vmatprep.subr.bf16.mxu0 0
  %112 = vmatpush1.bf16.msra.mxu0 %v104
  %113 = vmatprep.subr.bf16.mxu0 0
  %114 = vmatpush1.bf16.msra.mxu0 %v105
  %115 = vmatprep.subr.bf16.mxu0 0
  %116 = vmatpush1.bf16.msra.mxu0 0
  %117 = vmatprep.subr.bf16.mxu0 0
  %118 = vmatpush1.bf16.msra.mxu0 0
  %119 = vmatprep.subr.bf16.mxu0 0
  %120 = vmatpush1.bf16.msra.mxu0 0
  %121 = vmatprep.subr.bf16.mxu0 0
  %122 = vmatpush1.bf16.msra.mxu0 0
  %123 = vmatprep.subr.bf16.mxu0 0
  %124 = vmatpush1.bf16.msra.mxu0 0
  %125 = vmatprep.subr.bf16.mxu0 0
  %126 = vmatpush1.bf16.msra.mxu0 0
  %127 = vmatprep.subr.bf16.mxu0 0
  %128 = vmatpush1.bf16.msra.mxu0 0
  %129 = vmatprep.subr.bf16.mxu0 0
  %130 = vmatpush1.bf16.msra.mxu0 0
  %131 = vmatprep.subr.bf16.mxu0 0
  %132 = vmatpush1.bf16.msra.mxu0 0
  %133 = vmatprep.subr.bf16.mxu0 0
  %134 = vmatpush1.bf16.msra.mxu0 0
  %135 = vmatprep.subr.bf16.mxu0 0
  %136 = vmatpush1.bf16.msra.mxu0 0
  %137 = vmatprep.subr.bf16.mxu0 0
  %138 = vmatpush1.bf16.msra.mxu0 0
  %139 = vmatprep.subr.bf16.mxu0 0
  %140 = vmatpush1.bf16.msra.mxu0 0
  %141 = vmatprep.subr.bf16.mxu0 0
  %142 = vmatpush1.bf16.msra.mxu0 0
  %143 = vmatprep.mubr.bf16.mxu0 0
  %144 = vmatmul.mubr.bf16.gmra.mrb[0].mxu0 %v109
  %v145 = vpop.f32.mrb[0].mxu0
  %v146 = vadd.f32 %v94, %v145
  %v147 = vpop.f32.mrb[0].mxu0
  %v148 = vpop.f32.mrb[0].mxu0
  %v149 = vadd.f32 %v94, %v148
  %v150 = vpop.f32.mrb[0].mxu0
  %151 = vdwg.mxu0
  %v152 = vpack.c.bf16 %v149, %v146
  %v154 = vunpack.c.l.b16 %v152
  %v155 = vunpack.c.h.b16 %v152
  %v156 = vpack.c.b16 %v154, %v154
  %v157 = vpack.c.b16 %v155, %v155
  %vm160 = vcmask 257024
  %161 = vst.msk [vmem:[%s9] sm:$0xf] %vm160, %v156
  %162 = vst.msk [vmem:[%s9 + $0x4] sm:$0xf] %vm160, %v157
  %v163 = vld [vmem:[%s5] sm:$0xf]
  %v164 = vld [vmem:[%s5 + $0x4] sm:$0xf]
  %v165 = vld [vmem:[%s5 + $0x8] sm:$0xf]
  %v166 = vld [vmem:[%s5 + $0xc] sm:$0xf]
  %v167 = vld [vmem:[%s6] sm:$0x1]
  %v169 = vlaneseq
  %v170 = vshrl.u32 %v169, 7
  %v171 = vsub.s32 0, %v170
  %v172 = vrot.slane %v167, %v171
  %v178 = vunpack.c.l.b16 %v163
  %v179 = vunpack.c.l.b16 %v164
  %v180 = vunpack.c.l.b16 %v165
  %v181 = vunpack.c.l.b16 %v166
  %v182 = vpack.c.b16 %v179, %v178
  %v183 = vpack.c.b16 %v181, %v180
  %186 = vmatprep.subr.bf16.mxu0 0
  %187 = vmatpush1.bf16.msra.mxu0 %v182
  %188 = vmatprep.subr.bf16.mxu0 0
  %189 = vmatpush1.bf16.msra.mxu0 %v183
  %190 = vmatprep.subr.bf16.mxu0 0
  %191 = vmatpush1.bf16.msra.mxu0 0
  %192 = vmatprep.subr.bf16.mxu0 0
  %193 = vmatpush1.bf16.msra.mxu0 0
  %194 = vmatprep.subr.bf16.mxu0 0
  %195 = vmatpush1.bf16.msra.mxu0 0
  %196 = vmatprep.subr.bf16.mxu0 0
  %197 = vmatpush1.bf16.msra.mxu0 0
  %198 = vmatprep.subr.bf16.mxu0 0
  %199 = vmatpush1.bf16.msra.mxu0 0
  %200 = vmatprep.subr.bf16.mxu0 0
  %201 = vmatpush1.bf16.msra.mxu0 0
  %202 = vmatprep.subr.bf16.mxu0 0
  %203 = vmatpush1.bf16.msra.mxu0 0
  %204 = vmatprep.subr.bf16.mxu0 0
  %205 = vmatpush1.bf16.msra.mxu0 0
  %206 = vmatprep.subr.bf16.mxu0 0
  %207 = vmatpush1.bf16.msra.mxu0 0
  %208 = vmatprep.subr.bf16.mxu0 0
  %209 = vmatpush1.bf16.msra.mxu0 0
  %210 = vmatprep.subr.bf16.mxu0 0
  %211 = vmatpush1.bf16.msra.mxu0 0
  %212 = vmatprep.subr.bf16.mxu0 0
  %213 = vmatpush1.bf16.msra.mxu0 0
  %214 = vmatprep.subr.bf16.mxu0 0
  %215 = vmatpush1.bf16.msra.mxu0 0
  %216 = vmatprep.subr.bf16.mxu0 0
  %217 = vmatpush1.bf16.msra.mxu0 0
  %218 = vmatprep.mubr.bf16.mxu0 0
  %219 = vmatmul.mubr.bf16.gmra.mrb[0].mxu0 %v109
  %v220 = vpop.f32.mrb[0].mxu0
  %v221 = vadd.f32 %v172, %v220
  %v222 = vpop.f32.mrb[0].mxu0
  %v223 = vpop.f32.mrb[0].mxu0
  %v224 = vadd.f32 %v172, %v223
  %v225 = vpop.f32.mrb[0].mxu0
  %226 = vdwg.mxu0
  %v227 = vpack.c.bf16 %v224, %v221
  %v229 = vunpack.c.l.b16 %v227
  %v230 = vunpack.c.h.b16 %v227
  %v231 = vpack.c.b16 %v229, %v229
  %v232 = vpack.c.b16 %v230, %v230
  %235 = vst.msk [vmem:[%s10] sm:$0xf] %vm160, %v231
  %236 = vst.msk [vmem:[%s10 + $0x4] sm:$0xf] %vm160, %v232
  %v237 = vld [vmem:[%s7] sm:$0xf]
  %v238 = vld [vmem:[%s7 + $0x4] sm:$0xf]
  %v239 = vld [vmem:[%s7 + $0x8] sm:$0xf]
  %v240 = vld [vmem:[%s7 + $0xc] sm:$0xf]
  %v241 = vld [vmem:[%s8] sm:$0x1]
  %v243 = vlaneseq
  %v244 = vshrl.u32 %v243, 7
  %v245 = vsub.s32 0, %v244
  %v246 = vrot.slane %v241, %v245
  %v252 = vunpack.c.l.b16 %v237
  %v253 = vunpack.c.l.b16 %v238
  %v254 = vunpack.c.l.b16 %v239
  %v255 = vunpack.c.l.b16 %v240
  %v256 = vpack.c.b16 %v253, %v252
  %v257 = vpack.c.b16 %v255, %v254
  %260 = vmatprep.subr.bf16.mxu0 0
  %261 = vmatpush1.bf16.msra.mxu0 %v256
  %262 = vmatprep.subr.bf16.mxu0 0
  %263 = vmatpush1.bf16.msra.mxu0 %v257
  %264 = vmatprep.subr.bf16.mxu0 0
  %265 = vmatpush1.bf16.msra.mxu0 0
  %266 = vmatprep.subr.bf16.mxu0 0
  %267 = vmatpush1.bf16.msra.mxu0 0
  %268 = vmatprep.subr.bf16.mxu0 0
  %269 = vmatpush1.bf16.msra.mxu0 0
  %270 = vmatprep.subr.bf16.mxu0 0
  %271 = vmatpush1.bf16.msra.mxu0 0
  %272 = vmatprep.subr.bf16.mxu0 0
  %273 = vmatpush1.bf16.msra.mxu0 0
  %274 = vmatprep.subr.bf16.mxu0 0
  %275 = vmatpush1.bf16.msra.mxu0 0
  %276 = vmatprep.subr.bf16.mxu0 0
  %277 = vmatpush1.bf16.msra.mxu0 0
  %278 = vmatprep.subr.bf16.mxu0 0
  %279 = vmatpush1.bf16.msra.mxu0 0
  %280 = vmatprep.subr.bf16.mxu0 0
  %281 = vmatpush1.bf16.msra.mxu0 0
  %282 = vmatprep.subr.bf16.mxu0 0
  %283 = vmatpush1.bf16.msra.mxu0 0
  %284 = vmatprep.subr.bf16.mxu0 0
  %285 = vmatpush1.bf16.msra.mxu0 0
  %286 = vmatprep.subr.bf16.mxu0 0
  %287 = vmatpush1.bf16.msra.mxu0 0
  %288 = vmatprep.subr.bf16.mxu0 0
  %289 = vmatpush1.bf16.msra.mxu0 0
  %290 = vmatprep.subr.bf16.mxu0 0
  %291 = vmatpush1.bf16.msra.mxu0 0
  %292 = vmatprep.mubr.bf16.mxu0 0
  %293 = vmatmul.mubr.bf16.gmra.mrb[0].mxu0 %v109
  %v294 = vpop.f32.mrb[0].mxu0
  %v295 = vadd.f32 %v246, %v294
  %v296 = vpop.f32.mrb[0].mxu0
  %v297 = vpop.f32.mrb[0].mxu0
  %v298 = vadd.f32 %v246, %v297
  %v299 = vpop.f32.mrb[0].mxu0
  %300 = vdwg.mxu0
  %v301 = vpack.c.bf16 %v298, %v295
  %v303 = vunpack.c.l.b16 %v301
  %v304 = vunpack.c.h.b16 %v301
  %v305 = vpack.c.b16 %v303, %v303
  %v306 = vpack.c.b16 %v304, %v304
  %309 = vst.msk [vmem:[%s11] sm:$0xf] %vm160, %v305
  %310 = vst.msk [vmem:[%s11 + $0x4] sm:$0xf] %vm160, %v306
  // Predicated region
  $region38: #{decoder_forward.13} parent=0 // pred_check
    _
  $region39: #{decoder_forward.13} parent=0 // pred_check_branch
    %312 = sbr.rel (0) target = $region41
  $region40: #{decoder_forward.13} parent=0 // pred_region
    _
  $region41: #{decoder_forward.13} parent=0 // pred_fallthru
    _
  // Predicated region
  $region42: #{decoder_forward.13} parent=0 // pred_check
    _
  $region43: #{decoder_forward.13} parent=0 // pred_check_branch
    %314 = sbr.rel (0) target = $region45
  $region44: #{decoder_forward.13} parent=0 // pred_region
    _
  $region45: #{decoder_forward.13} parent=0 // pred_fallthru
    _
  // Predicated region
  $region46: #{decoder_forward.13} parent=0 // pred_check
    _
  $region47: #{decoder_forward.13} parent=0 // pred_check_branch
    %316 = sbr.rel (0) target = $region49
  $region48: #{decoder_forward.13} parent=0 // pred_region
    _
  $region49: #{decoder_forward.13} parent=0 // pred_fallthru
    _
  // Predicated region
  $region50: #{decoder_forward.13} parent=0 // pred_check
    _
  $region51: #{decoder_forward.13} parent=0 // pred_check_branch
    %318 = sbr.rel (0) target = $region53
  $region52: #{decoder_forward.13} parent=0 // pred_region
    _
  $region53: #{decoder_forward.13} parent=0 // pred_fallthru
    _
  // Predicated region
  $region54: #{decoder_forward.13} parent=0 // pred_check
    _
  $region55: #{decoder_forward.13} parent=0 // pred_check_branch
    %320 = sbr.rel (0) target = $region57
  $region56: #{decoder_forward.13} parent=0 // pred_region
    _
  $region57: #{decoder_forward.13} parent=0 // pred_fallthru
    _
  // Predicated region
  $region58: #{decoder_forward.13} parent=0 // pred_check
    _
  $region59: #{decoder_forward.13} parent=0 // pred_check_branch
    %322 = sbr.rel (0) target = $region61
  $region60: #{decoder_forward.13} parent=0 // pred_region
    _
  $region61: #{decoder_forward.13} parent=0 // pred_fallthru
    _

// kernel: decoder_forward.16
$region0: #{decoder_forward.16}
  #allocation0 [shape = 'u32[]', space=smem, size = 0x4, offset = 0x4, fixed_abs, tag = 'smem constant byte address 0x4 - core index']
  #allocation1 [shape = 'u32[144,128]{1,0:T(1,128)}', space=vmem, size = 0x12000, scoped, tag = 'internal scratch']
  %s0 = inlined_call_operand.vmem [shape: f32[16,32], index: 0, kind: input, shape index: {}]
  %s1 = inlined_call_operand.vmem [shape: bf16[32,32], index: 1, kind: input, shape index: {}]
  %s2 = inlined_call_operand.vmem [shape: f32[1,32], index: 2, kind: input, shape index: {}]
  %s3 = inlined_call_operand.vmem [shape: bf16[32,32], index: 3, kind: input, shape index: {}]
  %s4 = inlined_call_operand.hbm [shape: f32[1,32], index: 4, kind: input, shape index: {}]
  %s5 = inlined_call_operand.vmem [shape: bf16[16,32], index: 5, kind: output, shape index: {0}]
  %s6 = inlined_call_operand.vmem [shape: bf16[16,32], index: 6, kind: output, shape index: {1}]
  %7 = xla_tuple %s5, %s6
  %s8 = sld [smem:[#allocation0]]
  $region42: #{decoder_forward.16} parent=0
    _
  %s10 = ssub.s32 1, %s8
  %s11 = scalar_select 0, %s10, %s8
  $region1: #{decoder_forward.16} parent=0
    #allocation2 [shape = 'u8[512]{0}', space=vmem, size = 0x400, scoped, tag = 'input window, operand 4, single buffered']
    #allocation3 [shape = 's32[1]{0}', space=sflag, size = 0x4, scoped, tag = 'scoped memory for decoder_forward.16']
    %12 = vsyncpa [#allocation3], 0
    // Predicated region
    $region2: #{decoder_forward.16} parent=1 // pred_check
      _
    $region3: #{decoder_forward.16} parent=1 // pred_check_branch
      %14 = sbr.rel (0) target = $region5
    $region4: #{decoder_forward.16} parent=1 // pred_region
      _
    $region5: #{decoder_forward.16} parent=1 // pred_fallthru
      _
    // Predicated region
    $region6: #{decoder_forward.16} parent=1 // pred_check
      _
    $region7: #{decoder_forward.16} parent=1 // pred_check_branch
      %16 = sbr.rel (0) target = $region9
    $region8: #{decoder_forward.16} parent=1 // pred_region
      _
    $region9: #{decoder_forward.16} parent=1 // pred_fallthru
      _
    // Predicated region
    $region10: #{decoder_forward.16} parent=1 // pred_check
      _
    $region11: #{decoder_forward.16} parent=1 // pred_check_branch
      %18 = sbr.rel (0) target = $region13
    $region12: #{decoder_forward.16} parent=1 // pred_region
      _
    $region13: #{decoder_forward.16} parent=1 // pred_fallthru
      _
    // Predicated region
    $region14: #{decoder_forward.16} parent=1 // pred_check
      _
    $region15: #{decoder_forward.16} parent=1 // pred_check_branch
      %20 = sbr.rel (0) target = $region17
    $region16: #{decoder_forward.16} parent=1 // pred_region
      _
    $region17: #{decoder_forward.16} parent=1 // pred_fallthru
      _
    // Predicated region
    $region18: #{decoder_forward.16} parent=1 // pred_check
      _
    $region19: #{decoder_forward.16} parent=1 // pred_check_branch
      %22 = sbr.rel (0) target = $region21
    $region20: #{decoder_forward.16} parent=1 // pred_region
      %s24 = ssub.s32 16, 16
      %25 = vsyncadd [#allocation3], %s24
      %s27 = sshll.u32 [#allocation2], 4
      %s28 = int_to_ptr.vmem [resolvable:$true] %s27
      %30 = dma.hbm_to_vmem [thread:$0]  %s4, 16, %s28, [#allocation3]
    $region21: #{decoder_forward.16} parent=1 // pred_fallthru
      _
    // Predicated region
    $region22: #{decoder_forward.16} parent=1 // pred_check
      _
    $region23: #{decoder_forward.16} parent=1 // pred_check_branch
      %32 = sbr.rel (0) target = $region25
    $region24: #{decoder_forward.16} parent=1 // pred_region
      %33 = dma.done [#allocation3], 16
    $region25: #{decoder_forward.16} parent=1 // pred_fallthru
      _
    %v35 = vld [vmem:[%s0] sm:$0xff]
    %v36 = vld [vmem:[%s0 + $0x8] sm:$0xff]
    %v37 = vpack.c.bf16 %v36, %v35
    %v38 = vld [vmem:[%s1] sm:$0xf]
    %v39 = vld [vmem:[%s1 + $0x4] sm:$0xf]
    %v40 = vld [vmem:[%s1 + $0x8] sm:$0xf]
    %v41 = vld [vmem:[%s1 + $0xc] sm:$0xf]
    %v42 = vld [vmem:[%s2] sm:$0x1]
    %v44 = vlaneseq
    %v45 = vshrl.u32 %v44, 7
    %v46 = vsub.s32 0, %v45
    %v47 = vrot.slane %v42, %v46
    %v53 = vunpack.c.l.b16 %v38
    %v54 = vunpack.c.l.b16 %v39
    %v55 = vunpack.c.l.b16 %v40
    %v56 = vunpack.c.l.b16 %v41
    %v57 = vpack.c.b16 %v54, %v53
    %v58 = vpack.c.b16 %v56, %v55
    %vm61 = vcmask 261120
    %v63 = vsel %vm61, %v37, 0
    %65 = vmatprep.subr.bf16.mxu0 0
    %66 = vmatpush1.bf16.msra.mxu0 %v57
    %67 = vmatprep.subr.bf16.mxu0 0
    %68 = vmatpush1.bf16.msra.mxu0 %v58
    %69 = vmatprep.subr.bf16.mxu0 0
    %70 = vmatpush1.bf16.msra.mxu0 0
    %71 = vmatprep.subr.bf16.mxu0 0
    %72 = vmatpush1.bf16.msra.mxu0 0
    %73 = vmatprep.subr.bf16.mxu0 0
    %74 = vmatpush1.bf16.msra.mxu0 0
    %75 = vmatprep.subr.bf16.mxu0 0
    %76 = vmatpush1.bf16.msra.mxu0 0
    %77 = vmatprep.subr.bf16.mxu0 0
    %78 = vmatpush1.bf16.msra.mxu0 0
    %79 = vmatprep.subr.bf16.mxu0 0
    %80 = vmatpush1.bf16.msra.mxu0 0
    %81 = vmatprep.subr.bf16.mxu0 0
    %82 = vmatpush1.bf16.msra.mxu0 0
    %83 = vmatprep.subr.bf16.mxu0 0
    %84 = vmatpush1.bf16.msra.mxu0 0
    %85 = vmatprep.subr.bf16.mxu0 0
    %86 = vmatpush1.bf16.msra.mxu0 0
    %87 = vmatprep.subr.bf16.mxu0 0
    %88 = vmatpush1.bf16.msra.mxu0 0
    %89 = vmatprep.subr.bf16.mxu0 0
    %90 = vmatpush1.bf16.msra.mxu0 0
    %91 = vmatprep.subr.bf16.mxu0 0
    %92 = vmatpush1.bf16.msra.mxu0 0
    %93 = vmatprep.subr.bf16.mxu0 0
    %94 = vmatpush1.bf16.msra.mxu0 0
    %95 = vmatprep.subr.bf16.mxu0 0
    %96 = vmatpush1.bf16.msra.mxu0 0
    %97 = vmatprep.mubr.bf16.mxu0 0
    %98 = vmatmul.mubr.bf16.gmra.mrb[0].mxu0 %v63
    %v99 = vpop.f32.mrb[0].mxu0
    %v100 = vadd.f32 %v47, %v99
    %v101 = vpop.f32.mrb[0].mxu0
    %v102 = vpop.f32.mrb[0].mxu0
    %v103 = vadd.f32 %v47, %v102
    %v104 = vpop.f32.mrb[0].mxu0
    %105 = vdwg.mxu0
    %v106 = vpack.c.bf16 %v103, %v100
    %v108 = vunpack.c.l.b16 %v106
    %v109 = vunpack.c.h.b16 %v106
    %v110 = vpack.c.b16 %v108, %v108
    %v111 = vpack.c.b16 %v109, %v109
    %vm114 = vcmask 257024
    %115 = vst.msk [vmem:[%s5] sm:$0xf] %vm114, %v110
    %116 = vst.msk [vmem:[%s5 + $0x4] sm:$0xf] %vm114, %v111
    %v117 = vld [vmem:[%s3] sm:$0xf]
    %v118 = vld [vmem:[%s3 + $0x4] sm:$0xf]
    %v119 = vld [vmem:[%s3 + $0x8] sm:$0xf]
    %v120 = vld [vmem:[%s3 + $0xc] sm:$0xf]
    %v121 = vld [vmem:[#allocation2] sm:$0x1]
    %v123 = vlaneseq
    %v124 = vshrl.u32 %v123, 7
    %v125 = vsub.s32 0, %v124
    %v126 = vrot.slane %v121, %v125
    %v132 = vunpack.c.l.b16 %v117
    %v133 = vunpack.c.l.b16 %v118
    %v134 = vunpack.c.l.b16 %v119
    %v135 = vunpack.c.l.b16 %v120
    %v136 = vpack.c.b16 %v133, %v132
    %v137 = vpack.c.b16 %v135, %v134
    %140 = vmatprep.subr.bf16.mxu0 0
    %141 = vmatpush1.bf16.msra.mxu0 %v136
    %142 = vmatprep.subr.bf16.mxu0 0
    %143 = vmatpush1.bf16.msra.mxu0 %v137
    %144 = vmatprep.subr.bf16.mxu0 0
    %145 = vmatpush1.bf16.msra.mxu0 0
    %146 = vmatprep.subr.bf16.mxu0 0
    %147 = vmatpush1.bf16.msra.mxu0 0
    %148 = vmatprep.subr.bf16.mxu0 0
    %149 = vmatpush1.bf16.msra.mxu0 0
    %150 = vmatprep.subr.bf16.mxu0 0
    %151 = vmatpush1.bf16.msra.mxu0 0
    %152 = vmatprep.subr.bf16.mxu0 0
    %153 = vmatpush1.bf16.msra.mxu0 0
    %154 = vmatprep.subr.bf16.mxu0 0
    %155 = vmatpush1.bf16.msra.mxu0 0
    %156 = vmatprep.subr.bf16.mxu0 0
    %157 = vmatpush1.bf16.msra.mxu0 0
    %158 = vmatprep.subr.bf16.mxu0 0
    %159 = vmatpush1.bf16.msra.mxu0 0
    %160 = vmatprep.subr.bf16.mxu0 0
    %161 = vmatpush1.bf16.msra.mxu0 0
    %162 = vmatprep.subr.bf16.mxu0 0
    %163 = vmatpush1.bf16.msra.mxu0 0
    %164 = vmatprep.subr.bf16.mxu0 0
    %165 = vmatpush1.bf16.msra.mxu0 0
    %166 = vmatprep.subr.bf16.mxu0 0
    %167 = vmatpush1.bf16.msra.mxu0 0
    %168 = vmatprep.subr.bf16.mxu0 0
    %169 = vmatpush1.bf16.msra.mxu0 0
    %170 = vmatprep.subr.bf16.mxu0 0
    %171 = vmatpush1.bf16.msra.mxu0 0
    %172 = vmatprep.mubr.bf16.mxu0 0
    %173 = vmatmul.mubr.bf16.gmra.mrb[0].mxu0 %v63
    %v174 = vpop.f32.mrb[0].mxu0
    %v175 = vadd.f32 %v126, %v174
    %v176 = vpop.f32.mrb[0].mxu0
    %v177 = vpop.f32.mrb[0].mxu0
    %v178 = vadd.f32 %v126, %v177
    %v179 = vpop.f32.mrb[0].mxu0
    %180 = vdwg.mxu0
    %v181 = vpack.c.bf16 %v178, %v175
    %v183 = vunpack.c.l.b16 %v181
    %v184 = vunpack.c.h.b16 %v181
    %v185 = vpack.c.b16 %v183, %v183
    %v186 = vpack.c.b16 %v184, %v184
    %189 = vst.msk [vmem:[%s6] sm:$0xf] %vm114, %v185
    %190 = vst.msk [vmem:[%s6 + $0x4] sm:$0xf] %vm114, %v186
    // Predicated region
    $region26: #{decoder_forward.16} parent=1 // pred_check
      _
    $region27: #{decoder_forward.16} parent=1 // pred_check_branch
      %192 = sbr.rel (0) target = $region29
    $region28: #{decoder_forward.16} parent=1 // pred_region
      _
    $region29: #{decoder_forward.16} parent=1 // pred_fallthru
      _
    // Predicated region
    $region30: #{decoder_forward.16} parent=1 // pred_check
      _
    $region31: #{decoder_forward.16} parent=1 // pred_check_branch
      %194 = sbr.rel (0) target = $region33
    $region32: #{decoder_forward.16} parent=1 // pred_region
      _
    $region33: #{decoder_forward.16} parent=1 // pred_fallthru
      _
    // Predicated region
    $region34: #{decoder_forward.16} parent=1 // pred_check
      _
    $region35: #{decoder_forward.16} parent=1 // pred_check_branch
      %196 = sbr.rel (0) target = $region37
    $region36: #{decoder_forward.16} parent=1 // pred_region
      _
    $region37: #{decoder_forward.16} parent=1 // pred_fallthru
      _
    // Predicated region
    $region38: #{decoder_forward.16} parent=1 // pred_check
      _
    $region39: #{decoder_forward.16} parent=1 // pred_check_branch
      %198 = sbr.rel (0) target = $region41
    $region40: #{decoder_forward.16} parent=1 // pred_region
      _
    $region41: #{decoder_forward.16} parent=1 // pred_fallthru
      _
    %199 = vsyncpa [#allocation3], 1

// kernel: decoder_forward.22
$region0: #{decoder_forward.22}
  #allocation0 [shape = 'u32[]', space=smem, size = 0x4, offset = 0x4, fixed_abs, tag = 'smem constant byte address 0x4 - core index']
  #allocation1 [shape = 'u32[144,128]{1,0:T(1,128)}', space=vmem, size = 0x12000, scoped, tag = 'internal scratch']
  %s0 = inlined_call_operand.vmem [shape: f32[16,32], index: 0, kind: input, shape index: {}]
  %s1 = inlined_call_operand.vmem [shape: bf16[32,32], index: 1, kind: input, shape index: {}]
  %s2 = inlined_call_operand.vmem [shape: f32[1,32], index: 2, kind: input, shape index: {}]
  %s3 = inlined_call_operand.vmem [shape: bf16[32,32], index: 3, kind: input, shape index: {}]
  %s4 = inlined_call_operand.vmem [shape: f32[1,32], index: 4, kind: input, shape index: {}]
  %s5 = inlined_call_operand.vmem [shape: bf16[16,32], index: 5, kind: output, shape index: {0}]
  %s6 = inlined_call_operand.vmem [shape: bf16[16,32], index: 6, kind: output, shape index: {1}]
  %7 = xla_tuple %s5, %s6
  %s8 = sld [smem:[#allocation0]]
  $region38: #{decoder_forward.22} parent=0
    _
  %s10 = ssub.s32 1, %s8
  %s11 = scalar_select 0, %s10, %s8
  // Predicated region
  $region2: #{decoder_forward.22} parent=0 // pred_check
    _
  $region3: #{decoder_forward.22} parent=0 // pred_check_branch
    %13 = sbr.rel (0) target = $region5
  $region4: #{decoder_forward.22} parent=0 // pred_region
    _
  $region5: #{decoder_forward.22} parent=0 // pred_fallthru
    _
  // Predicated region
  $region6: #{decoder_forward.22} parent=0 // pred_check
    _
  $region7: #{decoder_forward.22} parent=0 // pred_check_branch
    %15 = sbr.rel (0) target = $region9
  $region8: #{decoder_forward.22} parent=0 // pred_region
    _
  $region9: #{decoder_forward.22} parent=0 // pred_fallthru
    _
  // Predicated region
  $region10: #{decoder_forward.22} parent=0 // pred_check
    _
  $region11: #{decoder_forward.22} parent=0 // pred_check_branch
    %17 = sbr.rel (0) target = $region13
  $region12: #{decoder_forward.22} parent=0 // pred_region
    _
  $region13: #{decoder_forward.22} parent=0 // pred_fallthru
    _
  // Predicated region
  $region14: #{decoder_forward.22} parent=0 // pred_check
    _
  $region15: #{decoder_forward.22} parent=0 // pred_check_branch
    %19 = sbr.rel (0) target = $region17
  $region16: #{decoder_forward.22} parent=0 // pred_region
    _
  $region17: #{decoder_forward.22} parent=0 // pred_fallthru
    _
  // Predicated region
  $region18: #{decoder_forward.22} parent=0 // pred_check
    _
  $region19: #{decoder_forward.22} parent=0 // pred_check_branch
    %21 = sbr.rel (0) target = $region21
  $region20: #{decoder_forward.22} parent=0 // pred_region
    _
  $region21: #{decoder_forward.22} parent=0 // pred_fallthru
    _
  %v23 = vld [vmem:[%s0] sm:$0xff]
  %v24 = vld [vmem:[%s0 + $0x8] sm:$0xff]
  %v25 = vpack.c.bf16 %v24, %v23
  %v26 = vld [vmem:[%s1] sm:$0xf]
  %v27 = vld [vmem:[%s1 + $0x4] sm:$0xf]
  %v28 = vld [vmem:[%s1 + $0x8] sm:$0xf]
  %v29 = vld [vmem:[%s1 + $0xc] sm:$0xf]
  %v30 = vld [vmem:[%s2] sm:$0x1]
  %v32 = vlaneseq
  %v33 = vshrl.u32 %v32, 7
  %v34 = vsub.s32 0, %v33
  %v35 = vrot.slane %v30, %v34
  %v41 = vunpack.c.l.b16 %v26
  %v42 = vunpack.c.l.b16 %v27
  %v43 = vunpack.c.l.b16 %v28
  %v44 = vunpack.c.l.b16 %v29
  %v45 = vpack.c.b16 %v42, %v41
  %v46 = vpack.c.b16 %v44, %v43
  %vm49 = vcmask 261120
  %v51 = vsel %vm49, %v25, 0
  %53 = vmatprep.subr.bf16.mxu0 0
  %54 = vmatpush1.bf16.msra.mxu0 %v45
  %55 = vmatprep.subr.bf16.mxu0 0
  %56 = vmatpush1.bf16.msra.mxu0 %v46
  %57 = vmatprep.subr.bf16.mxu0 0
  %58 = vmatpush1.bf16.msra.mxu0 0
  %59 = vmatprep.subr.bf16.mxu0 0
  %60 = vmatpush1.bf16.msra.mxu0 0
  %61 = vmatprep.subr.bf16.mxu0 0
  %62 = vmatpush1.bf16.msra.mxu0 0
  %63 = vmatprep.subr.bf16.mxu0 0
  %64 = vmatpush1.bf16.msra.mxu0 0
  %65 = vmatprep.subr.bf16.mxu0 0
  %66 = vmatpush1.bf16.msra.mxu0 0
  %67 = vmatprep.subr.bf16.mxu0 0
  %68 = vmatpush1.bf16.msra.mxu0 0
  %69 = vmatprep.subr.bf16.mxu0 0
  %70 = vmatpush1.bf16.msra.mxu0 0
  %71 = vmatprep.subr.bf16.mxu0 0
  %72 = vmatpush1.bf16.msra.mxu0 0
  %73 = vmatprep.subr.bf16.mxu0 0
  %74 = vmatpush1.bf16.msra.mxu0 0
  %75 = vmatprep.subr.bf16.mxu0 0
  %76 = vmatpush1.bf16.msra.mxu0 0
  %77 = vmatprep.subr.bf16.mxu0 0
  %78 = vmatpush1.bf16.msra.mxu0 0
  %79 = vmatprep.subr.bf16.mxu0 0
  %80 = vmatpush1.bf16.msra.mxu0 0
  %81 = vmatprep.subr.bf16.mxu0 0
  %82 = vmatpush1.bf16.msra.mxu0 0
  %83 = vmatprep.subr.bf16.mxu0 0
  %84 = vmatpush1.bf16.msra.mxu0 0
  %85 = vmatprep.mubr.bf16.mxu0 0
  %86 = vmatmul.mubr.bf16.gmra.mrb[0].mxu0 %v51
  %v87 = vpop.f32.mrb[0].mxu0
  %v88 = vadd.f32 %v35, %v87
  %v89 = vpop.f32.mrb[0].mxu0
  %v90 = vpop.f32.mrb[0].mxu0
  %v91 = vadd.f32 %v35, %v90
  %v92 = vpop.f32.mrb[0].mxu0
  %93 = vdwg.mxu0
  %v94 = vpack.c.bf16 %v91, %v88
  %v96 = vunpack.c.l.b16 %v94
  %v97 = vunpack.c.h.b16 %v94
  %v98 = vpack.c.b16 %v96, %v96
  %v99 = vpack.c.b16 %v97, %v97
  %vm102 = vcmask 257024
  %103 = vst.msk [vmem:[%s5] sm:$0xf] %vm102, %v98
  %104 = vst.msk [vmem:[%s5 + $0x4] sm:$0xf] %vm102, %v99
  %v105 = vld [vmem:[%s3] sm:$0xf]
  %v106 = vld [vmem:[%s3 + $0x4] sm:$0xf]
  %v107 = vld [vmem:[%s3 + $0x8] sm:$0xf]
  %v108 = vld [vmem:[%s3 + $0xc] sm:$0xf]
  %v109 = vld [vmem:[%s4] sm:$0x1]
  %v111 = vlaneseq
  %v112 = vshrl.u32 %v111, 7
  %v113 = vsub.s32 0, %v112
  %v114 = vrot.slane %v109, %v113
  %v120 = vunpack.c.l.b16 %v105
  %v121 = vunpack.c.l.b16 %v106
  %v122 = vunpack.c.l.b16 %v107
  %v123 = vunpack.c.l.b16 %v108
  %v124 = vpack.c.b16 %v121, %v120
  %v125 = vpack.c.b16 %v123, %v122
  %128 = vmatprep.subr.bf16.mxu0 0
  %129 = vmatpush1.bf16.msra.mxu0 %v124
  %130 = vmatprep.subr.bf16.mxu0 0
  %131 = vmatpush1.bf16.msra.mxu0 %v125
  %132 = vmatprep.subr.bf16.mxu0 0
  %133 = vmatpush1.bf16.msra.mxu0 0
  %134 = vmatprep.subr.bf16.mxu0 0
  %135 = vmatpush1.bf16.msra.mxu0 0
  %136 = vmatprep.subr.bf16.mxu0 0
  %137 = vmatpush1.bf16.msra.mxu0 0
  %138 = vmatprep.subr.bf16.mxu0 0
  %139 = vmatpush1.bf16.msra.mxu0 0
  %140 = vmatprep.subr.bf16.mxu0 0
  %141 = vmatpush1.bf16.msra.mxu0 0
  %142 = vmatprep.subr.bf16.mxu0 0
  %143 = vmatpush1.bf16.msra.mxu0 0
  %144 = vmatprep.subr.bf16.mxu0 0
  %145 = vmatpush1.bf16.msra.mxu0 0
  %146 = vmatprep.subr.bf16.mxu0 0
  %147 = vmatpush1.bf16.msra.mxu0 0
  %148 = vmatprep.subr.bf16.mxu0 0
  %149 = vmatpush1.bf16.msra.mxu0 0
  %150 = vmatprep.subr.bf16.mxu0 0
  %151 = vmatpush1.bf16.msra.mxu0 0
  %152 = vmatprep.subr.bf16.mxu0 0
  %153 = vmatpush1.bf16.msra.mxu0 0
  %154 = vmatprep.subr.bf16.mxu0 0
  %155 = vmatpush1.bf16.msra.mxu0 0
  %156 = vmatprep.subr.bf16.mxu0 0
  %157 = vmatpush1.bf16.msra.mxu0 0
  %158 = vmatprep.subr.bf16.mxu0 0
  %159 = vmatpush1.bf16.msra.mxu0 0
  %160 = vmatprep.mubr.bf16.mxu0 0
  %161 = vmatmul.mubr.bf16.gmra.mrb[0].mxu0 %v51
  %v162 = vpop.f32.mrb[0].mxu0
  %v163 = vadd.f32 %v114, %v162
  %v164 = vpop.f32.mrb[0].mxu0
  %v165 = vpop.f32.mrb[0].mxu0
  %v166 = vadd.f32 %v114, %v165
  %v167 = vpop.f32.mrb[0].mxu0
  %168 = vdwg.mxu0
  %v169 = vpack.c.bf16 %v166, %v163
  %v171 = vunpack.c.l.b16 %v169
  %v172 = vunpack.c.h.b16 %v169
  %v173 = vpack.c.b16 %v171, %v171
  %v174 = vpack.c.b16 %v172, %v172
  %177 = vst.msk [vmem:[%s6] sm:$0xf] %vm102, %v173
  %178 = vst.msk [vmem:[%s6 + $0x4] sm:$0xf] %vm102, %v174
  // Predicated region
  $region22: #{decoder_forward.22} parent=0 // pred_check
    _
  $region23: #{decoder_forward.22} parent=0 // pred_check_branch
    %180 = sbr.rel (0) target = $region25
  $region24: #{decoder_forward.22} parent=0 // pred_region
    _
  $region25: #{decoder_forward.22} parent=0 // pred_fallthru
    _
  // Predicated region
  $region26: #{decoder_forward.22} parent=0 // pred_check
    _
  $region27: #{decoder_forward.22} parent=0 // pred_check_branch
    %182 = sbr.rel (0) target = $region29
  $region28: #{decoder_forward.22} parent=0 // pred_region
    _
  $region29: #{decoder_forward.22} parent=0 // pred_fallthru
    _
  // Predicated region
  $region30: #{decoder_forward.22} parent=0 // pred_check
    _
  $region31: #{decoder_forward.22} parent=0 // pred_check_branch
    %184 = sbr.rel (0) target = $region33
  $region32: #{decoder_forward.22} parent=0 // pred_region
    _
  $region33: #{decoder_forward.22} parent=0 // pred_fallthru
    _
  // Predicated region
  $region34: #{decoder_forward.22} parent=0 // pred_check
    _
  $region35: #{decoder_forward.22} parent=0 // pred_check_branch
    %186 = sbr.rel (0) target = $region37
  $region36: #{decoder_forward.22} parent=0 // pred_region
    _
  $region37: #{decoder_forward.22} parent=0 // pred_fallthru
    _

// kernel: decoder_forward.14
$region0: #{decoder_forward.14}
  #allocation0 [shape = 'u32[]', space=smem, size = 0x4, offset = 0x4, fixed_abs, tag = 'smem constant byte address 0x4 - core index']
  #allocation1 [shape = 'u32[144,128]{1,0:T(1,128)}', space=vmem, size = 0x12000, scoped, tag = 'internal scratch']
  %s0 = inlined_call_operand.vmem [shape: bf16[2,4,8,8], index: 0, kind: input, shape index: {}]
  %s1 = inlined_call_operand.vmem [shape: bf16[2,4,8,8], index: 1, kind: input, shape index: {}]
  %s2 = inlined_call_operand.vmem [shape: bf16[2,4,8,8], index: 2, kind: input, shape index: {}]
  %s3 = inlined_call_operand.vmem [shape: f32[8,8], index: 3, kind: input, shape index: {}]
  %s4 = inlined_call_operand.vmem [shape: bf16[4,8,32], index: 4, kind: input, shape index: {}]
  %s5 = inlined_call_operand.vmem [shape: f32[1,32], index: 5, kind: input, shape index: {}]
  %s6 = inlined_call_operand.vmem [shape: f32[2,8,32], index: 6, kind: input, shape index: {}]
  %s7 = inlined_call_operand.vmem [shape: f32[2,8,32], index: 7, kind: output, shape index: {0}]
  %s8 = inlined_call_operand.hbm [shape: f32[2,4,8,8], index: 8, kind: output, shape index: {1}]
  %9 = xla_tuple %s7, %s8
  %s10 = sld [smem:[#allocation0]]
  $region69: #{decoder_forward.14} parent=0
    _
  %s12 = ssub.s32 1, %s10
  %s13 = scalar_select 0, %s12, %s10
  $region1: #{decoder_forward.14} parent=0
    #allocation2 [shape = 'u8[32768]{0}', space=vmem, size = 0x8000, scoped, tag = 'output window, operand 1']
    #allocation3 [shape = 's32[2]{0}', space=sflag, size = 0x8, scoped, tag = 'scoped memory for decoder_forward.14']
    %14 = vsyncpa [#allocation3], 0
    %s15 = scalar_lea.sflag [#allocation3], 1
    %16 = vsyncpa %s15, 0
    loop: start=0, step=1, limit=4
    $region2: #{decoder_forward.14} parent=1 // loop_pre_header
      _
    $region3: #{decoder_forward.14} parent=1 // loop_header
      %s18 = sphi 0, %s22
      %p19 = scmp.ge.s32.totalorder %s18, 4
      %s25 = sphi 0, %s37
      %s26 = sphi 0, %s33
      %s27 = sphi 0, %s25
      %s28 = sphi 0, %s26
      %s29 = sphi 0, %s27
      %s30 = sphi 0, %s28
      %s42 = sphi 0, %s44
      %s45 = sphi 0, %s42
      %s46 = sphi 0, %s45
      %s62 = sphi 0, %s46
      %s68 = sphi 0, %s70
      %s71 = sphi 0, %s68
      %s72 = sphi 0, %s71
      %s88 = sphi 0, %s72
      %s94 = sphi 0, %s96
      %s97 = sphi 0, %s94
      %s98 = sphi 0, %s97
      %s114 = sphi 0, %s98
      %s120 = sphi 0, %s122
      %s123 = sphi 0, %s120
      %s124 = sphi 0, %s123
      %s140 = sphi 0, %s124
      %s144 = sphi 0, %s144
      %s146 = sphi 0, %s144
      %s147 = sphi 0, %s146
      %s161 = sphi 0, %s147
      %s165 = sphi 0, %s165
      %s167 = sphi 0, %s165
      %s168 = sphi 0, %s167
      %s182 = sphi 0, %s168
      %s190 = sphi 0, %s192
      %s193 = sphi 0, %s190
      %s194 = sphi 0, %s193
      %s210 = sphi 0, %s194
      %s218 = sphi 0, %s220
      %s221 = sphi 0, %s218
      %s222 = sphi 0, %s221
      %s238 = sphi 0, %s222
      %s246 = sphi 0, %s248
      %s249 = sphi 0, %s246
      %s250 = sphi 0, %s249
      %s266 = sphi 0, %s250
    $region4: #{decoder_forward.14} parent=1 // loop_header_branch
      %21 = sbr.rel (%p19) target = $region8
    $region5: #{decoder_forward.14} parent=1 // loop_body
      %s23 = ssub.s32 %s18, 1
      %s24 = ssub.s32 %s18, 2
      %s31 = sadd.s32 1, %s26
      %p32 = scmp.ge.s32.totalorder %s31, 1
      %s33 = scalar_select %p32, 0, %s31
      %s34 = sadd.s32 1, %s25
      %s35 = scalar_select %p32, %s34, %s25
      %p36 = scmp.ge.s32.totalorder %s35, 2
      %s37 = scalar_select %p36, 0, %s35
      %s38 = ssub.s32 %s25, %s37
      %s39 = ssub.s32 %s26, %s33
      %s40 = sor.u32 %s38, %s39
      %p41 = scmp.eq.s32.totalorder %s40, 0
      %s43 = sadd.s32 %s42, 1
      %s44 = scalar_select %p41, %s42, %s43
      %p47 = pneg %p41
      %p48 = scmp.eq.s32.totalorder %s18, 1
      %p49 = por %p47, %p48
      %p50 = scmp.ne.s32.totalorder %s42, %s45
      %p51 = scmp.eq.s32.totalorder %s18, 0
      %p52 = por %p50, %p51
      %p53 = scmp.ne.s32.totalorder %s42, %s45
      %p54 = scmp.eq.s32.totalorder %s23, 1
      %p55 = por %p53, %p54
      %p56 = scmp.ne.s32.totalorder %s45, %s46
      %p57 = scmp.eq.s32.totalorder %s23, 0
      %p58 = por %p56, %p57
      %p59 = scmp.ne.s32.totalorder %s45, %s46
      %p60 = scmp.eq.s32.totalorder %s24, 1
      %p61 = por %p59, %p60
      %p63 = scmp.ne.s32.totalorder %s46, %s62
      %p64 = scmp.eq.s32.totalorder %s24, 0
      %p65 = por %p63, %p64
      %s66 = ssub.s32 %s25, %s37
      %p67 = scmp.eq.s32.totalorder %s66, 0
      %s69 = sadd.s32 %s68, 1
      %s70 = scalar_select %p67, %s68, %s69
      %p73 = pneg %p67
      %p74 = scmp.eq.s32.totalorder %s18, 1
      %p75 = por %p73, %p74
      %p76 = scmp.ne.s32.totalorder %s68, %s71
      %p77 = scmp.eq.s32.totalorder %s18, 0
      %p78 = por %p76, %p77
      %p79 = scmp.ne.s32.totalorder %s68, %s71
      %p80 = scmp.eq.s32.totalorder %s23, 1
      %p81 = por %p79, %p80
      %p82 = scmp.ne.s32.totalorder %s71, %s72
      %p83 = scmp.eq.s32.totalorder %s23, 0
      %p84 = por %p82, %p83
      %p85 = scmp.ne.s32.totalorder %s71, %s72
      %p86 = scmp.eq.s32.totalorder %s24, 1
      %p87 = por %p85, %p86
      %p89 = scmp.ne.s32.totalorder %s72, %s88
      %p90 = scmp.eq.s32.totalorder %s24, 0
      %p91 = por %p89, %p90
      %s92 = ssub.s32 %s25, %s37
      %p93 = scmp.eq.s32.totalorder %s92, 0
      %s95 = sadd.s32 %s94, 1
      %s96 = scalar_select %p93, %s94, %s95
      %p99 = pneg %p93
      %p100 = scmp.eq.s32.totalorder %s18, 1
      %p101 = por %p99, %p100
      %p102 = scmp.ne.s32.totalorder %s94, %s97
      %p103 = scmp.eq.s32.totalorder %s18, 0
      %p104 = por %p102, %p103
      %p105 = scmp.ne.s32.totalorder %s94, %s97
      %p106 = scmp.eq.s32.totalorder %s23, 1
      %p107 = por %p105, %p106
      %p108 = scmp.ne.s32.totalorder %s97, %s98
      %p109 = scmp.eq.s32.totalorder %s23, 0
      %p110 = por %p108, %p109
      %p111 = scmp.ne.s32.totalorder %s97, %s98
      %p112 = scmp.eq.s32.totalorder %s24, 1
      %p113 = por %p111, %p112
      %p115 = scmp.ne.s32.totalorder %s98, %s114
      %p116 = scmp.eq.s32.totalorder %s24, 0
      %p117 = por %p115, %p116
      %s118 = ssub.s32 %s26, %s33
      %p119 = scmp.eq.s32.totalorder %s118, 0
      %s121 = sadd.s32 %s120, 1
      %s122 = scalar_select %p119, %s120, %s121
      %p125 = pneg %p119
      %p126 = scmp.eq.s32.totalorder %s18, 1
      %p127 = por %p125, %p126
      %p128 = scmp.ne.s32.totalorder %s120, %s123
      %p129 = scmp.eq.s32.totalorder %s18, 0
      %p130 = por %p128, %p129
      %p131 = scmp.ne.s32.totalorder %s120, %s123
      %p132 = scmp.eq.s32.totalorder %s23, 1
      %p133 = por %p131, %p132
      %p134 = scmp.ne.s32.totalorder %s123, %s124
      %p135 = scmp.eq.s32.totalorder %s23, 0
      %p136 = por %p134, %p135
      %p137 = scmp.ne.s32.totalorder %s123, %s124
      %p138 = scmp.eq.s32.totalorder %s24, 1
      %p139 = por %p137, %p138
      %p141 = scmp.ne.s32.totalorder %s124, %s140
      %p142 = scmp.eq.s32.totalorder %s24, 0
      %p143 = por %p141, %p142
      %s145 = sadd.s32 %s144, 1
      %p148 = scmp.eq.s32.totalorder %s18, 1
      %p149 = scmp.ne.s32.totalorder %s144, %s146
      %p150 = scmp.eq.s32.totalorder %s18, 0
      %p151 = por %p149, %p150
      %p152 = scmp.ne.s32.totalorder %s144, %s146
      %p153 = scmp.eq.s32.totalorder %s23, 1
      %p154 = por %p152, %p153
      %p155 = scmp.ne.s32.totalorder %s146, %s147
      %p156 = scmp.eq.s32.totalorder %s23, 0
      %p157 = por %p155, %p156
      %p158 = scmp.ne.s32.totalorder %s146, %s147
      %p159 = scmp.eq.s32.totalorder %s24, 1
      %p160 = por %p158, %p159
      %p162 = scmp.ne.s32.totalorder %s147, %s161
      %p163 = scmp.eq.s32.totalorder %s24, 0
      %p164 = por %p162, %p163
      %s166 = sadd.s32 %s165, 1
      %p169 = scmp.eq.s32.totalorder %s18, 1
      %p170 = scmp.ne.s32.totalorder %s165, %s167
      %p171 = scmp.eq.s32.totalorder %s18, 0
      %p172 = por %p170, %p171
      %p173 = scmp.ne.s32.totalorder %s165, %s167
      %p174 = scmp.eq.s32.totalorder %s23, 1
      %p175 = por %p173, %p174
      %p176 = scmp.ne.s32.totalorder %s167, %s168
      %p177 = scmp.eq.s32.totalorder %s23, 0
      %p178 = por %p176, %p177
      %p179 = scmp.ne.s32.totalorder %s167, %s168
      %p180 = scmp.eq.s32.totalorder %s24, 1
      %p181 = por %p179, %p180
      %p183 = scmp.ne.s32.totalorder %s168, %s182
      %p184 = scmp.eq.s32.totalorder %s24, 0
      %p185 = por %p183, %p184
      %s186 = ssub.s32 %s25, %s37
      %s187 = ssub.s32 %s26, %s33
      %s188 = sor.u32 %s186, %s187
      %p189 = scmp.eq.s32.totalorder %s188, 0
      %s191 = sadd.s32 %s190, 1
      %s192 = scalar_select %p189, %s190, %s191
      %p195 = pneg %p189
      %p196 = scmp.eq.s32.totalorder %s18, 1
      %p197 = por %p195, %p196
      %p198 = scmp.ne.s32.totalorder %s190, %s193
      %p199 = scmp.eq.s32.totalorder %s18, 0
      %p200 = por %p198, %p199
      %p201 = scmp.ne.s32.totalorder %s190, %s193
      %p202 = scmp.eq.s32.totalorder %s23, 1
      %p203 = por %p201, %p202
      %p204 = scmp.ne.s32.totalorder %s193, %s194
      %p205 = scmp.eq.s32.totalorder %s23, 0
      %p206 = por %p204, %p205
      %p207 = scmp.ne.s32.totalorder %s193, %s194
      %p208 = scmp.eq.s32.totalorder %s24, 1
      %p209 = por %p207, %p208
      %p211 = scmp.ne.s32.totalorder %s194, %s210
      %p212 = scmp.eq.s32.totalorder %s24, 0
      %p213 = por %p211, %p212
      %s214 = ssub.s32 %s25, %s37
      %s215 = ssub.s32 %s26, %s33
      %s216 = sor.u32 %s214, %s215
      %p217 = scmp.eq.s32.totalorder %s216, 0
      %s219 = sadd.s32 %s218, 1
      %s220 = scalar_select %p217, %s218, %s219
      %p223 = pneg %p217
      %p224 = scmp.eq.s32.totalorder %s18, 1
      %p225 = por %p223, %p224
      %p226 = scmp.ne.s32.totalorder %s218, %s221
      %p227 = scmp.eq.s32.totalorder %s18, 0
      %p228 = por %p226, %p227
      %p229 = scmp.ne.s32.totalorder %s218, %s221
      %p230 = scmp.eq.s32.totalorder %s23, 1
      %p231 = por %p229, %p230
      %p232 = scmp.ne.s32.totalorder %s221, %s222
      %p233 = scmp.eq.s32.totalorder %s23, 0
      %p234 = por %p232, %p233
      %p235 = scmp.ne.s32.totalorder %s221, %s222
      %p236 = scmp.eq.s32.totalorder %s24, 1
      %p237 = por %p235, %p236
      %p239 = scmp.ne.s32.totalorder %s222, %s238
      %p240 = scmp.eq.s32.totalorder %s24, 0
      %p241 = por %p239, %p240
      %s242 = ssub.s32 %s25, %s37
      %s243 = ssub.s32 %s26, %s33
      %s244 = sor.u32 %s242, %s243
      %p245 = scmp.eq.s32.totalorder %s244, 0
      %s247 = sadd.s32 %s246, 1
      %s248 = scalar_select %p245, %s246, %s247
      %p251 = pneg %p245
      %p252 = scmp.eq.s32.totalorder %s18, 1
      %p253 = por %p251, %p252
      %p254 = scmp.ne.s32.totalorder %s246, %s249
      %p255 = scmp.eq.s32.totalorder %s18, 0
      %p256 = por %p254, %p255
      %p257 = scmp.ne.s32.totalorder %s246, %s249
      %p258 = scmp.eq.s32.totalorder %s23, 1
      %p259 = por %p257, %p258
      %p260 = scmp.ne.s32.totalorder %s249, %s250
      %p261 = scmp.eq.s32.totalorder %s23, 0
      %p262 = por %p260, %p261
      %p263 = scmp.ne.s32.totalorder %s249, %s250
      %p264 = scmp.eq.s32.totalorder %s24, 1
      %p265 = por %p263, %p264
      %p267 = scmp.ne.s32.totalorder %s250, %s266
      %p268 = scmp.eq.s32.totalorder %s24, 0
      %p269 = por %p267, %p268
      %p270 = scmp.le.s32.totalorder 1, %s18
      %p271 = scmp.lt.s32.totalorder %s18, 3
      %p272 = pnand %p270, %p271
      %p273 = pneg %p272
      // Predicated region
      $region9: #{decoder_forward.14} parent=5 // pred_check
        _
      $region10: #{decoder_forward.14} parent=5 // pred_check_branch
        %275 = sbr.rel (%p272) target = $region12
      $region11: #{decoder_forward.14} parent=5 // pred_region
        %s276 = ssub.s32 %s18, 1
        // Predicated region
        $region13: #{decoder_forward.14} parent=11 // pred_check
          %p277 = pneg %p136
        $region14: #{decoder_forward.14} parent=11 // pred_check_branch
          %279 = sbr.rel (%p277) target = $region16
        $region15: #{decoder_forward.14} parent=11 // pred_region
          %p280 = scmp.lt.s32.totalorder %s28, 0
          %s281 = scalar_select %p280, %s28, 0
          %s282 = smul.addr %s281, 8
          %s283 = scalar_lea.vmem %s3, %s282
        $region16: #{decoder_forward.14} parent=11 // pred_fallthru
          _
        // Predicated region
        $region17: #{decoder_forward.14} parent=11 // pred_check
          %p284 = pneg %p157
        $region18: #{decoder_forward.14} parent=11 // pred_check_branch
          %286 = sbr.rel (%p284) target = $region20
        $region19: #{decoder_forward.14} parent=11 // pred_region
          _
        $region20: #{decoder_forward.14} parent=11 // pred_fallthru
          _
        // Predicated region
        $region21: #{decoder_forward.14} parent=11 // pred_check
          %p287 = pneg %p178
        $region22: #{decoder_forward.14} parent=11 // pred_check_branch
          %289 = sbr.rel (%p287) target = $region24
        $region23: #{decoder_forward.14} parent=11 // pred_region
          _
        $region24: #{decoder_forward.14} parent=11 // pred_fallthru
          _
      $region12: #{decoder_forward.14} parent=5 // pred_fallthru
        _
      %p290 = scmp.lt.s32.totalorder %s18, 2
      // Predicated region
      $region25: #{decoder_forward.14} parent=5 // pred_check
        %p291 = pneg %p290
      $region26: #{decoder_forward.14} parent=5 // pred_check_branch
        %293 = sbr.rel (%p291) target = $region28
      $region27: #{decoder_forward.14} parent=5 // pred_region
        // Predicated region
        $region29: #{decoder_forward.14} parent=27 // pred_check
          %p294 = pneg %p52
        $region30: #{decoder_forward.14} parent=27 // pred_check_branch
          %296 = sbr.rel (%p294) target = $region32
        $region31: #{decoder_forward.14} parent=27 // pred_region
          %p297 = scmp.lt.s32.totalorder %s25, 1
          %s298 = scalar_select %p297, %s25, 1
          %p299 = scmp.lt.s32.totalorder %s26, 0
          %s300 = scalar_select %p299, %s26, 0
          %s301 = smul.addr %s298, 4
          %s302 = sadd.s32 %s300, %s301
          %s303 = smul.addr %s302, 4
          %s304 = scalar_lea.vmem %s0, %s303
        $region32: #{decoder_forward.14} parent=27 // pred_fallthru
          _
        // Predicated region
        $region33: #{decoder_forward.14} parent=27 // pred_check
          %p305 = pneg %p78
        $region34: #{decoder_forward.14} parent=27 // pred_check_branch
          %307 = sbr.rel (%p305) target = $region36
        $region35: #{decoder_forward.14} parent=27 // pred_region
          %p308 = scmp.lt.s32.totalorder %s25, 1
          %s309 = scalar_select %p308, %s25, 1
          %s310 = smul.addr %s309, 4
          %s311 = smul.addr %s310, 4
          %s312 = scalar_lea.vmem %s1, %s311
        $region36: #{decoder_forward.14} parent=27 // pred_fallthru
          _
        // Predicated region
        $region37: #{decoder_forward.14} parent=27 // pred_check
          %p313 = pneg %p104
        $region38: #{decoder_forward.14} parent=27 // pred_check_branch
          %315 = sbr.rel (%p313) target = $region40
        $region39: #{decoder_forward.14} parent=27 // pred_region
          %p316 = scmp.lt.s32.totalorder %s25, 1
          %s317 = scalar_select %p316, %s25, 1
          %s318 = smul.addr %s317, 4
          %s319 = smul.addr %s318, 4
          %s320 = scalar_lea.vmem %s2, %s319
        $region40: #{decoder_forward.14} parent=27 // pred_fallthru
          _
        // Predicated region
        $region41: #{decoder_forward.14} parent=27 // pred_check
          %p321 = pneg %p200
        $region42: #{decoder_forward.14} parent=27 // pred_check_branch
          %323 = sbr.rel (%p321) target = $region44
        $region43: #{decoder_forward.14} parent=27 // pred_region
          %p324 = scmp.lt.s32.totalorder %s25, 1
          %s325 = scalar_select %p324, %s25, 1
          %p326 = scmp.lt.s32.totalorder %s26, 0
          %s327 = scalar_select %p326, %s26, 0
          %s328 = sadd.s32 %s327, %s325
          %s329 = smul.addr %s328, 8
          %s330 = scalar_lea.vmem %s6, %s329
        $region44: #{decoder_forward.14} parent=27 // pred_fallthru
          _
      $region28: #{decoder_forward.14} parent=5 // pred_fallthru
        _
      %p331 = scmp.le.s32.totalorder 1, %s18
      %p332 = scmp.lt.s32.totalorder %s18, 3
      %p333 = pnand %p331, %p332
      %p334 = pneg %p333
      // Predicated region
      $region45: #{decoder_forward.14} parent=5 // pred_check
        _
      $region46: #{decoder_forward.14} parent=5 // pred_check_branch
        %336 = sbr.rel (%p333) target = $region48
      $region47: #{decoder_forward.14} parent=5 // pred_region
        %s337 = ssub.s32 %s18, 1
        %p338 = scmp.lt.s32.totalorder %s27, 1
        %s339 = scalar_select %p338, %s27, 1
        %p340 = scmp.lt.s32.totalorder %s28, 0
        %s341 = scalar_select %p340, %s28, 0
        %s342 = smul.addr %s339, 4
        %s343 = sadd.s32 %s341, %s342
        %s344 = smul.addr %s343, 4
        %s345 = scalar_lea.vmem %s0, %s344
        %p346 = pneg %p58
        %p347 = pneg %p55
        %p348 = scmp.lt.s32.totalorder %s27, 1
        %s349 = scalar_select %p348, %s27, 1
        %s350 = smul.addr %s349, 4
        %s351 = smul.addr %s350, 4
        %s352 = scalar_lea.vmem %s1, %s351
        %p353 = pneg %p84
        %p354 = pneg %p81
        %p355 = scmp.lt.s32.totalorder %s27, 1
        %s356 = scalar_select %p355, %s27, 1
        %s357 = smul.addr %s356, 4
        %s358 = smul.addr %s357, 4
        %s359 = scalar_lea.vmem %s2, %s358
        %p360 = pneg %p110
        %p361 = pneg %p107
        %p362 = scmp.lt.s32.totalorder %s28, 0
        %s363 = scalar_select %p362, %s28, 0
        %s364 = smul.addr %s363, 8
        %s365 = scalar_lea.vmem %s3, %s364
        %p366 = pneg %p136
        %p367 = pneg %p133
        %p368 = pneg %p157
        %p369 = pneg %p154
        %p370 = pneg %p178
        %p371 = pneg %p175
        %p372 = scmp.lt.s32.totalorder %s27, 1
        %s373 = scalar_select %p372, %s27, 1
        %p374 = scmp.lt.s32.totalorder %s28, 0
        %s375 = scalar_select %p374, %s28, 0
        %s376 = sadd.s32 %s375, %s373
        %s377 = smul.addr %s376, 8
        %s378 = scalar_lea.vmem %s6, %s377
        %p379 = pneg %p206
        %p380 = pneg %p203
        %p381 = pneg %p234
        %p382 = pneg %p231
        %p383 = scmp.lt.s32.totalorder %s27, 1
        %s384 = scalar_select %p383, %s27, 1
        %p385 = scmp.lt.s32.totalorder %s28, 0
        %s386 = scalar_select %p385, %s28, 0
        %s387 = sadd.s32 %s386, %s384
        %s388 = smul.addr %s387, 8
        %s389 = scalar_lea.vmem %s7, %s388
        %p390 = pneg %p262
        %p391 = pneg %p259
        %s392 = sand.u32 %s249, 1
        %s393 = scalar_lea.sflag [#allocation3], %s392
        %s394 = sand.u32 %s249, 1
        %s395 = smul.addr %s394, 32
        %s396 = scalar_lea.vmem [#allocation2], %s395
        %p397 = scmp.lt.s32.totalorder %s27, 1
        %s398 = scalar_select %p397, %s27, 1
        %p399 = scmp.lt.s32.totalorder %s28, 0
        %s400 = scalar_select %p399, %s28, 0
        %s401 = smul.addr %s398, 4
        %s402 = sadd.s32 %s400, %s401
        %s403 = smul.addr %s402, 4
        %s404 = scalar_lea.vmem %s0, %s403
        %p405 = scmp.lt.s32.totalorder %s27, 1
        %s406 = scalar_select %p405, %s27, 1
        %s407 = smul.addr %s406, 4
        %s408 = smul.addr %s407, 4
        %s409 = scalar_lea.vmem %s1, %s408
        %p410 = scmp.lt.s32.totalorder %s27, 1
        %s411 = scalar_select %p410, %s27, 1
        %s412 = smul.addr %s411, 4
        %s413 = smul.addr %s412, 4
        %s414 = scalar_lea.vmem %s2, %s413
        %p415 = scmp.lt.s32.totalorder %s28, 0
        %s416 = scalar_select %p415, %s28, 0
        %s417 = smul.addr %s416, 8
        %s418 = scalar_lea.vmem %s3, %s417
        %p419 = scmp.lt.s32.totalorder %s27, 1
        %s420 = scalar_select %p419, %s27, 1
        %p421 = scmp.lt.s32.totalorder %s28, 0
        %s422 = scalar_select %p421, %s28, 0
        %s423 = sadd.s32 %s422, %s420
        %s424 = smul.addr %s423, 8
        %s425 = scalar_lea.vmem %s6, %s424
        %p426 = scmp.lt.s32.totalorder %s27, 1
        %s427 = scalar_select %p426, %s27, 1
        %p428 = scmp.lt.s32.totalorder %s28, 0
        %s429 = scalar_select %p428, %s28, 0
        %s430 = sadd.s32 %s429, %s427
        %s431 = smul.addr %s430, 8
        %s432 = scalar_lea.vmem %s7, %s431
        %v434 = vld [vmem:[%s404] sm:$0xf]
        %v435 = vld [vmem:[%s404 + $0x4] sm:$0xf]
        %v436 = vld [vmem:[%s404 + $0x8] sm:$0xf]
        %v437 = vld [vmem:[%s404 + $0xc] sm:$0xf]
        %v438 = vunpack.c.l.bf16 %v434
        %v439 = vunpack.c.l.bf16 %v435
        %v440 = vunpack.c.l.bf16 %v436
        %v441 = vunpack.c.l.bf16 %v437
        %v442 = vmul.f32 %v438, 0.35355338
        %v443 = vmul.f32 %v439, 0.35355338
        %v444 = vmul.f32 %v440, 0.35355338
        %v445 = vmul.f32 %v441, 0.35355338
        %v446 = vpack.c.bf16 %v442, %v442
        %v447 = vpack.c.bf16 %v443, %v443
        %v448 = vpack.c.bf16 %v444, %v444
        %v449 = vpack.c.bf16 %v445, %v445
        %v450 = vld [vmem:[%s409] sm:$0xf]
        %v451 = vld [vmem:[%s409 + $0x4] sm:$0xf]
        %v452 = vld [vmem:[%s409 + $0x8] sm:$0xf]
        %v453 = vld [vmem:[%s409 + $0xc] sm:$0xf]
        %v454 = vld [vmem:[%s414] sm:$0xf]
        %v455 = vld [vmem:[%s414 + $0x4] sm:$0xf]
        %v456 = vld [vmem:[%s414 + $0x8] sm:$0xf]
        %v457 = vld [vmem:[%s414 + $0xc] sm:$0xf]
        %v458 = vld [vmem:[%s418] sm:$0xff]
        %vm459 = vcmask 64512
        %v461 = vsel %vm459, %v446, 0
        %v464 = vsel %vm459, %v450, 0
        %466 = vmatprep.subr.bf16.mxu0 0
        %467 = vmatpush1.bf16.xpose.msra.mxu0 %v464
        %468 = vmatprep.subr.bf16.mxu0 0
        %469 = vmatpush1.bf16.xpose.msra.mxu0 0
        %470 = vmatprep.subr.bf16.mxu0 0
        %471 = vmatpush1.bf16.xpose.msra.mxu0 0
        %472 = vmatprep.subr.bf16.mxu0 0
        %473 = vmatpush1.bf16.xpose.msra.mxu0 0
        %474 = vmatprep.subr.bf16.mxu0 0
        %475 = vmatpush1.bf16.xpose.msra.mxu0 0
        %476 = vmatprep.subr.bf16.mxu0 0
        %477 = vmatpush1.bf16.xpose.msra.mxu0 0
        %478 = vmatprep.subr.bf16.mxu0 0
        %479 = vmatpush1.bf16.xpose.msra.mxu0 0
        %480 = vmatprep.subr.bf16.mxu0 0
        %481 = vmatpush1.bf16.xpose.msra.mxu0 0
        %482 = vmatprep.subr.bf16.mxu0 0
        %483 = vmatpush1.bf16.xpose.msra.mxu0 0
        %484 = vmatprep.subr.bf16.mxu0 0
        %485 = vmatpush1.bf16.xpose.msra.mxu0 0
        %486 = vmatprep.subr.bf16.mxu0 0
        %487 = vmatpush1.bf16.xpose.msra.mxu0 0
        %488 = vmatprep.subr.bf16.mxu0 0
        %489 = vmatpush1.bf16.xpose.msra.mxu0 0
        %490 = vmatprep.subr.bf16.mxu0 0
        %491 = vmatpush1.bf16.xpose.msra.mxu0 0
        %492 = vmatprep.subr.bf16.mxu0 0
        %493 = vmatpush1.bf16.xpose.msra.mxu0 0
        %494 = vmatprep.subr.bf16.mxu0 0
        %495 = vmatpush1.bf16.xpose.msra.mxu0 0
        %496 = vmatprep.subr.bf16.mxu0 0
        %497 = vmatpush1.bf16.xpose.msra.mxu0 0
        %498 = vmatprep.mubr.bf16.mxu0 0
        %499 = vmatmul.mubr.bf16.gmra.mrb[0].mxu0 %v461
        %v500 = vpop.f32.mrb[0].mxu0
        %v501 = vadd.f32 %v458, %v500
        %v502 = vpop.f32.mrb[0].mxu0
        %v503 = vpop.f32.mrb[0].mxu0
        %v504 = vpop.f32.mrb[0].mxu0
        %505 = vdwg.mxu0
        %v507 = vsel %vm459, %v447, 0
        %v510 = vsel %vm459, %v451, 0
        %512 = vmatprep.subr.bf16.mxu0 0
        %513 = vmatpush1.bf16.xpose.msra.mxu0 %v510
        %514 = vmatprep.subr.bf16.mxu0 0
        %515 = vmatpush1.bf16.xpose.msra.mxu0 0
        %516 = vmatprep.subr.bf16.mxu0 0
        %517 = vmatpush1.bf16.xpose.msra.mxu0 0
        %518 = vmatprep.subr.bf16.mxu0 0
        %519 = vmatpush1.bf16.xpose.msra.mxu0 0
        %520 = vmatprep.subr.bf16.mxu0 0
        %521 = vmatpush1.bf16.xpose.msra.mxu0 0
        %522 = vmatprep.subr.bf16.mxu0 0
        %523 = vmatpush1.bf16.xpose.msra.mxu0 0
        %524 = vmatprep.subr.bf16.mxu0 0
        %525 = vmatpush1.bf16.xpose.msra.mxu0 0
        %526 = vmatprep.subr.bf16.mxu0 0
        %527 = vmatpush1.bf16.xpose.msra.mxu0 0
        %528 = vmatprep.subr.bf16.mxu0 0
        %529 = vmatpush1.bf16.xpose.msra.mxu0 0
        %530 = vmatprep.subr.bf16.mxu0 0
        %531 = vmatpush1.bf16.xpose.msra.mxu0 0
        %532 = vmatprep.subr.bf16.mxu0 0
        %533 = vmatpush1.bf16.xpose.msra.mxu0 0
        %534 = vmatprep.subr.bf16.mxu0 0
        %535 = vmatpush1.bf16.xpose.msra.mxu0 0
        %536 = vmatprep.subr.bf16.mxu0 0
        %537 = vmatpush1.bf16.xpose.msra.mxu0 0
        %538 = vmatprep.subr.bf16.mxu0 0
        %539 = vmatpush1.bf16.xpose.msra.mxu0 0
        %540 = vmatprep.subr.bf16.mxu0 0
        %541 = vmatpush1.bf16.xpose.msra.mxu0 0
        %542 = vmatprep.subr.bf16.mxu0 0
        %543 = vmatpush1.bf16.xpose.msra.mxu0 0
        %544 = vmatprep.mubr.bf16.mxu0 0
        %545 = vmatmul.mubr.bf16.gmra.mrb[0].mxu0 %v507
        %v546 = vpop.f32.mrb[0].mxu0
        %v547 = vadd.f32 %v458, %v546
        %v548 = vpop.f32.mrb[0].mxu0
        %v549 = vpop.f32.mrb[0].mxu0
        %v550 = vpop.f32.mrb[0].mxu0
        %551 = vdwg.mxu0
        %v553 = vsel %vm459, %v448, 0
        %v556 = vsel %vm459, %v452, 0
        %558 = vmatprep.subr.bf16.mxu0 0
        %559 = vmatpush1.bf16.xpose.msra.mxu0 %v556
        %560 = vmatprep.subr.bf16.mxu0 0
        %561 = vmatpush1.bf16.xpose.msra.mxu0 0
        %562 = vmatprep.subr.bf16.mxu0 0
        %563 = vmatpush1.bf16.xpose.msra.mxu0 0
        %564 = vmatprep.subr.bf16.mxu0 0
        %565 = vmatpush1.bf16.xpose.msra.mxu0 0
        %566 = vmatprep.subr.bf16.mxu0 0
        %567 = vmatpush1.bf16.xpose.msra.mxu0 0
        %568 = vmatprep.subr.bf16.mxu0 0
        %569 = vmatpush1.bf16.xpose.msra.mxu0 0
        %570 = vmatprep.subr.bf16.mxu0 0
        %571 = vmatpush1.bf16.xpose.msra.mxu0 0
        %572 = vmatprep.subr.bf16.mxu0 0
        %573 = vmatpush1.bf16.xpose.msra.mxu0 0
        %574 = vmatprep.subr.bf16.mxu0 0
        %575 = vmatpush1.bf16.xpose.msra.mxu0 0
        %576 = vmatprep.subr.bf16.mxu0 0
        %577 = vmatpush1.bf16.xpose.msra.mxu0 0
        %578 = vmatprep.subr.bf16.mxu0 0
        %579 = vmatpush1.bf16.xpose.msra.mxu0 0
        %580 = vmatprep.subr.bf16.mxu0 0
        %581 = vmatpush1.bf16.xpose.msra.mxu0 0
        %582 = vmatprep.subr.bf16.mxu0 0
        %583 = vmatpush1.bf16.xpose.msra.mxu0 0
        %584 = vmatprep.subr.bf16.mxu0 0
        %585 = vmatpush1.bf16.xpose.msra.mxu0 0
        %586 = vmatprep.subr.bf16.mxu0 0
        %587 = vmatpush1.bf16.xpose.msra.mxu0 0
        %588 = vmatprep.subr.bf16.mxu0 0
        %589 = vmatpush1.bf16.xpose.msra.mxu0 0
        %590 = vmatprep.mubr.bf16.mxu0 0
        %591 = vmatmul.mubr.bf16.gmra.mrb[0].mxu0 %v553
        %v592 = vpop.f32.mrb[0].mxu0
        %v593 = vadd.f32 %v458, %v592
        %v594 = vpop.f32.mrb[0].mxu0
        %v595 = vpop.f32.mrb[0].mxu0
        %v596 = vpop.f32.mrb[0].mxu0
        %597 = vdwg.mxu0
        %v599 = vsel %vm459, %v449, 0
        %v602 = vsel %vm459, %v453, 0
        %604 = vmatprep.subr.bf16.mxu0 0
        %605 = vmatpush1.bf16.xpose.msra.mxu0 %v602
        %606 = vmatprep.subr.bf16.mxu0 0
        %607 = vmatpush1.bf16.xpose.msra.mxu0 0
        %608 = vmatprep.subr.bf16.mxu0 0
        %609 = vmatpush1.bf16.xpose.msra.mxu0 0
        %610 = vmatprep.subr.bf16.mxu0 0
        %611 = vmatpush1.bf16.xpose.msra.mxu0 0
        %612 = vmatprep.subr.bf16.mxu0 0
        %613 = vmatpush1.bf16.xpose.msra.mxu0 0
        %614 = vmatprep.subr.bf16.mxu0 0
        %615 = vmatpush1.bf16.xpose.msra.mxu0 0
        %616 = vmatprep.subr.bf16.mxu0 0
        %617 = vmatpush1.bf16.xpose.msra.mxu0 0
        %618 = vmatprep.subr.bf16.mxu0 0
        %619 = vmatpush1.bf16.xpose.msra.mxu0 0
        %620 = vmatprep.subr.bf16.mxu0 0
        %621 = vmatpush1.bf16.xpose.msra.mxu0 0
        %622 = vmatprep.subr.bf16.mxu0 0
        %623 = vmatpush1.bf16.xpose.msra.mxu0 0
        %624 = vmatprep.subr.bf16.mxu0 0
        %625 = vmatpush1.bf16.xpose.msra.mxu0 0
        %626 = vmatprep.subr.bf16.mxu0 0
        %627 = vmatpush1.bf16.xpose.msra.mxu0 0
        %628 = vmatprep.subr.bf16.mxu0 0
        %629 = vmatpush1.bf16.xpose.msra.mxu0 0
        %630 = vmatprep.subr.bf16.mxu0 0
        %631 = vmatpush1.bf16.xpose.msra.mxu0 0
        %632 = vmatprep.subr.bf16.mxu0 0
        %633 = vmatpush1.bf16.xpose.msra.mxu0 0
        %634 = vmatprep.subr.bf16.mxu0 0
        %635 = vmatpush1.bf16.xpose.msra.mxu0 0
        %636 = vmatprep.mubr.bf16.mxu0 0
        %637 = vmatmul.mubr.bf16.gmra.mrb[0].mxu0 %v599
        %v638 = vpop.f32.mrb[0].mxu0
        %v639 = vadd.f32 %v458, %v638
        %v640 = vpop.f32.mrb[0].mxu0
        %v641 = vpop.f32.mrb[0].mxu0
        %v642 = vpop.f32.mrb[0].mxu0
        %643 = vdwg.mxu0
        %v644 = vsel %vm459, %v501, -inf
        %645 = vmax.xlane.f32.xlu0 %v644
        %v646 = vpop.xlane.xlu0 %645
        %v647 = vsel %vm459, %v547, -inf
        %648 = vmax.xlane.f32.xlu0 %v647
        %v649 = vpop.xlane.xlu0 %648
        %v650 = vsel %vm459, %v593, -inf
        %651 = vmax.xlane.f32.xlu0 %v650
        %v652 = vpop.xlane.xlu0 %651
        %v653 = vsel %vm459, %v639, -inf
        %654 = vmax.xlane.f32.xlu0 %v653
        %v655 = vpop.xlane.xlu0 %654
        %v656 = vsub.f32 %v501, %v646
        %v657 = vsub.f32 %v547, %v649
        %v658 = vsub.f32 %v593, %v652
        %v659 = vsub.f32 %v639, %v655
        %v660 = vmul.f32 %v656, 1.442695
        %v661 = vpow.pop %v660
        %v662 = vmul.f32 %v657, 1.442695
        %v663 = vpow.pop %v662
        %v664 = vmul.f32 %v658, 1.442695
        %v665 = vpow.pop %v664
        %v666 = vmul.f32 %v659, 1.442695
        %v667 = vpow.pop %v666
        %v668 = vsel %vm459, %v661, 0.0
        %669 = vadd.xlane.f32.xlu0 %v668
        %v670 = vpop.xlane.xlu0 %669
        %v671 = vsel %vm459, %v663, 0.0
        %672 = vadd.xlane.f32.xlu0 %v671
        %v673 = vpop.xlane.xlu0 %672
        %v674 = vsel %vm459, %v665, 0.0
        %675 = vadd.xlane.f32.xlu0 %v674
        %v676 = vpop.xlane.xlu0 %675
        %v677 = vsel %vm459, %v667, 0.0
        %678 = vadd.xlane.f32.xlu0 %v677
        %v679 = vpop.xlane.xlu0 %678
        %v680 = vrcp.pop %v670
        %v681 = vrcp.pop %v673
        %v682 = vrcp.pop %v676
        %v683 = vrcp.pop %v679
        %v684 = vmul.f32 %v661, %v680
        %v685 = vmul.f32 %v663, %v681
        %v686 = vmul.f32 %v665, %v682
        %v687 = vmul.f32 %v667, %v683
        %688 = vst.msk [vmem:[%s396] sm:$0xff] %vm459, %v684
        %689 = vst.msk [vmem:[%s396 + $0x8] sm:$0xff] %vm459, %v685
        %690 = vst.msk [vmem:[%s396 + $0x10] sm:$0xff] %vm459, %v686
        %691 = vst.msk [vmem:[%s396 + $0x18] sm:$0xff] %vm459, %v687
        %v692 = vpack.c.bf16 %v684, %v684
        %v693 = vpack.c.bf16 %v685, %v685
        %v694 = vpack.c.bf16 %v686, %v686
        %v695 = vpack.c.bf16 %v687, %v687
        %v697 = vsel %vm459, %v692, 0
        %vm699 = vcmask 1043456
        %v701 = vsel %vm699, %v454, 0
        %703 = vmatprep.subr.bf16.mxu0 0
        %704 = vmatpush1.bf16.msra.mxu0 %v701
        %705 = vmatprep.subr.bf16.mxu0 0
        %706 = vmatpush1.bf16.msra.mxu0 0
        %707 = vmatprep.subr.bf16.mxu0 0
        %708 = vmatpush1.bf16.msra.mxu0 0
        %709 = vmatprep.subr.bf16.mxu0 0
        %710 = vmatpush1.bf16.msra.mxu0 0
        %711 = vmatprep.subr.bf16.mxu0 0
        %712 = vmatpush1.bf16.msra.mxu0 0
        %713 = vmatprep.subr.bf16.mxu0 0
        %714 = vmatpush1.bf16.msra.mxu0 0
        %715 = vmatprep.subr.bf16.mxu0 0
        %716 = vmatpush1.bf16.msra.mxu0 0
        %717 = vmatprep.subr.bf16.mxu0 0
        %718 = vmatpush1.bf16.msra.mxu0 0
        %719 = vmatprep.subr.bf16.mxu0 0
        %720 = vmatpush1.bf16.msra.mxu0 0
        %721 = vmatprep.subr.bf16.mxu0 0
        %722 = vmatpush1.bf16.msra.mxu0 0
        %723 = vmatprep.subr.bf16.mxu0 0
        %724 = vmatpush1.bf16.msra.mxu0 0
        %725 = vmatprep.subr.bf16.mxu0 0
        %726 = vmatpush1.bf16.msra.mxu0 0
        %727 = vmatprep.subr.bf16.mxu0 0
        %728 = vmatpush1.bf16.msra.mxu0 0
        %729 = vmatprep.subr.bf16.mxu0 0
        %730 = vmatpush1.bf16.msra.mxu0 0
        %731 = vmatprep.subr.bf16.mxu0 0
        %732 = vmatpush1.bf16.msra.mxu0 0
        %733 = vmatprep.subr.bf16.mxu0 0
        %734 = vmatpush1.bf16.msra.mxu0 0
        %735 = vmatprep.mubr.bf16.mxu0 0
        %736 = vmatmul.mubr.bf16.gmra.mrb[0].mxu0 %v697
        %v737 = vpop.f32.mrb[0].mxu0
        %v738 = vadd.f32 0.0, %v737
        %v739 = vpop.f32.mrb[0].mxu0
        %v740 = vpop.f32.mrb[0].mxu0
        %v741 = vpop.f32.mrb[0].mxu0
        %742 = vdwg.mxu0
        %v744 = vsel %vm459, %v693, 0
        %v747 = vsel %vm699, %v455, 0
        %749 = vmatprep.subr.bf16.mxu0 0
        %750 = vmatpush1.bf16.msra.mxu0 %v747
        %751 = vmatprep.subr.bf16.mxu0 0
        %752 = vmatpush1.bf16.msra.mxu0 0
        %753 = vmatprep.subr.bf16.mxu0 0
        %754 = vmatpush1.bf16.msra.mxu0 0
        %755 = vmatprep.subr.bf16.mxu0 0
        %756 = vmatpush1.bf16.msra.mxu0 0
        %757 = vmatprep.subr.bf16.mxu0 0
        %758 = vmatpush1.bf16.msra.mxu0 0
        %759 = vmatprep.subr.bf16.mxu0 0
        %760 = vmatpush1.bf16.msra.mxu0 0
        %761 = vmatprep.subr.bf16.mxu0 0
        %762 = vmatpush1.bf16.msra.mxu0 0
        %763 = vmatprep.subr.bf16.mxu0 0
        %764 = vmatpush1.bf16.msra.mxu0 0
        %765 = vmatprep.subr.bf16.mxu0 0
        %766 = vmatpush1.bf16.msra.mxu0 0
        %767 = vmatprep.subr.bf16.mxu0 0
        %768 = vmatpush1.bf16.msra.mxu0 0
        %769 = vmatprep.subr.bf16.mxu0 0
        %770 = vmatpush1.bf16.msra.mxu0 0
        %771 = vmatprep.subr.bf16.mxu0 0
        %772 = vmatpush1.bf16.msra.mxu0 0
        %773 = vmatprep.subr.bf16.mxu0 0
        %774 = vmatpush1.bf16.msra.mxu0 0
        %775 = vmatprep.subr.bf16.mxu0 0
        %776 = vmatpush1.bf16.msra.mxu0 0
        %777 = vmatprep.subr.bf16.mxu0 0
        %778 = vmatpush1.bf16.msra.mxu0 0
        %779 = vmatprep.subr.bf16.mxu0 0
        %780 = vmatpush1.bf16.msra.mxu0 0
        %781 = vmatprep.mubr.bf16.mxu0 0
        %782 = vmatmul.mubr.bf16.gmra.mrb[0].mxu0 %v744
        %v783 = vpop.f32.mrb[0].mxu0
        %v784 = vadd.f32 0.0, %v783
        %v785 = vpop.f32.mrb[0].mxu0
        %v786 = vpop.f32.mrb[0].mxu0
        %v787 = vpop.f32.mrb[0].mxu0
        %788 = vdwg.mxu0
        %v790 = vsel %vm459, %v694, 0
        %v793 = vsel %vm699, %v456, 0
        %795 = vmatprep.subr.bf16.mxu0 0
        %796 = vmatpush1.bf16.msra.mxu0 %v793
        %797 = vmatprep.subr.bf16.mxu0 0
        %798 = vmatpush1.bf16.msra.mxu0 0
        %799 = vmatprep.subr.bf16.mxu0 0
        %800 = vmatpush1.bf16.msra.mxu0 0
        %801 = vmatprep.subr.bf16.mxu0 0
        %802 = vmatpush1.bf16.msra.mxu0 0
        %803 = vmatprep.subr.bf16.mxu0 0
        %804 = vmatpush1.bf16.msra.mxu0 0
        %805 = vmatprep.subr.bf16.mxu0 0
        %806 = vmatpush1.bf16.msra.mxu0 0
        %807 = vmatprep.subr.bf16.mxu0 0
        %808 = vmatpush1.bf16.msra.mxu0 0
        %809 = vmatprep.subr.bf16.mxu0 0
        %810 = vmatpush1.bf16.msra.mxu0 0
        %811 = vmatprep.subr.bf16.mxu0 0
        %812 = vmatpush1.bf16.msra.mxu0 0
        %813 = vmatprep.subr.bf16.mxu0 0
        %814 = vmatpush1.bf16.msra.mxu0 0
        %815 = vmatprep.subr.bf16.mxu0 0
        %816 = vmatpush1.bf16.msra.mxu0 0
        %817 = vmatprep.subr.bf16.mxu0 0
        %818 = vmatpush1.bf16.msra.mxu0 0
        %819 = vmatprep.subr.bf16.mxu0 0
        %820 = vmatpush1.bf16.msra.mxu0 0
        %821 = vmatprep.subr.bf16.mxu0 0
        %822 = vmatpush1.bf16.msra.mxu0 0
        %823 = vmatprep.subr.bf16.mxu0 0
        %824 = vmatpush1.bf16.msra.mxu0 0
        %825 = vmatprep.subr.bf16.mxu0 0
        %826 = vmatpush1.bf16.msra.mxu0 0
        %827 = vmatprep.mubr.bf16.mxu0 0
        %828 = vmatmul.mubr.bf16.gmra.mrb[0].mxu0 %v790
        %v829 = vpop.f32.mrb[0].mxu0
        %v830 = vadd.f32 0.0, %v829
        %v831 = vpop.f32.mrb[0].mxu0
        %v832 = vpop.f32.mrb[0].mxu0
        %v833 = vpop.f32.mrb[0].mxu0
        %834 = vdwg.mxu0
        %v836 = vsel %vm459, %v695, 0
        %v839 = vsel %vm699, %v457, 0
        %841 = vmatprep.subr.bf16.mxu0 0
        %842 = vmatpush1.bf16.msra.mxu0 %v839
        %843 = vmatprep.subr.bf16.mxu0 0
        %844 = vmatpush1.bf16.msra.mxu0 0
        %845 = vmatprep.subr.bf16.mxu0 0
        %846 = vmatpush1.bf16.msra.mxu0 0
        %847 = vmatprep.subr.bf16.mxu0 0
        %848 = vmatpush1.bf16.msra.mxu0 0
        %849 = vmatprep.subr.bf16.mxu0 0
        %850 = vmatpush1.bf16.msra.mxu0 0
        %851 = vmatprep.subr.bf16.mxu0 0
        %852 = vmatpush1.bf16.msra.mxu0 0
        %853 = vmatprep.subr.bf16.mxu0 0
        %854 = vmatpush1.bf16.msra.mxu0 0
        %855 = vmatprep.subr.bf16.mxu0 0
        %856 = vmatpush1.bf16.msra.mxu0 0
        %857 = vmatprep.subr.bf16.mxu0 0
        %858 = vmatpush1.bf16.msra.mxu0 0
        %859 = vmatprep.subr.bf16.mxu0 0
        %860 = vmatpush1.bf16.msra.mxu0 0
        %861 = vmatprep.subr.bf16.mxu0 0
        %862 = vmatpush1.bf16.msra.mxu0 0
        %863 = vmatprep.subr.bf16.mxu0 0
        %864 = vmatpush1.bf16.msra.mxu0 0
        %865 = vmatprep.subr.bf16.mxu0 0
        %866 = vmatpush1.bf16.msra.mxu0 0
        %867 = vmatprep.subr.bf16.mxu0 0
        %868 = vmatpush1.bf16.msra.mxu0 0
        %869 = vmatprep.subr.bf16.mxu0 0
        %870 = vmatpush1.bf16.msra.mxu0 0
        %871 = vmatprep.subr.bf16.mxu0 0
        %872 = vmatpush1.bf16.msra.mxu0 0
        %873 = vmatprep.mubr.bf16.mxu0 0
        %874 = vmatmul.mubr.bf16.gmra.mrb[0].mxu0 %v836
        %v875 = vpop.f32.mrb[0].mxu0
        %v876 = vadd.f32 0.0, %v875
        %v877 = vpop.f32.mrb[0].mxu0
        %v878 = vpop.f32.mrb[0].mxu0
        %v879 = vpop.f32.mrb[0].mxu0
        %880 = vdwg.mxu0
        %v881 = vld [vmem:[%s425] sm:$0xff]
        %v882 = vld [vmem:[%s5] sm:$0x1]
        %v884 = vlaneseq
        %v885 = vshrl.u32 %v884, 7
        %v886 = vsub.s32 0, %v885
        %v887 = vrot.slane %v882, %v886
        %v889 = vadd.f32 %v881, %v887
        %v890 = vpack.c.bf16 %v738, %v738
        %v891 = vld [vmem:[%s4] sm:$0xf]
        %v893 = vsel %vm459, %v890, 0
        %v896 = vsel %vm699, %v891, 0
        %898 = vmatprep.subr.bf16.mxu0 0
        %899 = vmatpush1.bf16.msra.mxu0 %v896
        %900 = vmatprep.subr.bf16.mxu0 0
        %901 = vmatpush1.bf16.msra.mxu0 0
        %902 = vmatprep.subr.bf16.mxu0 0
        %903 = vmatpush1.bf16.msra.mxu0 0
        %904 = vmatprep.subr.bf16.mxu0 0
        %905 = vmatpush1.bf16.msra.mxu0 0
        %906 = vmatprep.subr.bf16.mxu0 0
        %907 = vmatpush1.bf16.msra.mxu0 0
        %908 = vmatprep.subr.bf16.mxu0 0
        %909 = vmatpush1.bf16.msra.mxu0 0
        %910 = vmatprep.subr.bf16.mxu0 0
        %911 = vmatpush1.bf16.msra.mxu0 0
        %912 = vmatprep.subr.bf16.mxu0 0
        %913 = vmatpush1.bf16.msra.mxu0 0
        %914 = vmatprep.subr.bf16.mxu0 0
        %915 = vmatpush1.bf16.msra.mxu0 0
        %916 = vmatprep.subr.bf16.mxu0 0
        %917 = vmatpush1.bf16.msra.mxu0 0
        %918 = vmatprep.subr.bf16.mxu0 0
        %919 = vmatpush1.bf16.msra.mxu0 0
        %920 = vmatprep.subr.bf16.mxu0 0
        %921 = vmatpush1.bf16.msra.mxu0 0
        %922 = vmatprep.subr.bf16.mxu0 0
        %923 = vmatpush1.bf16.msra.mxu0 0
        %924 = vmatprep.subr.bf16.mxu0 0
        %925 = vmatpush1.bf16.msra.mxu0 0
        %926 = vmatprep.subr.bf16.mxu0 0
        %927 = vmatpush1.bf16.msra.mxu0 0
        %928 = vmatprep.subr.bf16.mxu0 0
        %929 = vmatpush1.bf16.msra.mxu0 0
        %930 = vmatprep.mubr.bf16.mxu0 0
        %931 = vmatmul.mubr.bf16.gmra.mrb[0].mxu0 %v893
        %v932 = vpop.f32.mrb[0].mxu0
        %v933 = vadd.f32 0.0, %v932
        %v934 = vpop.f32.mrb[0].mxu0
        %v935 = vpop.f32.mrb[0].mxu0
        %v936 = vpop.f32.mrb[0].mxu0
        %937 = vdwg.mxu0
        %v938 = vadd.f32 %v889, %v933
        %v939 = vpack.c.bf16 %v784, %v784
        %s940 = scalar_lea.vmem %s4, 4
        %v941 = vld [vmem:[%s940] sm:$0xf]
        %v943 = vsel %vm459, %v939, 0
        %v946 = vsel %vm699, %v941, 0
        %948 = vmatprep.subr.bf16.mxu0 0
        %949 = vmatpush1.bf16.msra.mxu0 %v946
        %950 = vmatprep.subr.bf16.mxu0 0
        %951 = vmatpush1.bf16.msra.mxu0 0
        %952 = vmatprep.subr.bf16.mxu0 0
        %953 = vmatpush1.bf16.msra.mxu0 0
        %954 = vmatprep.subr.bf16.mxu0 0
        %955 = vmatpush1.bf16.msra.mxu0 0
        %956 = vmatprep.subr.bf16.mxu0 0
        %957 = vmatpush1.bf16.msra.mxu0 0
        %958 = vmatprep.subr.bf16.mxu0 0
        %959 = vmatpush1.bf16.msra.mxu0 0
        %960 = vmatprep.subr.bf16.mxu0 0
        %961 = vmatpush1.bf16.msra.mxu0 0
        %962 = vmatprep.subr.bf16.mxu0 0
        %963 = vmatpush1.bf16.msra.mxu0 0
        %964 = vmatprep.subr.bf16.mxu0 0
        %965 = vmatpush1.bf16.msra.mxu0 0
        %966 = vmatprep.subr.bf16.mxu0 0
        %967 = vmatpush1.bf16.msra.mxu0 0
        %968 = vmatprep.subr.bf16.mxu0 0
        %969 = vmatpush1.bf16.msra.mxu0 0
        %970 = vmatprep.subr.bf16.mxu0 0
        %971 = vmatpush1.bf16.msra.mxu0 0
        %972 = vmatprep.subr.bf16.mxu0 0
        %973 = vmatpush1.bf16.msra.mxu0 0
        %974 = vmatprep.subr.bf16.mxu0 0
        %975 = vmatpush1.bf16.msra.mxu0 0
        %976 = vmatprep.subr.bf16.mxu0 0
        %977 = vmatpush1.bf16.msra.mxu0 0
        %978 = vmatprep.subr.bf16.mxu0 0
        %979 = vmatpush1.bf16.msra.mxu0 0
        %980 = vmatprep.mubr.bf16.mxu0 0
        %981 = vmatmul.mubr.bf16.gmra.mrb[0].mxu0 %v943
        %v982 = vpop.f32.mrb[0].mxu0
        %v983 = vadd.f32 0.0, %v982
        %v984 = vpop.f32.mrb[0].mxu0
        %v985 = vpop.f32.mrb[0].mxu0
        %v986 = vpop.f32.mrb[0].mxu0
        %987 = vdwg.mxu0
        %v988 = vadd.f32 %v938, %v983
        %v989 = vpack.c.bf16 %v830, %v830
        %s990 = scalar_lea.vmem %s4, 8
        %v991 = vld [vmem:[%s990] sm:$0xf]
        %v993 = vsel %vm459, %v989, 0
        %v996 = vsel %vm699, %v991, 0
        %998 = vmatprep.subr.bf16.mxu0 0
        %999 = vmatpush1.bf16.msra.mxu0 %v996
        %1000 = vmatprep.subr.bf16.mxu0 0
        %1001 = vmatpush1.bf16.msra.mxu0 0
        %1002 = vmatprep.subr.bf16.mxu0 0
        %1003 = vmatpush1.bf16.msra.mxu0 0
        %1004 = vmatprep.subr.bf16.mxu0 0
        %1005 = vmatpush1.bf16.msra.mxu0 0
        %1006 = vmatprep.subr.bf16.mxu0 0
        %1007 = vmatpush1.bf16.msra.mxu0 0
        %1008 = vmatprep.subr.bf16.mxu0 0
        %1009 = vmatpush1.bf16.msra.mxu0 0
        %1010 = vmatprep.subr.bf16.mxu0 0
        %1011 = vmatpush1.bf16.msra.mxu0 0
        %1012 = vmatprep.subr.bf16.mxu0 0
        %1013 = vmatpush1.bf16.msra.mxu0 0
        %1014 = vmatprep.subr.bf16.mxu0 0
        %1015 = vmatpush1.bf16.msra.mxu0 0
        %1016 = vmatprep.subr.bf16.mxu0 0
        %1017 = vmatpush1.bf16.msra.mxu0 0
        %1018 = vmatprep.subr.bf16.mxu0 0
        %1019 = vmatpush1.bf16.msra.mxu0 0
        %1020 = vmatprep.subr.bf16.mxu0 0
        %1021 = vmatpush1.bf16.msra.mxu0 0
        %1022 = vmatprep.subr.bf16.mxu0 0
        %1023 = vmatpush1.bf16.msra.mxu0 0
        %1024 = vmatprep.subr.bf16.mxu0 0
        %1025 = vmatpush1.bf16.msra.mxu0 0
        %1026 = vmatprep.subr.bf16.mxu0 0
        %1027 = vmatpush1.bf16.msra.mxu0 0
        %1028 = vmatprep.subr.bf16.mxu0 0
        %1029 = vmatpush1.bf16.msra.mxu0 0
        %1030 = vmatprep.mubr.bf16.mxu0 0
        %1031 = vmatmul.mubr.bf16.gmra.mrb[0].mxu0 %v993
        %v1032 = vpop.f32.mrb[0].mxu0
        %v1033 = vadd.f32 0.0, %v1032
        %v1034 = vpop.f32.mrb[0].mxu0
        %v1035 = vpop.f32.mrb[0].mxu0
        %v1036 = vpop.f32.mrb[0].mxu0
        %1037 = vdwg.mxu0
        %v1038 = vadd.f32 %v988, %v1033
        %v1039 = vpack.c.bf16 %v876, %v876
        %s1040 = scalar_lea.vmem %s4, 12
        %v1041 = vld [vmem:[%s1040] sm:$0xf]
        %v1043 = vsel %vm459, %v1039, 0
        %v1046 = vsel %vm699, %v1041, 0
        %1048 = vmatprep.subr.bf16.mxu0 0
        %1049 = vmatpush1.bf16.msra.mxu0 %v1046
        %1050 = vmatprep.subr.bf16.mxu0 0
        %1051 = vmatpush1.bf16.msra.mxu0 0
        %1052 = vmatprep.subr.bf16.mxu0 0
        %1053 = vmatpush1.bf16.msra.mxu0 0
        %1054 = vmatprep.subr.bf16.mxu0 0
        %1055 = vmatpush1.bf16.msra.mxu0 0
        %1056 = vmatprep.subr.bf16.mxu0 0
        %1057 = vmatpush1.bf16.msra.mxu0 0
        %1058 = vmatprep.subr.bf16.mxu0 0
        %1059 = vmatpush1.bf16.msra.mxu0 0
        %1060 = vmatprep.subr.bf16.mxu0 0
        %1061 = vmatpush1.bf16.msra.mxu0 0
        %1062 = vmatprep.subr.bf16.mxu0 0
        %1063 = vmatpush1.bf16.msra.mxu0 0
        %1064 = vmatprep.subr.bf16.mxu0 0
        %1065 = vmatpush1.bf16.msra.mxu0 0
        %1066 = vmatprep.subr.bf16.mxu0 0
        %1067 = vmatpush1.bf16.msra.mxu0 0
        %1068 = vmatprep.subr.bf16.mxu0 0
        %1069 = vmatpush1.bf16.msra.mxu0 0
        %1070 = vmatprep.subr.bf16.mxu0 0
        %1071 = vmatpush1.bf16.msra.mxu0 0
        %1072 = vmatprep.subr.bf16.mxu0 0
        %1073 = vmatpush1.bf16.msra.mxu0 0
        %1074 = vmatprep.subr.bf16.mxu0 0
        %1075 = vmatpush1.bf16.msra.mxu0 0
        %1076 = vmatprep.subr.bf16.mxu0 0
        %1077 = vmatpush1.bf16.msra.mxu0 0
        %1078 = vmatprep.subr.bf16.mxu0 0
        %1079 = vmatpush1.bf16.msra.mxu0 0
        %1080 = vmatprep.mubr.bf16.mxu0 0
        %1081 = vmatmul.mubr.bf16.gmra.mrb[0].mxu0 %v1043
        %v1082 = vpop.f32.mrb[0].mxu0
        %v1083 = vadd.f32 0.0, %v1082
        %v1084 = vpop.f32.mrb[0].mxu0
        %v1085 = vpop.f32.mrb[0].mxu0
        %v1086 = vpop.f32.mrb[0].mxu0
        %1087 = vdwg.mxu0
        %v1088 = vadd.f32 %v1038, %v1083
        %vm1089 = vcmask 261120
        %1090 = vst.msk [vmem:[%s432] sm:$0xff] %vm1089, %v1088
        %p1091 = scmp.lt.s32.totalorder %s27, 1
        %s1092 = scalar_select %p1091, %s27, 1
        %p1093 = scmp.lt.s32.totalorder %s28, 0
        %s1094 = scalar_select %p1093, %s28, 0
        %s1095 = sadd.s32 %s1094, %s1092
        %s1096 = smul.addr %s1095, 8
        %s1097 = scalar_lea.vmem %s7, %s1096
        %s1098 = sand.u32 %s249, 1
        %s1099 = scalar_lea.sflag [#allocation3], %s1098
        %s1100 = sand.u32 %s249, 1
        %s1101 = smul.addr %s1100, 32
        %s1102 = scalar_lea.vmem [#allocation2], %s1101
        // Predicated region
        $region49: #{decoder_forward.14} parent=47 // pred_check
          %p1103 = pneg %p231
        $region50: #{decoder_forward.14} parent=47 // pred_check_branch
          %1105 = sbr.rel (%p1103) target = $region52
        $region51: #{decoder_forward.14} parent=47 // pred_region
          _
        $region52: #{decoder_forward.14} parent=47 // pred_fallthru
          _
        // Predicated region
        $region53: #{decoder_forward.14} parent=47 // pred_check
          %p1106 = pneg %p259
        $region54: #{decoder_forward.14} parent=47 // pred_check_branch
          %1108 = sbr.rel (%p1106) target = $region56
        $region55: #{decoder_forward.14} parent=47 // pred_region
          %s1110 = ssub.s32 512, 512
          %1111 = vsyncadd %s1099, %s1110
          %s1112 = smul.addr %s27, 4
          %s1113 = sadd.s32 %s28, %s1112
          %s1114 = smul.addr %s1113, 128
          %s1115 = scalar_lea.hbm %s8, %s1114
          %s1116 = sshll.u32 %s1102, 4
          %s1117 = int_to_ptr.vmem [resolvable:$true] %s1116
          %1122 = dma.vmem_to_hbm [thread:$0]  %s1117, 512, %s1115, %s1099, 128, 128, 8
        $region56: #{decoder_forward.14} parent=47 // pred_fallthru
          _
      $region48: #{decoder_forward.14} parent=5 // pred_fallthru
        _
      %p1123 = scmp.le.s32.totalorder 2, %s18
      // Predicated region
      $region57: #{decoder_forward.14} parent=5 // pred_check
        %p1124 = pneg %p1123
      $region58: #{decoder_forward.14} parent=5 // pred_check_branch
        %1126 = sbr.rel (%p1124) target = $region60
      $region59: #{decoder_forward.14} parent=5 // pred_region
        %s1127 = ssub.s32 %s18, 2
        // Predicated region
        $region61: #{decoder_forward.14} parent=59 // pred_check
          %p1128 = pneg %p237
        $region62: #{decoder_forward.14} parent=59 // pred_check_branch
          %1130 = sbr.rel (%p1128) target = $region64
        $region63: #{decoder_forward.14} parent=59 // pred_region
          %p1131 = scmp.lt.s32.totalorder %s29, 1
          %s1132 = scalar_select %p1131, %s29, 1
          %p1133 = scmp.lt.s32.totalorder %s30, 0
          %s1134 = scalar_select %p1133, %s30, 0
          %s1135 = sadd.s32 %s1134, %s1132
          %s1136 = smul.addr %s1135, 8
          %s1137 = scalar_lea.vmem %s7, %s1136
        $region64: #{decoder_forward.14} parent=59 // pred_fallthru
          _
        // Predicated region
        $region65: #{decoder_forward.14} parent=59 // pred_check
          %p1138 = pneg %p265
        $region66: #{decoder_forward.14} parent=59 // pred_check_branch
          %1140 = sbr.rel (%p1138) target = $region68
        $region67: #{decoder_forward.14} parent=59 // pred_region
          %s1141 = sand.u32 %s250, 1
          %s1142 = scalar_lea.sflag [#allocation3], %s1141
          %s1143 = sand.u32 %s250, 1
          %s1144 = smul.addr %s1143, 32
          %s1145 = scalar_lea.vmem [#allocation2], %s1144
          %1146 = dma.done %s1142, 512
        $region68: #{decoder_forward.14} parent=59 // pred_fallthru
          _
      $region60: #{decoder_forward.14} parent=5 // pred_fallthru
        _
    $region6: #{decoder_forward.14} parent=1 // loop_footer
      %s22 = sadd.s32 1, %s18
    $region7: #{decoder_forward.14} parent=1 // loop_footer_branch
      %17 = sbr.rel target = $region3
    $region8: #{decoder_forward.14} parent=1 // loop_exit
      _
    %1147 = vsyncpa [#allocation3], 1
    %s1148 = scalar_lea.sflag [#allocation3], 1
    %1149 = vsyncpa %s1148, 1

// kernel: decoder_forward.25
$region0: #{decoder_forward.25}
  #allocation0 [shape = 'u32[]', space=smem, size = 0x4, offset = 0x4, fixed_abs, tag = 'smem constant byte address 0x4 - core index']
  #allocation1 [shape = 'u32[144,128]{1,0:T(1,128)}', space=vmem, size = 0x12000, scoped, tag = 'internal scratch']
  %s0 = inlined_call_operand.vmem [shape: f32[16,32], index: 0, kind: input, shape index: {}]
  %s1 = inlined_call_operand.vmem [shape: f32[1,32], index: 1, kind: input, shape index: {}]
  %s2 = inlined_call_operand.vmem [shape: f32[1,32], index: 2, kind: input, shape index: {}]
  %s3 = inlined_call_operand.hbm [shape: f32[16,32], index: 3, kind: output, shape index: {}]
  %s4 = sld [smem:[#allocation0]]
  $region22: #{decoder_forward.25} parent=0
    _
  %s6 = ssub.s32 1, %s4
  %s7 = scalar_select 0, %s6, %s4
  $region1: #{decoder_forward.25} parent=0
    #allocation2 [shape = 'u8[8192]{0}', space=vmem, size = 0x2000, scoped, tag = 'output window, operand 0, single buffered']
    #allocation3 [shape = 's32[1]{0}', space=sflag, size = 0x4, scoped, tag = 'scoped memory for decoder_forward.25']
    %8 = vsyncpa [#allocation3], 0
    // Predicated region
    $region2: #{decoder_forward.25} parent=1 // pred_check
      _
    $region3: #{decoder_forward.25} parent=1 // pred_check_branch
      %10 = sbr.rel (0) target = $region5
    $region4: #{decoder_forward.25} parent=1 // pred_region
      _
    $region5: #{decoder_forward.25} parent=1 // pred_fallthru
      _
    // Predicated region
    $region6: #{decoder_forward.25} parent=1 // pred_check
      _
    $region7: #{decoder_forward.25} parent=1 // pred_check_branch
      %12 = sbr.rel (0) target = $region9
    $region8: #{decoder_forward.25} parent=1 // pred_region
      _
    $region9: #{decoder_forward.25} parent=1 // pred_fallthru
      _
    // Predicated region
    $region10: #{decoder_forward.25} parent=1 // pred_check
      _
    $region11: #{decoder_forward.25} parent=1 // pred_check_branch
      %14 = sbr.rel (0) target = $region13
    $region12: #{decoder_forward.25} parent=1 // pred_region
      _
    $region13: #{decoder_forward.25} parent=1 // pred_fallthru
      _
    %v15 = vld [vmem:[%s0] sm:$0xff]
    %v16 = vld [vmem:[%s0 + $0x8] sm:$0xff]
    %vm17 = vcmask 261120
    %v18 = vsel %vm17, %v15, 0.0
    %19 = vadd.xlane.f32.xlu0 %v18
    %v20 = vpop.xlane.xlu0 %19
    %v21 = vsel %vm17, %v16, 0.0
    %22 = vadd.xlane.f32.xlu0 %v21
    %v23 = vpop.xlane.xlu0 %22
    %v24 = vrcp.pop 32.0
    %v25 = vmul.f32 %v20, %v24
    %v26 = vmul.f32 %v23, %v24
    %v27 = vsub.f32 %v15, %v25
    %v28 = vsub.f32 %v16, %v26
    %v29 = vmul.f32 %v27, %v27
    %v30 = vmul.f32 %v28, %v28
    %v31 = vsel %vm17, %v29, 0.0
    %32 = vadd.xlane.f32.xlu0 %v31
    %v33 = vpop.xlane.xlu0 %32
    %v34 = vsel %vm17, %v30, 0.0
    %35 = vadd.xlane.f32.xlu0 %v34
    %v36 = vpop.xlane.xlu0 %35
    %v37 = vmul.f32 %v33, %v24
    %v38 = vmul.f32 %v36, %v24
    %v39 = vadd.f32 %v37, 1e-05
    %v40 = vadd.f32 %v38, 1e-05
    %v41 = vrsqrt.pop %v39
    %v42 = vrsqrt.pop %v40
    %v43 = vmul.f32 %v27, %v41
    %v44 = vmul.f32 %v28, %v42
    %v45 = vld [vmem:[%s1] sm:$0x1]
    %v47 = vlaneseq
    %v48 = vshrl.u32 %v47, 7
    %v49 = vsub.s32 0, %v48
    %v50 = vrot.slane %v45, %v49
    %v52 = vmul.f32 %v43, %v50
    %v53 = vmul.f32 %v44, %v50
    %v54 = vld [vmem:[%s2] sm:$0x1]
    %v56 = vlaneseq
    %v57 = vshrl.u32 %v56, 7
    %v58 = vsub.s32 0, %v57
    %v59 = vrot.slane %v54, %v58
    %v61 = vadd.f32 %v52, %v59
    %v62 = vadd.f32 %v53, %v59
    %63 = vst.msk [vmem:[#allocation2] sm:$0xff] %vm17, %v61
    %64 = vst.msk [vmem:[#allocation2 + $0x8] sm:$0xff] %vm17, %v62
    // Predicated region
    $region14: #{decoder_forward.25} parent=1 // pred_check
      _
    $region15: #{decoder_forward.25} parent=1 // pred_check_branch
      %66 = sbr.rel (0) target = $region17
    $region16: #{decoder_forward.25} parent=1 // pred_region
      %s68 = ssub.s32 256, 256
      %69 = vsyncadd [#allocation3], %s68
      %s70 = sshll.u32 [#allocation2], 4
      %s71 = int_to_ptr.vmem [resolvable:$true] %s70
      %76 = dma.vmem_to_hbm [thread:$0]  %s71, 256, %s3, [#allocation3], 128, 128, 8
    $region17: #{decoder_forward.25} parent=1 // pred_fallthru
      _
    // Predicated region
    $region18: #{decoder_forward.25} parent=1 // pred_check
      _
    $region19: #{decoder_forward.25} parent=1 // pred_check_branch
      %78 = sbr.rel (0) target = $region21
    $region20: #{decoder_forward.25} parent=1 // pred_region
      %79 = dma.done [#allocation3], 256
    $region21: #{decoder_forward.25} parent=1 // pred_fallthru
      _
    %80 = vsyncpa [#allocation3], 1

// kernel: decoder_forward.15
$region0: #{decoder_forward.15}
  #allocation0 [shape = 'u32[]', space=smem, size = 0x4, offset = 0x4, fixed_abs, tag = 'smem constant byte address 0x4 - core index']
  #allocation1 [shape = 'u32[144,128]{1,0:T(1,128)}', space=vmem, size = 0x12000, scoped, tag = 'internal scratch']
  %s0 = inlined_call_operand.vmem [shape: f32[16,32], index: 0, kind: input, shape index: {}]
  %s1 = inlined_call_operand.vmem [shape: f32[1,32], index: 1, kind: input, shape index: {}]
  %s2 = inlined_call_operand.vmem [shape: f32[1,32], index: 2, kind: input, shape index: {}]
  %s3 = inlined_call_operand.vmem [shape: bf16[32,32], index: 3, kind: input, shape index: {}]
  %s4 = inlined_call_operand.vmem [shape: f32[1,32], index: 4, kind: input, shape index: {}]
  %s5 = inlined_call_operand.vmem [shape: bf16[16,32], index: 5, kind: output, shape index: {}]
  %s6 = sld [smem:[#allocation0]]
  $region30: #{decoder_forward.15} parent=0
    _
  %s8 = ssub.s32 1, %s6
  %s9 = scalar_select 0, %s8, %s6
  // Predicated region
  $region2: #{decoder_forward.15} parent=0 // pred_check
    _
  $region3: #{decoder_forward.15} parent=0 // pred_check_branch
    %11 = sbr.rel (0) target = $region5
  $region4: #{decoder_forward.15} parent=0 // pred_region
    _
  $region5: #{decoder_forward.15} parent=0 // pred_fallthru
    _
  // Predicated region
  $region6: #{decoder_forward.15} parent=0 // pred_check
    _
  $region7: #{decoder_forward.15} parent=0 // pred_check_branch
    %13 = sbr.rel (0) target = $region9
  $region8: #{decoder_forward.15} parent=0 // pred_region
    _
  $region9: #{decoder_forward.15} parent=0 // pred_fallthru
    _
  // Predicated region
  $region10: #{decoder_forward.15} parent=0 // pred_check
    _
  $region11: #{decoder_forward.15} parent=0 // pred_check_branch
    %15 = sbr.rel (0) target = $region13
  $region12: #{decoder_forward.15} parent=0 // pred_region
    _
  $region13: #{decoder_forward.15} parent=0 // pred_fallthru
    _
  // Predicated region
  $region14: #{decoder_forward.15} parent=0 // pred_check
    _
  $region15: #{decoder_forward.15} parent=0 // pred_check_branch
    %17 = sbr.rel (0) target = $region17
  $region16: #{decoder_forward.15} parent=0 // pred_region
    _
  $region17: #{decoder_forward.15} parent=0 // pred_fallthru
    _
  // Predicated region
  $region18: #{decoder_forward.15} parent=0 // pred_check
    _
  $region19: #{decoder_forward.15} parent=0 // pred_check_branch
    %19 = sbr.rel (0) target = $region21
  $region20: #{decoder_forward.15} parent=0 // pred_region
    _
  $region21: #{decoder_forward.15} parent=0 // pred_fallthru
    _
  %v21 = vld [vmem:[%s0] sm:$0xff]
  %v22 = vld [vmem:[%s0 + $0x8] sm:$0xff]
  %vm23 = vcmask 261120
  %v24 = vsel %vm23, %v21, 0.0
  %25 = vadd.xlane.f32.xlu0 %v24
  %v26 = vpop.xlane.xlu0 %25
  %v27 = vsel %vm23, %v22, 0.0
  %28 = vadd.xlane.f32.xlu0 %v27
  %v29 = vpop.xlane.xlu0 %28
  %v30 = vrcp.pop 32.0
  %v31 = vmul.f32 %v26, %v30
  %v32 = vmul.f32 %v29, %v30
  %v33 = vsub.f32 %v21, %v31
  %v34 = vsub.f32 %v22, %v32
  %v35 = vmul.f32 %v33, %v33
  %v36 = vmul.f32 %v34, %v34
  %v37 = vsel %vm23, %v35, 0.0
  %38 = vadd.xlane.f32.xlu0 %v37
  %v39 = vpop.xlane.xlu0 %38
  %v40 = vsel %vm23, %v36, 0.0
  %41 = vadd.xlane.f32.xlu0 %v40
  %v42 = vpop.xlane.xlu0 %41
  %v43 = vmul.f32 %v39, %v30
  %v44 = vmul.f32 %v42, %v30
  %v45 = vadd.f32 %v43, 1e-05
  %v46 = vadd.f32 %v44, 1e-05
  %v47 = vrsqrt.pop %v45
  %v48 = vrsqrt.pop %v46
  %v49 = vmul.f32 %v33, %v47
  %v50 = vmul.f32 %v34, %v48
  %v51 = vld [vmem:[%s1] sm:$0x1]
  %v53 = vlaneseq
  %v54 = vshrl.u32 %v53, 7
  %v55 = vsub.s32 0, %v54
  %v56 = vrot.slane %v51, %v55
  %v58 = vmul.f32 %v49, %v56
  %v59 = vmul.f32 %v50, %v56
  %v60 = vld [vmem:[%s2] sm:$0x1]
  %v62 = vlaneseq
  %v63 = vshrl.u32 %v62, 7
  %v64 = vsub.s32 0, %v63
  %v65 = vrot.slane %v60, %v64
  %v67 = vadd.f32 %v58, %v65
  %v68 = vadd.f32 %v59, %v65
  %v69 = vpack.c.bf16 %v68, %v67
  %v70 = vld [vmem:[%s3] sm:$0xf]
  %v71 = vld [vmem:[%s3 + $0x4] sm:$0xf]
  %v72 = vld [vmem:[%s3 + $0x8] sm:$0xf]
  %v73 = vld [vmem:[%s3 + $0xc] sm:$0xf]
  %v74 = vld [vmem:[%s4] sm:$0x1]
  %v76 = vlaneseq
  %v77 = vshrl.u32 %v76, 7
  %v78 = vsub.s32 0, %v77
  %v79 = vrot.slane %v74, %v78
  %v85 = vunpack.c.l.b16 %v70
  %v86 = vunpack.c.l.b16 %v71
  %v87 = vunpack.c.l.b16 %v72
  %v88 = vunpack.c.l.b16 %v73
  %v89 = vpack.c.b16 %v86, %v85
  %v90 = vpack.c.b16 %v88, %v87
  %v94 = vsel %vm23, %v69, 0
  %96 = vmatprep.subr.bf16.mxu0 0
  %97 = vmatpush1.bf16.msra.mxu0 %v89
  %98 = vmatprep.subr.bf16.mxu0 0
  %99 = vmatpush1.bf16.msra.mxu0 %v90
  %100 = vmatprep.subr.bf16.mxu0 0
  %101 = vmatpush1.bf16.msra.mxu0 0
  %102 = vmatprep.subr.bf16.mxu0 0
  %103 = vmatpush1.bf16.msra.mxu0 0
  %104 = vmatprep.subr.bf16.mxu0 0
  %105 = vmatpush1.bf16.msra.mxu0 0
  %106 = vmatprep.subr.bf16.mxu0 0
  %107 = vmatpush1.bf16.msra.mxu0 0
  %108 = vmatprep.subr.bf16.mxu0 0
  %109 = vmatpush1.bf16.msra.mxu0 0
  %110 = vmatprep.subr.bf16.mxu0 0
  %111 = vmatpush1.bf16.msra.mxu0 0
  %112 = vmatprep.subr.bf16.mxu0 0
  %113 = vmatpush1.bf16.msra.mxu0 0
  %114 = vmatprep.subr.bf16.mxu0 0
  %115 = vmatpush1.bf16.msra.mxu0 0
  %116 = vmatprep.subr.bf16.mxu0 0
  %117 = vmatpush1.bf16.msra.mxu0 0
  %118 = vmatprep.subr.bf16.mxu0 0
  %119 = vmatpush1.bf16.msra.mxu0 0
  %120 = vmatprep.subr.bf16.mxu0 0
  %121 = vmatpush1.bf16.msra.mxu0 0
  %122 = vmatprep.subr.bf16.mxu0 0
  %123 = vmatpush1.bf16.msra.mxu0 0
  %124 = vmatprep.subr.bf16.mxu0 0
  %125 = vmatpush1.bf16.msra.mxu0 0
  %126 = vmatprep.subr.bf16.mxu0 0
  %127 = vmatpush1.bf16.msra.mxu0 0
  %128 = vmatprep.mubr.bf16.mxu0 0
  %129 = vmatmul.mubr.bf16.gmra.mrb[0].mxu0 %v94
  %v130 = vpop.f32.mrb[0].mxu0
  %v131 = vadd.f32 %v79, %v130
  %v132 = vpop.f32.mrb[0].mxu0
  %v133 = vpop.f32.mrb[0].mxu0
  %v134 = vadd.f32 %v79, %v133
  %v135 = vpop.f32.mrb[0].mxu0
  %136 = vdwg.mxu0
  %v137 = vpack.c.bf16 %v134, %v131
  %v139 = vunpack.c.l.b16 %v137
  %v140 = vunpack.c.h.b16 %v137
  %v141 = vpack.c.b16 %v139, %v139
  %v142 = vpack.c.b16 %v140, %v140
  %vm145 = vcmask 257024
  %146 = vst.msk [vmem:[%s5] sm:$0xf] %vm145, %v141
  %147 = vst.msk [vmem:[%s5 + $0x4] sm:$0xf] %vm145, %v142
  // Predicated region
  $region22: #{decoder_forward.15} parent=0 // pred_check
    _
  $region23: #{decoder_forward.15} parent=0 // pred_check_branch
    %149 = sbr.rel (0) target = $region25
  $region24: #{decoder_forward.15} parent=0 // pred_region
    _
  $region25: #{decoder_forward.15} parent=0 // pred_fallthru
    _
  // Predicated region
  $region26: #{decoder_forward.15} parent=0 // pred_check
    _
  $region27: #{decoder_forward.15} parent=0 // pred_check_branch
    %151 = sbr.rel (0) target = $region29
  $region28: #{decoder_forward.15} parent=0 // pred_region
    _
  $region29: #{decoder_forward.15} parent=0 // pred_fallthru
    _

// kernel: decoder_forward.18
$region0: #{decoder_forward.18}
  #allocation0 [shape = 'u32[]', space=smem, size = 0x4, offset = 0x4, fixed_abs, tag = 'smem constant byte address 0x4 - core index']
  #allocation1 [shape = 'u32[144,128]{1,0:T(1,128)}', space=vmem, size = 0x12000, scoped, tag = 'internal scratch']
  #allocation2 [shape = 'bf16[16,32]{1,0:T(16,128)(2,1)}', space=vmem, size = 0x1000, scoped, tag = 'scratch operand']
  #allocation3 [shape = 'f32[16,32]{1,0:T(8,128)}', space=vmem, size = 0x2000, scoped, tag = 'scratch operand']
  %s0 = inlined_call_operand.vmem [shape: f32[16,32], index: 0, kind: input, shape index: {}]
  %s1 = inlined_call_operand.vmem [shape: f32[1,32], index: 1, kind: input, shape index: {}]
  %s2 = inlined_call_operand.vmem [shape: f32[1,32], index: 2, kind: input, shape index: {}]
  %s3 = inlined_call_operand.vmem [shape: bf16[32,64], index: 3, kind: input, shape index: {}]
  %s4 = inlined_call_operand.vmem [shape: f32[1,64], index: 4, kind: input, shape index: {}]
  %s5 = inlined_call_operand.vmem [shape: bf16[64,32], index: 5, kind: input, shape index: {}]
  %s6 = inlined_call_operand.vmem [shape: f32[1,32], index: 6, kind: input, shape index: {}]
  %s7 = inlined_call_operand.vmem [shape: f32[16,32], index: 7, kind: output, shape index: {}]
  %s8 = sld [smem:[#allocation0]]
  $region46: #{decoder_forward.18} parent=0
    _
  %s10 = ssub.s32 1, %s8
  %s11 = scalar_select 0, %s10, %s8
  // Predicated region
  $region2: #{decoder_forward.18} parent=0 // pred_check
    _
  $region3: #{decoder_forward.18} parent=0 // pred_check_branch
    %13 = sbr.rel (0) target = $region5
  $region4: #{decoder_forward.18} parent=0 // pred_region
    _
  $region5: #{decoder_forward.18} parent=0 // pred_fallthru
    _
  // Predicated region
  $region6: #{decoder_forward.18} parent=0 // pred_check
    _
  $region7: #{decoder_forward.18} parent=0 // pred_check_branch
    %15 = sbr.rel (0) target = $region9
  $region8: #{decoder_forward.18} parent=0 // pred_region
    _
  $region9: #{decoder_forward.18} parent=0 // pred_fallthru
    _
  // Predicated region
  $region10: #{decoder_forward.18} parent=0 // pred_check
    _
  $region11: #{decoder_forward.18} parent=0 // pred_check_branch
    %17 = sbr.rel (0) target = $region13
  $region12: #{decoder_forward.18} parent=0 // pred_region
    _
  $region13: #{decoder_forward.18} parent=0 // pred_fallthru
    _
  // Predicated region
  $region14: #{decoder_forward.18} parent=0 // pred_check
    _
  $region15: #{decoder_forward.18} parent=0 // pred_check_branch
    %19 = sbr.rel (0) target = $region17
  $region16: #{decoder_forward.18} parent=0 // pred_region
    _
  $region17: #{decoder_forward.18} parent=0 // pred_fallthru
    _
  // Predicated region
  $region18: #{decoder_forward.18} parent=0 // pred_check
    _
  $region19: #{decoder_forward.18} parent=0 // pred_check_branch
    %21 = sbr.rel (0) target = $region21
  $region20: #{decoder_forward.18} parent=0 // pred_region
    _
  $region21: #{decoder_forward.18} parent=0 // pred_fallthru
    _
  // Predicated region
  $region22: #{decoder_forward.18} parent=0 // pred_check
    _
  $region23: #{decoder_forward.18} parent=0 // pred_check_branch
    %23 = sbr.rel (0) target = $region25
  $region24: #{decoder_forward.18} parent=0 // pred_region
    _
  $region25: #{decoder_forward.18} parent=0 // pred_fallthru
    _
  // Predicated region
  $region26: #{decoder_forward.18} parent=0 // pred_check
    _
  $region27: #{decoder_forward.18} parent=0 // pred_check_branch
    %25 = sbr.rel (0) target = $region29
  $region28: #{decoder_forward.18} parent=0 // pred_region
    _
  $region29: #{decoder_forward.18} parent=0 // pred_fallthru
    _
  %p27 = scmp.eq.s32.totalorder 0, 0
  // Predicated region
  $region30: #{decoder_forward.18} parent=0 // pred_check
    %p28 = pneg %p27
  $region31: #{decoder_forward.18} parent=0 // pred_check_branch
    %30 = sbr.rel (%p28) target = $region33
  $region32: #{decoder_forward.18} parent=0 // pred_region
    %v31 = vld [vmem:[%s0] sm:$0xff]
    %v32 = vld [vmem:[%s0 + $0x8] sm:$0xff]
    %vm33 = vcmask 261120
    %v34 = vsel %vm33, %v31, 0.0
    %35 = vadd.xlane.f32.xlu0 %v34
    %v36 = vpop.xlane.xlu0 %35
    %v37 = vsel %vm33, %v32, 0.0
    %38 = vadd.xlane.f32.xlu0 %v37
    %v39 = vpop.xlane.xlu0 %38
    %v40 = vrcp.pop 32.0
    %v41 = vmul.f32 %v36, %v40
    %v42 = vmul.f32 %v39, %v40
    %v43 = vsub.f32 %v31, %v41
    %v44 = vsub.f32 %v32, %v42
    %v45 = vmul.f32 %v43, %v43
    %v46 = vmul.f32 %v44, %v44
    %v47 = vsel %vm33, %v45, 0.0
    %48 = vadd.xlane.f32.xlu0 %v47
    %v49 = vpop.xlane.xlu0 %48
    %v50 = vsel %vm33, %v46, 0.0
    %51 = vadd.xlane.f32.xlu0 %v50
    %v52 = vpop.xlane.xlu0 %51
    %v53 = vmul.f32 %v49, %v40
    %v54 = vmul.f32 %v52, %v40
    %v55 = vadd.f32 %v53, 1e-05
    %v56 = vadd.f32 %v54, 1e-05
    %v57 = vrsqrt.pop %v55
    %v58 = vrsqrt.pop %v56
    %v59 = vmul.f32 %v43, %v57
    %v60 = vmul.f32 %v44, %v58
    %v61 = vld [vmem:[%s1] sm:$0x1]
    %v63 = vlaneseq
    %v64 = vshrl.u32 %v63, 7
    %v65 = vsub.s32 0, %v64
    %v66 = vrot.slane %v61, %v65
    %v68 = vmul.f32 %v59, %v66
    %v69 = vmul.f32 %v60, %v66
    %v70 = vld [vmem:[%s2] sm:$0x1]
    %v72 = vlaneseq
    %v73 = vshrl.u32 %v72, 7
    %v74 = vsub.s32 0, %v73
    %v75 = vrot.slane %v70, %v74
    %v77 = vadd.f32 %v68, %v75
    %v78 = vadd.f32 %v69, %v75
    %v79 = vpack.c.bf16 %v78, %v77
    %80 = vst.msk [vmem:[#allocation2] sm:$0xff] %vm33, %v79
    %81 = vst.msk [vmem:[#allocation3] sm:$0xff] %vm33, 0.0
    %82 = vst.msk [vmem:[#allocation3 + $0x8] sm:$0xff] %vm33, 0.0
  $region33: #{decoder_forward.18} parent=0 // pred_fallthru
    _
  %v83 = vld [vmem:[#allocation2] sm:$0xff]
  %v84 = vld [vmem:[%s3] sm:$0xf]
  %v85 = vld [vmem:[%s3 + $0x4] sm:$0xf]
  %v86 = vld [vmem:[%s3 + $0x8] sm:$0xf]
  %v87 = vld [vmem:[%s3 + $0xc] sm:$0xf]
  %v88 = vld [vmem:[%s4] sm:$0x1]
  %v90 = vlaneseq
  %v91 = vshrl.u32 %v90, 7
  %v92 = vsub.s32 0, %v91
  %v93 = vrot.slane %v88, %v92
  %v99 = vunpack.c.l.b16 %v84
  %v100 = vunpack.c.l.b16 %v85
  %v101 = vunpack.c.l.b16 %v86
  %v102 = vunpack.c.l.b16 %v87
  %v103 = vpack.c.b16 %v100, %v99
  %v104 = vpack.c.b16 %v102, %v101
  %vm107 = vcmask 261120
  %v109 = vsel %vm107, %v83, 0
  %111 = vmatprep.subr.bf16.mxu0 0
  %112 = vmatpush1.bf16.msra.mxu0 %v103
  %113 = vmatprep.subr.bf16.mxu0 0
  %114 = vmatpush1.bf16.msra.mxu0 %v104
  %115 = vmatprep.subr.bf16.mxu0 0
  %116 = vmatpush1.bf16.msra.mxu0 0
  %117 = vmatprep.subr.bf16.mxu0 0
  %118 = vmatpush1.bf16.msra.mxu0 0
  %119 = vmatprep.subr.bf16.mxu0 0
  %120 = vmatpush1.bf16.msra.mxu0 0
  %121 = vmatprep.subr.bf16.mxu0 0
  %122 = vmatpush1.bf16.msra.mxu0 0
  %123 = vmatprep.subr.bf16.mxu0 0
  %124 = vmatpush1.bf16.msra.mxu0 0
  %125 = vmatprep.subr.bf16.mxu0 0
  %126 = vmatpush1.bf16.msra.mxu0 0
  %127 = vmatprep.subr.bf16.mxu0 0
  %128 = vmatpush1.bf16.msra.mxu0 0
  %129 = vmatprep.subr.bf16.mxu0 0
  %130 = vmatpush1.bf16.msra.mxu0 0
  %131 = vmatprep.subr.bf16.mxu0 0
  %132 = vmatpush1.bf16.msra.mxu0 0
  %133 = vmatprep.subr.bf16.mxu0 0
  %134 = vmatpush1.bf16.msra.mxu0 0
  %135 = vmatprep.subr.bf16.mxu0 0
  %136 = vmatpush1.bf16.msra.mxu0 0
  %137 = vmatprep.subr.bf16.mxu0 0
  %138 = vmatpush1.bf16.msra.mxu0 0
  %139 = vmatprep.subr.bf16.mxu0 0
  %140 = vmatpush1.bf16.msra.mxu0 0
  %141 = vmatprep.subr.bf16.mxu0 0
  %142 = vmatpush1.bf16.msra.mxu0 0
  %143 = vmatprep.mubr.bf16.mxu0 0
  %144 = vmatmul.mubr.bf16.gmra.mrb[0].mxu0 %v109
  %v145 = vpop.f32.mrb[0].mxu0
  %v146 = vadd.f32 %v93, %v145
  %v147 = vpop.f32.mrb[0].mxu0
  %v148 = vpop.f32.mrb[0].mxu0
  %v149 = vadd.f32 %v93, %v148
  %v150 = vpop.f32.mrb[0].mxu0
  %151 = vdwg.mxu0
  %v152 = vmax.f32 %v146, 0.0
  %v153 = vmax.f32 %v149, 0.0
  %v154 = vld [vmem:[#allocation3] sm:$0xff]
  %v155 = vld [vmem:[#allocation3 + $0x8] sm:$0xff]
  %v156 = vpack.c.bf16 %v153, %v152
  %v157 = vld [vmem:[%s5] sm:$0xf]
  %v158 = vld [vmem:[%s5 + $0x4] sm:$0xf]
  %v159 = vld [vmem:[%s5 + $0x8] sm:$0xf]
  %v160 = vld [vmem:[%s5 + $0xc] sm:$0xf]
  %v161 = vld [vmem:[%s5 + $0x10] sm:$0xf]
  %v162 = vld [vmem:[%s5 + $0x14] sm:$0xf]
  %v163 = vld [vmem:[%s5 + $0x18] sm:$0xf]
  %v164 = vld [vmem:[%s5 + $0x1c] sm:$0xf]
  %v173 = vunpack.c.l.b16 %v157
  %v174 = vunpack.c.l.b16 %v158
  %v175 = vunpack.c.l.b16 %v159
  %v176 = vunpack.c.l.b16 %v160
  %v177 = vunpack.c.l.b16 %v161
  %v178 = vunpack.c.l.b16 %v162
  %v179 = vunpack.c.l.b16 %v163
  %v180 = vunpack.c.l.b16 %v164
  %v181 = vpack.c.b16 %v174, %v173
  %v182 = vpack.c.b16 %v176, %v175
  %v183 = vpack.c.b16 %v178, %v177
  %v184 = vpack.c.b16 %v180, %v179
  %vm189 = vcmask 523264
  %v191 = vsel %vm189, %v156, 0
  %193 = vmatprep.subr.bf16.mxu0 0
  %194 = vmatpush1.bf16.msra.mxu0 %v181
  %195 = vmatprep.subr.bf16.mxu0 0
  %196 = vmatpush1.bf16.msra.mxu0 %v182
  %197 = vmatprep.subr.bf16.mxu0 0
  %198 = vmatpush1.bf16.msra.mxu0 %v183
  %199 = vmatprep.subr.bf16.mxu0 0
  %200 = vmatpush1.bf16.msra.mxu0 %v184
  %201 = vmatprep.subr.bf16.mxu0 0
  %202 = vmatpush1.bf16.msra.mxu0 0
  %203 = vmatprep.subr.bf16.mxu0 0
  %204 = vmatpush1.bf16.msra.mxu0 0
  %205 = vmatprep.subr.bf16.mxu0 0
  %206 = vmatpush1.bf16.msra.mxu0 0
  %207 = vmatprep.subr.bf16.mxu0 0
  %208 = vmatpush1.bf16.msra.mxu0 0
  %209 = vmatprep.subr.bf16.mxu0 0
  %210 = vmatpush1.bf16.msra.mxu0 0
  %211 = vmatprep.subr.bf16.mxu0 0
  %212 = vmatpush1.bf16.msra.mxu0 0
  %213 = vmatprep.subr.bf16.mxu0 0
  %214 = vmatpush1.bf16.msra.mxu0 0
  %215 = vmatprep.subr.bf16.mxu0 0
  %216 = vmatpush1.bf16.msra.mxu0 0
  %217 = vmatprep.subr.bf16.mxu0 0
  %218 = vmatpush1.bf16.msra.mxu0 0
  %219 = vmatprep.subr.bf16.mxu0 0
  %220 = vmatpush1.bf16.msra.mxu0 0
  %221 = vmatprep.subr.bf16.mxu0 0
  %222 = vmatpush1.bf16.msra.mxu0 0
  %223 = vmatprep.subr.bf16.mxu0 0
  %224 = vmatpush1.bf16.msra.mxu0 0
  %225 = vmatprep.mubr.bf16.mxu0 0
  %226 = vmatmul.mubr.bf16.gmra.mrb[0].mxu0 %v191
  %v227 = vpop.f32.mrb[0].mxu0
  %v228 = vadd.f32 0.0, %v227
  %v229 = vpop.f32.mrb[0].mxu0
  %v230 = vpop.f32.mrb[0].mxu0
  %v231 = vadd.f32 0.0, %v230
  %v232 = vpop.f32.mrb[0].mxu0
  %233 = vdwg.mxu0
  %v234 = vadd.f32 %v154, %v228
  %v235 = vadd.f32 %v155, %v231
  %236 = vst.msk [vmem:[#allocation3] sm:$0xff] %vm107, %v234
  %237 = vst.msk [vmem:[#allocation3 + $0x8] sm:$0xff] %vm107, %v235
  // Predicated region
  $region34: #{decoder_forward.18} parent=0 // pred_check
    %p238 = pneg %p27
  $region35: #{decoder_forward.18} parent=0 // pred_check_branch
    %240 = sbr.rel (%p238) target = $region37
  $region36: #{decoder_forward.18} parent=0 // pred_region
    %v241 = vld [vmem:[#allocation3] sm:$0xff]
    %v242 = vld [vmem:[#allocation3 + $0x8] sm:$0xff]
    %v243 = vld [vmem:[%s6] sm:$0x1]
    %v245 = vlaneseq
    %v246 = vshrl.u32 %v245, 7
    %v247 = vsub.s32 0, %v246
    %v248 = vrot.slane %v243, %v247
    %v250 = vadd.f32 %v241, %v248
    %v251 = vadd.f32 %v242, %v248
    %v252 = vld [vmem:[%s0] sm:$0xff]
    %v253 = vld [vmem:[%s0 + $0x8] sm:$0xff]
    %v254 = vadd.f32 %v250, %v252
    %v255 = vadd.f32 %v251, %v253
    %256 = vst.msk [vmem:[%s7] sm:$0xff] %vm107, %v254
    %257 = vst.msk [vmem:[%s7 + $0x8] sm:$0xff] %vm107, %v255
  $region37: #{decoder_forward.18} parent=0 // pred_fallthru
    _
  // Predicated region
  $region38: #{decoder_forward.18} parent=0 // pred_check
    _
  $region39: #{decoder_forward.18} parent=0 // pred_check_branch
    %259 = sbr.rel (0) target = $region41
  $region40: #{decoder_forward.18} parent=0 // pred_region
    _
  $region41: #{decoder_forward.18} parent=0 // pred_fallthru
    _
  // Predicated region
  $region42: #{decoder_forward.18} parent=0 // pred_check
    _
  $region43: #{decoder_forward.18} parent=0 // pred_check_branch
    %261 = sbr.rel (0) target = $region45
  $region44: #{decoder_forward.18} parent=0 // pred_region
    _
  $region45: #{decoder_forward.18} parent=0 // pred_fallthru
    _

</llo_original>
